<compile_context>
chip_gen: v7x
topology: tpu7x:2x2x1
jax: 0.10.0
libtpu: 0.0.40
codegen_flags: <defaults>
</compile_context>

<pallas_src>
import jax
import jax.numpy as jnp
from jax.experimental import pallas as pl
from jax.experimental.pallas import tpu as pltpu

EPS = 1e-3          # BatchNorm2d(eps=0.001) in the reference module
H = W = 14
HW = H * W
CIN = 64
COUT = 384
CT = 128            # channel tile = lane width; 384 = 3 * 128
K = 5               # depthwise kernel size
PAD = 2


def fused_kernel(x_ref, w1_ref, g1_ref, b1_ref, w2_ref, g2_ref, b2_ref,
                 o_ref, xp, y_scr):
    """One 128-channel tile of the whole fused pipeline.

    x_ref : (HW, CIN)       input activations, channels-last
    w1_ref: (CIN, CT)       1x1 conv weights for this channel tile
    g1/b1 : (1, CT)         BN1 affine
    w2_ref: (K, K, CT)      depthwise 5x5 taps
    g2/b2 : (1, CT)         BN2 affine
    o_ref : (H, W, CT)      output block (channels-last)
    xp    : (H+4, W+4, CT)  zero-padded stage-1 result (VMEM scratch)
    y_scr : (HW, CT)        stage-1 post-BN/ReLU result (VMEM scratch)
    """
    C = o_ref.shape[-1]
    inv_hw = 1.0 / HW

    # ---------------- stage 1: 1x1 conv as a single MXU matmul ----------------
    y = jnp.dot(x_ref[...], w1_ref[...], preferred_element_type=jnp.float32)  # (HW, C)

    # BN1 (batch statistics, biased variance) folded into one per-channel FMA.
    s1 = jnp.sum(y, axis=0, keepdims=True)
    ss1 = jnp.sum(y * y, axis=0, keepdims=True)
    mean1 = s1 * inv_hw
    var1 = ss1 * inv_hw - mean1 * mean1
    scale1 = g1_ref[...] * jax.lax.rsqrt(var1 + EPS)        # (1, C)
    shift1 = b1_ref[...] - mean1 * scale1                   # (1, C)
    y_scr[...] = jnp.maximum(y * scale1 + shift1, 0.0)      # BN + ReLU

    # Scatter stage-1 rows into the interior of the zero-padded scratch.
    # (The zero border implements Conv2d(padding=2) applied to the ReLU output.)
    xp[...] = jnp.zeros(xp.shape, xp.dtype)
    for h in range(H):
        xp[PAD + h, PAD:PAD + W, :] = y_scr[h * W:(h + 1) * W, :]

    # ---------------- stage 2: depthwise 5x5, row-tiled ------------------------
    # Hoist the 25 per-channel taps once, each as a (1, C) value.
    w_taps = [[w2_ref[kh, kw:kw + 1, :] for kw in range(K)] for kh in range(K)]

    s2 = jnp.zeros((1, C), jnp.float32)
    ss2 = jnp.zeros((1, C), jnp.float32)
    for h in range(H):
        acc = jnp.zeros((W, C), jnp.float32)   # per-row accumulator stays in vregs
        for kh in range(K):
            for kw in range(K):
                acc = acc + xp[h + kh, kw:kw + W, :] * w_taps[kh][kw]
        o_ref[h] = acc                          # raw conv2 row; BN2 applied below
        s2 = s2 + jnp.sum(acc, axis=0, keepdims=True)
        ss2 = ss2 + jnp.sum(acc * acc, axis=0, keepdims=True)

    # BN2 (batch stats) + ReLU, applied in place on the output block.
    mean2 = s2 * inv_hw
    var2 = ss2 * inv_hw - mean2 * mean2
    scale2 = g2_ref[...] * jax.lax.rsqrt(var2 + EPS)        # (1, C)
    shift2 = b2_ref[...] - mean2 * scale2
    o_ref[...] = jnp.maximum(
        o_ref[...] * scale2.reshape(1, 1, C) + shift2.reshape(1, 1, C), 0.0)


def module_forward(x_nchw, params):
    n, cin, h, w = x_nchw.shape
    assert (n, cin, h, w) == (1, CIN, H, W), x_nchw.shape
    cout = params["w1"].shape[1]

    # NCHW -> (H*W, Cin): one tiny XLA transpose (~50 KB), kept outside for robust lowering.
    x_hw_c = jnp.transpose(x_nchw.reshape(cin, h * w))      # (HW, CIN)

    out_hwc = pl.pallas_call(
        fused_kernel,
        out_shape=jax.ShapeDtypeStruct((H, W, cout), jnp.float32),
        grid=(cout // CT,),
        in_specs=[
            pl.BlockSpec((HW, CIN), lambda c: (0, 0)),
            pl.BlockSpec((CIN, CT), lambda c: (0, c)),
            pl.BlockSpec((1, CT), lambda c: (0, c)),
            pl.BlockSpec((1, CT), lambda c: (0, c)),
            pl.BlockSpec((K, K, CT), lambda c: (0, 0, c)),
            pl.BlockSpec((1, CT), lambda c: (0, c)),
            pl.BlockSpec((1, CT), lambda c: (0, c)),
        ],
        out_specs=pl.BlockSpec((H, W, CT), lambda c: (0, 0, c)),
        scratch_shapes=[
            pltpu.VMEM((H + 2 * PAD, W + 2 * PAD, CT), jnp.float32),
            pltpu.VMEM((HW, CT), jnp.float32),
        ],
        compiler_params=pltpu.CompilerParams(
            dimension_semantics=("parallel",)),
    )(x_hw_c, params["w1"], params["gamma1"], params["beta1"],
      params["w2"], params["gamma2"], params["beta2"])

    # (H, W, C) -> NCHW
    return jnp.transpose(out_hwc, (2, 0, 1))[None]


def init_params(key, cin=CIN, cout=COUT):
    k1, k2, k3, k4, k5, k6 = jax.random.split(key, 6)
    # Conv2d(64, 384, 1x1): PyTorch weight (384, 64, 1, 1) -> (Cin, Cout)
    w1 = jax.random.normal(k1, (cin, cout), jnp.float32) * 0.1
    # Conv2d(384, 384, 5x5, groups=384): PyTorch weight (384, 1, 5, 5) -> (5, 5, C)
    w2 = jax.random.normal(k2, (K, K, cout), jnp.float32) * 0.1
    gamma1 = 1.0 + 0.1 * jax.random.normal(k3, (1, cout), jnp.float32)
    beta1 = 0.1 * jax.random.normal(k4, (1, cout), jnp.float32)
    gamma2 = 1.0 + 0.1 * jax.random.normal(k5, (1, cout), jnp.float32)
    beta2 = 0.1 * jax.random.normal(k6, (1, cout), jnp.float32)
    return dict(w1=w1, w2=w2, gamma1=gamma1, beta1=beta1, gamma2=gamma2, beta2=beta2)


def reference_forward(x_nchw, params):
    """Pure-JAX reference with identical (training-mode BN) semantics."""
    x = x_nchw[0]                                            # (Cin, H, W)
    y = jnp.einsum('chw,cf->fhw', x, params["w1"],
                   precision=jax.lax.Precision.HIGHEST)      # (Cout, H, W)
    m = y.mean(axis=(1, 2), keepdims=True)
    v = y.var(axis=(1, 2), keepdims=True)
    g1 = params["gamma1"][0][:, None, None]
    b1 = params["beta1"][0][:, None, None]
    y = jnp.maximum((y - m) * jax.lax.rsqrt(v + EPS) * g1 + b1, 0.0)

    yp = jnp.pad(y, ((0, 0), (PAD, PAD), (PAD, PAD)))
    acc = jnp.zeros_like(y)
    for kh in range(K):
        for kw in range(K):
            tap = params["w2"][kh, kw, :][:, None, None]
            acc = acc + yp[:, kh:kh + H, kw:kw + W] * tap
    m2 = acc.mean(axis=(1, 2), keepdims=True)
    v2 = acc.var(axis=(1, 2), keepdims=True)
    g2 = params["gamma2"][0][:, None, None]
    b2 = params["beta2"][0][:, None, None]
    z = jnp.maximum((acc - m2) * jax.lax.rsqrt(v2 + EPS) * g2 + b2, 0.0)
    return z[None]


if __name__ == "__main__":
    key = jax.random.PRNGKey(0)
    kx, kp = jax.random.split(key)
    # Same shape as the reference module's input: [1, 64, 14, 14] (NCHW)
    x = jax.random.normal(kx, (1, CIN, H, W), jnp.float32)
    params = init_params(kp)

    out = jax.jit(module_forward)(x, params)
    out = jax.block_until_ready(out)

    assert out.shape == (1, COUT, H, W), out.shape
    assert bool(jnp.all(out >= 0.0))                         # ReLU output

    ref = reference_forward(x, params)
    max_err = float(jnp.max(jnp.abs(out - ref)))
    assert max_err < 3e-2, f"max abs error {max_err}"

    print("KERNEL_OK")
</pallas_src>

<mosaic_0001>
module attributes {stable_mosaic.version = 11 : i64} {
  func.func @fused_kernel(%arg0: i32, %arg1: memref<196x64xf32, #tpu.memory_space<vmem>>, %arg2: memref<64x128xf32, #tpu.memory_space<vmem>>, %arg3: memref<1x128xf32, #tpu.memory_space<vmem>>, %arg4: memref<1x128xf32, #tpu.memory_space<vmem>>, %arg5: memref<5x5x128xf32, #tpu.memory_space<vmem>>, %arg6: memref<1x128xf32, #tpu.memory_space<vmem>>, %arg7: memref<1x128xf32, #tpu.memory_space<vmem>>, %arg8: memref<14x14x128xf32, #tpu.memory_space<vmem>>, %arg9: memref<18x18x128xf32, #tpu.memory_space<vmem>>, %arg10: memref<196x128xf32, #tpu.memory_space<vmem>>) attributes {dimension_semantics = [#tpu.dimension_semantics<parallel>], iteration_bounds = array<i64: 3>, scalar_prefetch = 0 : i64, scratch_operands = 2 : i64, tpu.core_type = #tpu.core_type<tc>, window_params = [{pipeline_mode = #tpu.pipeline_mode<synchronous>, transform_indices = @transform_0, window_bounds = array<i64: 196, 64>}, {transform_indices = @transform_1, window_bounds = array<i64: 64, 128>}, {transform_indices = @transform_2, window_bounds = array<i64: 1, 128>}, {transform_indices = @transform_3, window_bounds = array<i64: 1, 128>}, {transform_indices = @transform_4, window_bounds = array<i64: 5, 5, 128>}, {transform_indices = @transform_5, window_bounds = array<i64: 1, 128>}, {transform_indices = @transform_6, window_bounds = array<i64: 1, 128>}, {transform_indices = @transform_7, window_bounds = array<i64: 14, 14, 128>}]} {
    %c0 = arith.constant 0 : index
    %c0_0 = arith.constant 0 : index
    %0 = vector.load %arg1[%c0, %c0_0] : memref<196x64xf32, #tpu.memory_space<vmem>>, vector<196x64xf32>
    %c0_1 = arith.constant 0 : index
    %c0_2 = arith.constant 0 : index
    %1 = vector.load %arg2[%c0_1, %c0_2] : memref<64x128xf32, #tpu.memory_space<vmem>>, vector<64x128xf32>
    %cst = arith.constant dense<0.000000e+00> : vector<196x128xf32>
    %2 = tpu.matmul %0, %1, %cst {dimension_numbers = #tpu.dot_dimension_numbers<[1], [0], [0], [1], [0, 0, 1, 1], [], []>} : vector<196x64xf32>, vector<64x128xf32>, vector<196x128xf32> -> vector<196x128xf32>
    %cst_3 = arith.constant dense<0.000000e+00> : vector<128xf32>
    %3 = vector.multi_reduction <add>, %2, %cst_3 [0] : vector<196x128xf32> to vector<128xf32>
    %4 = vector.shape_cast %3 : vector<128xf32> to vector<1x128xf32>
    %5 = arith.mulf %2, %2 : vector<196x128xf32>
    %cst_4 = arith.constant dense<0.000000e+00> : vector<128xf32>
    %6 = vector.multi_reduction <add>, %5, %cst_4 [0] : vector<196x128xf32> to vector<128xf32>
    %7 = vector.shape_cast %6 : vector<128xf32> to vector<1x128xf32>
    %cst_5 = arith.constant 0.00510204071 : f32
    %8 = vector.broadcast %cst_5 : f32 to vector<1x128xf32>
    %9 = arith.mulf %4, %8 : vector<1x128xf32>
    %cst_6 = arith.constant 0.00510204071 : f32
    %10 = vector.broadcast %cst_6 : f32 to vector<1x128xf32>
    %11 = arith.mulf %7, %10 : vector<1x128xf32>
    %12 = arith.mulf %9, %9 : vector<1x128xf32>
    %13 = arith.subf %11, %12 : vector<1x128xf32>
    %c0_7 = arith.constant 0 : index
    %c0_8 = arith.constant 0 : index
    %14 = vector.load %arg3[%c0_7, %c0_8] : memref<1x128xf32, #tpu.memory_space<vmem>>, vector<1x128xf32>
    %cst_9 = arith.constant 1.000000e-03 : f32
    %15 = vector.broadcast %cst_9 : f32 to vector<1x128xf32>
    %16 = arith.addf %13, %15 : vector<1x128xf32>
    %17 = math.rsqrt %16 : vector<1x128xf32>
    %18 = arith.mulf %14, %17 : vector<1x128xf32>
    %c0_10 = arith.constant 0 : index
    %c0_11 = arith.constant 0 : index
    %19 = vector.load %arg4[%c0_10, %c0_11] : memref<1x128xf32, #tpu.memory_space<vmem>>, vector<1x128xf32>
    %20 = arith.mulf %9, %18 : vector<1x128xf32>
    %21 = arith.subf %19, %20 : vector<1x128xf32>
    %22 = vector.broadcast %18 : vector<1x128xf32> to vector<196x128xf32>
    %23 = arith.mulf %2, %22 : vector<196x128xf32>
    %24 = vector.broadcast %21 : vector<1x128xf32> to vector<196x128xf32>
    %25 = arith.addf %23, %24 : vector<196x128xf32>
    %cst_12 = arith.constant 0.000000e+00 : f32
    %26 = vector.broadcast %cst_12 : f32 to vector<196x128xf32>
    %27 = arith.maximumf %25, %26 : vector<196x128xf32>
    %c0_13 = arith.constant 0 : index
    %c0_14 = arith.constant 0 : index
    %28 = vector.load %arg10[%c0_13, %c0_14] : memref<196x128xf32, #tpu.memory_space<vmem>>, vector<196x128xf32>
    tpu.vector_store %arg10[%c0_13, %c0_14], %27 {strides = array<i32>} : memref<196x128xf32, #tpu.memory_space<vmem>>, vector<196x128xf32>,
    %cst_15 = arith.constant 0.000000e+00 : f32
    %29 = vector.broadcast %cst_15 : f32 to vector<18x18x128xf32>
    %c0_16 = arith.constant 0 : index
    %c0_17 = arith.constant 0 : index
    %c0_18 = arith.constant 0 : index
    %30 = vector.load %arg9[%c0_16, %c0_17, %c0_18] : memref<18x18x128xf32, #tpu.memory_space<vmem>>, vector<18x18x128xf32>
    tpu.vector_store %arg9[%c0_16, %c0_17, %c0_18], %29 {strides = array<i32>} : memref<18x18x128xf32, #tpu.memory_space<vmem>>, vector<18x18x128xf32>,
    %c0_19 = arith.constant 0 : index
    %c0_20 = arith.constant 0 : index
    %31 = vector.load %arg10[%c0_19, %c0_20] : memref<196x128xf32, #tpu.memory_space<vmem>>, vector<14x128xf32>
    %c2 = arith.constant 2 : index
    %c2_21 = arith.constant 2 : index
    %c0_22 = arith.constant 0 : index
    %32 = vector.load %arg9[%c2, %c2_21, %c0_22] : memref<18x18x128xf32, #tpu.memory_space<vmem>>, vector<1x14x128xf32>
    %33 = vector.shape_cast %32 : vector<1x14x128xf32> to vector<14x128xf32>
    %34 = vector.shape_cast %31 : vector<14x128xf32> to vector<1x14x128xf32>
    tpu.vector_store %arg9[%c2, %c2_21, %c0_22], %34 {strides = array<i32>} : memref<18x18x128xf32, #tpu.memory_space<vmem>>, vector<1x14x128xf32>,
    %c14 = arith.constant 14 : index
    %c0_23 = arith.constant 0 : index
    %35 = vector.load %arg10[%c14, %c0_23] : memref<196x128xf32, #tpu.memory_space<vmem>>, vector<14x128xf32>
    %c3 = arith.constant 3 : index
    %c2_24 = arith.constant 2 : index
    %c0_25 = arith.constant 0 : index
    %36 = vector.load %arg9[%c3, %c2_24, %c0_25] : memref<18x18x128xf32, #tpu.memory_space<vmem>>, vector<1x14x128xf32>
    %37 = vector.shape_cast %36 : vector<1x14x128xf32> to vector<14x128xf32>
    %38 = vector.shape_cast %35 : vector<14x128xf32> to vector<1x14x128xf32>
    tpu.vector_store %arg9[%c3, %c2_24, %c0_25], %38 {strides = array<i32>} : memref<18x18x128xf32, #tpu.memory_space<vmem>>, vector<1x14x128xf32>,
    %c28 = arith.constant 28 : index
    %c0_26 = arith.constant 0 : index
    %39 = vector.load %arg10[%c28, %c0_26] : memref<196x128xf32, #tpu.memory_space<vmem>>, vector<14x128xf32>
    %c4 = arith.constant 4 : index
    %c2_27 = arith.constant 2 : index
    %c0_28 = arith.constant 0 : index
    %40 = vector.load %arg9[%c4, %c2_27, %c0_28] : memref<18x18x128xf32, #tpu.memory_space<vmem>>, vector<1x14x128xf32>
    %41 = vector.shape_cast %40 : vector<1x14x128xf32> to vector<14x128xf32>
    %42 = vector.shape_cast %39 : vector<14x128xf32> to vector<1x14x128xf32>
    tpu.vector_store %arg9[%c4, %c2_27, %c0_28], %42 {strides = array<i32>} : memref<18x18x128xf32, #tpu.memory_space<vmem>>, vector<1x14x128xf32>,
    %c42 = arith.constant 42 : index
    %c0_29 = arith.constant 0 : index
    %43 = vector.load %arg10[%c42, %c0_29] : memref<196x128xf32, #tpu.memory_space<vmem>>, vector<14x128xf32>
    %c5 = arith.constant 5 : index
    %c2_30 = arith.constant 2 : index
    %c0_31 = arith.constant 0 : index
    %44 = vector.load %arg9[%c5, %c2_30, %c0_31] : memref<18x18x128xf32, #tpu.memory_space<vmem>>, vector<1x14x128xf32>
    %45 = vector.shape_cast %44 : vector<1x14x128xf32> to vector<14x128xf32>
    %46 = vector.shape_cast %43 : vector<14x128xf32> to vector<1x14x128xf32>
    tpu.vector_store %arg9[%c5, %c2_30, %c0_31], %46 {strides = array<i32>} : memref<18x18x128xf32, #tpu.memory_space<vmem>>, vector<1x14x128xf32>,
    %c56 = arith.constant 56 : index
    %c0_32 = arith.constant 0 : index
    %47 = vector.load %arg10[%c56, %c0_32] : memref<196x128xf32, #tpu.memory_space<vmem>>, vector<14x128xf32>
    %c6 = arith.constant 6 : index
    %c2_33 = arith.constant 2 : index
    %c0_34 = arith.constant 0 : index
    %48 = vector.load %arg9[%c6, %c2_33, %c0_34] : memref<18x18x128xf32, #tpu.memory_space<vmem>>, vector<1x14x128xf32>
    %49 = vector.shape_cast %48 : vector<1x14x128xf32> to vector<14x128xf32>
    %50 = vector.shape_cast %47 : vector<14x128xf32> to vector<1x14x128xf32>
    tpu.vector_store %arg9[%c6, %c2_33, %c0_34], %50 {strides = array<i32>} : memref<18x18x128xf32, #tpu.memory_space<vmem>>, vector<1x14x128xf32>,
    %c70 = arith.constant 70 : index
    %c0_35 = arith.constant 0 : index
    %51 = vector.load %arg10[%c70, %c0_35] : memref<196x128xf32, #tpu.memory_space<vmem>>, vector<14x128xf32>
    %c7 = arith.constant 7 : index
    %c2_36 = arith.constant 2 : index
    %c0_37 = arith.constant 0 : index
    %52 = vector.load %arg9[%c7, %c2_36, %c0_37] : memref<18x18x128xf32, #tpu.memory_space<vmem>>, vector<1x14x128xf32>
    %53 = vector.shape_cast %52 : vector<1x14x128xf32> to vector<14x128xf32>
    %54 = vector.shape_cast %51 : vector<14x128xf32> to vector<1x14x128xf32>
    tpu.vector_store %arg9[%c7, %c2_36, %c0_37], %54 {strides = array<i32>} : memref<18x18x128xf32, #tpu.memory_space<vmem>>, vector<1x14x128xf32>,
    %c84 = arith.constant 84 : index
    %c0_38 = arith.constant 0 : index
    %55 = vector.load %arg10[%c84, %c0_38] : memref<196x128xf32, #tpu.memory_space<vmem>>, vector<14x128xf32>
    %c8 = arith.constant 8 : index
    %c2_39 = arith.constant 2 : index
    %c0_40 = arith.constant 0 : index
    %56 = vector.load %arg9[%c8, %c2_39, %c0_40] : memref<18x18x128xf32, #tpu.memory_space<vmem>>, vector<1x14x128xf32>
    %57 = vector.shape_cast %56 : vector<1x14x128xf32> to vector<14x128xf32>
    %58 = vector.shape_cast %55 : vector<14x128xf32> to vector<1x14x128xf32>
    tpu.vector_store %arg9[%c8, %c2_39, %c0_40], %58 {strides = array<i32>} : memref<18x18x128xf32, #tpu.memory_space<vmem>>, vector<1x14x128xf32>,
    %c98 = arith.constant 98 : index
    %c0_41 = arith.constant 0 : index
    %59 = vector.load %arg10[%c98, %c0_41] : memref<196x128xf32, #tpu.memory_space<vmem>>, vector<14x128xf32>
    %c9 = arith.constant 9 : index
    %c2_42 = arith.constant 2 : index
    %c0_43 = arith.constant 0 : index
    %60 = vector.load %arg9[%c9, %c2_42, %c0_43] : memref<18x18x128xf32, #tpu.memory_space<vmem>>, vector<1x14x128xf32>
    %61 = vector.shape_cast %60 : vector<1x14x128xf32> to vector<14x128xf32>
    %62 = vector.shape_cast %59 : vector<14x128xf32> to vector<1x14x128xf32>
    tpu.vector_store %arg9[%c9, %c2_42, %c0_43], %62 {strides = array<i32>} : memref<18x18x128xf32, #tpu.memory_space<vmem>>, vector<1x14x128xf32>,
    %c112 = arith.constant 112 : index
    %c0_44 = arith.constant 0 : index
    %63 = vector.load %arg10[%c112, %c0_44] : memref<196x128xf32, #tpu.memory_space<vmem>>, vector<14x128xf32>
    %c10 = arith.constant 10 : index
    %c2_45 = arith.constant 2 : index
    %c0_46 = arith.constant 0 : index
    %64 = vector.load %arg9[%c10, %c2_45, %c0_46] : memref<18x18x128xf32, #tpu.memory_space<vmem>>, vector<1x14x128xf32>
    %65 = vector.shape_cast %64 : vector<1x14x128xf32> to vector<14x128xf32>
    %66 = vector.shape_cast %63 : vector<14x128xf32> to vector<1x14x128xf32>
    tpu.vector_store %arg9[%c10, %c2_45, %c0_46], %66 {strides = array<i32>} : memref<18x18x128xf32, #tpu.memory_space<vmem>>, vector<1x14x128xf32>,
    %c126 = arith.constant 126 : index
    %c0_47 = arith.constant 0 : index
    %67 = vector.load %arg10[%c126, %c0_47] : memref<196x128xf32, #tpu.memory_space<vmem>>, vector<14x128xf32>
    %c11 = arith.constant 11 : index
    %c2_48 = arith.constant 2 : index
    %c0_49 = arith.constant 0 : index
    %68 = vector.load %arg9[%c11, %c2_48, %c0_49] : memref<18x18x128xf32, #tpu.memory_space<vmem>>, vector<1x14x128xf32>
    %69 = vector.shape_cast %68 : vector<1x14x128xf32> to vector<14x128xf32>
    %70 = vector.shape_cast %67 : vector<14x128xf32> to vector<1x14x128xf32>
    tpu.vector_store %arg9[%c11, %c2_48, %c0_49], %70 {strides = array<i32>} : memref<18x18x128xf32, #tpu.memory_space<vmem>>, vector<1x14x128xf32>,
    %c140 = arith.constant 140 : index
    %c0_50 = arith.constant 0 : index
    %71 = vector.load %arg10[%c140, %c0_50] : memref<196x128xf32, #tpu.memory_space<vmem>>, vector<14x128xf32>
    %c12 = arith.constant 12 : index
    %c2_51 = arith.constant 2 : index
    %c0_52 = arith.constant 0 : index
    %72 = vector.load %arg9[%c12, %c2_51, %c0_52] : memref<18x18x128xf32, #tpu.memory_space<vmem>>, vector<1x14x128xf32>
    %73 = vector.shape_cast %72 : vector<1x14x128xf32> to vector<14x128xf32>
    %74 = vector.shape_cast %71 : vector<14x128xf32> to vector<1x14x128xf32>
    tpu.vector_store %arg9[%c12, %c2_51, %c0_52], %74 {strides = array<i32>} : memref<18x18x128xf32, #tpu.memory_space<vmem>>, vector<1x14x128xf32>,
    %c154 = arith.constant 154 : index
    %c0_53 = arith.constant 0 : index
    %75 = vector.load %arg10[%c154, %c0_53] : memref<196x128xf32, #tpu.memory_space<vmem>>, vector<14x128xf32>
    %c13 = arith.constant 13 : index
    %c2_54 = arith.constant 2 : index
    %c0_55 = arith.constant 0 : index
    %76 = vector.load %arg9[%c13, %c2_54, %c0_55] : memref<18x18x128xf32, #tpu.memory_space<vmem>>, vector<1x14x128xf32>
    %77 = vector.shape_cast %76 : vector<1x14x128xf32> to vector<14x128xf32>
    %78 = vector.shape_cast %75 : vector<14x128xf32> to vector<1x14x128xf32>
    tpu.vector_store %arg9[%c13, %c2_54, %c0_55], %78 {strides = array<i32>} : memref<18x18x128xf32, #tpu.memory_space<vmem>>, vector<1x14x128xf32>,
    %c168 = arith.constant 168 : index
    %c0_56 = arith.constant 0 : index
    %79 = vector.load %arg10[%c168, %c0_56] : memref<196x128xf32, #tpu.memory_space<vmem>>, vector<14x128xf32>
    %c14_57 = arith.constant 14 : index
    %c2_58 = arith.constant 2 : index
    %c0_59 = arith.constant 0 : index
    %80 = vector.load %arg9[%c14_57, %c2_58, %c0_59] : memref<18x18x128xf32, #tpu.memory_space<vmem>>, vector<1x14x128xf32>
    %81 = vector.shape_cast %80 : vector<1x14x128xf32> to vector<14x128xf32>
    %82 = vector.shape_cast %79 : vector<14x128xf32> to vector<1x14x128xf32>
    tpu.vector_store %arg9[%c14_57, %c2_58, %c0_59], %82 {strides = array<i32>} : memref<18x18x128xf32, #tpu.memory_space<vmem>>, vector<1x14x128xf32>,
    %c182 = arith.constant 182 : index
    %c0_60 = arith.constant 0 : index
    %83 = vector.load %arg10[%c182, %c0_60] : memref<196x128xf32, #tpu.memory_space<vmem>>, vector<14x128xf32>
    %c15 = arith.constant 15 : index
    %c2_61 = arith.constant 2 : index
    %c0_62 = arith.constant 0 : index
    %84 = vector.load %arg9[%c15, %c2_61, %c0_62] : memref<18x18x128xf32, #tpu.memory_space<vmem>>, vector<1x14x128xf32>
    %85 = vector.shape_cast %84 : vector<1x14x128xf32> to vector<14x128xf32>
    %86 = vector.shape_cast %83 : vector<14x128xf32> to vector<1x14x128xf32>
    tpu.vector_store %arg9[%c15, %c2_61, %c0_62], %86 {strides = array<i32>} : memref<18x18x128xf32, #tpu.memory_space<vmem>>, vector<1x14x128xf32>,
    %c0_63 = arith.constant 0 : index
    %c0_64 = arith.constant 0 : index
    %c0_65 = arith.constant 0 : index
    %87 = vector.load %arg5[%c0_63, %c0_64, %c0_65] : memref<5x5x128xf32, #tpu.memory_space<vmem>>, vector<1x1x128xf32>
    %88 = vector.shape_cast %87 : vector<1x1x128xf32> to vector<1x128xf32>
    %c0_66 = arith.constant 0 : index
    %c1 = arith.constant 1 : index
    %c0_67 = arith.constant 0 : index
    %89 = vector.load %arg5[%c0_66, %c1, %c0_67] : memref<5x5x128xf32, #tpu.memory_space<vmem>>, vector<1x1x128xf32>
    %90 = vector.shape_cast %89 : vector<1x1x128xf32> to vector<1x128xf32>
    %c0_68 = arith.constant 0 : index
    %c2_69 = arith.constant 2 : index
    %c0_70 = arith.constant 0 : index
    %91 = vector.load %arg5[%c0_68, %c2_69, %c0_70] : memref<5x5x128xf32, #tpu.memory_space<vmem>>, vector<1x1x128xf32>
    %92 = vector.shape_cast %91 : vector<1x1x128xf32> to vector<1x128xf32>
    %c0_71 = arith.constant 0 : index
    %c3_72 = arith.constant 3 : index
    %c0_73 = arith.constant 0 : index
    %93 = vector.load %arg5[%c0_71, %c3_72, %c0_73] : memref<5x5x128xf32, #tpu.memory_space<vmem>>, vector<1x1x128xf32>
    %94 = vector.shape_cast %93 : vector<1x1x128xf32> to vector<1x128xf32>
    %c0_74 = arith.constant 0 : index
    %c4_75 = arith.constant 4 : index
    %c0_76 = arith.constant 0 : index
    %95 = vector.load %arg5[%c0_74, %c4_75, %c0_76] : memref<5x5x128xf32, #tpu.memory_space<vmem>>, vector<1x1x128xf32>
    %96 = vector.shape_cast %95 : vector<1x1x128xf32> to vector<1x128xf32>
    %c1_77 = arith.constant 1 : index
    %c0_78 = arith.constant 0 : index
    %c0_79 = arith.constant 0 : index
    %97 = vector.load %arg5[%c1_77, %c0_78, %c0_79] : memref<5x5x128xf32, #tpu.memory_space<vmem>>, vector<1x1x128xf32>
    %98 = vector.shape_cast %97 : vector<1x1x128xf32> to vector<1x128xf32>
    %c1_80 = arith.constant 1 : index
    %c1_81 = arith.constant 1 : index
    %c0_82 = arith.constant 0 : index
    %99 = vector.load %arg5[%c1_80, %c1_81, %c0_82] : memref<5x5x128xf32, #tpu.memory_space<vmem>>, vector<1x1x128xf32>
    %100 = vector.shape_cast %99 : vector<1x1x128xf32> to vector<1x128xf32>
    %c1_83 = arith.constant 1 : index
    %c2_84 = arith.constant 2 : index
    %c0_85 = arith.constant 0 : index
    %101 = vector.load %arg5[%c1_83, %c2_84, %c0_85] : memref<5x5x128xf32, #tpu.memory_space<vmem>>, vector<1x1x128xf32>
    %102 = vector.shape_cast %101 : vector<1x1x128xf32> to vector<1x128xf32>
    %c1_86 = arith.constant 1 : index
    %c3_87 = arith.constant 3 : index
    %c0_88 = arith.constant 0 : index
    %103 = vector.load %arg5[%c1_86, %c3_87, %c0_88] : memref<5x5x128xf32, #tpu.memory_space<vmem>>, vector<1x1x128xf32>
    %104 = vector.shape_cast %103 : vector<1x1x128xf32> to vector<1x128xf32>
    %c1_89 = arith.constant 1 : index
    %c4_90 = arith.constant 4 : index
    %c0_91 = arith.constant 0 : index
    %105 = vector.load %arg5[%c1_89, %c4_90, %c0_91] : memref<5x5x128xf32, #tpu.memory_space<vmem>>, vector<1x1x128xf32>
    %106 = vector.shape_cast %105 : vector<1x1x128xf32> to vector<1x128xf32>
    %c2_92 = arith.constant 2 : index
    %c0_93 = arith.constant 0 : index
    %c0_94 = arith.constant 0 : index
    %107 = vector.load %arg5[%c2_92, %c0_93, %c0_94] : memref<5x5x128xf32, #tpu.memory_space<vmem>>, vector<1x1x128xf32>
    %108 = vector.shape_cast %107 : vector<1x1x128xf32> to vector<1x128xf32>
    %c2_95 = arith.constant 2 : index
    %c1_96 = arith.constant 1 : index
    %c0_97 = arith.constant 0 : index
    %109 = vector.load %arg5[%c2_95, %c1_96, %c0_97] : memref<5x5x128xf32, #tpu.memory_space<vmem>>, vector<1x1x128xf32>
    %110 = vector.shape_cast %109 : vector<1x1x128xf32> to vector<1x128xf32>
    %c2_98 = arith.constant 2 : index
    %c2_99 = arith.constant 2 : index
    %c0_100 = arith.constant 0 : index
    %111 = vector.load %arg5[%c2_98, %c2_99, %c0_100] : memref<5x5x128xf32, #tpu.memory_space<vmem>>, vector<1x1x128xf32>
    %112 = vector.shape_cast %111 : vector<1x1x128xf32> to vector<1x128xf32>
    %c2_101 = arith.constant 2 : index
    %c3_102 = arith.constant 3 : index
    %c0_103 = arith.constant 0 : index
    %113 = vector.load %arg5[%c2_101, %c3_102, %c0_103] : memref<5x5x128xf32, #tpu.memory_space<vmem>>, vector<1x1x128xf32>
    %114 = vector.shape_cast %113 : vector<1x1x128xf32> to vector<1x128xf32>
    %c2_104 = arith.constant 2 : index
    %c4_105 = arith.constant 4 : index
    %c0_106 = arith.constant 0 : index
    %115 = vector.load %arg5[%c2_104, %c4_105, %c0_106] : memref<5x5x128xf32, #tpu.memory_space<vmem>>, vector<1x1x128xf32>
    %116 = vector.shape_cast %115 : vector<1x1x128xf32> to vector<1x128xf32>
    %c3_107 = arith.constant 3 : index
    %c0_108 = arith.constant 0 : index
    %c0_109 = arith.constant 0 : index
    %117 = vector.load %arg5[%c3_107, %c0_108, %c0_109] : memref<5x5x128xf32, #tpu.memory_space<vmem>>, vector<1x1x128xf32>
    %118 = vector.shape_cast %117 : vector<1x1x128xf32> to vector<1x128xf32>
    %c3_110 = arith.constant 3 : index
    %c1_111 = arith.constant 1 : index
    %c0_112 = arith.constant 0 : index
    %119 = vector.load %arg5[%c3_110, %c1_111, %c0_112] : memref<5x5x128xf32, #tpu.memory_space<vmem>>, vector<1x1x128xf32>
    %120 = vector.shape_cast %119 : vector<1x1x128xf32> to vector<1x128xf32>
    %c3_113 = arith.constant 3 : index
    %c2_114 = arith.constant 2 : index
    %c0_115 = arith.constant 0 : index
    %121 = vector.load %arg5[%c3_113, %c2_114, %c0_115] : memref<5x5x128xf32, #tpu.memory_space<vmem>>, vector<1x1x128xf32>
    %122 = vector.shape_cast %121 : vector<1x1x128xf32> to vector<1x128xf32>
    %c3_116 = arith.constant 3 : index
    %c3_117 = arith.constant 3 : index
    %c0_118 = arith.constant 0 : index
    %123 = vector.load %arg5[%c3_116, %c3_117, %c0_118] : memref<5x5x128xf32, #tpu.memory_space<vmem>>, vector<1x1x128xf32>
    %124 = vector.shape_cast %123 : vector<1x1x128xf32> to vector<1x128xf32>
    %c3_119 = arith.constant 3 : index
    %c4_120 = arith.constant 4 : index
    %c0_121 = arith.constant 0 : index
    %125 = vector.load %arg5[%c3_119, %c4_120, %c0_121] : memref<5x5x128xf32, #tpu.memory_space<vmem>>, vector<1x1x128xf32>
    %126 = vector.shape_cast %125 : vector<1x1x128xf32> to vector<1x128xf32>
    %c4_122 = arith.constant 4 : index
    %c0_123 = arith.constant 0 : index
    %c0_124 = arith.constant 0 : index
    %127 = vector.load %arg5[%c4_122, %c0_123, %c0_124] : memref<5x5x128xf32, #tpu.memory_space<vmem>>, vector<1x1x128xf32>
    %128 = vector.shape_cast %127 : vector<1x1x128xf32> to vector<1x128xf32>
    %c4_125 = arith.constant 4 : index
    %c1_126 = arith.constant 1 : index
    %c0_127 = arith.constant 0 : index
    %129 = vector.load %arg5[%c4_125, %c1_126, %c0_127] : memref<5x5x128xf32, #tpu.memory_space<vmem>>, vector<1x1x128xf32>
    %130 = vector.shape_cast %129 : vector<1x1x128xf32> to vector<1x128xf32>
    %c4_128 = arith.constant 4 : index
    %c2_129 = arith.constant 2 : index
    %c0_130 = arith.constant 0 : index
    %131 = vector.load %arg5[%c4_128, %c2_129, %c0_130] : memref<5x5x128xf32, #tpu.memory_space<vmem>>, vector<1x1x128xf32>
    %132 = vector.shape_cast %131 : vector<1x1x128xf32> to vector<1x128xf32>
    %c4_131 = arith.constant 4 : index
    %c3_132 = arith.constant 3 : index
    %c0_133 = arith.constant 0 : index
    %133 = vector.load %arg5[%c4_131, %c3_132, %c0_133] : memref<5x5x128xf32, #tpu.memory_space<vmem>>, vector<1x1x128xf32>
    %134 = vector.shape_cast %133 : vector<1x1x128xf32> to vector<1x128xf32>
    %c4_134 = arith.constant 4 : index
    %c4_135 = arith.constant 4 : index
    %c0_136 = arith.constant 0 : index
    %135 = vector.load %arg5[%c4_134, %c4_135, %c0_136] : memref<5x5x128xf32, #tpu.memory_space<vmem>>, vector<1x1x128xf32>
    %136 = vector.shape_cast %135 : vector<1x1x128xf32> to vector<1x128xf32>
    %cst_137 = arith.constant 0.000000e+00 : f32
    %137 = vector.broadcast %cst_137 : f32 to vector<1x128xf32>
    %cst_138 = arith.constant 0.000000e+00 : f32
    %138 = vector.broadcast %cst_138 : f32 to vector<1x128xf32>
    %cst_139 = arith.constant 0.000000e+00 : f32
    %139 = vector.broadcast %cst_139 : f32 to vector<14x128xf32>
    %c0_140 = arith.constant 0 : index
    %c0_141 = arith.constant 0 : index
    %c0_142 = arith.constant 0 : index
    %140 = vector.load %arg9[%c0_140, %c0_141, %c0_142] : memref<18x18x128xf32, #tpu.memory_space<vmem>>, vector<1x14x128xf32>
    %141 = vector.shape_cast %140 : vector<1x14x128xf32> to vector<14x128xf32>
    %142 = vector.broadcast %88 : vector<1x128xf32> to vector<14x128xf32>
    %143 = arith.mulf %141, %142 : vector<14x128xf32>
    %144 = arith.addf %139, %143 : vector<14x128xf32>
    %c0_143 = arith.constant 0 : index
    %c1_144 = arith.constant 1 : index
    %c0_145 = arith.constant 0 : index
    %145 = vector.load %arg9[%c0_143, %c1_144, %c0_145] : memref<18x18x128xf32, #tpu.memory_space<vmem>>, vector<1x14x128xf32>
    %146 = vector.shape_cast %145 : vector<1x14x128xf32> to vector<14x128xf32>
    %147 = vector.broadcast %90 : vector<1x128xf32> to vector<14x128xf32>
    %148 = arith.mulf %146, %147 : vector<14x128xf32>
    %149 = arith.addf %144, %148 : vector<14x128xf32>
    %c0_146 = arith.constant 0 : index
    %c2_147 = arith.constant 2 : index
    %c0_148 = arith.constant 0 : index
    %150 = vector.load %arg9[%c0_146, %c2_147, %c0_148] : memref<18x18x128xf32, #tpu.memory_space<vmem>>, vector<1x14x128xf32>
    %151 = vector.shape_cast %150 : vector<1x14x128xf32> to vector<14x128xf32>
    %152 = vector.broadcast %92 : vector<1x128xf32> to vector<14x128xf32>
    %153 = arith.mulf %151, %152 : vector<14x128xf32>
    %154 = arith.addf %149, %153 : vector<14x128xf32>
    %c0_149 = arith.constant 0 : index
    %c3_150 = arith.constant 3 : index
    %c0_151 = arith.constant 0 : index
    %155 = vector.load %arg9[%c0_149, %c3_150, %c0_151] : memref<18x18x128xf32, #tpu.memory_space<vmem>>, vector<1x14x128xf32>
    %156 = vector.shape_cast %155 : vector<1x14x128xf32> to vector<14x128xf32>
    %157 = vector.broadcast %94 : vector<1x128xf32> to vector<14x128xf32>
    %158 = arith.mulf %156, %157 : vector<14x128xf32>
    %159 = arith.addf %154, %158 : vector<14x128xf32>
    %c0_152 = arith.constant 0 : index
    %c4_153 = arith.constant 4 : index
    %c0_154 = arith.constant 0 : index
    %160 = vector.load %arg9[%c0_152, %c4_153, %c0_154] : memref<18x18x128xf32, #tpu.memory_space<vmem>>, vector<1x14x128xf32>
    %161 = vector.shape_cast %160 : vector<1x14x128xf32> to vector<14x128xf32>
    %162 = vector.broadcast %96 : vector<1x128xf32> to vector<14x128xf32>
    %163 = arith.mulf %161, %162 : vector<14x128xf32>
    %164 = arith.addf %159, %163 : vector<14x128xf32>
    %c1_155 = arith.constant 1 : index
    %c0_156 = arith.constant 0 : index
    %c0_157 = arith.constant 0 : index
    %165 = vector.load %arg9[%c1_155, %c0_156, %c0_157] : memref<18x18x128xf32, #tpu.memory_space<vmem>>, vector<1x14x128xf32>
    %166 = vector.shape_cast %165 : vector<1x14x128xf32> to vector<14x128xf32>
    %167 = vector.broadcast %98 : vector<1x128xf32> to vector<14x128xf32>
    %168 = arith.mulf %166, %167 : vector<14x128xf32>
    %169 = arith.addf %164, %168 : vector<14x128xf32>
    %c1_158 = arith.constant 1 : index
    %c1_159 = arith.constant 1 : index
    %c0_160 = arith.constant 0 : index
    %170 = vector.load %arg9[%c1_158, %c1_159, %c0_160] : memref<18x18x128xf32, #tpu.memory_space<vmem>>, vector<1x14x128xf32>
    %171 = vector.shape_cast %170 : vector<1x14x128xf32> to vector<14x128xf32>
    %172 = vector.broadcast %100 : vector<1x128xf32> to vector<14x128xf32>
    %173 = arith.mulf %171, %172 : vector<14x128xf32>
    %174 = arith.addf %169, %173 : vector<14x128xf32>
    %c1_161 = arith.constant 1 : index
    %c2_162 = arith.constant 2 : index
    %c0_163 = arith.constant 0 : index
    %175 = vector.load %arg9[%c1_161, %c2_162, %c0_163] : memref<18x18x128xf32, #tpu.memory_space<vmem>>, vector<1x14x128xf32>
    %176 = vector.shape_cast %175 : vector<1x14x128xf32> to vector<14x128xf32>
    %177 = vector.broadcast %102 : vector<1x128xf32> to vector<14x128xf32>
    %178 = arith.mulf %176, %177 : vector<14x128xf32>
    %179 = arith.addf %174, %178 : vector<14x128xf32>
    %c1_164 = arith.constant 1 : index
    %c3_165 = arith.constant 3 : index
    %c0_166 = arith.constant 0 : index
    %180 = vector.load %arg9[%c1_164, %c3_165, %c0_166] : memref<18x18x128xf32, #tpu.memory_space<vmem>>, vector<1x14x128xf32>
    %181 = vector.shape_cast %180 : vector<1x14x128xf32> to vector<14x128xf32>
    %182 = vector.broadcast %104 : vector<1x128xf32> to vector<14x128xf32>
    %183 = arith.mulf %181, %182 : vector<14x128xf32>
    %184 = arith.addf %179, %183 : vector<14x128xf32>
    %c1_167 = arith.constant 1 : index
    %c4_168 = arith.constant 4 : index
    %c0_169 = arith.constant 0 : index
    %185 = vector.load %arg9[%c1_167, %c4_168, %c0_169] : memref<18x18x128xf32, #tpu.memory_space<vmem>>, vector<1x14x128xf32>
    %186 = vector.shape_cast %185 : vector<1x14x128xf32> to vector<14x128xf32>
    %187 = vector.broadcast %106 : vector<1x128xf32> to vector<14x128xf32>
    %188 = arith.mulf %186, %187 : vector<14x128xf32>
    %189 = arith.addf %184, %188 : vector<14x128xf32>
    %c2_170 = arith.constant 2 : index
    %c0_171 = arith.constant 0 : index
    %c0_172 = arith.constant 0 : index
    %190 = vector.load %arg9[%c2_170, %c0_171, %c0_172] : memref<18x18x128xf32, #tpu.memory_space<vmem>>, vector<1x14x128xf32>
    %191 = vector.shape_cast %190 : vector<1x14x128xf32> to vector<14x128xf32>
    %192 = vector.broadcast %108 : vector<1x128xf32> to vector<14x128xf32>
    %193 = arith.mulf %191, %192 : vector<14x128xf32>
    %194 = arith.addf %189, %193 : vector<14x128xf32>
    %c2_173 = arith.constant 2 : index
    %c1_174 = arith.constant 1 : index
    %c0_175 = arith.constant 0 : index
    %195 = vector.load %arg9[%c2_173, %c1_174, %c0_175] : memref<18x18x128xf32, #tpu.memory_space<vmem>>, vector<1x14x128xf32>
    %196 = vector.shape_cast %195 : vector<1x14x128xf32> to vector<14x128xf32>
    %197 = vector.broadcast %110 : vector<1x128xf32> to vector<14x128xf32>
    %198 = arith.mulf %196, %197 : vector<14x128xf32>
    %199 = arith.addf %194, %198 : vector<14x128xf32>
    %c2_176 = arith.constant 2 : index
    %c2_177 = arith.constant 2 : index
    %c0_178 = arith.constant 0 : index
    %200 = vector.load %arg9[%c2_176, %c2_177, %c0_178] : memref<18x18x128xf32, #tpu.memory_space<vmem>>, vector<1x14x128xf32>
    %201 = vector.shape_cast %200 : vector<1x14x128xf32> to vector<14x128xf32>
    %202 = vector.broadcast %112 : vector<1x128xf32> to vector<14x128xf32>
    %203 = arith.mulf %201, %202 : vector<14x128xf32>
    %204 = arith.addf %199, %203 : vector<14x128xf32>
    %c2_179 = arith.constant 2 : index
    %c3_180 = arith.constant 3 : index
    %c0_181 = arith.constant 0 : index
    %205 = vector.load %arg9[%c2_179, %c3_180, %c0_181] : memref<18x18x128xf32, #tpu.memory_space<vmem>>, vector<1x14x128xf32>
    %206 = vector.shape_cast %205 : vector<1x14x128xf32> to vector<14x128xf32>
    %207 = vector.broadcast %114 : vector<1x128xf32> to vector<14x128xf32>
    %208 = arith.mulf %206, %207 : vector<14x128xf32>
    %209 = arith.addf %204, %208 : vector<14x128xf32>
    %c2_182 = arith.constant 2 : index
    %c4_183 = arith.constant 4 : index
    %c0_184 = arith.constant 0 : index
    %210 = vector.load %arg9[%c2_182, %c4_183, %c0_184] : memref<18x18x128xf32, #tpu.memory_space<vmem>>, vector<1x14x128xf32>
    %211 = vector.shape_cast %210 : vector<1x14x128xf32> to vector<14x128xf32>
    %212 = vector.broadcast %116 : vector<1x128xf32> to vector<14x128xf32>
    %213 = arith.mulf %211, %212 : vector<14x128xf32>
    %214 = arith.addf %209, %213 : vector<14x128xf32>
    %c3_185 = arith.constant 3 : index
    %c0_186 = arith.constant 0 : index
    %c0_187 = arith.constant 0 : index
    %215 = vector.load %arg9[%c3_185, %c0_186, %c0_187] : memref<18x18x128xf32, #tpu.memory_space<vmem>>, vector<1x14x128xf32>
    %216 = vector.shape_cast %215 : vector<1x14x128xf32> to vector<14x128xf32>
    %217 = vector.broadcast %118 : vector<1x128xf32> to vector<14x128xf32>
    %218 = arith.mulf %216, %217 : vector<14x128xf32>
    %219 = arith.addf %214, %218 : vector<14x128xf32>
    %c3_188 = arith.constant 3 : index
    %c1_189 = arith.constant 1 : index
    %c0_190 = arith.constant 0 : index
    %220 = vector.load %arg9[%c3_188, %c1_189, %c0_190] : memref<18x18x128xf32, #tpu.memory_space<vmem>>, vector<1x14x128xf32>
    %221 = vector.shape_cast %220 : vector<1x14x128xf32> to vector<14x128xf32>
    %222 = vector.broadcast %120 : vector<1x128xf32> to vector<14x128xf32>
    %223 = arith.mulf %221, %222 : vector<14x128xf32>
    %224 = arith.addf %219, %223 : vector<14x128xf32>
    %c3_191 = arith.constant 3 : index
    %c2_192 = arith.constant 2 : index
    %c0_193 = arith.constant 0 : index
    %225 = vector.load %arg9[%c3_191, %c2_192, %c0_193] : memref<18x18x128xf32, #tpu.memory_space<vmem>>, vector<1x14x128xf32>
    %226 = vector.shape_cast %225 : vector<1x14x128xf32> to vector<14x128xf32>
    %227 = vector.broadcast %122 : vector<1x128xf32> to vector<14x128xf32>
    %228 = arith.mulf %226, %227 : vector<14x128xf32>
    %229 = arith.addf %224, %228 : vector<14x128xf32>
    %c3_194 = arith.constant 3 : index
    %c3_195 = arith.constant 3 : index
    %c0_196 = arith.constant 0 : index
    %230 = vector.load %arg9[%c3_194, %c3_195, %c0_196] : memref<18x18x128xf32, #tpu.memory_space<vmem>>, vector<1x14x128xf32>
    %231 = vector.shape_cast %230 : vector<1x14x128xf32> to vector<14x128xf32>
    %232 = vector.broadcast %124 : vector<1x128xf32> to vector<14x128xf32>
    %233 = arith.mulf %231, %232 : vector<14x128xf32>
    %234 = arith.addf %229, %233 : vector<14x128xf32>
    %c3_197 = arith.constant 3 : index
    %c4_198 = arith.constant 4 : index
    %c0_199 = arith.constant 0 : index
    %235 = vector.load %arg9[%c3_197, %c4_198, %c0_199] : memref<18x18x128xf32, #tpu.memory_space<vmem>>, vector<1x14x128xf32>
    %236 = vector.shape_cast %235 : vector<1x14x128xf32> to vector<14x128xf32>
    %237 = vector.broadcast %126 : vector<1x128xf32> to vector<14x128xf32>
    %238 = arith.mulf %236, %237 : vector<14x128xf32>
    %239 = arith.addf %234, %238 : vector<14x128xf32>
    %c4_200 = arith.constant 4 : index
    %c0_201 = arith.constant 0 : index
    %c0_202 = arith.constant 0 : index
    %240 = vector.load %arg9[%c4_200, %c0_201, %c0_202] : memref<18x18x128xf32, #tpu.memory_space<vmem>>, vector<1x14x128xf32>
    %241 = vector.shape_cast %240 : vector<1x14x128xf32> to vector<14x128xf32>
    %242 = vector.broadcast %128 : vector<1x128xf32> to vector<14x128xf32>
    %243 = arith.mulf %241, %242 : vector<14x128xf32>
    %244 = arith.addf %239, %243 : vector<14x128xf32>
    %c4_203 = arith.constant 4 : index
    %c1_204 = arith.constant 1 : index
    %c0_205 = arith.constant 0 : index
    %245 = vector.load %arg9[%c4_203, %c1_204, %c0_205] : memref<18x18x128xf32, #tpu.memory_space<vmem>>, vector<1x14x128xf32>
    %246 = vector.shape_cast %245 : vector<1x14x128xf32> to vector<14x128xf32>
    %247 = vector.broadcast %130 : vector<1x128xf32> to vector<14x128xf32>
    %248 = arith.mulf %246, %247 : vector<14x128xf32>
    %249 = arith.addf %244, %248 : vector<14x128xf32>
    %c4_206 = arith.constant 4 : index
    %c2_207 = arith.constant 2 : index
    %c0_208 = arith.constant 0 : index
    %250 = vector.load %arg9[%c4_206, %c2_207, %c0_208] : memref<18x18x128xf32, #tpu.memory_space<vmem>>, vector<1x14x128xf32>
    %251 = vector.shape_cast %250 : vector<1x14x128xf32> to vector<14x128xf32>
    %252 = vector.broadcast %132 : vector<1x128xf32> to vector<14x128xf32>
    %253 = arith.mulf %251, %252 : vector<14x128xf32>
    %254 = arith.addf %249, %253 : vector<14x128xf32>
    %c4_209 = arith.constant 4 : index
    %c3_210 = arith.constant 3 : index
    %c0_211 = arith.constant 0 : index
    %255 = vector.load %arg9[%c4_209, %c3_210, %c0_211] : memref<18x18x128xf32, #tpu.memory_space<vmem>>, vector<1x14x128xf32>
    %256 = vector.shape_cast %255 : vector<1x14x128xf32> to vector<14x128xf32>
    %257 = vector.broadcast %134 : vector<1x128xf32> to vector<14x128xf32>
    %258 = arith.mulf %256, %257 : vector<14x128xf32>
    %259 = arith.addf %254, %258 : vector<14x128xf32>
    %c4_212 = arith.constant 4 : index
    %c4_213 = arith.constant 4 : index
    %c0_214 = arith.constant 0 : index
    %260 = vector.load %arg9[%c4_212, %c4_213, %c0_214] : memref<18x18x128xf32, #tpu.memory_space<vmem>>, vector<1x14x128xf32>
    %261 = vector.shape_cast %260 : vector<1x14x128xf32> to vector<14x128xf32>
    %262 = vector.broadcast %136 : vector<1x128xf32> to vector<14x128xf32>
    %263 = arith.mulf %261, %262 : vector<14x128xf32>
    %264 = arith.addf %259, %263 : vector<14x128xf32>
    %c0_215 = arith.constant 0 : index
    %c0_216 = arith.constant 0 : index
    %c0_217 = arith.constant 0 : index
    %265 = vector.load %arg8[%c0_215, %c0_216, %c0_217] : memref<14x14x128xf32, #tpu.memory_space<vmem>>, vector<1x14x128xf32>
    %266 = vector.shape_cast %265 : vector<1x14x128xf32> to vector<14x128xf32>
    %267 = vector.shape_cast %264 : vector<14x128xf32> to vector<1x14x128xf32>
    tpu.vector_store %arg8[%c0_215, %c0_216, %c0_217], %267 {strides = array<i32>} : memref<14x14x128xf32, #tpu.memory_space<vmem>>, vector<1x14x128xf32>,
    %cst_218 = arith.constant dense<0.000000e+00> : vector<128xf32>
    %268 = vector.multi_reduction <add>, %264, %cst_218 [0] : vector<14x128xf32> to vector<128xf32>
    %269 = vector.shape_cast %268 : vector<128xf32> to vector<1x128xf32>
    %270 = arith.addf %137, %269 : vector<1x128xf32>
    %271 = arith.mulf %264, %264 : vector<14x128xf32>
    %cst_219 = arith.constant dense<0.000000e+00> : vector<128xf32>
    %272 = vector.multi_reduction <add>, %271, %cst_219 [0] : vector<14x128xf32> to vector<128xf32>
    %273 = vector.shape_cast %272 : vector<128xf32> to vector<1x128xf32>
    %274 = arith.addf %138, %273 : vector<1x128xf32>
    %cst_220 = arith.constant 0.000000e+00 : f32
    %275 = vector.broadcast %cst_220 : f32 to vector<14x128xf32>
    %c1_221 = arith.constant 1 : index
    %c0_222 = arith.constant 0 : index
    %c0_223 = arith.constant 0 : index
    %276 = vector.load %arg9[%c1_221, %c0_222, %c0_223] : memref<18x18x128xf32, #tpu.memory_space<vmem>>, vector<1x14x128xf32>
    %277 = vector.shape_cast %276 : vector<1x14x128xf32> to vector<14x128xf32>
    %278 = vector.broadcast %88 : vector<1x128xf32> to vector<14x128xf32>
    %279 = arith.mulf %277, %278 : vector<14x128xf32>
    %280 = arith.addf %275, %279 : vector<14x128xf32>
    %c1_224 = arith.constant 1 : index
    %c1_225 = arith.constant 1 : index
    %c0_226 = arith.constant 0 : index
    %281 = vector.load %arg9[%c1_224, %c1_225, %c0_226] : memref<18x18x128xf32, #tpu.memory_space<vmem>>, vector<1x14x128xf32>
    %282 = vector.shape_cast %281 : vector<1x14x128xf32> to vector<14x128xf32>
    %283 = vector.broadcast %90 : vector<1x128xf32> to vector<14x128xf32>
    %284 = arith.mulf %282, %283 : vector<14x128xf32>
    %285 = arith.addf %280, %284 : vector<14x128xf32>
    %c1_227 = arith.constant 1 : index
    %c2_228 = arith.constant 2 : index
    %c0_229 = arith.constant 0 : index
    %286 = vector.load %arg9[%c1_227, %c2_228, %c0_229] : memref<18x18x128xf32, #tpu.memory_space<vmem>>, vector<1x14x128xf32>
    %287 = vector.shape_cast %286 : vector<1x14x128xf32> to vector<14x128xf32>
    %288 = vector.broadcast %92 : vector<1x128xf32> to vector<14x128xf32>
    %289 = arith.mulf %287, %288 : vector<14x128xf32>
    %290 = arith.addf %285, %289 : vector<14x128xf32>
    %c1_230 = arith.constant 1 : index
    %c3_231 = arith.constant 3 : index
    %c0_232 = arith.constant 0 : index
    %291 = vector.load %arg9[%c1_230, %c3_231, %c0_232] : memref<18x18x128xf32, #tpu.memory_space<vmem>>, vector<1x14x128xf32>
    %292 = vector.shape_cast %291 : vector<1x14x128xf32> to vector<14x128xf32>
    %293 = vector.broadcast %94 : vector<1x128xf32> to vector<14x128xf32>
    %294 = arith.mulf %292, %293 : vector<14x128xf32>
    %295 = arith.addf %290, %294 : vector<14x128xf32>
    %c1_233 = arith.constant 1 : index
    %c4_234 = arith.constant 4 : index
    %c0_235 = arith.constant 0 : index
    %296 = vector.load %arg9[%c1_233, %c4_234, %c0_235] : memref<18x18x128xf32, #tpu.memory_space<vmem>>, vector<1x14x128xf32>
    %297 = vector.shape_cast %296 : vector<1x14x128xf32> to vector<14x128xf32>
    %298 = vector.broadcast %96 : vector<1x128xf32> to vector<14x128xf32>
    %299 = arith.mulf %297, %298 : vector<14x128xf32>
    %300 = arith.addf %295, %299 : vector<14x128xf32>
    %c2_236 = arith.constant 2 : index
    %c0_237 = arith.constant 0 : index
    %c0_238 = arith.constant 0 : index
    %301 = vector.load %arg9[%c2_236, %c0_237, %c0_238] : memref<18x18x128xf32, #tpu.memory_space<vmem>>, vector<1x14x128xf32>
    %302 = vector.shape_cast %301 : vector<1x14x128xf32> to vector<14x128xf32>
    %303 = vector.broadcast %98 : vector<1x128xf32> to vector<14x128xf32>
    %304 = arith.mulf %302, %303 : vector<14x128xf32>
    %305 = arith.addf %300, %304 : vector<14x128xf32>
    %c2_239 = arith.constant 2 : index
    %c1_240 = arith.constant 1 : index
    %c0_241 = arith.constant 0 : index
    %306 = vector.load %arg9[%c2_239, %c1_240, %c0_241] : memref<18x18x128xf32, #tpu.memory_space<vmem>>, vector<1x14x128xf32>
    %307 = vector.shape_cast %306 : vector<1x14x128xf32> to vector<14x128xf32>
    %308 = vector.broadcast %100 : vector<1x128xf32> to vector<14x128xf32>
    %309 = arith.mulf %307, %308 : vector<14x128xf32>
    %310 = arith.addf %305, %309 : vector<14x128xf32>
    %c2_242 = arith.constant 2 : index
    %c2_243 = arith.constant 2 : index
    %c0_244 = arith.constant 0 : index
    %311 = vector.load %arg9[%c2_242, %c2_243, %c0_244] : memref<18x18x128xf32, #tpu.memory_space<vmem>>, vector<1x14x128xf32>
    %312 = vector.shape_cast %311 : vector<1x14x128xf32> to vector<14x128xf32>
    %313 = vector.broadcast %102 : vector<1x128xf32> to vector<14x128xf32>
    %314 = arith.mulf %312, %313 : vector<14x128xf32>
    %315 = arith.addf %310, %314 : vector<14x128xf32>
    %c2_245 = arith.constant 2 : index
    %c3_246 = arith.constant 3 : index
    %c0_247 = arith.constant 0 : index
    %316 = vector.load %arg9[%c2_245, %c3_246, %c0_247] : memref<18x18x128xf32, #tpu.memory_space<vmem>>, vector<1x14x128xf32>
    %317 = vector.shape_cast %316 : vector<1x14x128xf32> to vector<14x128xf32>
    %318 = vector.broadcast %104 : vector<1x128xf32> to vector<14x128xf32>
    %319 = arith.mulf %317, %318 : vector<14x128xf32>
    %320 = arith.addf %315, %319 : vector<14x128xf32>
    %c2_248 = arith.constant 2 : index
    %c4_249 = arith.constant 4 : index
    %c0_250 = arith.constant 0 : index
    %321 = vector.load %arg9[%c2_248, %c4_249, %c0_250] : memref<18x18x128xf32, #tpu.memory_space<vmem>>, vector<1x14x128xf32>
    %322 = vector.shape_cast %321 : vector<1x14x128xf32> to vector<14x128xf32>
    %323 = vector.broadcast %106 : vector<1x128xf32> to vector<14x128xf32>
    %324 = arith.mulf %322, %323 : vector<14x128xf32>
    %325 = arith.addf %320, %324 : vector<14x128xf32>
    %c3_251 = arith.constant 3 : index
    %c0_252 = arith.constant 0 : index
    %c0_253 = arith.constant 0 : index
    %326 = vector.load %arg9[%c3_251, %c0_252, %c0_253] : memref<18x18x128xf32, #tpu.memory_space<vmem>>, vector<1x14x128xf32>
    %327 = vector.shape_cast %326 : vector<1x14x128xf32> to vector<14x128xf32>
    %328 = vector.broadcast %108 : vector<1x128xf32> to vector<14x128xf32>
    %329 = arith.mulf %327, %328 : vector<14x128xf32>
    %330 = arith.addf %325, %329 : vector<14x128xf32>
    %c3_254 = arith.constant 3 : index
    %c1_255 = arith.constant 1 : index
    %c0_256 = arith.constant 0 : index
    %331 = vector.load %arg9[%c3_254, %c1_255, %c0_256] : memref<18x18x128xf32, #tpu.memory_space<vmem>>, vector<1x14x128xf32>
    %332 = vector.shape_cast %331 : vector<1x14x128xf32> to vector<14x128xf32>
    %333 = vector.broadcast %110 : vector<1x128xf32> to vector<14x128xf32>
    %334 = arith.mulf %332, %333 : vector<14x128xf32>
    %335 = arith.addf %330, %334 : vector<14x128xf32>
    %c3_257 = arith.constant 3 : index
    %c2_258 = arith.constant 2 : index
    %c0_259 = arith.constant 0 : index
    %336 = vector.load %arg9[%c3_257, %c2_258, %c0_259] : memref<18x18x128xf32, #tpu.memory_space<vmem>>, vector<1x14x128xf32>
    %337 = vector.shape_cast %336 : vector<1x14x128xf32> to vector<14x128xf32>
    %338 = vector.broadcast %112 : vector<1x128xf32> to vector<14x128xf32>
    %339 = arith.mulf %337, %338 : vector<14x128xf32>
    %340 = arith.addf %335, %339 : vector<14x128xf32>
    %c3_260 = arith.constant 3 : index
    %c3_261 = arith.constant 3 : index
    %c0_262 = arith.constant 0 : index
    %341 = vector.load %arg9[%c3_260, %c3_261, %c0_262] : memref<18x18x128xf32, #tpu.memory_space<vmem>>, vector<1x14x128xf32>
    %342 = vector.shape_cast %341 : vector<1x14x128xf32> to vector<14x128xf32>
    %343 = vector.broadcast %114 : vector<1x128xf32> to vector<14x128xf32>
    %344 = arith.mulf %342, %343 : vector<14x128xf32>
    %345 = arith.addf %340, %344 : vector<14x128xf32>
    %c3_263 = arith.constant 3 : index
    %c4_264 = arith.constant 4 : index
    %c0_265 = arith.constant 0 : index
    %346 = vector.load %arg9[%c3_263, %c4_264, %c0_265] : memref<18x18x128xf32, #tpu.memory_space<vmem>>, vector<1x14x128xf32>
    %347 = vector.shape_cast %346 : vector<1x14x128xf32> to vector<14x128xf32>
    %348 = vector.broadcast %116 : vector<1x128xf32> to vector<14x128xf32>
    %349 = arith.mulf %347, %348 : vector<14x128xf32>
    %350 = arith.addf %345, %349 : vector<14x128xf32>
    %c4_266 = arith.constant 4 : index
    %c0_267 = arith.constant 0 : index
    %c0_268 = arith.constant 0 : index
    %351 = vector.load %arg9[%c4_266, %c0_267, %c0_268] : memref<18x18x128xf32, #tpu.memory_space<vmem>>, vector<1x14x128xf32>
    %352 = vector.shape_cast %351 : vector<1x14x128xf32> to vector<14x128xf32>
    %353 = vector.broadcast %118 : vector<1x128xf32> to vector<14x128xf32>
    %354 = arith.mulf %352, %353 : vector<14x128xf32>
    %355 = arith.addf %350, %354 : vector<14x128xf32>
    %c4_269 = arith.constant 4 : index
    %c1_270 = arith.constant 1 : index
    %c0_271 = arith.constant 0 : index
    %356 = vector.load %arg9[%c4_269, %c1_270, %c0_271] : memref<18x18x128xf32, #tpu.memory_space<vmem>>, vector<1x14x128xf32>
    %357 = vector.shape_cast %356 : vector<1x14x128xf32> to vector<14x128xf32>
    %358 = vector.broadcast %120 : vector<1x128xf32> to vector<14x128xf32>
    %359 = arith.mulf %357, %358 : vector<14x128xf32>
    %360 = arith.addf %355, %359 : vector<14x128xf32>
    %c4_272 = arith.constant 4 : index
    %c2_273 = arith.constant 2 : index
    %c0_274 = arith.constant 0 : index
    %361 = vector.load %arg9[%c4_272, %c2_273, %c0_274] : memref<18x18x128xf32, #tpu.memory_space<vmem>>, vector<1x14x128xf32>
    %362 = vector.shape_cast %361 : vector<1x14x128xf32> to vector<14x128xf32>
    %363 = vector.broadcast %122 : vector<1x128xf32> to vector<14x128xf32>
    %364 = arith.mulf %362, %363 : vector<14x128xf32>
    %365 = arith.addf %360, %364 : vector<14x128xf32>
    %c4_275 = arith.constant 4 : index
    %c3_276 = arith.constant 3 : index
    %c0_277 = arith.constant 0 : index
    %366 = vector.load %arg9[%c4_275, %c3_276, %c0_277] : memref<18x18x128xf32, #tpu.memory_space<vmem>>, vector<1x14x128xf32>
    %367 = vector.shape_cast %366 : vector<1x14x128xf32> to vector<14x128xf32>
    %368 = vector.broadcast %124 : vector<1x128xf32> to vector<14x128xf32>
    %369 = arith.mulf %367, %368 : vector<14x128xf32>
    %370 = arith.addf %365, %369 : vector<14x128xf32>
    %c4_278 = arith.constant 4 : index
    %c4_279 = arith.constant 4 : index
    %c0_280 = arith.constant 0 : index
    %371 = vector.load %arg9[%c4_278, %c4_279, %c0_280] : memref<18x18x128xf32, #tpu.memory_space<vmem>>, vector<1x14x128xf32>
    %372 = vector.shape_cast %371 : vector<1x14x128xf32> to vector<14x128xf32>
    %373 = vector.broadcast %126 : vector<1x128xf32> to vector<14x128xf32>
    %374 = arith.mulf %372, %373 : vector<14x128xf32>
    %375 = arith.addf %370, %374 : vector<14x128xf32>
    %c5_281 = arith.constant 5 : index
    %c0_282 = arith.constant 0 : index
    %c0_283 = arith.constant 0 : index
    %376 = vector.load %arg9[%c5_281, %c0_282, %c0_283] : memref<18x18x128xf32, #tpu.memory_space<vmem>>, vector<1x14x128xf32>
    %377 = vector.shape_cast %376 : vector<1x14x128xf32> to vector<14x128xf32>
    %378 = vector.broadcast %128 : vector<1x128xf32> to vector<14x128xf32>
    %379 = arith.mulf %377, %378 : vector<14x128xf32>
    %380 = arith.addf %375, %379 : vector<14x128xf32>
    %c5_284 = arith.constant 5 : index
    %c1_285 = arith.constant 1 : index
    %c0_286 = arith.constant 0 : index
    %381 = vector.load %arg9[%c5_284, %c1_285, %c0_286] : memref<18x18x128xf32, #tpu.memory_space<vmem>>, vector<1x14x128xf32>
    %382 = vector.shape_cast %381 : vector<1x14x128xf32> to vector<14x128xf32>
    %383 = vector.broadcast %130 : vector<1x128xf32> to vector<14x128xf32>
    %384 = arith.mulf %382, %383 : vector<14x128xf32>
    %385 = arith.addf %380, %384 : vector<14x128xf32>
    %c5_287 = arith.constant 5 : index
    %c2_288 = arith.constant 2 : index
    %c0_289 = arith.constant 0 : index
    %386 = vector.load %arg9[%c5_287, %c2_288, %c0_289] : memref<18x18x128xf32, #tpu.memory_space<vmem>>, vector<1x14x128xf32>
    %387 = vector.shape_cast %386 : vector<1x14x128xf32> to vector<14x128xf32>
    %388 = vector.broadcast %132 : vector<1x128xf32> to vector<14x128xf32>
    %389 = arith.mulf %387, %388 : vector<14x128xf32>
    %390 = arith.addf %385, %389 : vector<14x128xf32>
    %c5_290 = arith.constant 5 : index
    %c3_291 = arith.constant 3 : index
    %c0_292 = arith.constant 0 : index
    %391 = vector.load %arg9[%c5_290, %c3_291, %c0_292] : memref<18x18x128xf32, #tpu.memory_space<vmem>>, vector<1x14x128xf32>
    %392 = vector.shape_cast %391 : vector<1x14x128xf32> to vector<14x128xf32>
    %393 = vector.broadcast %134 : vector<1x128xf32> to vector<14x128xf32>
    %394 = arith.mulf %392, %393 : vector<14x128xf32>
    %395 = arith.addf %390, %394 : vector<14x128xf32>
    %c5_293 = arith.constant 5 : index
    %c4_294 = arith.constant 4 : index
    %c0_295 = arith.constant 0 : index
    %396 = vector.load %arg9[%c5_293, %c4_294, %c0_295] : memref<18x18x128xf32, #tpu.memory_space<vmem>>, vector<1x14x128xf32>
    %397 = vector.shape_cast %396 : vector<1x14x128xf32> to vector<14x128xf32>
    %398 = vector.broadcast %136 : vector<1x128xf32> to vector<14x128xf32>
    %399 = arith.mulf %397, %398 : vector<14x128xf32>
    %400 = arith.addf %395, %399 : vector<14x128xf32>
    %c1_296 = arith.constant 1 : index
    %c0_297 = arith.constant 0 : index
    %c0_298 = arith.constant 0 : index
    %401 = vector.load %arg8[%c1_296, %c0_297, %c0_298] : memref<14x14x128xf32, #tpu.memory_space<vmem>>, vector<1x14x128xf32>
    %402 = vector.shape_cast %401 : vector<1x14x128xf32> to vector<14x128xf32>
    %403 = vector.shape_cast %400 : vector<14x128xf32> to vector<1x14x128xf32>
    tpu.vector_store %arg8[%c1_296, %c0_297, %c0_298], %403 {strides = array<i32>} : memref<14x14x128xf32, #tpu.memory_space<vmem>>, vector<1x14x128xf32>,
    %cst_299 = arith.constant dense<0.000000e+00> : vector<128xf32>
    %404 = vector.multi_reduction <add>, %400, %cst_299 [0] : vector<14x128xf32> to vector<128xf32>
    %405 = vector.shape_cast %404 : vector<128xf32> to vector<1x128xf32>
    %406 = arith.addf %270, %405 : vector<1x128xf32>
    %407 = arith.mulf %400, %400 : vector<14x128xf32>
    %cst_300 = arith.constant dense<0.000000e+00> : vector<128xf32>
    %408 = vector.multi_reduction <add>, %407, %cst_300 [0] : vector<14x128xf32> to vector<128xf32>
    %409 = vector.shape_cast %408 : vector<128xf32> to vector<1x128xf32>
    %410 = arith.addf %274, %409 : vector<1x128xf32>
    %cst_301 = arith.constant 0.000000e+00 : f32
    %411 = vector.broadcast %cst_301 : f32 to vector<14x128xf32>
    %c2_302 = arith.constant 2 : index
    %c0_303 = arith.constant 0 : index
    %c0_304 = arith.constant 0 : index
    %412 = vector.load %arg9[%c2_302, %c0_303, %c0_304] : memref<18x18x128xf32, #tpu.memory_space<vmem>>, vector<1x14x128xf32>
    %413 = vector.shape_cast %412 : vector<1x14x128xf32> to vector<14x128xf32>
    %414 = vector.broadcast %88 : vector<1x128xf32> to vector<14x128xf32>
    %415 = arith.mulf %413, %414 : vector<14x128xf32>
    %416 = arith.addf %411, %415 : vector<14x128xf32>
    %c2_305 = arith.constant 2 : index
    %c1_306 = arith.constant 1 : index
    %c0_307 = arith.constant 0 : index
    %417 = vector.load %arg9[%c2_305, %c1_306, %c0_307] : memref<18x18x128xf32, #tpu.memory_space<vmem>>, vector<1x14x128xf32>
    %418 = vector.shape_cast %417 : vector<1x14x128xf32> to vector<14x128xf32>
    %419 = vector.broadcast %90 : vector<1x128xf32> to vector<14x128xf32>
    %420 = arith.mulf %418, %419 : vector<14x128xf32>
    %421 = arith.addf %416, %420 : vector<14x128xf32>
    %c2_308 = arith.constant 2 : index
    %c2_309 = arith.constant 2 : index
    %c0_310 = arith.constant 0 : index
    %422 = vector.load %arg9[%c2_308, %c2_309, %c0_310] : memref<18x18x128xf32, #tpu.memory_space<vmem>>, vector<1x14x128xf32>
    %423 = vector.shape_cast %422 : vector<1x14x128xf32> to vector<14x128xf32>
    %424 = vector.broadcast %92 : vector<1x128xf32> to vector<14x128xf32>
    %425 = arith.mulf %423, %424 : vector<14x128xf32>
    %426 = arith.addf %421, %425 : vector<14x128xf32>
    %c2_311 = arith.constant 2 : index
    %c3_312 = arith.constant 3 : index
    %c0_313 = arith.constant 0 : index
    %427 = vector.load %arg9[%c2_311, %c3_312, %c0_313] : memref<18x18x128xf32, #tpu.memory_space<vmem>>, vector<1x14x128xf32>
    %428 = vector.shape_cast %427 : vector<1x14x128xf32> to vector<14x128xf32>
    %429 = vector.broadcast %94 : vector<1x128xf32> to vector<14x128xf32>
    %430 = arith.mulf %428, %429 : vector<14x128xf32>
    %431 = arith.addf %426, %430 : vector<14x128xf32>
    %c2_314 = arith.constant 2 : index
    %c4_315 = arith.constant 4 : index
    %c0_316 = arith.constant 0 : index
    %432 = vector.load %arg9[%c2_314, %c4_315, %c0_316] : memref<18x18x128xf32, #tpu.memory_space<vmem>>, vector<1x14x128xf32>
    %433 = vector.shape_cast %432 : vector<1x14x128xf32> to vector<14x128xf32>
    %434 = vector.broadcast %96 : vector<1x128xf32> to vector<14x128xf32>
    %435 = arith.mulf %433, %434 : vector<14x128xf32>
    %436 = arith.addf %431, %435 : vector<14x128xf32>
    %c3_317 = arith.constant 3 : index
    %c0_318 = arith.constant 0 : index
    %c0_319 = arith.constant 0 : index
    %437 = vector.load %arg9[%c3_317, %c0_318, %c0_319] : memref<18x18x128xf32, #tpu.memory_space<vmem>>, vector<1x14x128xf32>
    %438 = vector.shape_cast %437 : vector<1x14x128xf32> to vector<14x128xf32>
    %439 = vector.broadcast %98 : vector<1x128xf32> to vector<14x128xf32>
    %440 = arith.mulf %438, %439 : vector<14x128xf32>
    %441 = arith.addf %436, %440 : vector<14x128xf32>
    %c3_320 = arith.constant 3 : index
    %c1_321 = arith.constant 1 : index
    %c0_322 = arith.constant 0 : index
    %442 = vector.load %arg9[%c3_320, %c1_321, %c0_322] : memref<18x18x128xf32, #tpu.memory_space<vmem>>, vector<1x14x128xf32>
    %443 = vector.shape_cast %442 : vector<1x14x128xf32> to vector<14x128xf32>
    %444 = vector.broadcast %100 : vector<1x128xf32> to vector<14x128xf32>
    %445 = arith.mulf %443, %444 : vector<14x128xf32>
    %446 = arith.addf %441, %445 : vector<14x128xf32>
    %c3_323 = arith.constant 3 : index
    %c2_324 = arith.constant 2 : index
    %c0_325 = arith.constant 0 : index
    %447 = vector.load %arg9[%c3_323, %c2_324, %c0_325] : memref<18x18x128xf32, #tpu.memory_space<vmem>>, vector<1x14x128xf32>
    %448 = vector.shape_cast %447 : vector<1x14x128xf32> to vector<14x128xf32>
    %449 = vector.broadcast %102 : vector<1x128xf32> to vector<14x128xf32>
    %450 = arith.mulf %448, %449 : vector<14x128xf32>
    %451 = arith.addf %446, %450 : vector<14x128xf32>
    %c3_326 = arith.constant 3 : index
    %c3_327 = arith.constant 3 : index
    %c0_328 = arith.constant 0 : index
    %452 = vector.load %arg9[%c3_326, %c3_327, %c0_328] : memref<18x18x128xf32, #tpu.memory_space<vmem>>, vector<1x14x128xf32>
    %453 = vector.shape_cast %452 : vector<1x14x128xf32> to vector<14x128xf32>
    %454 = vector.broadcast %104 : vector<1x128xf32> to vector<14x128xf32>
    %455 = arith.mulf %453, %454 : vector<14x128xf32>
    %456 = arith.addf %451, %455 : vector<14x128xf32>
    %c3_329 = arith.constant 3 : index
    %c4_330 = arith.constant 4 : index
    %c0_331 = arith.constant 0 : index
    %457 = vector.load %arg9[%c3_329, %c4_330, %c0_331] : memref<18x18x128xf32, #tpu.memory_space<vmem>>, vector<1x14x128xf32>
    %458 = vector.shape_cast %457 : vector<1x14x128xf32> to vector<14x128xf32>
    %459 = vector.broadcast %106 : vector<1x128xf32> to vector<14x128xf32>
    %460 = arith.mulf %458, %459 : vector<14x128xf32>
    %461 = arith.addf %456, %460 : vector<14x128xf32>
    %c4_332 = arith.constant 4 : index
    %c0_333 = arith.constant 0 : index
    %c0_334 = arith.constant 0 : index
    %462 = vector.load %arg9[%c4_332, %c0_333, %c0_334] : memref<18x18x128xf32, #tpu.memory_space<vmem>>, vector<1x14x128xf32>
    %463 = vector.shape_cast %462 : vector<1x14x128xf32> to vector<14x128xf32>
    %464 = vector.broadcast %108 : vector<1x128xf32> to vector<14x128xf32>
    %465 = arith.mulf %463, %464 : vector<14x128xf32>
    %466 = arith.addf %461, %465 : vector<14x128xf32>
    %c4_335 = arith.constant 4 : index
    %c1_336 = arith.constant 1 : index
    %c0_337 = arith.constant 0 : index
    %467 = vector.load %arg9[%c4_335, %c1_336, %c0_337] : memref<18x18x128xf32, #tpu.memory_space<vmem>>, vector<1x14x128xf32>
    %468 = vector.shape_cast %467 : vector<1x14x128xf32> to vector<14x128xf32>
    %469 = vector.broadcast %110 : vector<1x128xf32> to vector<14x128xf32>
    %470 = arith.mulf %468, %469 : vector<14x128xf32>
    %471 = arith.addf %466, %470 : vector<14x128xf32>
    %c4_338 = arith.constant 4 : index
    %c2_339 = arith.constant 2 : index
    %c0_340 = arith.constant 0 : index
    %472 = vector.load %arg9[%c4_338, %c2_339, %c0_340] : memref<18x18x128xf32, #tpu.memory_space<vmem>>, vector<1x14x128xf32>
    %473 = vector.shape_cast %472 : vector<1x14x128xf32> to vector<14x128xf32>
    %474 = vector.broadcast %112 : vector<1x128xf32> to vector<14x128xf32>
    %475 = arith.mulf %473, %474 : vector<14x128xf32>
    %476 = arith.addf %471, %475 : vector<14x128xf32>
    %c4_341 = arith.constant 4 : index
    %c3_342 = arith.constant 3 : index
    %c0_343 = arith.constant 0 : index
    %477 = vector.load %arg9[%c4_341, %c3_342, %c0_343] : memref<18x18x128xf32, #tpu.memory_space<vmem>>, vector<1x14x128xf32>
    %478 = vector.shape_cast %477 : vector<1x14x128xf32> to vector<14x128xf32>
    %479 = vector.broadcast %114 : vector<1x128xf32> to vector<14x128xf32>
    %480 = arith.mulf %478, %479 : vector<14x128xf32>
    %481 = arith.addf %476, %480 : vector<14x128xf32>
    %c4_344 = arith.constant 4 : index
    %c4_345 = arith.constant 4 : index
    %c0_346 = arith.constant 0 : index
    %482 = vector.load %arg9[%c4_344, %c4_345, %c0_346] : memref<18x18x128xf32, #tpu.memory_space<vmem>>, vector<1x14x128xf32>
    %483 = vector.shape_cast %482 : vector<1x14x128xf32> to vector<14x128xf32>
    %484 = vector.broadcast %116 : vector<1x128xf32> to vector<14x128xf32>
    %485 = arith.mulf %483, %484 : vector<14x128xf32>
    %486 = arith.addf %481, %485 : vector<14x128xf32>
    %c5_347 = arith.constant 5 : index
    %c0_348 = arith.constant 0 : index
    %c0_349 = arith.constant 0 : index
    %487 = vector.load %arg9[%c5_347, %c0_348, %c0_349] : memref<18x18x128xf32, #tpu.memory_space<vmem>>, vector<1x14x128xf32>
    %488 = vector.shape_cast %487 : vector<1x14x128xf32> to vector<14x128xf32>
    %489 = vector.broadcast %118 : vector<1x128xf32> to vector<14x128xf32>
    %490 = arith.mulf %488, %489 : vector<14x128xf32>
    %491 = arith.addf %486, %490 : vector<14x128xf32>
    %c5_350 = arith.constant 5 : index
    %c1_351 = arith.constant 1 : index
    %c0_352 = arith.constant 0 : index
    %492 = vector.load %arg9[%c5_350, %c1_351, %c0_352] : memref<18x18x128xf32, #tpu.memory_space<vmem>>, vector<1x14x128xf32>
    %493 = vector.shape_cast %492 : vector<1x14x128xf32> to vector<14x128xf32>
    %494 = vector.broadcast %120 : vector<1x128xf32> to vector<14x128xf32>
    %495 = arith.mulf %493, %494 : vector<14x128xf32>
    %496 = arith.addf %491, %495 : vector<14x128xf32>
    %c5_353 = arith.constant 5 : index
    %c2_354 = arith.constant 2 : index
    %c0_355 = arith.constant 0 : index
    %497 = vector.load %arg9[%c5_353, %c2_354, %c0_355] : memref<18x18x128xf32, #tpu.memory_space<vmem>>, vector<1x14x128xf32>
    %498 = vector.shape_cast %497 : vector<1x14x128xf32> to vector<14x128xf32>
    %499 = vector.broadcast %122 : vector<1x128xf32> to vector<14x128xf32>
    %500 = arith.mulf %498, %499 : vector<14x128xf32>
    %501 = arith.addf %496, %500 : vector<14x128xf32>
    %c5_356 = arith.constant 5 : index
    %c3_357 = arith.constant 3 : index
    %c0_358 = arith.constant 0 : index
    %502 = vector.load %arg9[%c5_356, %c3_357, %c0_358] : memref<18x18x128xf32, #tpu.memory_space<vmem>>, vector<1x14x128xf32>
    %503 = vector.shape_cast %502 : vector<1x14x128xf32> to vector<14x128xf32>
    %504 = vector.broadcast %124 : vector<1x128xf32> to vector<14x128xf32>
    %505 = arith.mulf %503, %504 : vector<14x128xf32>
    %506 = arith.addf %501, %505 : vector<14x128xf32>
    %c5_359 = arith.constant 5 : index
    %c4_360 = arith.constant 4 : index
    %c0_361 = arith.constant 0 : index
    %507 = vector.load %arg9[%c5_359, %c4_360, %c0_361] : memref<18x18x128xf32, #tpu.memory_space<vmem>>, vector<1x14x128xf32>
    %508 = vector.shape_cast %507 : vector<1x14x128xf32> to vector<14x128xf32>
    %509 = vector.broadcast %126 : vector<1x128xf32> to vector<14x128xf32>
    %510 = arith.mulf %508, %509 : vector<14x128xf32>
    %511 = arith.addf %506, %510 : vector<14x128xf32>
    %c6_362 = arith.constant 6 : index
    %c0_363 = arith.constant 0 : index
    %c0_364 = arith.constant 0 : index
    %512 = vector.load %arg9[%c6_362, %c0_363, %c0_364] : memref<18x18x128xf32, #tpu.memory_space<vmem>>, vector<1x14x128xf32>
    %513 = vector.shape_cast %512 : vector<1x14x128xf32> to vector<14x128xf32>
    %514 = vector.broadcast %128 : vector<1x128xf32> to vector<14x128xf32>
    %515 = arith.mulf %513, %514 : vector<14x128xf32>
    %516 = arith.addf %511, %515 : vector<14x128xf32>
    %c6_365 = arith.constant 6 : index
    %c1_366 = arith.constant 1 : index
    %c0_367 = arith.constant 0 : index
    %517 = vector.load %arg9[%c6_365, %c1_366, %c0_367] : memref<18x18x128xf32, #tpu.memory_space<vmem>>, vector<1x14x128xf32>
    %518 = vector.shape_cast %517 : vector<1x14x128xf32> to vector<14x128xf32>
    %519 = vector.broadcast %130 : vector<1x128xf32> to vector<14x128xf32>
    %520 = arith.mulf %518, %519 : vector<14x128xf32>
    %521 = arith.addf %516, %520 : vector<14x128xf32>
    %c6_368 = arith.constant 6 : index
    %c2_369 = arith.constant 2 : index
    %c0_370 = arith.constant 0 : index
    %522 = vector.load %arg9[%c6_368, %c2_369, %c0_370] : memref<18x18x128xf32, #tpu.memory_space<vmem>>, vector<1x14x128xf32>
    %523 = vector.shape_cast %522 : vector<1x14x128xf32> to vector<14x128xf32>
    %524 = vector.broadcast %132 : vector<1x128xf32> to vector<14x128xf32>
    %525 = arith.mulf %523, %524 : vector<14x128xf32>
    %526 = arith.addf %521, %525 : vector<14x128xf32>
    %c6_371 = arith.constant 6 : index
    %c3_372 = arith.constant 3 : index
    %c0_373 = arith.constant 0 : index
    %527 = vector.load %arg9[%c6_371, %c3_372, %c0_373] : memref<18x18x128xf32, #tpu.memory_space<vmem>>, vector<1x14x128xf32>
    %528 = vector.shape_cast %527 : vector<1x14x128xf32> to vector<14x128xf32>
    %529 = vector.broadcast %134 : vector<1x128xf32> to vector<14x128xf32>
    %530 = arith.mulf %528, %529 : vector<14x128xf32>
    %531 = arith.addf %526, %530 : vector<14x128xf32>
    %c6_374 = arith.constant 6 : index
    %c4_375 = arith.constant 4 : index
    %c0_376 = arith.constant 0 : index
    %532 = vector.load %arg9[%c6_374, %c4_375, %c0_376] : memref<18x18x128xf32, #tpu.memory_space<vmem>>, vector<1x14x128xf32>
    %533 = vector.shape_cast %532 : vector<1x14x128xf32> to vector<14x128xf32>
    %534 = vector.broadcast %136 : vector<1x128xf32> to vector<14x128xf32>
    %535 = arith.mulf %533, %534 : vector<14x128xf32>
    %536 = arith.addf %531, %535 : vector<14x128xf32>
    %c2_377 = arith.constant 2 : index
    %c0_378 = arith.constant 0 : index
    %c0_379 = arith.constant 0 : index
    %537 = vector.load %arg8[%c2_377, %c0_378, %c0_379] : memref<14x14x128xf32, #tpu.memory_space<vmem>>, vector<1x14x128xf32>
    %538 = vector.shape_cast %537 : vector<1x14x128xf32> to vector<14x128xf32>
    %539 = vector.shape_cast %536 : vector<14x128xf32> to vector<1x14x128xf32>
    tpu.vector_store %arg8[%c2_377, %c0_378, %c0_379], %539 {strides = array<i32>} : memref<14x14x128xf32, #tpu.memory_space<vmem>>, vector<1x14x128xf32>,
    %cst_380 = arith.constant dense<0.000000e+00> : vector<128xf32>
    %540 = vector.multi_reduction <add>, %536, %cst_380 [0] : vector<14x128xf32> to vector<128xf32>
    %541 = vector.shape_cast %540 : vector<128xf32> to vector<1x128xf32>
    %542 = arith.addf %406, %541 : vector<1x128xf32>
    %543 = arith.mulf %536, %536 : vector<14x128xf32>
    %cst_381 = arith.constant dense<0.000000e+00> : vector<128xf32>
    %544 = vector.multi_reduction <add>, %543, %cst_381 [0] : vector<14x128xf32> to vector<128xf32>
    %545 = vector.shape_cast %544 : vector<128xf32> to vector<1x128xf32>
    %546 = arith.addf %410, %545 : vector<1x128xf32>
    %cst_382 = arith.constant 0.000000e+00 : f32
    %547 = vector.broadcast %cst_382 : f32 to vector<14x128xf32>
    %c3_383 = arith.constant 3 : index
    %c0_384 = arith.constant 0 : index
    %c0_385 = arith.constant 0 : index
    %548 = vector.load %arg9[%c3_383, %c0_384, %c0_385] : memref<18x18x128xf32, #tpu.memory_space<vmem>>, vector<1x14x128xf32>
    %549 = vector.shape_cast %548 : vector<1x14x128xf32> to vector<14x128xf32>
    %550 = vector.broadcast %88 : vector<1x128xf32> to vector<14x128xf32>
    %551 = arith.mulf %549, %550 : vector<14x128xf32>
    %552 = arith.addf %547, %551 : vector<14x128xf32>
    %c3_386 = arith.constant 3 : index
    %c1_387 = arith.constant 1 : index
    %c0_388 = arith.constant 0 : index
    %553 = vector.load %arg9[%c3_386, %c1_387, %c0_388] : memref<18x18x128xf32, #tpu.memory_space<vmem>>, vector<1x14x128xf32>
    %554 = vector.shape_cast %553 : vector<1x14x128xf32> to vector<14x128xf32>
    %555 = vector.broadcast %90 : vector<1x128xf32> to vector<14x128xf32>
    %556 = arith.mulf %554, %555 : vector<14x128xf32>
    %557 = arith.addf %552, %556 : vector<14x128xf32>
    %c3_389 = arith.constant 3 : index
    %c2_390 = arith.constant 2 : index
    %c0_391 = arith.constant 0 : index
    %558 = vector.load %arg9[%c3_389, %c2_390, %c0_391] : memref<18x18x128xf32, #tpu.memory_space<vmem>>, vector<1x14x128xf32>
    %559 = vector.shape_cast %558 : vector<1x14x128xf32> to vector<14x128xf32>
    %560 = vector.broadcast %92 : vector<1x128xf32> to vector<14x128xf32>
    %561 = arith.mulf %559, %560 : vector<14x128xf32>
    %562 = arith.addf %557, %561 : vector<14x128xf32>
    %c3_392 = arith.constant 3 : index
    %c3_393 = arith.constant 3 : index
    %c0_394 = arith.constant 0 : index
    %563 = vector.load %arg9[%c3_392, %c3_393, %c0_394] : memref<18x18x128xf32, #tpu.memory_space<vmem>>, vector<1x14x128xf32>
    %564 = vector.shape_cast %563 : vector<1x14x128xf32> to vector<14x128xf32>
    %565 = vector.broadcast %94 : vector<1x128xf32> to vector<14x128xf32>
    %566 = arith.mulf %564, %565 : vector<14x128xf32>
    %567 = arith.addf %562, %566 : vector<14x128xf32>
    %c3_395 = arith.constant 3 : index
    %c4_396 = arith.constant 4 : index
    %c0_397 = arith.constant 0 : index
    %568 = vector.load %arg9[%c3_395, %c4_396, %c0_397] : memref<18x18x128xf32, #tpu.memory_space<vmem>>, vector<1x14x128xf32>
    %569 = vector.shape_cast %568 : vector<1x14x128xf32> to vector<14x128xf32>
    %570 = vector.broadcast %96 : vector<1x128xf32> to vector<14x128xf32>
    %571 = arith.mulf %569, %570 : vector<14x128xf32>
    %572 = arith.addf %567, %571 : vector<14x128xf32>
    %c4_398 = arith.constant 4 : index
    %c0_399 = arith.constant 0 : index
    %c0_400 = arith.constant 0 : index
    %573 = vector.load %arg9[%c4_398, %c0_399, %c0_400] : memref<18x18x128xf32, #tpu.memory_space<vmem>>, vector<1x14x128xf32>
    %574 = vector.shape_cast %573 : vector<1x14x128xf32> to vector<14x128xf32>
    %575 = vector.broadcast %98 : vector<1x128xf32> to vector<14x128xf32>
    %576 = arith.mulf %574, %575 : vector<14x128xf32>
    %577 = arith.addf %572, %576 : vector<14x128xf32>
    %c4_401 = arith.constant 4 : index
    %c1_402 = arith.constant 1 : index
    %c0_403 = arith.constant 0 : index
    %578 = vector.load %arg9[%c4_401, %c1_402, %c0_403] : memref<18x18x128xf32, #tpu.memory_space<vmem>>, vector<1x14x128xf32>
    %579 = vector.shape_cast %578 : vector<1x14x128xf32> to vector<14x128xf32>
    %580 = vector.broadcast %100 : vector<1x128xf32> to vector<14x128xf32>
    %581 = arith.mulf %579, %580 : vector<14x128xf32>
    %582 = arith.addf %577, %581 : vector<14x128xf32>
    %c4_404 = arith.constant 4 : index
    %c2_405 = arith.constant 2 : index
    %c0_406 = arith.constant 0 : index
    %583 = vector.load %arg9[%c4_404, %c2_405, %c0_406] : memref<18x18x128xf32, #tpu.memory_space<vmem>>, vector<1x14x128xf32>
    %584 = vector.shape_cast %583 : vector<1x14x128xf32> to vector<14x128xf32>
    %585 = vector.broadcast %102 : vector<1x128xf32> to vector<14x128xf32>
    %586 = arith.mulf %584, %585 : vector<14x128xf32>
    %587 = arith.addf %582, %586 : vector<14x128xf32>
    %c4_407 = arith.constant 4 : index
    %c3_408 = arith.constant 3 : index
    %c0_409 = arith.constant 0 : index
    %588 = vector.load %arg9[%c4_407, %c3_408, %c0_409] : memref<18x18x128xf32, #tpu.memory_space<vmem>>, vector<1x14x128xf32>
    %589 = vector.shape_cast %588 : vector<1x14x128xf32> to vector<14x128xf32>
    %590 = vector.broadcast %104 : vector<1x128xf32> to vector<14x128xf32>
    %591 = arith.mulf %589, %590 : vector<14x128xf32>
    %592 = arith.addf %587, %591 : vector<14x128xf32>
    %c4_410 = arith.constant 4 : index
    %c4_411 = arith.constant 4 : index
    %c0_412 = arith.constant 0 : index
    %593 = vector.load %arg9[%c4_410, %c4_411, %c0_412] : memref<18x18x128xf32, #tpu.memory_space<vmem>>, vector<1x14x128xf32>
    %594 = vector.shape_cast %593 : vector<1x14x128xf32> to vector<14x128xf32>
    %595 = vector.broadcast %106 : vector<1x128xf32> to vector<14x128xf32>
    %596 = arith.mulf %594, %595 : vector<14x128xf32>
    %597 = arith.addf %592, %596 : vector<14x128xf32>
    %c5_413 = arith.constant 5 : index
    %c0_414 = arith.constant 0 : index
    %c0_415 = arith.constant 0 : index
    %598 = vector.load %arg9[%c5_413, %c0_414, %c0_415] : memref<18x18x128xf32, #tpu.memory_space<vmem>>, vector<1x14x128xf32>
    %599 = vector.shape_cast %598 : vector<1x14x128xf32> to vector<14x128xf32>
    %600 = vector.broadcast %108 : vector<1x128xf32> to vector<14x128xf32>
    %601 = arith.mulf %599, %600 : vector<14x128xf32>
    %602 = arith.addf %597, %601 : vector<14x128xf32>
    %c5_416 = arith.constant 5 : index
    %c1_417 = arith.constant 1 : index
    %c0_418 = arith.constant 0 : index
    %603 = vector.load %arg9[%c5_416, %c1_417, %c0_418] : memref<18x18x128xf32, #tpu.memory_space<vmem>>, vector<1x14x128xf32>
    %604 = vector.shape_cast %603 : vector<1x14x128xf32> to vector<14x128xf32>
    %605 = vector.broadcast %110 : vector<1x128xf32> to vector<14x128xf32>
    %606 = arith.mulf %604, %605 : vector<14x128xf32>
    %607 = arith.addf %602, %606 : vector<14x128xf32>
    %c5_419 = arith.constant 5 : index
    %c2_420 = arith.constant 2 : index
    %c0_421 = arith.constant 0 : index
    %608 = vector.load %arg9[%c5_419, %c2_420, %c0_421] : memref<18x18x128xf32, #tpu.memory_space<vmem>>, vector<1x14x128xf32>
    %609 = vector.shape_cast %608 : vector<1x14x128xf32> to vector<14x128xf32>
    %610 = vector.broadcast %112 : vector<1x128xf32> to vector<14x128xf32>
    %611 = arith.mulf %609, %610 : vector<14x128xf32>
    %612 = arith.addf %607, %611 : vector<14x128xf32>
    %c5_422 = arith.constant 5 : index
    %c3_423 = arith.constant 3 : index
    %c0_424 = arith.constant 0 : index
    %613 = vector.load %arg9[%c5_422, %c3_423, %c0_424] : memref<18x18x128xf32, #tpu.memory_space<vmem>>, vector<1x14x128xf32>
    %614 = vector.shape_cast %613 : vector<1x14x128xf32> to vector<14x128xf32>
    %615 = vector.broadcast %114 : vector<1x128xf32> to vector<14x128xf32>
    %616 = arith.mulf %614, %615 : vector<14x128xf32>
    %617 = arith.addf %612, %616 : vector<14x128xf32>
    %c5_425 = arith.constant 5 : index
    %c4_426 = arith.constant 4 : index
    %c0_427 = arith.constant 0 : index
    %618 = vector.load %arg9[%c5_425, %c4_426, %c0_427] : memref<18x18x128xf32, #tpu.memory_space<vmem>>, vector<1x14x128xf32>
    %619 = vector.shape_cast %618 : vector<1x14x128xf32> to vector<14x128xf32>
    %620 = vector.broadcast %116 : vector<1x128xf32> to vector<14x128xf32>
    %621 = arith.mulf %619, %620 : vector<14x128xf32>
    %622 = arith.addf %617, %621 : vector<14x128xf32>
    %c6_428 = arith.constant 6 : index
    %c0_429 = arith.constant 0 : index
    %c0_430 = arith.constant 0 : index
    %623 = vector.load %arg9[%c6_428, %c0_429, %c0_430] : memref<18x18x128xf32, #tpu.memory_space<vmem>>, vector<1x14x128xf32>
    %624 = vector.shape_cast %623 : vector<1x14x128xf32> to vector<14x128xf32>
    %625 = vector.broadcast %118 : vector<1x128xf32> to vector<14x128xf32>
    %626 = arith.mulf %624, %625 : vector<14x128xf32>
    %627 = arith.addf %622, %626 : vector<14x128xf32>
    %c6_431 = arith.constant 6 : index
    %c1_432 = arith.constant 1 : index
    %c0_433 = arith.constant 0 : index
    %628 = vector.load %arg9[%c6_431, %c1_432, %c0_433] : memref<18x18x128xf32, #tpu.memory_space<vmem>>, vector<1x14x128xf32>
    %629 = vector.shape_cast %628 : vector<1x14x128xf32> to vector<14x128xf32>
    %630 = vector.broadcast %120 : vector<1x128xf32> to vector<14x128xf32>
    %631 = arith.mulf %629, %630 : vector<14x128xf32>
    %632 = arith.addf %627, %631 : vector<14x128xf32>
    %c6_434 = arith.constant 6 : index
    %c2_435 = arith.constant 2 : index
    %c0_436 = arith.constant 0 : index
    %633 = vector.load %arg9[%c6_434, %c2_435, %c0_436] : memref<18x18x128xf32, #tpu.memory_space<vmem>>, vector<1x14x128xf32>
    %634 = vector.shape_cast %633 : vector<1x14x128xf32> to vector<14x128xf32>
    %635 = vector.broadcast %122 : vector<1x128xf32> to vector<14x128xf32>
    %636 = arith.mulf %634, %635 : vector<14x128xf32>
    %637 = arith.addf %632, %636 : vector<14x128xf32>
    %c6_437 = arith.constant 6 : index
    %c3_438 = arith.constant 3 : index
    %c0_439 = arith.constant 0 : index
    %638 = vector.load %arg9[%c6_437, %c3_438, %c0_439] : memref<18x18x128xf32, #tpu.memory_space<vmem>>, vector<1x14x128xf32>
    %639 = vector.shape_cast %638 : vector<1x14x128xf32> to vector<14x128xf32>
    %640 = vector.broadcast %124 : vector<1x128xf32> to vector<14x128xf32>
    %641 = arith.mulf %639, %640 : vector<14x128xf32>
    %642 = arith.addf %637, %641 : vector<14x128xf32>
    %c6_440 = arith.constant 6 : index
    %c4_441 = arith.constant 4 : index
    %c0_442 = arith.constant 0 : index
    %643 = vector.load %arg9[%c6_440, %c4_441, %c0_442] : memref<18x18x128xf32, #tpu.memory_space<vmem>>, vector<1x14x128xf32>
    %644 = vector.shape_cast %643 : vector<1x14x128xf32> to vector<14x128xf32>
    %645 = vector.broadcast %126 : vector<1x128xf32> to vector<14x128xf32>
    %646 = arith.mulf %644, %645 : vector<14x128xf32>
    %647 = arith.addf %642, %646 : vector<14x128xf32>
    %c7_443 = arith.constant 7 : index
    %c0_444 = arith.constant 0 : index
    %c0_445 = arith.constant 0 : index
    %648 = vector.load %arg9[%c7_443, %c0_444, %c0_445] : memref<18x18x128xf32, #tpu.memory_space<vmem>>, vector<1x14x128xf32>
    %649 = vector.shape_cast %648 : vector<1x14x128xf32> to vector<14x128xf32>
    %650 = vector.broadcast %128 : vector<1x128xf32> to vector<14x128xf32>
    %651 = arith.mulf %649, %650 : vector<14x128xf32>
    %652 = arith.addf %647, %651 : vector<14x128xf32>
    %c7_446 = arith.constant 7 : index
    %c1_447 = arith.constant 1 : index
    %c0_448 = arith.constant 0 : index
    %653 = vector.load %arg9[%c7_446, %c1_447, %c0_448] : memref<18x18x128xf32, #tpu.memory_space<vmem>>, vector<1x14x128xf32>
    %654 = vector.shape_cast %653 : vector<1x14x128xf32> to vector<14x128xf32>
    %655 = vector.broadcast %130 : vector<1x128xf32> to vector<14x128xf32>
    %656 = arith.mulf %654, %655 : vector<14x128xf32>
    %657 = arith.addf %652, %656 : vector<14x128xf32>
    %c7_449 = arith.constant 7 : index
    %c2_450 = arith.constant 2 : index
    %c0_451 = arith.constant 0 : index
    %658 = vector.load %arg9[%c7_449, %c2_450, %c0_451] : memref<18x18x128xf32, #tpu.memory_space<vmem>>, vector<1x14x128xf32>
    %659 = vector.shape_cast %658 : vector<1x14x128xf32> to vector<14x128xf32>
    %660 = vector.broadcast %132 : vector<1x128xf32> to vector<14x128xf32>
    %661 = arith.mulf %659, %660 : vector<14x128xf32>
    %662 = arith.addf %657, %661 : vector<14x128xf32>
    %c7_452 = arith.constant 7 : index
    %c3_453 = arith.constant 3 : index
    %c0_454 = arith.constant 0 : index
    %663 = vector.load %arg9[%c7_452, %c3_453, %c0_454] : memref<18x18x128xf32, #tpu.memory_space<vmem>>, vector<1x14x128xf32>
    %664 = vector.shape_cast %663 : vector<1x14x128xf32> to vector<14x128xf32>
    %665 = vector.broadcast %134 : vector<1x128xf32> to vector<14x128xf32>
    %666 = arith.mulf %664, %665 : vector<14x128xf32>
    %667 = arith.addf %662, %666 : vector<14x128xf32>
    %c7_455 = arith.constant 7 : index
    %c4_456 = arith.constant 4 : index
    %c0_457 = arith.constant 0 : index
    %668 = vector.load %arg9[%c7_455, %c4_456, %c0_457] : memref<18x18x128xf32, #tpu.memory_space<vmem>>, vector<1x14x128xf32>
    %669 = vector.shape_cast %668 : vector<1x14x128xf32> to vector<14x128xf32>
    %670 = vector.broadcast %136 : vector<1x128xf32> to vector<14x128xf32>
    %671 = arith.mulf %669, %670 : vector<14x128xf32>
    %672 = arith.addf %667, %671 : vector<14x128xf32>
    %c3_458 = arith.constant 3 : index
    %c0_459 = arith.constant 0 : index
    %c0_460 = arith.constant 0 : index
    %673 = vector.load %arg8[%c3_458, %c0_459, %c0_460] : memref<14x14x128xf32, #tpu.memory_space<vmem>>, vector<1x14x128xf32>
    %674 = vector.shape_cast %673 : vector<1x14x128xf32> to vector<14x128xf32>
    %675 = vector.shape_cast %672 : vector<14x128xf32> to vector<1x14x128xf32>
    tpu.vector_store %arg8[%c3_458, %c0_459, %c0_460], %675 {strides = array<i32>} : memref<14x14x128xf32, #tpu.memory_space<vmem>>, vector<1x14x128xf32>,
    %cst_461 = arith.constant dense<0.000000e+00> : vector<128xf32>
    %676 = vector.multi_reduction <add>, %672, %cst_461 [0] : vector<14x128xf32> to vector<128xf32>
    %677 = vector.shape_cast %676 : vector<128xf32> to vector<1x128xf32>
    %678 = arith.addf %542, %677 : vector<1x128xf32>
    %679 = arith.mulf %672, %672 : vector<14x128xf32>
    %cst_462 = arith.constant dense<0.000000e+00> : vector<128xf32>
    %680 = vector.multi_reduction <add>, %679, %cst_462 [0] : vector<14x128xf32> to vector<128xf32>
    %681 = vector.shape_cast %680 : vector<128xf32> to vector<1x128xf32>
    %682 = arith.addf %546, %681 : vector<1x128xf32>
    %cst_463 = arith.constant 0.000000e+00 : f32
    %683 = vector.broadcast %cst_463 : f32 to vector<14x128xf32>
    %c4_464 = arith.constant 4 : index
    %c0_465 = arith.constant 0 : index
    %c0_466 = arith.constant 0 : index
    %684 = vector.load %arg9[%c4_464, %c0_465, %c0_466] : memref<18x18x128xf32, #tpu.memory_space<vmem>>, vector<1x14x128xf32>
    %685 = vector.shape_cast %684 : vector<1x14x128xf32> to vector<14x128xf32>
    %686 = vector.broadcast %88 : vector<1x128xf32> to vector<14x128xf32>
    %687 = arith.mulf %685, %686 : vector<14x128xf32>
    %688 = arith.addf %683, %687 : vector<14x128xf32>
    %c4_467 = arith.constant 4 : index
    %c1_468 = arith.constant 1 : index
    %c0_469 = arith.constant 0 : index
    %689 = vector.load %arg9[%c4_467, %c1_468, %c0_469] : memref<18x18x128xf32, #tpu.memory_space<vmem>>, vector<1x14x128xf32>
    %690 = vector.shape_cast %689 : vector<1x14x128xf32> to vector<14x128xf32>
    %691 = vector.broadcast %90 : vector<1x128xf32> to vector<14x128xf32>
    %692 = arith.mulf %690, %691 : vector<14x128xf32>
    %693 = arith.addf %688, %692 : vector<14x128xf32>
    %c4_470 = arith.constant 4 : index
    %c2_471 = arith.constant 2 : index
    %c0_472 = arith.constant 0 : index
    %694 = vector.load %arg9[%c4_470, %c2_471, %c0_472] : memref<18x18x128xf32, #tpu.memory_space<vmem>>, vector<1x14x128xf32>
    %695 = vector.shape_cast %694 : vector<1x14x128xf32> to vector<14x128xf32>
    %696 = vector.broadcast %92 : vector<1x128xf32> to vector<14x128xf32>
    %697 = arith.mulf %695, %696 : vector<14x128xf32>
    %698 = arith.addf %693, %697 : vector<14x128xf32>
    %c4_473 = arith.constant 4 : index
    %c3_474 = arith.constant 3 : index
    %c0_475 = arith.constant 0 : index
    %699 = vector.load %arg9[%c4_473, %c3_474, %c0_475] : memref<18x18x128xf32, #tpu.memory_space<vmem>>, vector<1x14x128xf32>
    %700 = vector.shape_cast %699 : vector<1x14x128xf32> to vector<14x128xf32>
    %701 = vector.broadcast %94 : vector<1x128xf32> to vector<14x128xf32>
    %702 = arith.mulf %700, %701 : vector<14x128xf32>
    %703 = arith.addf %698, %702 : vector<14x128xf32>
    %c4_476 = arith.constant 4 : index
    %c4_477 = arith.constant 4 : index
    %c0_478 = arith.constant 0 : index
    %704 = vector.load %arg9[%c4_476, %c4_477, %c0_478] : memref<18x18x128xf32, #tpu.memory_space<vmem>>, vector<1x14x128xf32>
    %705 = vector.shape_cast %704 : vector<1x14x128xf32> to vector<14x128xf32>
    %706 = vector.broadcast %96 : vector<1x128xf32> to vector<14x128xf32>
    %707 = arith.mulf %705, %706 : vector<14x128xf32>
    %708 = arith.addf %703, %707 : vector<14x128xf32>
    %c5_479 = arith.constant 5 : index
    %c0_480 = arith.constant 0 : index
    %c0_481 = arith.constant 0 : index
    %709 = vector.load %arg9[%c5_479, %c0_480, %c0_481] : memref<18x18x128xf32, #tpu.memory_space<vmem>>, vector<1x14x128xf32>
    %710 = vector.shape_cast %709 : vector<1x14x128xf32> to vector<14x128xf32>
    %711 = vector.broadcast %98 : vector<1x128xf32> to vector<14x128xf32>
    %712 = arith.mulf %710, %711 : vector<14x128xf32>
    %713 = arith.addf %708, %712 : vector<14x128xf32>
    %c5_482 = arith.constant 5 : index
    %c1_483 = arith.constant 1 : index
    %c0_484 = arith.constant 0 : index
    %714 = vector.load %arg9[%c5_482, %c1_483, %c0_484] : memref<18x18x128xf32, #tpu.memory_space<vmem>>, vector<1x14x128xf32>
    %715 = vector.shape_cast %714 : vector<1x14x128xf32> to vector<14x128xf32>
    %716 = vector.broadcast %100 : vector<1x128xf32> to vector<14x128xf32>
    %717 = arith.mulf %715, %716 : vector<14x128xf32>
    %718 = arith.addf %713, %717 : vector<14x128xf32>
    %c5_485 = arith.constant 5 : index
    %c2_486 = arith.constant 2 : index
    %c0_487 = arith.constant 0 : index
    %719 = vector.load %arg9[%c5_485, %c2_486, %c0_487] : memref<18x18x128xf32, #tpu.memory_space<vmem>>, vector<1x14x128xf32>
    %720 = vector.shape_cast %719 : vector<1x14x128xf32> to vector<14x128xf32>
    %721 = vector.broadcast %102 : vector<1x128xf32> to vector<14x128xf32>
    %722 = arith.mulf %720, %721 : vector<14x128xf32>
    %723 = arith.addf %718, %722 : vector<14x128xf32>
    %c5_488 = arith.constant 5 : index
    %c3_489 = arith.constant 3 : index
    %c0_490 = arith.constant 0 : index
    %724 = vector.load %arg9[%c5_488, %c3_489, %c0_490] : memref<18x18x128xf32, #tpu.memory_space<vmem>>, vector<1x14x128xf32>
    %725 = vector.shape_cast %724 : vector<1x14x128xf32> to vector<14x128xf32>
    %726 = vector.broadcast %104 : vector<1x128xf32> to vector<14x128xf32>
    %727 = arith.mulf %725, %726 : vector<14x128xf32>
    %728 = arith.addf %723, %727 : vector<14x128xf32>
    %c5_491 = arith.constant 5 : index
    %c4_492 = arith.constant 4 : index
    %c0_493 = arith.constant 0 : index
    %729 = vector.load %arg9[%c5_491, %c4_492, %c0_493] : memref<18x18x128xf32, #tpu.memory_space<vmem>>, vector<1x14x128xf32>
    %730 = vector.shape_cast %729 : vector<1x14x128xf32> to vector<14x128xf32>
    %731 = vector.broadcast %106 : vector<1x128xf32> to vector<14x128xf32>
    %732 = arith.mulf %730, %731 : vector<14x128xf32>
    %733 = arith.addf %728, %732 : vector<14x128xf32>
    %c6_494 = arith.constant 6 : index
    %c0_495 = arith.constant 0 : index
    %c0_496 = arith.constant 0 : index
    %734 = vector.load %arg9[%c6_494, %c0_495, %c0_496] : memref<18x18x128xf32, #tpu.memory_space<vmem>>, vector<1x14x128xf32>
    %735 = vector.shape_cast %734 : vector<1x14x128xf32> to vector<14x128xf32>
    %736 = vector.broadcast %108 : vector<1x128xf32> to vector<14x128xf32>
    %737 = arith.mulf %735, %736 : vector<14x128xf32>
    %738 = arith.addf %733, %737 : vector<14x128xf32>
    %c6_497 = arith.constant 6 : index
    %c1_498 = arith.constant 1 : index
    %c0_499 = arith.constant 0 : index
    %739 = vector.load %arg9[%c6_497, %c1_498, %c0_499] : memref<18x18x128xf32, #tpu.memory_space<vmem>>, vector<1x14x128xf32>
    %740 = vector.shape_cast %739 : vector<1x14x128xf32> to vector<14x128xf32>
    %741 = vector.broadcast %110 : vector<1x128xf32> to vector<14x128xf32>
    %742 = arith.mulf %740, %741 : vector<14x128xf32>
    %743 = arith.addf %738, %742 : vector<14x128xf32>
    %c6_500 = arith.constant 6 : index
    %c2_501 = arith.constant 2 : index
    %c0_502 = arith.constant 0 : index
    %744 = vector.load %arg9[%c6_500, %c2_501, %c0_502] : memref<18x18x128xf32, #tpu.memory_space<vmem>>, vector<1x14x128xf32>
    %745 = vector.shape_cast %744 : vector<1x14x128xf32> to vector<14x128xf32>
    %746 = vector.broadcast %112 : vector<1x128xf32> to vector<14x128xf32>
    %747 = arith.mulf %745, %746 : vector<14x128xf32>
    %748 = arith.addf %743, %747 : vector<14x128xf32>
    %c6_503 = arith.constant 6 : index
    %c3_504 = arith.constant 3 : index
    %c0_505 = arith.constant 0 : index
    %749 = vector.load %arg9[%c6_503, %c3_504, %c0_505] : memref<18x18x128xf32, #tpu.memory_space<vmem>>, vector<1x14x128xf32>
    %750 = vector.shape_cast %749 : vector<1x14x128xf32> to vector<14x128xf32>
    %751 = vector.broadcast %114 : vector<1x128xf32> to vector<14x128xf32>
    %752 = arith.mulf %750, %751 : vector<14x128xf32>
    %753 = arith.addf %748, %752 : vector<14x128xf32>
    %c6_506 = arith.constant 6 : index
    %c4_507 = arith.constant 4 : index
    %c0_508 = arith.constant 0 : index
    %754 = vector.load %arg9[%c6_506, %c4_507, %c0_508] : memref<18x18x128xf32, #tpu.memory_space<vmem>>, vector<1x14x128xf32>
    %755 = vector.shape_cast %754 : vector<1x14x128xf32> to vector<14x128xf32>
    %756 = vector.broadcast %116 : vector<1x128xf32> to vector<14x128xf32>
    %757 = arith.mulf %755, %756 : vector<14x128xf32>
    %758 = arith.addf %753, %757 : vector<14x128xf32>
    %c7_509 = arith.constant 7 : index
    %c0_510 = arith.constant 0 : index
    %c0_511 = arith.constant 0 : index
    %759 = vector.load %arg9[%c7_509, %c0_510, %c0_511] : memref<18x18x128xf32, #tpu.memory_space<vmem>>, vector<1x14x128xf32>
    %760 = vector.shape_cast %759 : vector<1x14x128xf32> to vector<14x128xf32>
    %761 = vector.broadcast %118 : vector<1x128xf32> to vector<14x128xf32>
    %762 = arith.mulf %760, %761 : vector<14x128xf32>
    %763 = arith.addf %758, %762 : vector<14x128xf32>
    %c7_512 = arith.constant 7 : index
    %c1_513 = arith.constant 1 : index
    %c0_514 = arith.constant 0 : index
    %764 = vector.load %arg9[%c7_512, %c1_513, %c0_514] : memref<18x18x128xf32, #tpu.memory_space<vmem>>, vector<1x14x128xf32>
    %765 = vector.shape_cast %764 : vector<1x14x128xf32> to vector<14x128xf32>
    %766 = vector.broadcast %120 : vector<1x128xf32> to vector<14x128xf32>
    %767 = arith.mulf %765, %766 : vector<14x128xf32>
    %768 = arith.addf %763, %767 : vector<14x128xf32>
    %c7_515 = arith.constant 7 : index
    %c2_516 = arith.constant 2 : index
    %c0_517 = arith.constant 0 : index
    %769 = vector.load %arg9[%c7_515, %c2_516, %c0_517] : memref<18x18x128xf32, #tpu.memory_space<vmem>>, vector<1x14x128xf32>
    %770 = vector.shape_cast %769 : vector<1x14x128xf32> to vector<14x128xf32>
    %771 = vector.broadcast %122 : vector<1x128xf32> to vector<14x128xf32>
    %772 = arith.mulf %770, %771 : vector<14x128xf32>
    %773 = arith.addf %768, %772 : vector<14x128xf32>
    %c7_518 = arith.constant 7 : index
    %c3_519 = arith.constant 3 : index
    %c0_520 = arith.constant 0 : index
    %774 = vector.load %arg9[%c7_518, %c3_519, %c0_520] : memref<18x18x128xf32, #tpu.memory_space<vmem>>, vector<1x14x128xf32>
    %775 = vector.shape_cast %774 : vector<1x14x128xf32> to vector<14x128xf32>
    %776 = vector.broadcast %124 : vector<1x128xf32> to vector<14x128xf32>
    %777 = arith.mulf %775, %776 : vector<14x128xf32>
    %778 = arith.addf %773, %777 : vector<14x128xf32>
    %c7_521 = arith.constant 7 : index
    %c4_522 = arith.constant 4 : index
    %c0_523 = arith.constant 0 : index
    %779 = vector.load %arg9[%c7_521, %c4_522, %c0_523] : memref<18x18x128xf32, #tpu.memory_space<vmem>>, vector<1x14x128xf32>
    %780 = vector.shape_cast %779 : vector<1x14x128xf32> to vector<14x128xf32>
    %781 = vector.broadcast %126 : vector<1x128xf32> to vector<14x128xf32>
    %782 = arith.mulf %780, %781 : vector<14x128xf32>
    %783 = arith.addf %778, %782 : vector<14x128xf32>
    %c8_524 = arith.constant 8 : index
    %c0_525 = arith.constant 0 : index
    %c0_526 = arith.constant 0 : index
    %784 = vector.load %arg9[%c8_524, %c0_525, %c0_526] : memref<18x18x128xf32, #tpu.memory_space<vmem>>, vector<1x14x128xf32>
    %785 = vector.shape_cast %784 : vector<1x14x128xf32> to vector<14x128xf32>
    %786 = vector.broadcast %128 : vector<1x128xf32> to vector<14x128xf32>
    %787 = arith.mulf %785, %786 : vector<14x128xf32>
    %788 = arith.addf %783, %787 : vector<14x128xf32>
    %c8_527 = arith.constant 8 : index
    %c1_528 = arith.constant 1 : index
    %c0_529 = arith.constant 0 : index
    %789 = vector.load %arg9[%c8_527, %c1_528, %c0_529] : memref<18x18x128xf32, #tpu.memory_space<vmem>>, vector<1x14x128xf32>
    %790 = vector.shape_cast %789 : vector<1x14x128xf32> to vector<14x128xf32>
    %791 = vector.broadcast %130 : vector<1x128xf32> to vector<14x128xf32>
    %792 = arith.mulf %790, %791 : vector<14x128xf32>
    %793 = arith.addf %788, %792 : vector<14x128xf32>
    %c8_530 = arith.constant 8 : index
    %c2_531 = arith.constant 2 : index
    %c0_532 = arith.constant 0 : index
    %794 = vector.load %arg9[%c8_530, %c2_531, %c0_532] : memref<18x18x128xf32, #tpu.memory_space<vmem>>, vector<1x14x128xf32>
    %795 = vector.shape_cast %794 : vector<1x14x128xf32> to vector<14x128xf32>
    %796 = vector.broadcast %132 : vector<1x128xf32> to vector<14x128xf32>
    %797 = arith.mulf %795, %796 : vector<14x128xf32>
    %798 = arith.addf %793, %797 : vector<14x128xf32>
    %c8_533 = arith.constant 8 : index
    %c3_534 = arith.constant 3 : index
    %c0_535 = arith.constant 0 : index
    %799 = vector.load %arg9[%c8_533, %c3_534, %c0_535] : memref<18x18x128xf32, #tpu.memory_space<vmem>>, vector<1x14x128xf32>
    %800 = vector.shape_cast %799 : vector<1x14x128xf32> to vector<14x128xf32>
    %801 = vector.broadcast %134 : vector<1x128xf32> to vector<14x128xf32>
    %802 = arith.mulf %800, %801 : vector<14x128xf32>
    %803 = arith.addf %798, %802 : vector<14x128xf32>
    %c8_536 = arith.constant 8 : index
    %c4_537 = arith.constant 4 : index
    %c0_538 = arith.constant 0 : index
    %804 = vector.load %arg9[%c8_536, %c4_537, %c0_538] : memref<18x18x128xf32, #tpu.memory_space<vmem>>, vector<1x14x128xf32>
    %805 = vector.shape_cast %804 : vector<1x14x128xf32> to vector<14x128xf32>
    %806 = vector.broadcast %136 : vector<1x128xf32> to vector<14x128xf32>
    %807 = arith.mulf %805, %806 : vector<14x128xf32>
    %808 = arith.addf %803, %807 : vector<14x128xf32>
    %c4_539 = arith.constant 4 : index
    %c0_540 = arith.constant 0 : index
    %c0_541 = arith.constant 0 : index
    %809 = vector.load %arg8[%c4_539, %c0_540, %c0_541] : memref<14x14x128xf32, #tpu.memory_space<vmem>>, vector<1x14x128xf32>
    %810 = vector.shape_cast %809 : vector<1x14x128xf32> to vector<14x128xf32>
    %811 = vector.shape_cast %808 : vector<14x128xf32> to vector<1x14x128xf32>
    tpu.vector_store %arg8[%c4_539, %c0_540, %c0_541], %811 {strides = array<i32>} : memref<14x14x128xf32, #tpu.memory_space<vmem>>, vector<1x14x128xf32>,
    %cst_542 = arith.constant dense<0.000000e+00> : vector<128xf32>
    %812 = vector.multi_reduction <add>, %808, %cst_542 [0] : vector<14x128xf32> to vector<128xf32>
    %813 = vector.shape_cast %812 : vector<128xf32> to vector<1x128xf32>
    %814 = arith.addf %678, %813 : vector<1x128xf32>
    %815 = arith.mulf %808, %808 : vector<14x128xf32>
    %cst_543 = arith.constant dense<0.000000e+00> : vector<128xf32>
    %816 = vector.multi_reduction <add>, %815, %cst_543 [0] : vector<14x128xf32> to vector<128xf32>
    %817 = vector.shape_cast %816 : vector<128xf32> to vector<1x128xf32>
    %818 = arith.addf %682, %817 : vector<1x128xf32>
    %cst_544 = arith.constant 0.000000e+00 : f32
    %819 = vector.broadcast %cst_544 : f32 to vector<14x128xf32>
    %c5_545 = arith.constant 5 : index
    %c0_546 = arith.constant 0 : index
    %c0_547 = arith.constant 0 : index
    %820 = vector.load %arg9[%c5_545, %c0_546, %c0_547] : memref<18x18x128xf32, #tpu.memory_space<vmem>>, vector<1x14x128xf32>
    %821 = vector.shape_cast %820 : vector<1x14x128xf32> to vector<14x128xf32>
    %822 = vector.broadcast %88 : vector<1x128xf32> to vector<14x128xf32>
    %823 = arith.mulf %821, %822 : vector<14x128xf32>
    %824 = arith.addf %819, %823 : vector<14x128xf32>
    %c5_548 = arith.constant 5 : index
    %c1_549 = arith.constant 1 : index
    %c0_550 = arith.constant 0 : index
    %825 = vector.load %arg9[%c5_548, %c1_549, %c0_550] : memref<18x18x128xf32, #tpu.memory_space<vmem>>, vector<1x14x128xf32>
    %826 = vector.shape_cast %825 : vector<1x14x128xf32> to vector<14x128xf32>
    %827 = vector.broadcast %90 : vector<1x128xf32> to vector<14x128xf32>
    %828 = arith.mulf %826, %827 : vector<14x128xf32>
    %829 = arith.addf %824, %828 : vector<14x128xf32>
    %c5_551 = arith.constant 5 : index
    %c2_552 = arith.constant 2 : index
    %c0_553 = arith.constant 0 : index
    %830 = vector.load %arg9[%c5_551, %c2_552, %c0_553] : memref<18x18x128xf32, #tpu.memory_space<vmem>>, vector<1x14x128xf32>
    %831 = vector.shape_cast %830 : vector<1x14x128xf32> to vector<14x128xf32>
    %832 = vector.broadcast %92 : vector<1x128xf32> to vector<14x128xf32>
    %833 = arith.mulf %831, %832 : vector<14x128xf32>
    %834 = arith.addf %829, %833 : vector<14x128xf32>
    %c5_554 = arith.constant 5 : index
    %c3_555 = arith.constant 3 : index
    %c0_556 = arith.constant 0 : index
    %835 = vector.load %arg9[%c5_554, %c3_555, %c0_556] : memref<18x18x128xf32, #tpu.memory_space<vmem>>, vector<1x14x128xf32>
    %836 = vector.shape_cast %835 : vector<1x14x128xf32> to vector<14x128xf32>
    %837 = vector.broadcast %94 : vector<1x128xf32> to vector<14x128xf32>
    %838 = arith.mulf %836, %837 : vector<14x128xf32>
    %839 = arith.addf %834, %838 : vector<14x128xf32>
    %c5_557 = arith.constant 5 : index
    %c4_558 = arith.constant 4 : index
    %c0_559 = arith.constant 0 : index
    %840 = vector.load %arg9[%c5_557, %c4_558, %c0_559] : memref<18x18x128xf32, #tpu.memory_space<vmem>>, vector<1x14x128xf32>
    %841 = vector.shape_cast %840 : vector<1x14x128xf32> to vector<14x128xf32>
    %842 = vector.broadcast %96 : vector<1x128xf32> to vector<14x128xf32>
    %843 = arith.mulf %841, %842 : vector<14x128xf32>
    %844 = arith.addf %839, %843 : vector<14x128xf32>
    %c6_560 = arith.constant 6 : index
    %c0_561 = arith.constant 0 : index
    %c0_562 = arith.constant 0 : index
    %845 = vector.load %arg9[%c6_560, %c0_561, %c0_562] : memref<18x18x128xf32, #tpu.memory_space<vmem>>, vector<1x14x128xf32>
    %846 = vector.shape_cast %845 : vector<1x14x128xf32> to vector<14x128xf32>
    %847 = vector.broadcast %98 : vector<1x128xf32> to vector<14x128xf32>
    %848 = arith.mulf %846, %847 : vector<14x128xf32>
    %849 = arith.addf %844, %848 : vector<14x128xf32>
    %c6_563 = arith.constant 6 : index
    %c1_564 = arith.constant 1 : index
    %c0_565 = arith.constant 0 : index
    %850 = vector.load %arg9[%c6_563, %c1_564, %c0_565] : memref<18x18x128xf32, #tpu.memory_space<vmem>>, vector<1x14x128xf32>
    %851 = vector.shape_cast %850 : vector<1x14x128xf32> to vector<14x128xf32>
    %852 = vector.broadcast %100 : vector<1x128xf32> to vector<14x128xf32>
    %853 = arith.mulf %851, %852 : vector<14x128xf32>
    %854 = arith.addf %849, %853 : vector<14x128xf32>
    %c6_566 = arith.constant 6 : index
    %c2_567 = arith.constant 2 : index
    %c0_568 = arith.constant 0 : index
    %855 = vector.load %arg9[%c6_566, %c2_567, %c0_568] : memref<18x18x128xf32, #tpu.memory_space<vmem>>, vector<1x14x128xf32>
    %856 = vector.shape_cast %855 : vector<1x14x128xf32> to vector<14x128xf32>
    %857 = vector.broadcast %102 : vector<1x128xf32> to vector<14x128xf32>
    %858 = arith.mulf %856, %857 : vector<14x128xf32>
    %859 = arith.addf %854, %858 : vector<14x128xf32>
    %c6_569 = arith.constant 6 : index
    %c3_570 = arith.constant 3 : index
    %c0_571 = arith.constant 0 : index
    %860 = vector.load %arg9[%c6_569, %c3_570, %c0_571] : memref<18x18x128xf32, #tpu.memory_space<vmem>>, vector<1x14x128xf32>
    %861 = vector.shape_cast %860 : vector<1x14x128xf32> to vector<14x128xf32>
    %862 = vector.broadcast %104 : vector<1x128xf32> to vector<14x128xf32>
    %863 = arith.mulf %861, %862 : vector<14x128xf32>
    %864 = arith.addf %859, %863 : vector<14x128xf32>
    %c6_572 = arith.constant 6 : index
    %c4_573 = arith.constant 4 : index
    %c0_574 = arith.constant 0 : index
    %865 = vector.load %arg9[%c6_572, %c4_573, %c0_574] : memref<18x18x128xf32, #tpu.memory_space<vmem>>, vector<1x14x128xf32>
    %866 = vector.shape_cast %865 : vector<1x14x128xf32> to vector<14x128xf32>
    %867 = vector.broadcast %106 : vector<1x128xf32> to vector<14x128xf32>
    %868 = arith.mulf %866, %867 : vector<14x128xf32>
    %869 = arith.addf %864, %868 : vector<14x128xf32>
    %c7_575 = arith.constant 7 : index
    %c0_576 = arith.constant 0 : index
    %c0_577 = arith.constant 0 : index
    %870 = vector.load %arg9[%c7_575, %c0_576, %c0_577] : memref<18x18x128xf32, #tpu.memory_space<vmem>>, vector<1x14x128xf32>
    %871 = vector.shape_cast %870 : vector<1x14x128xf32> to vector<14x128xf32>
    %872 = vector.broadcast %108 : vector<1x128xf32> to vector<14x128xf32>
    %873 = arith.mulf %871, %872 : vector<14x128xf32>
    %874 = arith.addf %869, %873 : vector<14x128xf32>
    %c7_578 = arith.constant 7 : index
    %c1_579 = arith.constant 1 : index
    %c0_580 = arith.constant 0 : index
    %875 = vector.load %arg9[%c7_578, %c1_579, %c0_580] : memref<18x18x128xf32, #tpu.memory_space<vmem>>, vector<1x14x128xf32>
    %876 = vector.shape_cast %875 : vector<1x14x128xf32> to vector<14x128xf32>
    %877 = vector.broadcast %110 : vector<1x128xf32> to vector<14x128xf32>
    %878 = arith.mulf %876, %877 : vector<14x128xf32>
    %879 = arith.addf %874, %878 : vector<14x128xf32>
    %c7_581 = arith.constant 7 : index
    %c2_582 = arith.constant 2 : index
    %c0_583 = arith.constant 0 : index
    %880 = vector.load %arg9[%c7_581, %c2_582, %c0_583] : memref<18x18x128xf32, #tpu.memory_space<vmem>>, vector<1x14x128xf32>
    %881 = vector.shape_cast %880 : vector<1x14x128xf32> to vector<14x128xf32>
    %882 = vector.broadcast %112 : vector<1x128xf32> to vector<14x128xf32>
    %883 = arith.mulf %881, %882 : vector<14x128xf32>
    %884 = arith.addf %879, %883 : vector<14x128xf32>
    %c7_584 = arith.constant 7 : index
    %c3_585 = arith.constant 3 : index
    %c0_586 = arith.constant 0 : index
    %885 = vector.load %arg9[%c7_584, %c3_585, %c0_586] : memref<18x18x128xf32, #tpu.memory_space<vmem>>, vector<1x14x128xf32>
    %886 = vector.shape_cast %885 : vector<1x14x128xf32> to vector<14x128xf32>
    %887 = vector.broadcast %114 : vector<1x128xf32> to vector<14x128xf32>
    %888 = arith.mulf %886, %887 : vector<14x128xf32>
    %889 = arith.addf %884, %888 : vector<14x128xf32>
    %c7_587 = arith.constant 7 : index
    %c4_588 = arith.constant 4 : index
    %c0_589 = arith.constant 0 : index
    %890 = vector.load %arg9[%c7_587, %c4_588, %c0_589] : memref<18x18x128xf32, #tpu.memory_space<vmem>>, vector<1x14x128xf32>
    %891 = vector.shape_cast %890 : vector<1x14x128xf32> to vector<14x128xf32>
    %892 = vector.broadcast %116 : vector<1x128xf32> to vector<14x128xf32>
    %893 = arith.mulf %891, %892 : vector<14x128xf32>
    %894 = arith.addf %889, %893 : vector<14x128xf32>
    %c8_590 = arith.constant 8 : index
    %c0_591 = arith.constant 0 : index
    %c0_592 = arith.constant 0 : index
    %895 = vector.load %arg9[%c8_590, %c0_591, %c0_592] : memref<18x18x128xf32, #tpu.memory_space<vmem>>, vector<1x14x128xf32>
    %896 = vector.shape_cast %895 : vector<1x14x128xf32> to vector<14x128xf32>
    %897 = vector.broadcast %118 : vector<1x128xf32> to vector<14x128xf32>
    %898 = arith.mulf %896, %897 : vector<14x128xf32>
    %899 = arith.addf %894, %898 : vector<14x128xf32>
    %c8_593 = arith.constant 8 : index
    %c1_594 = arith.constant 1 : index
    %c0_595 = arith.constant 0 : index
    %900 = vector.load %arg9[%c8_593, %c1_594, %c0_595] : memref<18x18x128xf32, #tpu.memory_space<vmem>>, vector<1x14x128xf32>
    %901 = vector.shape_cast %900 : vector<1x14x128xf32> to vector<14x128xf32>
    %902 = vector.broadcast %120 : vector<1x128xf32> to vector<14x128xf32>
    %903 = arith.mulf %901, %902 : vector<14x128xf32>
    %904 = arith.addf %899, %903 : vector<14x128xf32>
    %c8_596 = arith.constant 8 : index
    %c2_597 = arith.constant 2 : index
    %c0_598 = arith.constant 0 : index
    %905 = vector.load %arg9[%c8_596, %c2_597, %c0_598] : memref<18x18x128xf32, #tpu.memory_space<vmem>>, vector<1x14x128xf32>
    %906 = vector.shape_cast %905 : vector<1x14x128xf32> to vector<14x128xf32>
    %907 = vector.broadcast %122 : vector<1x128xf32> to vector<14x128xf32>
    %908 = arith.mulf %906, %907 : vector<14x128xf32>
    %909 = arith.addf %904, %908 : vector<14x128xf32>
    %c8_599 = arith.constant 8 : index
    %c3_600 = arith.constant 3 : index
    %c0_601 = arith.constant 0 : index
    %910 = vector.load %arg9[%c8_599, %c3_600, %c0_601] : memref<18x18x128xf32, #tpu.memory_space<vmem>>, vector<1x14x128xf32>
    %911 = vector.shape_cast %910 : vector<1x14x128xf32> to vector<14x128xf32>
    %912 = vector.broadcast %124 : vector<1x128xf32> to vector<14x128xf32>
    %913 = arith.mulf %911, %912 : vector<14x128xf32>
    %914 = arith.addf %909, %913 : vector<14x128xf32>
    %c8_602 = arith.constant 8 : index
    %c4_603 = arith.constant 4 : index
    %c0_604 = arith.constant 0 : index
    %915 = vector.load %arg9[%c8_602, %c4_603, %c0_604] : memref<18x18x128xf32, #tpu.memory_space<vmem>>, vector<1x14x128xf32>
    %916 = vector.shape_cast %915 : vector<1x14x128xf32> to vector<14x128xf32>
    %917 = vector.broadcast %126 : vector<1x128xf32> to vector<14x128xf32>
    %918 = arith.mulf %916, %917 : vector<14x128xf32>
    %919 = arith.addf %914, %918 : vector<14x128xf32>
    %c9_605 = arith.constant 9 : index
    %c0_606 = arith.constant 0 : index
    %c0_607 = arith.constant 0 : index
    %920 = vector.load %arg9[%c9_605, %c0_606, %c0_607] : memref<18x18x128xf32, #tpu.memory_space<vmem>>, vector<1x14x128xf32>
    %921 = vector.shape_cast %920 : vector<1x14x128xf32> to vector<14x128xf32>
    %922 = vector.broadcast %128 : vector<1x128xf32> to vector<14x128xf32>
    %923 = arith.mulf %921, %922 : vector<14x128xf32>
    %924 = arith.addf %919, %923 : vector<14x128xf32>
    %c9_608 = arith.constant 9 : index
    %c1_609 = arith.constant 1 : index
    %c0_610 = arith.constant 0 : index
    %925 = vector.load %arg9[%c9_608, %c1_609, %c0_610] : memref<18x18x128xf32, #tpu.memory_space<vmem>>, vector<1x14x128xf32>
    %926 = vector.shape_cast %925 : vector<1x14x128xf32> to vector<14x128xf32>
    %927 = vector.broadcast %130 : vector<1x128xf32> to vector<14x128xf32>
    %928 = arith.mulf %926, %927 : vector<14x128xf32>
    %929 = arith.addf %924, %928 : vector<14x128xf32>
    %c9_611 = arith.constant 9 : index
    %c2_612 = arith.constant 2 : index
    %c0_613 = arith.constant 0 : index
    %930 = vector.load %arg9[%c9_611, %c2_612, %c0_613] : memref<18x18x128xf32, #tpu.memory_space<vmem>>, vector<1x14x128xf32>
    %931 = vector.shape_cast %930 : vector<1x14x128xf32> to vector<14x128xf32>
    %932 = vector.broadcast %132 : vector<1x128xf32> to vector<14x128xf32>
    %933 = arith.mulf %931, %932 : vector<14x128xf32>
    %934 = arith.addf %929, %933 : vector<14x128xf32>
    %c9_614 = arith.constant 9 : index
    %c3_615 = arith.constant 3 : index
    %c0_616 = arith.constant 0 : index
    %935 = vector.load %arg9[%c9_614, %c3_615, %c0_616] : memref<18x18x128xf32, #tpu.memory_space<vmem>>, vector<1x14x128xf32>
    %936 = vector.shape_cast %935 : vector<1x14x128xf32> to vector<14x128xf32>
    %937 = vector.broadcast %134 : vector<1x128xf32> to vector<14x128xf32>
    %938 = arith.mulf %936, %937 : vector<14x128xf32>
    %939 = arith.addf %934, %938 : vector<14x128xf32>
    %c9_617 = arith.constant 9 : index
    %c4_618 = arith.constant 4 : index
    %c0_619 = arith.constant 0 : index
    %940 = vector.load %arg9[%c9_617, %c4_618, %c0_619] : memref<18x18x128xf32, #tpu.memory_space<vmem>>, vector<1x14x128xf32>
    %941 = vector.shape_cast %940 : vector<1x14x128xf32> to vector<14x128xf32>
    %942 = vector.broadcast %136 : vector<1x128xf32> to vector<14x128xf32>
    %943 = arith.mulf %941, %942 : vector<14x128xf32>
    %944 = arith.addf %939, %943 : vector<14x128xf32>
    %c5_620 = arith.constant 5 : index
    %c0_621 = arith.constant 0 : index
    %c0_622 = arith.constant 0 : index
    %945 = vector.load %arg8[%c5_620, %c0_621, %c0_622] : memref<14x14x128xf32, #tpu.memory_space<vmem>>, vector<1x14x128xf32>
    %946 = vector.shape_cast %945 : vector<1x14x128xf32> to vector<14x128xf32>
    %947 = vector.shape_cast %944 : vector<14x128xf32> to vector<1x14x128xf32>
    tpu.vector_store %arg8[%c5_620, %c0_621, %c0_622], %947 {strides = array<i32>} : memref<14x14x128xf32, #tpu.memory_space<vmem>>, vector<1x14x128xf32>,
    %cst_623 = arith.constant dense<0.000000e+00> : vector<128xf32>
    %948 = vector.multi_reduction <add>, %944, %cst_623 [0] : vector<14x128xf32> to vector<128xf32>
    %949 = vector.shape_cast %948 : vector<128xf32> to vector<1x128xf32>
    %950 = arith.addf %814, %949 : vector<1x128xf32>
    %951 = arith.mulf %944, %944 : vector<14x128xf32>
    %cst_624 = arith.constant dense<0.000000e+00> : vector<128xf32>
    %952 = vector.multi_reduction <add>, %951, %cst_624 [0] : vector<14x128xf32> to vector<128xf32>
    %953 = vector.shape_cast %952 : vector<128xf32> to vector<1x128xf32>
    %954 = arith.addf %818, %953 : vector<1x128xf32>
    %cst_625 = arith.constant 0.000000e+00 : f32
    %955 = vector.broadcast %cst_625 : f32 to vector<14x128xf32>
    %c6_626 = arith.constant 6 : index
    %c0_627 = arith.constant 0 : index
    %c0_628 = arith.constant 0 : index
    %956 = vector.load %arg9[%c6_626, %c0_627, %c0_628] : memref<18x18x128xf32, #tpu.memory_space<vmem>>, vector<1x14x128xf32>
    %957 = vector.shape_cast %956 : vector<1x14x128xf32> to vector<14x128xf32>
    %958 = vector.broadcast %88 : vector<1x128xf32> to vector<14x128xf32>
    %959 = arith.mulf %957, %958 : vector<14x128xf32>
    %960 = arith.addf %955, %959 : vector<14x128xf32>
    %c6_629 = arith.constant 6 : index
    %c1_630 = arith.constant 1 : index
    %c0_631 = arith.constant 0 : index
    %961 = vector.load %arg9[%c6_629, %c1_630, %c0_631] : memref<18x18x128xf32, #tpu.memory_space<vmem>>, vector<1x14x128xf32>
    %962 = vector.shape_cast %961 : vector<1x14x128xf32> to vector<14x128xf32>
    %963 = vector.broadcast %90 : vector<1x128xf32> to vector<14x128xf32>
    %964 = arith.mulf %962, %963 : vector<14x128xf32>
    %965 = arith.addf %960, %964 : vector<14x128xf32>
    %c6_632 = arith.constant 6 : index
    %c2_633 = arith.constant 2 : index
    %c0_634 = arith.constant 0 : index
    %966 = vector.load %arg9[%c6_632, %c2_633, %c0_634] : memref<18x18x128xf32, #tpu.memory_space<vmem>>, vector<1x14x128xf32>
    %967 = vector.shape_cast %966 : vector<1x14x128xf32> to vector<14x128xf32>
    %968 = vector.broadcast %92 : vector<1x128xf32> to vector<14x128xf32>
    %969 = arith.mulf %967, %968 : vector<14x128xf32>
    %970 = arith.addf %965, %969 : vector<14x128xf32>
    %c6_635 = arith.constant 6 : index
    %c3_636 = arith.constant 3 : index
    %c0_637 = arith.constant 0 : index
    %971 = vector.load %arg9[%c6_635, %c3_636, %c0_637] : memref<18x18x128xf32, #tpu.memory_space<vmem>>, vector<1x14x128xf32>
    %972 = vector.shape_cast %971 : vector<1x14x128xf32> to vector<14x128xf32>
    %973 = vector.broadcast %94 : vector<1x128xf32> to vector<14x128xf32>
    %974 = arith.mulf %972, %973 : vector<14x128xf32>
    %975 = arith.addf %970, %974 : vector<14x128xf32>
    %c6_638 = arith.constant 6 : index
    %c4_639 = arith.constant 4 : index
    %c0_640 = arith.constant 0 : index
    %976 = vector.load %arg9[%c6_638, %c4_639, %c0_640] : memref<18x18x128xf32, #tpu.memory_space<vmem>>, vector<1x14x128xf32>
    %977 = vector.shape_cast %976 : vector<1x14x128xf32> to vector<14x128xf32>
    %978 = vector.broadcast %96 : vector<1x128xf32> to vector<14x128xf32>
    %979 = arith.mulf %977, %978 : vector<14x128xf32>
    %980 = arith.addf %975, %979 : vector<14x128xf32>
    %c7_641 = arith.constant 7 : index
    %c0_642 = arith.constant 0 : index
    %c0_643 = arith.constant 0 : index
    %981 = vector.load %arg9[%c7_641, %c0_642, %c0_643] : memref<18x18x128xf32, #tpu.memory_space<vmem>>, vector<1x14x128xf32>
    %982 = vector.shape_cast %981 : vector<1x14x128xf32> to vector<14x128xf32>
    %983 = vector.broadcast %98 : vector<1x128xf32> to vector<14x128xf32>
    %984 = arith.mulf %982, %983 : vector<14x128xf32>
    %985 = arith.addf %980, %984 : vector<14x128xf32>
    %c7_644 = arith.constant 7 : index
    %c1_645 = arith.constant 1 : index
    %c0_646 = arith.constant 0 : index
    %986 = vector.load %arg9[%c7_644, %c1_645, %c0_646] : memref<18x18x128xf32, #tpu.memory_space<vmem>>, vector<1x14x128xf32>
    %987 = vector.shape_cast %986 : vector<1x14x128xf32> to vector<14x128xf32>
    %988 = vector.broadcast %100 : vector<1x128xf32> to vector<14x128xf32>
    %989 = arith.mulf %987, %988 : vector<14x128xf32>
    %990 = arith.addf %985, %989 : vector<14x128xf32>
    %c7_647 = arith.constant 7 : index
    %c2_648 = arith.constant 2 : index
    %c0_649 = arith.constant 0 : index
    %991 = vector.load %arg9[%c7_647, %c2_648, %c0_649] : memref<18x18x128xf32, #tpu.memory_space<vmem>>, vector<1x14x128xf32>
    %992 = vector.shape_cast %991 : vector<1x14x128xf32> to vector<14x128xf32>
    %993 = vector.broadcast %102 : vector<1x128xf32> to vector<14x128xf32>
    %994 = arith.mulf %992, %993 : vector<14x128xf32>
    %995 = arith.addf %990, %994 : vector<14x128xf32>
    %c7_650 = arith.constant 7 : index
    %c3_651 = arith.constant 3 : index
    %c0_652 = arith.constant 0 : index
    %996 = vector.load %arg9[%c7_650, %c3_651, %c0_652] : memref<18x18x128xf32, #tpu.memory_space<vmem>>, vector<1x14x128xf32>
    %997 = vector.shape_cast %996 : vector<1x14x128xf32> to vector<14x128xf32>
    %998 = vector.broadcast %104 : vector<1x128xf32> to vector<14x128xf32>
    %999 = arith.mulf %997, %998 : vector<14x128xf32>
    %1000 = arith.addf %995, %999 : vector<14x128xf32>
    %c7_653 = arith.constant 7 : index
    %c4_654 = arith.constant 4 : index
    %c0_655 = arith.constant 0 : index
    %1001 = vector.load %arg9[%c7_653, %c4_654, %c0_655] : memref<18x18x128xf32, #tpu.memory_space<vmem>>, vector<1x14x128xf32>
    %1002 = vector.shape_cast %1001 : vector<1x14x128xf32> to vector<14x128xf32>
    %1003 = vector.broadcast %106 : vector<1x128xf32> to vector<14x128xf32>
    %1004 = arith.mulf %1002, %1003 : vector<14x128xf32>
    %1005 = arith.addf %1000, %1004 : vector<14x128xf32>
    %c8_656 = arith.constant 8 : index
    %c0_657 = arith.constant 0 : index
    %c0_658 = arith.constant 0 : index
    %1006 = vector.load %arg9[%c8_656, %c0_657, %c0_658] : memref<18x18x128xf32, #tpu.memory_space<vmem>>, vector<1x14x128xf32>
    %1007 = vector.shape_cast %1006 : vector<1x14x128xf32> to vector<14x128xf32>
    %1008 = vector.broadcast %108 : vector<1x128xf32> to vector<14x128xf32>
    %1009 = arith.mulf %1007, %1008 : vector<14x128xf32>
    %1010 = arith.addf %1005, %1009 : vector<14x128xf32>
    %c8_659 = arith.constant 8 : index
    %c1_660 = arith.constant 1 : index
    %c0_661 = arith.constant 0 : index
    %1011 = vector.load %arg9[%c8_659, %c1_660, %c0_661] : memref<18x18x128xf32, #tpu.memory_space<vmem>>, vector<1x14x128xf32>
    %1012 = vector.shape_cast %1011 : vector<1x14x128xf32> to vector<14x128xf32>
    %1013 = vector.broadcast %110 : vector<1x128xf32> to vector<14x128xf32>
    %1014 = arith.mulf %1012, %1013 : vector<14x128xf32>
    %1015 = arith.addf %1010, %1014 : vector<14x128xf32>
    %c8_662 = arith.constant 8 : index
    %c2_663 = arith.constant 2 : index
    %c0_664 = arith.constant 0 : index
    %1016 = vector.load %arg9[%c8_662, %c2_663, %c0_664] : memref<18x18x128xf32, #tpu.memory_space<vmem>>, vector<1x14x128xf32>
    %1017 = vector.shape_cast %1016 : vector<1x14x128xf32> to vector<14x128xf32>
    %1018 = vector.broadcast %112 : vector<1x128xf32> to vector<14x128xf32>
    %1019 = arith.mulf %1017, %1018 : vector<14x128xf32>
    %1020 = arith.addf %1015, %1019 : vector<14x128xf32>
    %c8_665 = arith.constant 8 : index
    %c3_666 = arith.constant 3 : index
    %c0_667 = arith.constant 0 : index
    %1021 = vector.load %arg9[%c8_665, %c3_666, %c0_667] : memref<18x18x128xf32, #tpu.memory_space<vmem>>, vector<1x14x128xf32>
    %1022 = vector.shape_cast %1021 : vector<1x14x128xf32> to vector<14x128xf32>
    %1023 = vector.broadcast %114 : vector<1x128xf32> to vector<14x128xf32>
    %1024 = arith.mulf %1022, %1023 : vector<14x128xf32>
    %1025 = arith.addf %1020, %1024 : vector<14x128xf32>
    %c8_668 = arith.constant 8 : index
    %c4_669 = arith.constant 4 : index
    %c0_670 = arith.constant 0 : index
    %1026 = vector.load %arg9[%c8_668, %c4_669, %c0_670] : memref<18x18x128xf32, #tpu.memory_space<vmem>>, vector<1x14x128xf32>
    %1027 = vector.shape_cast %1026 : vector<1x14x128xf32> to vector<14x128xf32>
    %1028 = vector.broadcast %116 : vector<1x128xf32> to vector<14x128xf32>
    %1029 = arith.mulf %1027, %1028 : vector<14x128xf32>
    %1030 = arith.addf %1025, %1029 : vector<14x128xf32>
    %c9_671 = arith.constant 9 : index
    %c0_672 = arith.constant 0 : index
    %c0_673 = arith.constant 0 : index
    %1031 = vector.load %arg9[%c9_671, %c0_672, %c0_673] : memref<18x18x128xf32, #tpu.memory_space<vmem>>, vector<1x14x128xf32>
    %1032 = vector.shape_cast %1031 : vector<1x14x128xf32> to vector<14x128xf32>
    %1033 = vector.broadcast %118 : vector<1x128xf32> to vector<14x128xf32>
    %1034 = arith.mulf %1032, %1033 : vector<14x128xf32>
    %1035 = arith.addf %1030, %1034 : vector<14x128xf32>
    %c9_674 = arith.constant 9 : index
    %c1_675 = arith.constant 1 : index
    %c0_676 = arith.constant 0 : index
    %1036 = vector.load %arg9[%c9_674, %c1_675, %c0_676] : memref<18x18x128xf32, #tpu.memory_space<vmem>>, vector<1x14x128xf32>
    %1037 = vector.shape_cast %1036 : vector<1x14x128xf32> to vector<14x128xf32>
    %1038 = vector.broadcast %120 : vector<1x128xf32> to vector<14x128xf32>
    %1039 = arith.mulf %1037, %1038 : vector<14x128xf32>
    %1040 = arith.addf %1035, %1039 : vector<14x128xf32>
    %c9_677 = arith.constant 9 : index
    %c2_678 = arith.constant 2 : index
    %c0_679 = arith.constant 0 : index
    %1041 = vector.load %arg9[%c9_677, %c2_678, %c0_679] : memref<18x18x128xf32, #tpu.memory_space<vmem>>, vector<1x14x128xf32>
    %1042 = vector.shape_cast %1041 : vector<1x14x128xf32> to vector<14x128xf32>
    %1043 = vector.broadcast %122 : vector<1x128xf32> to vector<14x128xf32>
    %1044 = arith.mulf %1042, %1043 : vector<14x128xf32>
    %1045 = arith.addf %1040, %1044 : vector<14x128xf32>
    %c9_680 = arith.constant 9 : index
    %c3_681 = arith.constant 3 : index
    %c0_682 = arith.constant 0 : index
    %1046 = vector.load %arg9[%c9_680, %c3_681, %c0_682] : memref<18x18x128xf32, #tpu.memory_space<vmem>>, vector<1x14x128xf32>
    %1047 = vector.shape_cast %1046 : vector<1x14x128xf32> to vector<14x128xf32>
    %1048 = vector.broadcast %124 : vector<1x128xf32> to vector<14x128xf32>
    %1049 = arith.mulf %1047, %1048 : vector<14x128xf32>
    %1050 = arith.addf %1045, %1049 : vector<14x128xf32>
    %c9_683 = arith.constant 9 : index
    %c4_684 = arith.constant 4 : index
    %c0_685 = arith.constant 0 : index
    %1051 = vector.load %arg9[%c9_683, %c4_684, %c0_685] : memref<18x18x128xf32, #tpu.memory_space<vmem>>, vector<1x14x128xf32>
    %1052 = vector.shape_cast %1051 : vector<1x14x128xf32> to vector<14x128xf32>
    %1053 = vector.broadcast %126 : vector<1x128xf32> to vector<14x128xf32>
    %1054 = arith.mulf %1052, %1053 : vector<14x128xf32>
    %1055 = arith.addf %1050, %1054 : vector<14x128xf32>
    %c10_686 = arith.constant 10 : index
    %c0_687 = arith.constant 0 : index
    %c0_688 = arith.constant 0 : index
    %1056 = vector.load %arg9[%c10_686, %c0_687, %c0_688] : memref<18x18x128xf32, #tpu.memory_space<vmem>>, vector<1x14x128xf32>
    %1057 = vector.shape_cast %1056 : vector<1x14x128xf32> to vector<14x128xf32>
    %1058 = vector.broadcast %128 : vector<1x128xf32> to vector<14x128xf32>
    %1059 = arith.mulf %1057, %1058 : vector<14x128xf32>
    %1060 = arith.addf %1055, %1059 : vector<14x128xf32>
    %c10_689 = arith.constant 10 : index
    %c1_690 = arith.constant 1 : index
    %c0_691 = arith.constant 0 : index
    %1061 = vector.load %arg9[%c10_689, %c1_690, %c0_691] : memref<18x18x128xf32, #tpu.memory_space<vmem>>, vector<1x14x128xf32>
    %1062 = vector.shape_cast %1061 : vector<1x14x128xf32> to vector<14x128xf32>
    %1063 = vector.broadcast %130 : vector<1x128xf32> to vector<14x128xf32>
    %1064 = arith.mulf %1062, %1063 : vector<14x128xf32>
    %1065 = arith.addf %1060, %1064 : vector<14x128xf32>
    %c10_692 = arith.constant 10 : index
    %c2_693 = arith.constant 2 : index
    %c0_694 = arith.constant 0 : index
    %1066 = vector.load %arg9[%c10_692, %c2_693, %c0_694] : memref<18x18x128xf32, #tpu.memory_space<vmem>>, vector<1x14x128xf32>
    %1067 = vector.shape_cast %1066 : vector<1x14x128xf32> to vector<14x128xf32>
    %1068 = vector.broadcast %132 : vector<1x128xf32> to vector<14x128xf32>
    %1069 = arith.mulf %1067, %1068 : vector<14x128xf32>
    %1070 = arith.addf %1065, %1069 : vector<14x128xf32>
    %c10_695 = arith.constant 10 : index
    %c3_696 = arith.constant 3 : index
    %c0_697 = arith.constant 0 : index
    %1071 = vector.load %arg9[%c10_695, %c3_696, %c0_697] : memref<18x18x128xf32, #tpu.memory_space<vmem>>, vector<1x14x128xf32>
    %1072 = vector.shape_cast %1071 : vector<1x14x128xf32> to vector<14x128xf32>
    %1073 = vector.broadcast %134 : vector<1x128xf32> to vector<14x128xf32>
    %1074 = arith.mulf %1072, %1073 : vector<14x128xf32>
    %1075 = arith.addf %1070, %1074 : vector<14x128xf32>
    %c10_698 = arith.constant 10 : index
    %c4_699 = arith.constant 4 : index
    %c0_700 = arith.constant 0 : index
    %1076 = vector.load %arg9[%c10_698, %c4_699, %c0_700] : memref<18x18x128xf32, #tpu.memory_space<vmem>>, vector<1x14x128xf32>
    %1077 = vector.shape_cast %1076 : vector<1x14x128xf32> to vector<14x128xf32>
    %1078 = vector.broadcast %136 : vector<1x128xf32> to vector<14x128xf32>
    %1079 = arith.mulf %1077, %1078 : vector<14x128xf32>
    %1080 = arith.addf %1075, %1079 : vector<14x128xf32>
    %c6_701 = arith.constant 6 : index
    %c0_702 = arith.constant 0 : index
    %c0_703 = arith.constant 0 : index
    %1081 = vector.load %arg8[%c6_701, %c0_702, %c0_703] : memref<14x14x128xf32, #tpu.memory_space<vmem>>, vector<1x14x128xf32>
    %1082 = vector.shape_cast %1081 : vector<1x14x128xf32> to vector<14x128xf32>
    %1083 = vector.shape_cast %1080 : vector<14x128xf32> to vector<1x14x128xf32>
    tpu.vector_store %arg8[%c6_701, %c0_702, %c0_703], %1083 {strides = array<i32>} : memref<14x14x128xf32, #tpu.memory_space<vmem>>, vector<1x14x128xf32>,
    %cst_704 = arith.constant dense<0.000000e+00> : vector<128xf32>
    %1084 = vector.multi_reduction <add>, %1080, %cst_704 [0] : vector<14x128xf32> to vector<128xf32>
    %1085 = vector.shape_cast %1084 : vector<128xf32> to vector<1x128xf32>
    %1086 = arith.addf %950, %1085 : vector<1x128xf32>
    %1087 = arith.mulf %1080, %1080 : vector<14x128xf32>
    %cst_705 = arith.constant dense<0.000000e+00> : vector<128xf32>
    %1088 = vector.multi_reduction <add>, %1087, %cst_705 [0] : vector<14x128xf32> to vector<128xf32>
    %1089 = vector.shape_cast %1088 : vector<128xf32> to vector<1x128xf32>
    %1090 = arith.addf %954, %1089 : vector<1x128xf32>
    %cst_706 = arith.constant 0.000000e+00 : f32
    %1091 = vector.broadcast %cst_706 : f32 to vector<14x128xf32>
    %c7_707 = arith.constant 7 : index
    %c0_708 = arith.constant 0 : index
    %c0_709 = arith.constant 0 : index
    %1092 = vector.load %arg9[%c7_707, %c0_708, %c0_709] : memref<18x18x128xf32, #tpu.memory_space<vmem>>, vector<1x14x128xf32>
    %1093 = vector.shape_cast %1092 : vector<1x14x128xf32> to vector<14x128xf32>
    %1094 = vector.broadcast %88 : vector<1x128xf32> to vector<14x128xf32>
    %1095 = arith.mulf %1093, %1094 : vector<14x128xf32>
    %1096 = arith.addf %1091, %1095 : vector<14x128xf32>
    %c7_710 = arith.constant 7 : index
    %c1_711 = arith.constant 1 : index
    %c0_712 = arith.constant 0 : index
    %1097 = vector.load %arg9[%c7_710, %c1_711, %c0_712] : memref<18x18x128xf32, #tpu.memory_space<vmem>>, vector<1x14x128xf32>
    %1098 = vector.shape_cast %1097 : vector<1x14x128xf32> to vector<14x128xf32>
    %1099 = vector.broadcast %90 : vector<1x128xf32> to vector<14x128xf32>
    %1100 = arith.mulf %1098, %1099 : vector<14x128xf32>
    %1101 = arith.addf %1096, %1100 : vector<14x128xf32>
    %c7_713 = arith.constant 7 : index
    %c2_714 = arith.constant 2 : index
    %c0_715 = arith.constant 0 : index
    %1102 = vector.load %arg9[%c7_713, %c2_714, %c0_715] : memref<18x18x128xf32, #tpu.memory_space<vmem>>, vector<1x14x128xf32>
    %1103 = vector.shape_cast %1102 : vector<1x14x128xf32> to vector<14x128xf32>
    %1104 = vector.broadcast %92 : vector<1x128xf32> to vector<14x128xf32>
    %1105 = arith.mulf %1103, %1104 : vector<14x128xf32>
    %1106 = arith.addf %1101, %1105 : vector<14x128xf32>
    %c7_716 = arith.constant 7 : index
    %c3_717 = arith.constant 3 : index
    %c0_718 = arith.constant 0 : index
    %1107 = vector.load %arg9[%c7_716, %c3_717, %c0_718] : memref<18x18x128xf32, #tpu.memory_space<vmem>>, vector<1x14x128xf32>
    %1108 = vector.shape_cast %1107 : vector<1x14x128xf32> to vector<14x128xf32>
    %1109 = vector.broadcast %94 : vector<1x128xf32> to vector<14x128xf32>
    %1110 = arith.mulf %1108, %1109 : vector<14x128xf32>
    %1111 = arith.addf %1106, %1110 : vector<14x128xf32>
    %c7_719 = arith.constant 7 : index
    %c4_720 = arith.constant 4 : index
    %c0_721 = arith.constant 0 : index
    %1112 = vector.load %arg9[%c7_719, %c4_720, %c0_721] : memref<18x18x128xf32, #tpu.memory_space<vmem>>, vector<1x14x128xf32>
    %1113 = vector.shape_cast %1112 : vector<1x14x128xf32> to vector<14x128xf32>
    %1114 = vector.broadcast %96 : vector<1x128xf32> to vector<14x128xf32>
    %1115 = arith.mulf %1113, %1114 : vector<14x128xf32>
    %1116 = arith.addf %1111, %1115 : vector<14x128xf32>
    %c8_722 = arith.constant 8 : index
    %c0_723 = arith.constant 0 : index
    %c0_724 = arith.constant 0 : index
    %1117 = vector.load %arg9[%c8_722, %c0_723, %c0_724] : memref<18x18x128xf32, #tpu.memory_space<vmem>>, vector<1x14x128xf32>
    %1118 = vector.shape_cast %1117 : vector<1x14x128xf32> to vector<14x128xf32>
    %1119 = vector.broadcast %98 : vector<1x128xf32> to vector<14x128xf32>
    %1120 = arith.mulf %1118, %1119 : vector<14x128xf32>
    %1121 = arith.addf %1116, %1120 : vector<14x128xf32>
    %c8_725 = arith.constant 8 : index
    %c1_726 = arith.constant 1 : index
    %c0_727 = arith.constant 0 : index
    %1122 = vector.load %arg9[%c8_725, %c1_726, %c0_727] : memref<18x18x128xf32, #tpu.memory_space<vmem>>, vector<1x14x128xf32>
    %1123 = vector.shape_cast %1122 : vector<1x14x128xf32> to vector<14x128xf32>
    %1124 = vector.broadcast %100 : vector<1x128xf32> to vector<14x128xf32>
    %1125 = arith.mulf %1123, %1124 : vector<14x128xf32>
    %1126 = arith.addf %1121, %1125 : vector<14x128xf32>
    %c8_728 = arith.constant 8 : index
    %c2_729 = arith.constant 2 : index
    %c0_730 = arith.constant 0 : index
    %1127 = vector.load %arg9[%c8_728, %c2_729, %c0_730] : memref<18x18x128xf32, #tpu.memory_space<vmem>>, vector<1x14x128xf32>
    %1128 = vector.shape_cast %1127 : vector<1x14x128xf32> to vector<14x128xf32>
    %1129 = vector.broadcast %102 : vector<1x128xf32> to vector<14x128xf32>
    %1130 = arith.mulf %1128, %1129 : vector<14x128xf32>
    %1131 = arith.addf %1126, %1130 : vector<14x128xf32>
    %c8_731 = arith.constant 8 : index
    %c3_732 = arith.constant 3 : index
    %c0_733 = arith.constant 0 : index
    %1132 = vector.load %arg9[%c8_731, %c3_732, %c0_733] : memref<18x18x128xf32, #tpu.memory_space<vmem>>, vector<1x14x128xf32>
    %1133 = vector.shape_cast %1132 : vector<1x14x128xf32> to vector<14x128xf32>
    %1134 = vector.broadcast %104 : vector<1x128xf32> to vector<14x128xf32>
    %1135 = arith.mulf %1133, %1134 : vector<14x128xf32>
    %1136 = arith.addf %1131, %1135 : vector<14x128xf32>
    %c8_734 = arith.constant 8 : index
    %c4_735 = arith.constant 4 : index
    %c0_736 = arith.constant 0 : index
    %1137 = vector.load %arg9[%c8_734, %c4_735, %c0_736] : memref<18x18x128xf32, #tpu.memory_space<vmem>>, vector<1x14x128xf32>
    %1138 = vector.shape_cast %1137 : vector<1x14x128xf32> to vector<14x128xf32>
    %1139 = vector.broadcast %106 : vector<1x128xf32> to vector<14x128xf32>
    %1140 = arith.mulf %1138, %1139 : vector<14x128xf32>
    %1141 = arith.addf %1136, %1140 : vector<14x128xf32>
    %c9_737 = arith.constant 9 : index
    %c0_738 = arith.constant 0 : index
    %c0_739 = arith.constant 0 : index
    %1142 = vector.load %arg9[%c9_737, %c0_738, %c0_739] : memref<18x18x128xf32, #tpu.memory_space<vmem>>, vector<1x14x128xf32>
    %1143 = vector.shape_cast %1142 : vector<1x14x128xf32> to vector<14x128xf32>
    %1144 = vector.broadcast %108 : vector<1x128xf32> to vector<14x128xf32>
    %1145 = arith.mulf %1143, %1144 : vector<14x128xf32>
    %1146 = arith.addf %1141, %1145 : vector<14x128xf32>
    %c9_740 = arith.constant 9 : index
    %c1_741 = arith.constant 1 : index
    %c0_742 = arith.constant 0 : index
    %1147 = vector.load %arg9[%c9_740, %c1_741, %c0_742] : memref<18x18x128xf32, #tpu.memory_space<vmem>>, vector<1x14x128xf32>
    %1148 = vector.shape_cast %1147 : vector<1x14x128xf32> to vector<14x128xf32>
    %1149 = vector.broadcast %110 : vector<1x128xf32> to vector<14x128xf32>
    %1150 = arith.mulf %1148, %1149 : vector<14x128xf32>
    %1151 = arith.addf %1146, %1150 : vector<14x128xf32>
    %c9_743 = arith.constant 9 : index
    %c2_744 = arith.constant 2 : index
    %c0_745 = arith.constant 0 : index
    %1152 = vector.load %arg9[%c9_743, %c2_744, %c0_745] : memref<18x18x128xf32, #tpu.memory_space<vmem>>, vector<1x14x128xf32>
    %1153 = vector.shape_cast %1152 : vector<1x14x128xf32> to vector<14x128xf32>
    %1154 = vector.broadcast %112 : vector<1x128xf32> to vector<14x128xf32>
    %1155 = arith.mulf %1153, %1154 : vector<14x128xf32>
    %1156 = arith.addf %1151, %1155 : vector<14x128xf32>
    %c9_746 = arith.constant 9 : index
    %c3_747 = arith.constant 3 : index
    %c0_748 = arith.constant 0 : index
    %1157 = vector.load %arg9[%c9_746, %c3_747, %c0_748] : memref<18x18x128xf32, #tpu.memory_space<vmem>>, vector<1x14x128xf32>
    %1158 = vector.shape_cast %1157 : vector<1x14x128xf32> to vector<14x128xf32>
    %1159 = vector.broadcast %114 : vector<1x128xf32> to vector<14x128xf32>
    %1160 = arith.mulf %1158, %1159 : vector<14x128xf32>
    %1161 = arith.addf %1156, %1160 : vector<14x128xf32>
    %c9_749 = arith.constant 9 : index
    %c4_750 = arith.constant 4 : index
    %c0_751 = arith.constant 0 : index
    %1162 = vector.load %arg9[%c9_749, %c4_750, %c0_751] : memref<18x18x128xf32, #tpu.memory_space<vmem>>, vector<1x14x128xf32>
    %1163 = vector.shape_cast %1162 : vector<1x14x128xf32> to vector<14x128xf32>
    %1164 = vector.broadcast %116 : vector<1x128xf32> to vector<14x128xf32>
    %1165 = arith.mulf %1163, %1164 : vector<14x128xf32>
    %1166 = arith.addf %1161, %1165 : vector<14x128xf32>
    %c10_752 = arith.constant 10 : index
    %c0_753 = arith.constant 0 : index
    %c0_754 = arith.constant 0 : index
    %1167 = vector.load %arg9[%c10_752, %c0_753, %c0_754] : memref<18x18x128xf32, #tpu.memory_space<vmem>>, vector<1x14x128xf32>
    %1168 = vector.shape_cast %1167 : vector<1x14x128xf32> to vector<14x128xf32>
    %1169 = vector.broadcast %118 : vector<1x128xf32> to vector<14x128xf32>
    %1170 = arith.mulf %1168, %1169 : vector<14x128xf32>
    %1171 = arith.addf %1166, %1170 : vector<14x128xf32>
    %c10_755 = arith.constant 10 : index
    %c1_756 = arith.constant 1 : index
    %c0_757 = arith.constant 0 : index
    %1172 = vector.load %arg9[%c10_755, %c1_756, %c0_757] : memref<18x18x128xf32, #tpu.memory_space<vmem>>, vector<1x14x128xf32>
    %1173 = vector.shape_cast %1172 : vector<1x14x128xf32> to vector<14x128xf32>
    %1174 = vector.broadcast %120 : vector<1x128xf32> to vector<14x128xf32>
    %1175 = arith.mulf %1173, %1174 : vector<14x128xf32>
    %1176 = arith.addf %1171, %1175 : vector<14x128xf32>
    %c10_758 = arith.constant 10 : index
    %c2_759 = arith.constant 2 : index
    %c0_760 = arith.constant 0 : index
    %1177 = vector.load %arg9[%c10_758, %c2_759, %c0_760] : memref<18x18x128xf32, #tpu.memory_space<vmem>>, vector<1x14x128xf32>
    %1178 = vector.shape_cast %1177 : vector<1x14x128xf32> to vector<14x128xf32>
    %1179 = vector.broadcast %122 : vector<1x128xf32> to vector<14x128xf32>
    %1180 = arith.mulf %1178, %1179 : vector<14x128xf32>
    %1181 = arith.addf %1176, %1180 : vector<14x128xf32>
    %c10_761 = arith.constant 10 : index
    %c3_762 = arith.constant 3 : index
    %c0_763 = arith.constant 0 : index
    %1182 = vector.load %arg9[%c10_761, %c3_762, %c0_763] : memref<18x18x128xf32, #tpu.memory_space<vmem>>, vector<1x14x128xf32>
    %1183 = vector.shape_cast %1182 : vector<1x14x128xf32> to vector<14x128xf32>
    %1184 = vector.broadcast %124 : vector<1x128xf32> to vector<14x128xf32>
    %1185 = arith.mulf %1183, %1184 : vector<14x128xf32>
    %1186 = arith.addf %1181, %1185 : vector<14x128xf32>
    %c10_764 = arith.constant 10 : index
    %c4_765 = arith.constant 4 : index
    %c0_766 = arith.constant 0 : index
    %1187 = vector.load %arg9[%c10_764, %c4_765, %c0_766] : memref<18x18x128xf32, #tpu.memory_space<vmem>>, vector<1x14x128xf32>
    %1188 = vector.shape_cast %1187 : vector<1x14x128xf32> to vector<14x128xf32>
    %1189 = vector.broadcast %126 : vector<1x128xf32> to vector<14x128xf32>
    %1190 = arith.mulf %1188, %1189 : vector<14x128xf32>
    %1191 = arith.addf %1186, %1190 : vector<14x128xf32>
    %c11_767 = arith.constant 11 : index
    %c0_768 = arith.constant 0 : index
    %c0_769 = arith.constant 0 : index
    %1192 = vector.load %arg9[%c11_767, %c0_768, %c0_769] : memref<18x18x128xf32, #tpu.memory_space<vmem>>, vector<1x14x128xf32>
    %1193 = vector.shape_cast %1192 : vector<1x14x128xf32> to vector<14x128xf32>
    %1194 = vector.broadcast %128 : vector<1x128xf32> to vector<14x128xf32>
    %1195 = arith.mulf %1193, %1194 : vector<14x128xf32>
    %1196 = arith.addf %1191, %1195 : vector<14x128xf32>
    %c11_770 = arith.constant 11 : index
    %c1_771 = arith.constant 1 : index
    %c0_772 = arith.constant 0 : index
    %1197 = vector.load %arg9[%c11_770, %c1_771, %c0_772] : memref<18x18x128xf32, #tpu.memory_space<vmem>>, vector<1x14x128xf32>
    %1198 = vector.shape_cast %1197 : vector<1x14x128xf32> to vector<14x128xf32>
    %1199 = vector.broadcast %130 : vector<1x128xf32> to vector<14x128xf32>
    %1200 = arith.mulf %1198, %1199 : vector<14x128xf32>
    %1201 = arith.addf %1196, %1200 : vector<14x128xf32>
    %c11_773 = arith.constant 11 : index
    %c2_774 = arith.constant 2 : index
    %c0_775 = arith.constant 0 : index
    %1202 = vector.load %arg9[%c11_773, %c2_774, %c0_775] : memref<18x18x128xf32, #tpu.memory_space<vmem>>, vector<1x14x128xf32>
    %1203 = vector.shape_cast %1202 : vector<1x14x128xf32> to vector<14x128xf32>
    %1204 = vector.broadcast %132 : vector<1x128xf32> to vector<14x128xf32>
    %1205 = arith.mulf %1203, %1204 : vector<14x128xf32>
    %1206 = arith.addf %1201, %1205 : vector<14x128xf32>
    %c11_776 = arith.constant 11 : index
    %c3_777 = arith.constant 3 : index
    %c0_778 = arith.constant 0 : index
    %1207 = vector.load %arg9[%c11_776, %c3_777, %c0_778] : memref<18x18x128xf32, #tpu.memory_space<vmem>>, vector<1x14x128xf32>
    %1208 = vector.shape_cast %1207 : vector<1x14x128xf32> to vector<14x128xf32>
    %1209 = vector.broadcast %134 : vector<1x128xf32> to vector<14x128xf32>
    %1210 = arith.mulf %1208, %1209 : vector<14x128xf32>
    %1211 = arith.addf %1206, %1210 : vector<14x128xf32>
    %c11_779 = arith.constant 11 : index
    %c4_780 = arith.constant 4 : index
    %c0_781 = arith.constant 0 : index
    %1212 = vector.load %arg9[%c11_779, %c4_780, %c0_781] : memref<18x18x128xf32, #tpu.memory_space<vmem>>, vector<1x14x128xf32>
    %1213 = vector.shape_cast %1212 : vector<1x14x128xf32> to vector<14x128xf32>
    %1214 = vector.broadcast %136 : vector<1x128xf32> to vector<14x128xf32>
    %1215 = arith.mulf %1213, %1214 : vector<14x128xf32>
    %1216 = arith.addf %1211, %1215 : vector<14x128xf32>
    %c7_782 = arith.constant 7 : index
    %c0_783 = arith.constant 0 : index
    %c0_784 = arith.constant 0 : index
    %1217 = vector.load %arg8[%c7_782, %c0_783, %c0_784] : memref<14x14x128xf32, #tpu.memory_space<vmem>>, vector<1x14x128xf32>
    %1218 = vector.shape_cast %1217 : vector<1x14x128xf32> to vector<14x128xf32>
    %1219 = vector.shape_cast %1216 : vector<14x128xf32> to vector<1x14x128xf32>
    tpu.vector_store %arg8[%c7_782, %c0_783, %c0_784], %1219 {strides = array<i32>} : memref<14x14x128xf32, #tpu.memory_space<vmem>>, vector<1x14x128xf32>,
    %cst_785 = arith.constant dense<0.000000e+00> : vector<128xf32>
    %1220 = vector.multi_reduction <add>, %1216, %cst_785 [0] : vector<14x128xf32> to vector<128xf32>
    %1221 = vector.shape_cast %1220 : vector<128xf32> to vector<1x128xf32>
    %1222 = arith.addf %1086, %1221 : vector<1x128xf32>
    %1223 = arith.mulf %1216, %1216 : vector<14x128xf32>
    %cst_786 = arith.constant dense<0.000000e+00> : vector<128xf32>
    %1224 = vector.multi_reduction <add>, %1223, %cst_786 [0] : vector<14x128xf32> to vector<128xf32>
    %1225 = vector.shape_cast %1224 : vector<128xf32> to vector<1x128xf32>
    %1226 = arith.addf %1090, %1225 : vector<1x128xf32>
    %cst_787 = arith.constant 0.000000e+00 : f32
    %1227 = vector.broadcast %cst_787 : f32 to vector<14x128xf32>
    %c8_788 = arith.constant 8 : index
    %c0_789 = arith.constant 0 : index
    %c0_790 = arith.constant 0 : index
    %1228 = vector.load %arg9[%c8_788, %c0_789, %c0_790] : memref<18x18x128xf32, #tpu.memory_space<vmem>>, vector<1x14x128xf32>
    %1229 = vector.shape_cast %1228 : vector<1x14x128xf32> to vector<14x128xf32>
    %1230 = vector.broadcast %88 : vector<1x128xf32> to vector<14x128xf32>
    %1231 = arith.mulf %1229, %1230 : vector<14x128xf32>
    %1232 = arith.addf %1227, %1231 : vector<14x128xf32>
    %c8_791 = arith.constant 8 : index
    %c1_792 = arith.constant 1 : index
    %c0_793 = arith.constant 0 : index
    %1233 = vector.load %arg9[%c8_791, %c1_792, %c0_793] : memref<18x18x128xf32, #tpu.memory_space<vmem>>, vector<1x14x128xf32>
    %1234 = vector.shape_cast %1233 : vector<1x14x128xf32> to vector<14x128xf32>
    %1235 = vector.broadcast %90 : vector<1x128xf32> to vector<14x128xf32>
    %1236 = arith.mulf %1234, %1235 : vector<14x128xf32>
    %1237 = arith.addf %1232, %1236 : vector<14x128xf32>
    %c8_794 = arith.constant 8 : index
    %c2_795 = arith.constant 2 : index
    %c0_796 = arith.constant 0 : index
    %1238 = vector.load %arg9[%c8_794, %c2_795, %c0_796] : memref<18x18x128xf32, #tpu.memory_space<vmem>>, vector<1x14x128xf32>
    %1239 = vector.shape_cast %1238 : vector<1x14x128xf32> to vector<14x128xf32>
    %1240 = vector.broadcast %92 : vector<1x128xf32> to vector<14x128xf32>
    %1241 = arith.mulf %1239, %1240 : vector<14x128xf32>
    %1242 = arith.addf %1237, %1241 : vector<14x128xf32>
    %c8_797 = arith.constant 8 : index
    %c3_798 = arith.constant 3 : index
    %c0_799 = arith.constant 0 : index
    %1243 = vector.load %arg9[%c8_797, %c3_798, %c0_799] : memref<18x18x128xf32, #tpu.memory_space<vmem>>, vector<1x14x128xf32>
    %1244 = vector.shape_cast %1243 : vector<1x14x128xf32> to vector<14x128xf32>
    %1245 = vector.broadcast %94 : vector<1x128xf32> to vector<14x128xf32>
    %1246 = arith.mulf %1244, %1245 : vector<14x128xf32>
    %1247 = arith.addf %1242, %1246 : vector<14x128xf32>
    %c8_800 = arith.constant 8 : index
    %c4_801 = arith.constant 4 : index
    %c0_802 = arith.constant 0 : index
    %1248 = vector.load %arg9[%c8_800, %c4_801, %c0_802] : memref<18x18x128xf32, #tpu.memory_space<vmem>>, vector<1x14x128xf32>
    %1249 = vector.shape_cast %1248 : vector<1x14x128xf32> to vector<14x128xf32>
    %1250 = vector.broadcast %96 : vector<1x128xf32> to vector<14x128xf32>
    %1251 = arith.mulf %1249, %1250 : vector<14x128xf32>
    %1252 = arith.addf %1247, %1251 : vector<14x128xf32>
    %c9_803 = arith.constant 9 : index
    %c0_804 = arith.constant 0 : index
    %c0_805 = arith.constant 0 : index
    %1253 = vector.load %arg9[%c9_803, %c0_804, %c0_805] : memref<18x18x128xf32, #tpu.memory_space<vmem>>, vector<1x14x128xf32>
    %1254 = vector.shape_cast %1253 : vector<1x14x128xf32> to vector<14x128xf32>
    %1255 = vector.broadcast %98 : vector<1x128xf32> to vector<14x128xf32>
    %1256 = arith.mulf %1254, %1255 : vector<14x128xf32>
    %1257 = arith.addf %1252, %1256 : vector<14x128xf32>
    %c9_806 = arith.constant 9 : index
    %c1_807 = arith.constant 1 : index
    %c0_808 = arith.constant 0 : index
    %1258 = vector.load %arg9[%c9_806, %c1_807, %c0_808] : memref<18x18x128xf32, #tpu.memory_space<vmem>>, vector<1x14x128xf32>
    %1259 = vector.shape_cast %1258 : vector<1x14x128xf32> to vector<14x128xf32>
    %1260 = vector.broadcast %100 : vector<1x128xf32> to vector<14x128xf32>
    %1261 = arith.mulf %1259, %1260 : vector<14x128xf32>
    %1262 = arith.addf %1257, %1261 : vector<14x128xf32>
    %c9_809 = arith.constant 9 : index
    %c2_810 = arith.constant 2 : index
    %c0_811 = arith.constant 0 : index
    %1263 = vector.load %arg9[%c9_809, %c2_810, %c0_811] : memref<18x18x128xf32, #tpu.memory_space<vmem>>, vector<1x14x128xf32>
    %1264 = vector.shape_cast %1263 : vector<1x14x128xf32> to vector<14x128xf32>
    %1265 = vector.broadcast %102 : vector<1x128xf32> to vector<14x128xf32>
    %1266 = arith.mulf %1264, %1265 : vector<14x128xf32>
    %1267 = arith.addf %1262, %1266 : vector<14x128xf32>
    %c9_812 = arith.constant 9 : index
    %c3_813 = arith.constant 3 : index
    %c0_814 = arith.constant 0 : index
    %1268 = vector.load %arg9[%c9_812, %c3_813, %c0_814] : memref<18x18x128xf32, #tpu.memory_space<vmem>>, vector<1x14x128xf32>
    %1269 = vector.shape_cast %1268 : vector<1x14x128xf32> to vector<14x128xf32>
    %1270 = vector.broadcast %104 : vector<1x128xf32> to vector<14x128xf32>
    %1271 = arith.mulf %1269, %1270 : vector<14x128xf32>
    %1272 = arith.addf %1267, %1271 : vector<14x128xf32>
    %c9_815 = arith.constant 9 : index
    %c4_816 = arith.constant 4 : index
    %c0_817 = arith.constant 0 : index
    %1273 = vector.load %arg9[%c9_815, %c4_816, %c0_817] : memref<18x18x128xf32, #tpu.memory_space<vmem>>, vector<1x14x128xf32>
    %1274 = vector.shape_cast %1273 : vector<1x14x128xf32> to vector<14x128xf32>
    %1275 = vector.broadcast %106 : vector<1x128xf32> to vector<14x128xf32>
    %1276 = arith.mulf %1274, %1275 : vector<14x128xf32>
    %1277 = arith.addf %1272, %1276 : vector<14x128xf32>
    %c10_818 = arith.constant 10 : index
    %c0_819 = arith.constant 0 : index
    %c0_820 = arith.constant 0 : index
    %1278 = vector.load %arg9[%c10_818, %c0_819, %c0_820] : memref<18x18x128xf32, #tpu.memory_space<vmem>>, vector<1x14x128xf32>
    %1279 = vector.shape_cast %1278 : vector<1x14x128xf32> to vector<14x128xf32>
    %1280 = vector.broadcast %108 : vector<1x128xf32> to vector<14x128xf32>
    %1281 = arith.mulf %1279, %1280 : vector<14x128xf32>
    %1282 = arith.addf %1277, %1281 : vector<14x128xf32>
    %c10_821 = arith.constant 10 : index
    %c1_822 = arith.constant 1 : index
    %c0_823 = arith.constant 0 : index
    %1283 = vector.load %arg9[%c10_821, %c1_822, %c0_823] : memref<18x18x128xf32, #tpu.memory_space<vmem>>, vector<1x14x128xf32>
    %1284 = vector.shape_cast %1283 : vector<1x14x128xf32> to vector<14x128xf32>
    %1285 = vector.broadcast %110 : vector<1x128xf32> to vector<14x128xf32>
    %1286 = arith.mulf %1284, %1285 : vector<14x128xf32>
    %1287 = arith.addf %1282, %1286 : vector<14x128xf32>
    %c10_824 = arith.constant 10 : index
    %c2_825 = arith.constant 2 : index
    %c0_826 = arith.constant 0 : index
    %1288 = vector.load %arg9[%c10_824, %c2_825, %c0_826] : memref<18x18x128xf32, #tpu.memory_space<vmem>>, vector<1x14x128xf32>
    %1289 = vector.shape_cast %1288 : vector<1x14x128xf32> to vector<14x128xf32>
    %1290 = vector.broadcast %112 : vector<1x128xf32> to vector<14x128xf32>
    %1291 = arith.mulf %1289, %1290 : vector<14x128xf32>
    %1292 = arith.addf %1287, %1291 : vector<14x128xf32>
    %c10_827 = arith.constant 10 : index
    %c3_828 = arith.constant 3 : index
    %c0_829 = arith.constant 0 : index
    %1293 = vector.load %arg9[%c10_827, %c3_828, %c0_829] : memref<18x18x128xf32, #tpu.memory_space<vmem>>, vector<1x14x128xf32>
    %1294 = vector.shape_cast %1293 : vector<1x14x128xf32> to vector<14x128xf32>
    %1295 = vector.broadcast %114 : vector<1x128xf32> to vector<14x128xf32>
    %1296 = arith.mulf %1294, %1295 : vector<14x128xf32>
    %1297 = arith.addf %1292, %1296 : vector<14x128xf32>
    %c10_830 = arith.constant 10 : index
    %c4_831 = arith.constant 4 : index
    %c0_832 = arith.constant 0 : index
    %1298 = vector.load %arg9[%c10_830, %c4_831, %c0_832] : memref<18x18x128xf32, #tpu.memory_space<vmem>>, vector<1x14x128xf32>
    %1299 = vector.shape_cast %1298 : vector<1x14x128xf32> to vector<14x128xf32>
    %1300 = vector.broadcast %116 : vector<1x128xf32> to vector<14x128xf32>
    %1301 = arith.mulf %1299, %1300 : vector<14x128xf32>
    %1302 = arith.addf %1297, %1301 : vector<14x128xf32>
    %c11_833 = arith.constant 11 : index
    %c0_834 = arith.constant 0 : index
    %c0_835 = arith.constant 0 : index
    %1303 = vector.load %arg9[%c11_833, %c0_834, %c0_835] : memref<18x18x128xf32, #tpu.memory_space<vmem>>, vector<1x14x128xf32>
    %1304 = vector.shape_cast %1303 : vector<1x14x128xf32> to vector<14x128xf32>
    %1305 = vector.broadcast %118 : vector<1x128xf32> to vector<14x128xf32>
    %1306 = arith.mulf %1304, %1305 : vector<14x128xf32>
    %1307 = arith.addf %1302, %1306 : vector<14x128xf32>
    %c11_836 = arith.constant 11 : index
    %c1_837 = arith.constant 1 : index
    %c0_838 = arith.constant 0 : index
    %1308 = vector.load %arg9[%c11_836, %c1_837, %c0_838] : memref<18x18x128xf32, #tpu.memory_space<vmem>>, vector<1x14x128xf32>
    %1309 = vector.shape_cast %1308 : vector<1x14x128xf32> to vector<14x128xf32>
    %1310 = vector.broadcast %120 : vector<1x128xf32> to vector<14x128xf32>
    %1311 = arith.mulf %1309, %1310 : vector<14x128xf32>
    %1312 = arith.addf %1307, %1311 : vector<14x128xf32>
    %c11_839 = arith.constant 11 : index
    %c2_840 = arith.constant 2 : index
    %c0_841 = arith.constant 0 : index
    %1313 = vector.load %arg9[%c11_839, %c2_840, %c0_841] : memref<18x18x128xf32, #tpu.memory_space<vmem>>, vector<1x14x128xf32>
    %1314 = vector.shape_cast %1313 : vector<1x14x128xf32> to vector<14x128xf32>
    %1315 = vector.broadcast %122 : vector<1x128xf32> to vector<14x128xf32>
    %1316 = arith.mulf %1314, %1315 : vector<14x128xf32>
    %1317 = arith.addf %1312, %1316 : vector<14x128xf32>
    %c11_842 = arith.constant 11 : index
    %c3_843 = arith.constant 3 : index
    %c0_844 = arith.constant 0 : index
    %1318 = vector.load %arg9[%c11_842, %c3_843, %c0_844] : memref<18x18x128xf32, #tpu.memory_space<vmem>>, vector<1x14x128xf32>
    %1319 = vector.shape_cast %1318 : vector<1x14x128xf32> to vector<14x128xf32>
    %1320 = vector.broadcast %124 : vector<1x128xf32> to vector<14x128xf32>
    %1321 = arith.mulf %1319, %1320 : vector<14x128xf32>
    %1322 = arith.addf %1317, %1321 : vector<14x128xf32>
    %c11_845 = arith.constant 11 : index
    %c4_846 = arith.constant 4 : index
    %c0_847 = arith.constant 0 : index
    %1323 = vector.load %arg9[%c11_845, %c4_846, %c0_847] : memref<18x18x128xf32, #tpu.memory_space<vmem>>, vector<1x14x128xf32>
    %1324 = vector.shape_cast %1323 : vector<1x14x128xf32> to vector<14x128xf32>
    %1325 = vector.broadcast %126 : vector<1x128xf32> to vector<14x128xf32>
    %1326 = arith.mulf %1324, %1325 : vector<14x128xf32>
    %1327 = arith.addf %1322, %1326 : vector<14x128xf32>
    %c12_848 = arith.constant 12 : index
    %c0_849 = arith.constant 0 : index
    %c0_850 = arith.constant 0 : index
    %1328 = vector.load %arg9[%c12_848, %c0_849, %c0_850] : memref<18x18x128xf32, #tpu.memory_space<vmem>>, vector<1x14x128xf32>
    %1329 = vector.shape_cast %1328 : vector<1x14x128xf32> to vector<14x128xf32>
    %1330 = vector.broadcast %128 : vector<1x128xf32> to vector<14x128xf32>
    %1331 = arith.mulf %1329, %1330 : vector<14x128xf32>
    %1332 = arith.addf %1327, %1331 : vector<14x128xf32>
    %c12_851 = arith.constant 12 : index
    %c1_852 = arith.constant 1 : index
    %c0_853 = arith.constant 0 : index
    %1333 = vector.load %arg9[%c12_851, %c1_852, %c0_853] : memref<18x18x128xf32, #tpu.memory_space<vmem>>, vector<1x14x128xf32>
    %1334 = vector.shape_cast %1333 : vector<1x14x128xf32> to vector<14x128xf32>
    %1335 = vector.broadcast %130 : vector<1x128xf32> to vector<14x128xf32>
    %1336 = arith.mulf %1334, %1335 : vector<14x128xf32>
    %1337 = arith.addf %1332, %1336 : vector<14x128xf32>
    %c12_854 = arith.constant 12 : index
    %c2_855 = arith.constant 2 : index
    %c0_856 = arith.constant 0 : index
    %1338 = vector.load %arg9[%c12_854, %c2_855, %c0_856] : memref<18x18x128xf32, #tpu.memory_space<vmem>>, vector<1x14x128xf32>
    %1339 = vector.shape_cast %1338 : vector<1x14x128xf32> to vector<14x128xf32>
    %1340 = vector.broadcast %132 : vector<1x128xf32> to vector<14x128xf32>
    %1341 = arith.mulf %1339, %1340 : vector<14x128xf32>
    %1342 = arith.addf %1337, %1341 : vector<14x128xf32>
    %c12_857 = arith.constant 12 : index
    %c3_858 = arith.constant 3 : index
    %c0_859 = arith.constant 0 : index
    %1343 = vector.load %arg9[%c12_857, %c3_858, %c0_859] : memref<18x18x128xf32, #tpu.memory_space<vmem>>, vector<1x14x128xf32>
    %1344 = vector.shape_cast %1343 : vector<1x14x128xf32> to vector<14x128xf32>
    %1345 = vector.broadcast %134 : vector<1x128xf32> to vector<14x128xf32>
    %1346 = arith.mulf %1344, %1345 : vector<14x128xf32>
    %1347 = arith.addf %1342, %1346 : vector<14x128xf32>
    %c12_860 = arith.constant 12 : index
    %c4_861 = arith.constant 4 : index
    %c0_862 = arith.constant 0 : index
    %1348 = vector.load %arg9[%c12_860, %c4_861, %c0_862] : memref<18x18x128xf32, #tpu.memory_space<vmem>>, vector<1x14x128xf32>
    %1349 = vector.shape_cast %1348 : vector<1x14x128xf32> to vector<14x128xf32>
    %1350 = vector.broadcast %136 : vector<1x128xf32> to vector<14x128xf32>
    %1351 = arith.mulf %1349, %1350 : vector<14x128xf32>
    %1352 = arith.addf %1347, %1351 : vector<14x128xf32>
    %c8_863 = arith.constant 8 : index
    %c0_864 = arith.constant 0 : index
    %c0_865 = arith.constant 0 : index
    %1353 = vector.load %arg8[%c8_863, %c0_864, %c0_865] : memref<14x14x128xf32, #tpu.memory_space<vmem>>, vector<1x14x128xf32>
    %1354 = vector.shape_cast %1353 : vector<1x14x128xf32> to vector<14x128xf32>
    %1355 = vector.shape_cast %1352 : vector<14x128xf32> to vector<1x14x128xf32>
    tpu.vector_store %arg8[%c8_863, %c0_864, %c0_865], %1355 {strides = array<i32>} : memref<14x14x128xf32, #tpu.memory_space<vmem>>, vector<1x14x128xf32>,
    %cst_866 = arith.constant dense<0.000000e+00> : vector<128xf32>
    %1356 = vector.multi_reduction <add>, %1352, %cst_866 [0] : vector<14x128xf32> to vector<128xf32>
    %1357 = vector.shape_cast %1356 : vector<128xf32> to vector<1x128xf32>
    %1358 = arith.addf %1222, %1357 : vector<1x128xf32>
    %1359 = arith.mulf %1352, %1352 : vector<14x128xf32>
    %cst_867 = arith.constant dense<0.000000e+00> : vector<128xf32>
    %1360 = vector.multi_reduction <add>, %1359, %cst_867 [0] : vector<14x128xf32> to vector<128xf32>
    %1361 = vector.shape_cast %1360 : vector<128xf32> to vector<1x128xf32>
    %1362 = arith.addf %1226, %1361 : vector<1x128xf32>
    %cst_868 = arith.constant 0.000000e+00 : f32
    %1363 = vector.broadcast %cst_868 : f32 to vector<14x128xf32>
    %c9_869 = arith.constant 9 : index
    %c0_870 = arith.constant 0 : index
    %c0_871 = arith.constant 0 : index
    %1364 = vector.load %arg9[%c9_869, %c0_870, %c0_871] : memref<18x18x128xf32, #tpu.memory_space<vmem>>, vector<1x14x128xf32>
    %1365 = vector.shape_cast %1364 : vector<1x14x128xf32> to vector<14x128xf32>
    %1366 = vector.broadcast %88 : vector<1x128xf32> to vector<14x128xf32>
    %1367 = arith.mulf %1365, %1366 : vector<14x128xf32>
    %1368 = arith.addf %1363, %1367 : vector<14x128xf32>
    %c9_872 = arith.constant 9 : index
    %c1_873 = arith.constant 1 : index
    %c0_874 = arith.constant 0 : index
    %1369 = vector.load %arg9[%c9_872, %c1_873, %c0_874] : memref<18x18x128xf32, #tpu.memory_space<vmem>>, vector<1x14x128xf32>
    %1370 = vector.shape_cast %1369 : vector<1x14x128xf32> to vector<14x128xf32>
    %1371 = vector.broadcast %90 : vector<1x128xf32> to vector<14x128xf32>
    %1372 = arith.mulf %1370, %1371 : vector<14x128xf32>
    %1373 = arith.addf %1368, %1372 : vector<14x128xf32>
    %c9_875 = arith.constant 9 : index
    %c2_876 = arith.constant 2 : index
    %c0_877 = arith.constant 0 : index
    %1374 = vector.load %arg9[%c9_875, %c2_876, %c0_877] : memref<18x18x128xf32, #tpu.memory_space<vmem>>, vector<1x14x128xf32>
    %1375 = vector.shape_cast %1374 : vector<1x14x128xf32> to vector<14x128xf32>
    %1376 = vector.broadcast %92 : vector<1x128xf32> to vector<14x128xf32>
    %1377 = arith.mulf %1375, %1376 : vector<14x128xf32>
    %1378 = arith.addf %1373, %1377 : vector<14x128xf32>
    %c9_878 = arith.constant 9 : index
    %c3_879 = arith.constant 3 : index
    %c0_880 = arith.constant 0 : index
    %1379 = vector.load %arg9[%c9_878, %c3_879, %c0_880] : memref<18x18x128xf32, #tpu.memory_space<vmem>>, vector<1x14x128xf32>
    %1380 = vector.shape_cast %1379 : vector<1x14x128xf32> to vector<14x128xf32>
    %1381 = vector.broadcast %94 : vector<1x128xf32> to vector<14x128xf32>
    %1382 = arith.mulf %1380, %1381 : vector<14x128xf32>
    %1383 = arith.addf %1378, %1382 : vector<14x128xf32>
    %c9_881 = arith.constant 9 : index
    %c4_882 = arith.constant 4 : index
    %c0_883 = arith.constant 0 : index
    %1384 = vector.load %arg9[%c9_881, %c4_882, %c0_883] : memref<18x18x128xf32, #tpu.memory_space<vmem>>, vector<1x14x128xf32>
    %1385 = vector.shape_cast %1384 : vector<1x14x128xf32> to vector<14x128xf32>
    %1386 = vector.broadcast %96 : vector<1x128xf32> to vector<14x128xf32>
    %1387 = arith.mulf %1385, %1386 : vector<14x128xf32>
    %1388 = arith.addf %1383, %1387 : vector<14x128xf32>
    %c10_884 = arith.constant 10 : index
    %c0_885 = arith.constant 0 : index
    %c0_886 = arith.constant 0 : index
    %1389 = vector.load %arg9[%c10_884, %c0_885, %c0_886] : memref<18x18x128xf32, #tpu.memory_space<vmem>>, vector<1x14x128xf32>
    %1390 = vector.shape_cast %1389 : vector<1x14x128xf32> to vector<14x128xf32>
    %1391 = vector.broadcast %98 : vector<1x128xf32> to vector<14x128xf32>
    %1392 = arith.mulf %1390, %1391 : vector<14x128xf32>
    %1393 = arith.addf %1388, %1392 : vector<14x128xf32>
    %c10_887 = arith.constant 10 : index
    %c1_888 = arith.constant 1 : index
    %c0_889 = arith.constant 0 : index
    %1394 = vector.load %arg9[%c10_887, %c1_888, %c0_889] : memref<18x18x128xf32, #tpu.memory_space<vmem>>, vector<1x14x128xf32>
    %1395 = vector.shape_cast %1394 : vector<1x14x128xf32> to vector<14x128xf32>
    %1396 = vector.broadcast %100 : vector<1x128xf32> to vector<14x128xf32>
    %1397 = arith.mulf %1395, %1396 : vector<14x128xf32>
    %1398 = arith.addf %1393, %1397 : vector<14x128xf32>
    %c10_890 = arith.constant 10 : index
    %c2_891 = arith.constant 2 : index
    %c0_892 = arith.constant 0 : index
    %1399 = vector.load %arg9[%c10_890, %c2_891, %c0_892] : memref<18x18x128xf32, #tpu.memory_space<vmem>>, vector<1x14x128xf32>
    %1400 = vector.shape_cast %1399 : vector<1x14x128xf32> to vector<14x128xf32>
    %1401 = vector.broadcast %102 : vector<1x128xf32> to vector<14x128xf32>
    %1402 = arith.mulf %1400, %1401 : vector<14x128xf32>
    %1403 = arith.addf %1398, %1402 : vector<14x128xf32>
    %c10_893 = arith.constant 10 : index
    %c3_894 = arith.constant 3 : index
    %c0_895 = arith.constant 0 : index
    %1404 = vector.load %arg9[%c10_893, %c3_894, %c0_895] : memref<18x18x128xf32, #tpu.memory_space<vmem>>, vector<1x14x128xf32>
    %1405 = vector.shape_cast %1404 : vector<1x14x128xf32> to vector<14x128xf32>
    %1406 = vector.broadcast %104 : vector<1x128xf32> to vector<14x128xf32>
    %1407 = arith.mulf %1405, %1406 : vector<14x128xf32>
    %1408 = arith.addf %1403, %1407 : vector<14x128xf32>
    %c10_896 = arith.constant 10 : index
    %c4_897 = arith.constant 4 : index
    %c0_898 = arith.constant 0 : index
    %1409 = vector.load %arg9[%c10_896, %c4_897, %c0_898] : memref<18x18x128xf32, #tpu.memory_space<vmem>>, vector<1x14x128xf32>
    %1410 = vector.shape_cast %1409 : vector<1x14x128xf32> to vector<14x128xf32>
    %1411 = vector.broadcast %106 : vector<1x128xf32> to vector<14x128xf32>
    %1412 = arith.mulf %1410, %1411 : vector<14x128xf32>
    %1413 = arith.addf %1408, %1412 : vector<14x128xf32>
    %c11_899 = arith.constant 11 : index
    %c0_900 = arith.constant 0 : index
    %c0_901 = arith.constant 0 : index
    %1414 = vector.load %arg9[%c11_899, %c0_900, %c0_901] : memref<18x18x128xf32, #tpu.memory_space<vmem>>, vector<1x14x128xf32>
    %1415 = vector.shape_cast %1414 : vector<1x14x128xf32> to vector<14x128xf32>
    %1416 = vector.broadcast %108 : vector<1x128xf32> to vector<14x128xf32>
    %1417 = arith.mulf %1415, %1416 : vector<14x128xf32>
    %1418 = arith.addf %1413, %1417 : vector<14x128xf32>
    %c11_902 = arith.constant 11 : index
    %c1_903 = arith.constant 1 : index
    %c0_904 = arith.constant 0 : index
    %1419 = vector.load %arg9[%c11_902, %c1_903, %c0_904] : memref<18x18x128xf32, #tpu.memory_space<vmem>>, vector<1x14x128xf32>
    %1420 = vector.shape_cast %1419 : vector<1x14x128xf32> to vector<14x128xf32>
    %1421 = vector.broadcast %110 : vector<1x128xf32> to vector<14x128xf32>
    %1422 = arith.mulf %1420, %1421 : vector<14x128xf32>
    %1423 = arith.addf %1418, %1422 : vector<14x128xf32>
    %c11_905 = arith.constant 11 : index
    %c2_906 = arith.constant 2 : index
    %c0_907 = arith.constant 0 : index
    %1424 = vector.load %arg9[%c11_905, %c2_906, %c0_907] : memref<18x18x128xf32, #tpu.memory_space<vmem>>, vector<1x14x128xf32>
    %1425 = vector.shape_cast %1424 : vector<1x14x128xf32> to vector<14x128xf32>
    %1426 = vector.broadcast %112 : vector<1x128xf32> to vector<14x128xf32>
    %1427 = arith.mulf %1425, %1426 : vector<14x128xf32>
    %1428 = arith.addf %1423, %1427 : vector<14x128xf32>
    %c11_908 = arith.constant 11 : index
    %c3_909 = arith.constant 3 : index
    %c0_910 = arith.constant 0 : index
    %1429 = vector.load %arg9[%c11_908, %c3_909, %c0_910] : memref<18x18x128xf32, #tpu.memory_space<vmem>>, vector<1x14x128xf32>
    %1430 = vector.shape_cast %1429 : vector<1x14x128xf32> to vector<14x128xf32>
    %1431 = vector.broadcast %114 : vector<1x128xf32> to vector<14x128xf32>
    %1432 = arith.mulf %1430, %1431 : vector<14x128xf32>
    %1433 = arith.addf %1428, %1432 : vector<14x128xf32>
    %c11_911 = arith.constant 11 : index
    %c4_912 = arith.constant 4 : index
    %c0_913 = arith.constant 0 : index
    %1434 = vector.load %arg9[%c11_911, %c4_912, %c0_913] : memref<18x18x128xf32, #tpu.memory_space<vmem>>, vector<1x14x128xf32>
    %1435 = vector.shape_cast %1434 : vector<1x14x128xf32> to vector<14x128xf32>
    %1436 = vector.broadcast %116 : vector<1x128xf32> to vector<14x128xf32>
    %1437 = arith.mulf %1435, %1436 : vector<14x128xf32>
    %1438 = arith.addf %1433, %1437 : vector<14x128xf32>
    %c12_914 = arith.constant 12 : index
    %c0_915 = arith.constant 0 : index
    %c0_916 = arith.constant 0 : index
    %1439 = vector.load %arg9[%c12_914, %c0_915, %c0_916] : memref<18x18x128xf32, #tpu.memory_space<vmem>>, vector<1x14x128xf32>
    %1440 = vector.shape_cast %1439 : vector<1x14x128xf32> to vector<14x128xf32>
    %1441 = vector.broadcast %118 : vector<1x128xf32> to vector<14x128xf32>
    %1442 = arith.mulf %1440, %1441 : vector<14x128xf32>
    %1443 = arith.addf %1438, %1442 : vector<14x128xf32>
    %c12_917 = arith.constant 12 : index
    %c1_918 = arith.constant 1 : index
    %c0_919 = arith.constant 0 : index
    %1444 = vector.load %arg9[%c12_917, %c1_918, %c0_919] : memref<18x18x128xf32, #tpu.memory_space<vmem>>, vector<1x14x128xf32>
    %1445 = vector.shape_cast %1444 : vector<1x14x128xf32> to vector<14x128xf32>
    %1446 = vector.broadcast %120 : vector<1x128xf32> to vector<14x128xf32>
    %1447 = arith.mulf %1445, %1446 : vector<14x128xf32>
    %1448 = arith.addf %1443, %1447 : vector<14x128xf32>
    %c12_920 = arith.constant 12 : index
    %c2_921 = arith.constant 2 : index
    %c0_922 = arith.constant 0 : index
    %1449 = vector.load %arg9[%c12_920, %c2_921, %c0_922] : memref<18x18x128xf32, #tpu.memory_space<vmem>>, vector<1x14x128xf32>
    %1450 = vector.shape_cast %1449 : vector<1x14x128xf32> to vector<14x128xf32>
    %1451 = vector.broadcast %122 : vector<1x128xf32> to vector<14x128xf32>
    %1452 = arith.mulf %1450, %1451 : vector<14x128xf32>
    %1453 = arith.addf %1448, %1452 : vector<14x128xf32>
    %c12_923 = arith.constant 12 : index
    %c3_924 = arith.constant 3 : index
    %c0_925 = arith.constant 0 : index
    %1454 = vector.load %arg9[%c12_923, %c3_924, %c0_925] : memref<18x18x128xf32, #tpu.memory_space<vmem>>, vector<1x14x128xf32>
    %1455 = vector.shape_cast %1454 : vector<1x14x128xf32> to vector<14x128xf32>
    %1456 = vector.broadcast %124 : vector<1x128xf32> to vector<14x128xf32>
    %1457 = arith.mulf %1455, %1456 : vector<14x128xf32>
    %1458 = arith.addf %1453, %1457 : vector<14x128xf32>
    %c12_926 = arith.constant 12 : index
    %c4_927 = arith.constant 4 : index
    %c0_928 = arith.constant 0 : index
    %1459 = vector.load %arg9[%c12_926, %c4_927, %c0_928] : memref<18x18x128xf32, #tpu.memory_space<vmem>>, vector<1x14x128xf32>
    %1460 = vector.shape_cast %1459 : vector<1x14x128xf32> to vector<14x128xf32>
    %1461 = vector.broadcast %126 : vector<1x128xf32> to vector<14x128xf32>
    %1462 = arith.mulf %1460, %1461 : vector<14x128xf32>
    %1463 = arith.addf %1458, %1462 : vector<14x128xf32>
    %c13_929 = arith.constant 13 : index
    %c0_930 = arith.constant 0 : index
    %c0_931 = arith.constant 0 : index
    %1464 = vector.load %arg9[%c13_929, %c0_930, %c0_931] : memref<18x18x128xf32, #tpu.memory_space<vmem>>, vector<1x14x128xf32>
    %1465 = vector.shape_cast %1464 : vector<1x14x128xf32> to vector<14x128xf32>
    %1466 = vector.broadcast %128 : vector<1x128xf32> to vector<14x128xf32>
    %1467 = arith.mulf %1465, %1466 : vector<14x128xf32>
    %1468 = arith.addf %1463, %1467 : vector<14x128xf32>
    %c13_932 = arith.constant 13 : index
    %c1_933 = arith.constant 1 : index
    %c0_934 = arith.constant 0 : index
    %1469 = vector.load %arg9[%c13_932, %c1_933, %c0_934] : memref<18x18x128xf32, #tpu.memory_space<vmem>>, vector<1x14x128xf32>
    %1470 = vector.shape_cast %1469 : vector<1x14x128xf32> to vector<14x128xf32>
    %1471 = vector.broadcast %130 : vector<1x128xf32> to vector<14x128xf32>
    %1472 = arith.mulf %1470, %1471 : vector<14x128xf32>
    %1473 = arith.addf %1468, %1472 : vector<14x128xf32>
    %c13_935 = arith.constant 13 : index
    %c2_936 = arith.constant 2 : index
    %c0_937 = arith.constant 0 : index
    %1474 = vector.load %arg9[%c13_935, %c2_936, %c0_937] : memref<18x18x128xf32, #tpu.memory_space<vmem>>, vector<1x14x128xf32>
    %1475 = vector.shape_cast %1474 : vector<1x14x128xf32> to vector<14x128xf32>
    %1476 = vector.broadcast %132 : vector<1x128xf32> to vector<14x128xf32>
    %1477 = arith.mulf %1475, %1476 : vector<14x128xf32>
    %1478 = arith.addf %1473, %1477 : vector<14x128xf32>
    %c13_938 = arith.constant 13 : index
    %c3_939 = arith.constant 3 : index
    %c0_940 = arith.constant 0 : index
    %1479 = vector.load %arg9[%c13_938, %c3_939, %c0_940] : memref<18x18x128xf32, #tpu.memory_space<vmem>>, vector<1x14x128xf32>
    %1480 = vector.shape_cast %1479 : vector<1x14x128xf32> to vector<14x128xf32>
    %1481 = vector.broadcast %134 : vector<1x128xf32> to vector<14x128xf32>
    %1482 = arith.mulf %1480, %1481 : vector<14x128xf32>
    %1483 = arith.addf %1478, %1482 : vector<14x128xf32>
    %c13_941 = arith.constant 13 : index
    %c4_942 = arith.constant 4 : index
    %c0_943 = arith.constant 0 : index
    %1484 = vector.load %arg9[%c13_941, %c4_942, %c0_943] : memref<18x18x128xf32, #tpu.memory_space<vmem>>, vector<1x14x128xf32>
    %1485 = vector.shape_cast %1484 : vector<1x14x128xf32> to vector<14x128xf32>
    %1486 = vector.broadcast %136 : vector<1x128xf32> to vector<14x128xf32>
    %1487 = arith.mulf %1485, %1486 : vector<14x128xf32>
    %1488 = arith.addf %1483, %1487 : vector<14x128xf32>
    %c9_944 = arith.constant 9 : index
    %c0_945 = arith.constant 0 : index
    %c0_946 = arith.constant 0 : index
    %1489 = vector.load %arg8[%c9_944, %c0_945, %c0_946] : memref<14x14x128xf32, #tpu.memory_space<vmem>>, vector<1x14x128xf32>
    %1490 = vector.shape_cast %1489 : vector<1x14x128xf32> to vector<14x128xf32>
    %1491 = vector.shape_cast %1488 : vector<14x128xf32> to vector<1x14x128xf32>
    tpu.vector_store %arg8[%c9_944, %c0_945, %c0_946], %1491 {strides = array<i32>} : memref<14x14x128xf32, #tpu.memory_space<vmem>>, vector<1x14x128xf32>,
    %cst_947 = arith.constant dense<0.000000e+00> : vector<128xf32>
    %1492 = vector.multi_reduction <add>, %1488, %cst_947 [0] : vector<14x128xf32> to vector<128xf32>
    %1493 = vector.shape_cast %1492 : vector<128xf32> to vector<1x128xf32>
    %1494 = arith.addf %1358, %1493 : vector<1x128xf32>
    %1495 = arith.mulf %1488, %1488 : vector<14x128xf32>
    %cst_948 = arith.constant dense<0.000000e+00> : vector<128xf32>
    %1496 = vector.multi_reduction <add>, %1495, %cst_948 [0] : vector<14x128xf32> to vector<128xf32>
    %1497 = vector.shape_cast %1496 : vector<128xf32> to vector<1x128xf32>
    %1498 = arith.addf %1362, %1497 : vector<1x128xf32>
    %cst_949 = arith.constant 0.000000e+00 : f32
    %1499 = vector.broadcast %cst_949 : f32 to vector<14x128xf32>
    %c10_950 = arith.constant 10 : index
    %c0_951 = arith.constant 0 : index
    %c0_952 = arith.constant 0 : index
    %1500 = vector.load %arg9[%c10_950, %c0_951, %c0_952] : memref<18x18x128xf32, #tpu.memory_space<vmem>>, vector<1x14x128xf32>
    %1501 = vector.shape_cast %1500 : vector<1x14x128xf32> to vector<14x128xf32>
    %1502 = vector.broadcast %88 : vector<1x128xf32> to vector<14x128xf32>
    %1503 = arith.mulf %1501, %1502 : vector<14x128xf32>
    %1504 = arith.addf %1499, %1503 : vector<14x128xf32>
    %c10_953 = arith.constant 10 : index
    %c1_954 = arith.constant 1 : index
    %c0_955 = arith.constant 0 : index
    %1505 = vector.load %arg9[%c10_953, %c1_954, %c0_955] : memref<18x18x128xf32, #tpu.memory_space<vmem>>, vector<1x14x128xf32>
    %1506 = vector.shape_cast %1505 : vector<1x14x128xf32> to vector<14x128xf32>
    %1507 = vector.broadcast %90 : vector<1x128xf32> to vector<14x128xf32>
    %1508 = arith.mulf %1506, %1507 : vector<14x128xf32>
    %1509 = arith.addf %1504, %1508 : vector<14x128xf32>
    %c10_956 = arith.constant 10 : index
    %c2_957 = arith.constant 2 : index
    %c0_958 = arith.constant 0 : index
    %1510 = vector.load %arg9[%c10_956, %c2_957, %c0_958] : memref<18x18x128xf32, #tpu.memory_space<vmem>>, vector<1x14x128xf32>
    %1511 = vector.shape_cast %1510 : vector<1x14x128xf32> to vector<14x128xf32>
    %1512 = vector.broadcast %92 : vector<1x128xf32> to vector<14x128xf32>
    %1513 = arith.mulf %1511, %1512 : vector<14x128xf32>
    %1514 = arith.addf %1509, %1513 : vector<14x128xf32>
    %c10_959 = arith.constant 10 : index
    %c3_960 = arith.constant 3 : index
    %c0_961 = arith.constant 0 : index
    %1515 = vector.load %arg9[%c10_959, %c3_960, %c0_961] : memref<18x18x128xf32, #tpu.memory_space<vmem>>, vector<1x14x128xf32>
    %1516 = vector.shape_cast %1515 : vector<1x14x128xf32> to vector<14x128xf32>
    %1517 = vector.broadcast %94 : vector<1x128xf32> to vector<14x128xf32>
    %1518 = arith.mulf %1516, %1517 : vector<14x128xf32>
    %1519 = arith.addf %1514, %1518 : vector<14x128xf32>
    %c10_962 = arith.constant 10 : index
    %c4_963 = arith.constant 4 : index
    %c0_964 = arith.constant 0 : index
    %1520 = vector.load %arg9[%c10_962, %c4_963, %c0_964] : memref<18x18x128xf32, #tpu.memory_space<vmem>>, vector<1x14x128xf32>
    %1521 = vector.shape_cast %1520 : vector<1x14x128xf32> to vector<14x128xf32>
    %1522 = vector.broadcast %96 : vector<1x128xf32> to vector<14x128xf32>
    %1523 = arith.mulf %1521, %1522 : vector<14x128xf32>
    %1524 = arith.addf %1519, %1523 : vector<14x128xf32>
    %c11_965 = arith.constant 11 : index
    %c0_966 = arith.constant 0 : index
    %c0_967 = arith.constant 0 : index
    %1525 = vector.load %arg9[%c11_965, %c0_966, %c0_967] : memref<18x18x128xf32, #tpu.memory_space<vmem>>, vector<1x14x128xf32>
    %1526 = vector.shape_cast %1525 : vector<1x14x128xf32> to vector<14x128xf32>
    %1527 = vector.broadcast %98 : vector<1x128xf32> to vector<14x128xf32>
    %1528 = arith.mulf %1526, %1527 : vector<14x128xf32>
    %1529 = arith.addf %1524, %1528 : vector<14x128xf32>
    %c11_968 = arith.constant 11 : index
    %c1_969 = arith.constant 1 : index
    %c0_970 = arith.constant 0 : index
    %1530 = vector.load %arg9[%c11_968, %c1_969, %c0_970] : memref<18x18x128xf32, #tpu.memory_space<vmem>>, vector<1x14x128xf32>
    %1531 = vector.shape_cast %1530 : vector<1x14x128xf32> to vector<14x128xf32>
    %1532 = vector.broadcast %100 : vector<1x128xf32> to vector<14x128xf32>
    %1533 = arith.mulf %1531, %1532 : vector<14x128xf32>
    %1534 = arith.addf %1529, %1533 : vector<14x128xf32>
    %c11_971 = arith.constant 11 : index
    %c2_972 = arith.constant 2 : index
    %c0_973 = arith.constant 0 : index
    %1535 = vector.load %arg9[%c11_971, %c2_972, %c0_973] : memref<18x18x128xf32, #tpu.memory_space<vmem>>, vector<1x14x128xf32>
    %1536 = vector.shape_cast %1535 : vector<1x14x128xf32> to vector<14x128xf32>
    %1537 = vector.broadcast %102 : vector<1x128xf32> to vector<14x128xf32>
    %1538 = arith.mulf %1536, %1537 : vector<14x128xf32>
    %1539 = arith.addf %1534, %1538 : vector<14x128xf32>
    %c11_974 = arith.constant 11 : index
    %c3_975 = arith.constant 3 : index
    %c0_976 = arith.constant 0 : index
    %1540 = vector.load %arg9[%c11_974, %c3_975, %c0_976] : memref<18x18x128xf32, #tpu.memory_space<vmem>>, vector<1x14x128xf32>
    %1541 = vector.shape_cast %1540 : vector<1x14x128xf32> to vector<14x128xf32>
    %1542 = vector.broadcast %104 : vector<1x128xf32> to vector<14x128xf32>
    %1543 = arith.mulf %1541, %1542 : vector<14x128xf32>
    %1544 = arith.addf %1539, %1543 : vector<14x128xf32>
    %c11_977 = arith.constant 11 : index
    %c4_978 = arith.constant 4 : index
    %c0_979 = arith.constant 0 : index
    %1545 = vector.load %arg9[%c11_977, %c4_978, %c0_979] : memref<18x18x128xf32, #tpu.memory_space<vmem>>, vector<1x14x128xf32>
    %1546 = vector.shape_cast %1545 : vector<1x14x128xf32> to vector<14x128xf32>
    %1547 = vector.broadcast %106 : vector<1x128xf32> to vector<14x128xf32>
    %1548 = arith.mulf %1546, %1547 : vector<14x128xf32>
    %1549 = arith.addf %1544, %1548 : vector<14x128xf32>
    %c12_980 = arith.constant 12 : index
    %c0_981 = arith.constant 0 : index
    %c0_982 = arith.constant 0 : index
    %1550 = vector.load %arg9[%c12_980, %c0_981, %c0_982] : memref<18x18x128xf32, #tpu.memory_space<vmem>>, vector<1x14x128xf32>
    %1551 = vector.shape_cast %1550 : vector<1x14x128xf32> to vector<14x128xf32>
    %1552 = vector.broadcast %108 : vector<1x128xf32> to vector<14x128xf32>
    %1553 = arith.mulf %1551, %1552 : vector<14x128xf32>
    %1554 = arith.addf %1549, %1553 : vector<14x128xf32>
    %c12_983 = arith.constant 12 : index
    %c1_984 = arith.constant 1 : index
    %c0_985 = arith.constant 0 : index
    %1555 = vector.load %arg9[%c12_983, %c1_984, %c0_985] : memref<18x18x128xf32, #tpu.memory_space<vmem>>, vector<1x14x128xf32>
    %1556 = vector.shape_cast %1555 : vector<1x14x128xf32> to vector<14x128xf32>
    %1557 = vector.broadcast %110 : vector<1x128xf32> to vector<14x128xf32>
    %1558 = arith.mulf %1556, %1557 : vector<14x128xf32>
    %1559 = arith.addf %1554, %1558 : vector<14x128xf32>
    %c12_986 = arith.constant 12 : index
    %c2_987 = arith.constant 2 : index
    %c0_988 = arith.constant 0 : index
    %1560 = vector.load %arg9[%c12_986, %c2_987, %c0_988] : memref<18x18x128xf32, #tpu.memory_space<vmem>>, vector<1x14x128xf32>
    %1561 = vector.shape_cast %1560 : vector<1x14x128xf32> to vector<14x128xf32>
    %1562 = vector.broadcast %112 : vector<1x128xf32> to vector<14x128xf32>
    %1563 = arith.mulf %1561, %1562 : vector<14x128xf32>
    %1564 = arith.addf %1559, %1563 : vector<14x128xf32>
    %c12_989 = arith.constant 12 : index
    %c3_990 = arith.constant 3 : index
    %c0_991 = arith.constant 0 : index
    %1565 = vector.load %arg9[%c12_989, %c3_990, %c0_991] : memref<18x18x128xf32, #tpu.memory_space<vmem>>, vector<1x14x128xf32>
    %1566 = vector.shape_cast %1565 : vector<1x14x128xf32> to vector<14x128xf32>
    %1567 = vector.broadcast %114 : vector<1x128xf32> to vector<14x128xf32>
    %1568 = arith.mulf %1566, %1567 : vector<14x128xf32>
    %1569 = arith.addf %1564, %1568 : vector<14x128xf32>
    %c12_992 = arith.constant 12 : index
    %c4_993 = arith.constant 4 : index
    %c0_994 = arith.constant 0 : index
    %1570 = vector.load %arg9[%c12_992, %c4_993, %c0_994] : memref<18x18x128xf32, #tpu.memory_space<vmem>>, vector<1x14x128xf32>
    %1571 = vector.shape_cast %1570 : vector<1x14x128xf32> to vector<14x128xf32>
    %1572 = vector.broadcast %116 : vector<1x128xf32> to vector<14x128xf32>
    %1573 = arith.mulf %1571, %1572 : vector<14x128xf32>
    %1574 = arith.addf %1569, %1573 : vector<14x128xf32>
    %c13_995 = arith.constant 13 : index
    %c0_996 = arith.constant 0 : index
    %c0_997 = arith.constant 0 : index
    %1575 = vector.load %arg9[%c13_995, %c0_996, %c0_997] : memref<18x18x128xf32, #tpu.memory_space<vmem>>, vector<1x14x128xf32>
    %1576 = vector.shape_cast %1575 : vector<1x14x128xf32> to vector<14x128xf32>
    %1577 = vector.broadcast %118 : vector<1x128xf32> to vector<14x128xf32>
    %1578 = arith.mulf %1576, %1577 : vector<14x128xf32>
    %1579 = arith.addf %1574, %1578 : vector<14x128xf32>
    %c13_998 = arith.constant 13 : index
    %c1_999 = arith.constant 1 : index
    %c0_1000 = arith.constant 0 : index
    %1580 = vector.load %arg9[%c13_998, %c1_999, %c0_1000] : memref<18x18x128xf32, #tpu.memory_space<vmem>>, vector<1x14x128xf32>
    %1581 = vector.shape_cast %1580 : vector<1x14x128xf32> to vector<14x128xf32>
    %1582 = vector.broadcast %120 : vector<1x128xf32> to vector<14x128xf32>
    %1583 = arith.mulf %1581, %1582 : vector<14x128xf32>
    %1584 = arith.addf %1579, %1583 : vector<14x128xf32>
    %c13_1001 = arith.constant 13 : index
    %c2_1002 = arith.constant 2 : index
    %c0_1003 = arith.constant 0 : index
    %1585 = vector.load %arg9[%c13_1001, %c2_1002, %c0_1003] : memref<18x18x128xf32, #tpu.memory_space<vmem>>, vector<1x14x128xf32>
    %1586 = vector.shape_cast %1585 : vector<1x14x128xf32> to vector<14x128xf32>
    %1587 = vector.broadcast %122 : vector<1x128xf32> to vector<14x128xf32>
    %1588 = arith.mulf %1586, %1587 : vector<14x128xf32>
    %1589 = arith.addf %1584, %1588 : vector<14x128xf32>
    %c13_1004 = arith.constant 13 : index
    %c3_1005 = arith.constant 3 : index
    %c0_1006 = arith.constant 0 : index
    %1590 = vector.load %arg9[%c13_1004, %c3_1005, %c0_1006] : memref<18x18x128xf32, #tpu.memory_space<vmem>>, vector<1x14x128xf32>
    %1591 = vector.shape_cast %1590 : vector<1x14x128xf32> to vector<14x128xf32>
    %1592 = vector.broadcast %124 : vector<1x128xf32> to vector<14x128xf32>
    %1593 = arith.mulf %1591, %1592 : vector<14x128xf32>
    %1594 = arith.addf %1589, %1593 : vector<14x128xf32>
    %c13_1007 = arith.constant 13 : index
    %c4_1008 = arith.constant 4 : index
    %c0_1009 = arith.constant 0 : index
    %1595 = vector.load %arg9[%c13_1007, %c4_1008, %c0_1009] : memref<18x18x128xf32, #tpu.memory_space<vmem>>, vector<1x14x128xf32>
    %1596 = vector.shape_cast %1595 : vector<1x14x128xf32> to vector<14x128xf32>
    %1597 = vector.broadcast %126 : vector<1x128xf32> to vector<14x128xf32>
    %1598 = arith.mulf %1596, %1597 : vector<14x128xf32>
    %1599 = arith.addf %1594, %1598 : vector<14x128xf32>
    %c14_1010 = arith.constant 14 : index
    %c0_1011 = arith.constant 0 : index
    %c0_1012 = arith.constant 0 : index
    %1600 = vector.load %arg9[%c14_1010, %c0_1011, %c0_1012] : memref<18x18x128xf32, #tpu.memory_space<vmem>>, vector<1x14x128xf32>
    %1601 = vector.shape_cast %1600 : vector<1x14x128xf32> to vector<14x128xf32>
    %1602 = vector.broadcast %128 : vector<1x128xf32> to vector<14x128xf32>
    %1603 = arith.mulf %1601, %1602 : vector<14x128xf32>
    %1604 = arith.addf %1599, %1603 : vector<14x128xf32>
    %c14_1013 = arith.constant 14 : index
    %c1_1014 = arith.constant 1 : index
    %c0_1015 = arith.constant 0 : index
    %1605 = vector.load %arg9[%c14_1013, %c1_1014, %c0_1015] : memref<18x18x128xf32, #tpu.memory_space<vmem>>, vector<1x14x128xf32>
    %1606 = vector.shape_cast %1605 : vector<1x14x128xf32> to vector<14x128xf32>
    %1607 = vector.broadcast %130 : vector<1x128xf32> to vector<14x128xf32>
    %1608 = arith.mulf %1606, %1607 : vector<14x128xf32>
    %1609 = arith.addf %1604, %1608 : vector<14x128xf32>
    %c14_1016 = arith.constant 14 : index
    %c2_1017 = arith.constant 2 : index
    %c0_1018 = arith.constant 0 : index
    %1610 = vector.load %arg9[%c14_1016, %c2_1017, %c0_1018] : memref<18x18x128xf32, #tpu.memory_space<vmem>>, vector<1x14x128xf32>
    %1611 = vector.shape_cast %1610 : vector<1x14x128xf32> to vector<14x128xf32>
    %1612 = vector.broadcast %132 : vector<1x128xf32> to vector<14x128xf32>
    %1613 = arith.mulf %1611, %1612 : vector<14x128xf32>
    %1614 = arith.addf %1609, %1613 : vector<14x128xf32>
    %c14_1019 = arith.constant 14 : index
    %c3_1020 = arith.constant 3 : index
    %c0_1021 = arith.constant 0 : index
    %1615 = vector.load %arg9[%c14_1019, %c3_1020, %c0_1021] : memref<18x18x128xf32, #tpu.memory_space<vmem>>, vector<1x14x128xf32>
    %1616 = vector.shape_cast %1615 : vector<1x14x128xf32> to vector<14x128xf32>
    %1617 = vector.broadcast %134 : vector<1x128xf32> to vector<14x128xf32>
    %1618 = arith.mulf %1616, %1617 : vector<14x128xf32>
    %1619 = arith.addf %1614, %1618 : vector<14x128xf32>
    %c14_1022 = arith.constant 14 : index
    %c4_1023 = arith.constant 4 : index
    %c0_1024 = arith.constant 0 : index
    %1620 = vector.load %arg9[%c14_1022, %c4_1023, %c0_1024] : memref<18x18x128xf32, #tpu.memory_space<vmem>>, vector<1x14x128xf32>
    %1621 = vector.shape_cast %1620 : vector<1x14x128xf32> to vector<14x128xf32>
    %1622 = vector.broadcast %136 : vector<1x128xf32> to vector<14x128xf32>
    %1623 = arith.mulf %1621, %1622 : vector<14x128xf32>
    %1624 = arith.addf %1619, %1623 : vector<14x128xf32>
    %c10_1025 = arith.constant 10 : index
    %c0_1026 = arith.constant 0 : index
    %c0_1027 = arith.constant 0 : index
    %1625 = vector.load %arg8[%c10_1025, %c0_1026, %c0_1027] : memref<14x14x128xf32, #tpu.memory_space<vmem>>, vector<1x14x128xf32>
    %1626 = vector.shape_cast %1625 : vector<1x14x128xf32> to vector<14x128xf32>
    %1627 = vector.shape_cast %1624 : vector<14x128xf32> to vector<1x14x128xf32>
    tpu.vector_store %arg8[%c10_1025, %c0_1026, %c0_1027], %1627 {strides = array<i32>} : memref<14x14x128xf32, #tpu.memory_space<vmem>>, vector<1x14x128xf32>,
    %cst_1028 = arith.constant dense<0.000000e+00> : vector<128xf32>
    %1628 = vector.multi_reduction <add>, %1624, %cst_1028 [0] : vector<14x128xf32> to vector<128xf32>
    %1629 = vector.shape_cast %1628 : vector<128xf32> to vector<1x128xf32>
    %1630 = arith.addf %1494, %1629 : vector<1x128xf32>
    %1631 = arith.mulf %1624, %1624 : vector<14x128xf32>
    %cst_1029 = arith.constant dense<0.000000e+00> : vector<128xf32>
    %1632 = vector.multi_reduction <add>, %1631, %cst_1029 [0] : vector<14x128xf32> to vector<128xf32>
    %1633 = vector.shape_cast %1632 : vector<128xf32> to vector<1x128xf32>
    %1634 = arith.addf %1498, %1633 : vector<1x128xf32>
    %cst_1030 = arith.constant 0.000000e+00 : f32
    %1635 = vector.broadcast %cst_1030 : f32 to vector<14x128xf32>
    %c11_1031 = arith.constant 11 : index
    %c0_1032 = arith.constant 0 : index
    %c0_1033 = arith.constant 0 : index
    %1636 = vector.load %arg9[%c11_1031, %c0_1032, %c0_1033] : memref<18x18x128xf32, #tpu.memory_space<vmem>>, vector<1x14x128xf32>
    %1637 = vector.shape_cast %1636 : vector<1x14x128xf32> to vector<14x128xf32>
    %1638 = vector.broadcast %88 : vector<1x128xf32> to vector<14x128xf32>
    %1639 = arith.mulf %1637, %1638 : vector<14x128xf32>
    %1640 = arith.addf %1635, %1639 : vector<14x128xf32>
    %c11_1034 = arith.constant 11 : index
    %c1_1035 = arith.constant 1 : index
    %c0_1036 = arith.constant 0 : index
    %1641 = vector.load %arg9[%c11_1034, %c1_1035, %c0_1036] : memref<18x18x128xf32, #tpu.memory_space<vmem>>, vector<1x14x128xf32>
    %1642 = vector.shape_cast %1641 : vector<1x14x128xf32> to vector<14x128xf32>
    %1643 = vector.broadcast %90 : vector<1x128xf32> to vector<14x128xf32>
    %1644 = arith.mulf %1642, %1643 : vector<14x128xf32>
    %1645 = arith.addf %1640, %1644 : vector<14x128xf32>
    %c11_1037 = arith.constant 11 : index
    %c2_1038 = arith.constant 2 : index
    %c0_1039 = arith.constant 0 : index
    %1646 = vector.load %arg9[%c11_1037, %c2_1038, %c0_1039] : memref<18x18x128xf32, #tpu.memory_space<vmem>>, vector<1x14x128xf32>
    %1647 = vector.shape_cast %1646 : vector<1x14x128xf32> to vector<14x128xf32>
    %1648 = vector.broadcast %92 : vector<1x128xf32> to vector<14x128xf32>
    %1649 = arith.mulf %1647, %1648 : vector<14x128xf32>
    %1650 = arith.addf %1645, %1649 : vector<14x128xf32>
    %c11_1040 = arith.constant 11 : index
    %c3_1041 = arith.constant 3 : index
    %c0_1042 = arith.constant 0 : index
    %1651 = vector.load %arg9[%c11_1040, %c3_1041, %c0_1042] : memref<18x18x128xf32, #tpu.memory_space<vmem>>, vector<1x14x128xf32>
    %1652 = vector.shape_cast %1651 : vector<1x14x128xf32> to vector<14x128xf32>
    %1653 = vector.broadcast %94 : vector<1x128xf32> to vector<14x128xf32>
    %1654 = arith.mulf %1652, %1653 : vector<14x128xf32>
    %1655 = arith.addf %1650, %1654 : vector<14x128xf32>
    %c11_1043 = arith.constant 11 : index
    %c4_1044 = arith.constant 4 : index
    %c0_1045 = arith.constant 0 : index
    %1656 = vector.load %arg9[%c11_1043, %c4_1044, %c0_1045] : memref<18x18x128xf32, #tpu.memory_space<vmem>>, vector<1x14x128xf32>
    %1657 = vector.shape_cast %1656 : vector<1x14x128xf32> to vector<14x128xf32>
    %1658 = vector.broadcast %96 : vector<1x128xf32> to vector<14x128xf32>
    %1659 = arith.mulf %1657, %1658 : vector<14x128xf32>
    %1660 = arith.addf %1655, %1659 : vector<14x128xf32>
    %c12_1046 = arith.constant 12 : index
    %c0_1047 = arith.constant 0 : index
    %c0_1048 = arith.constant 0 : index
    %1661 = vector.load %arg9[%c12_1046, %c0_1047, %c0_1048] : memref<18x18x128xf32, #tpu.memory_space<vmem>>, vector<1x14x128xf32>
    %1662 = vector.shape_cast %1661 : vector<1x14x128xf32> to vector<14x128xf32>
    %1663 = vector.broadcast %98 : vector<1x128xf32> to vector<14x128xf32>
    %1664 = arith.mulf %1662, %1663 : vector<14x128xf32>
    %1665 = arith.addf %1660, %1664 : vector<14x128xf32>
    %c12_1049 = arith.constant 12 : index
    %c1_1050 = arith.constant 1 : index
    %c0_1051 = arith.constant 0 : index
    %1666 = vector.load %arg9[%c12_1049, %c1_1050, %c0_1051] : memref<18x18x128xf32, #tpu.memory_space<vmem>>, vector<1x14x128xf32>
    %1667 = vector.shape_cast %1666 : vector<1x14x128xf32> to vector<14x128xf32>
    %1668 = vector.broadcast %100 : vector<1x128xf32> to vector<14x128xf32>
    %1669 = arith.mulf %1667, %1668 : vector<14x128xf32>
    %1670 = arith.addf %1665, %1669 : vector<14x128xf32>
    %c12_1052 = arith.constant 12 : index
    %c2_1053 = arith.constant 2 : index
    %c0_1054 = arith.constant 0 : index
    %1671 = vector.load %arg9[%c12_1052, %c2_1053, %c0_1054] : memref<18x18x128xf32, #tpu.memory_space<vmem>>, vector<1x14x128xf32>
    %1672 = vector.shape_cast %1671 : vector<1x14x128xf32> to vector<14x128xf32>
    %1673 = vector.broadcast %102 : vector<1x128xf32> to vector<14x128xf32>
    %1674 = arith.mulf %1672, %1673 : vector<14x128xf32>
    %1675 = arith.addf %1670, %1674 : vector<14x128xf32>
    %c12_1055 = arith.constant 12 : index
    %c3_1056 = arith.constant 3 : index
    %c0_1057 = arith.constant 0 : index
    %1676 = vector.load %arg9[%c12_1055, %c3_1056, %c0_1057] : memref<18x18x128xf32, #tpu.memory_space<vmem>>, vector<1x14x128xf32>
    %1677 = vector.shape_cast %1676 : vector<1x14x128xf32> to vector<14x128xf32>
    %1678 = vector.broadcast %104 : vector<1x128xf32> to vector<14x128xf32>
    %1679 = arith.mulf %1677, %1678 : vector<14x128xf32>
    %1680 = arith.addf %1675, %1679 : vector<14x128xf32>
    %c12_1058 = arith.constant 12 : index
    %c4_1059 = arith.constant 4 : index
    %c0_1060 = arith.constant 0 : index
    %1681 = vector.load %arg9[%c12_1058, %c4_1059, %c0_1060] : memref<18x18x128xf32, #tpu.memory_space<vmem>>, vector<1x14x128xf32>
    %1682 = vector.shape_cast %1681 : vector<1x14x128xf32> to vector<14x128xf32>
    %1683 = vector.broadcast %106 : vector<1x128xf32> to vector<14x128xf32>
    %1684 = arith.mulf %1682, %1683 : vector<14x128xf32>
    %1685 = arith.addf %1680, %1684 : vector<14x128xf32>
    %c13_1061 = arith.constant 13 : index
    %c0_1062 = arith.constant 0 : index
    %c0_1063 = arith.constant 0 : index
    %1686 = vector.load %arg9[%c13_1061, %c0_1062, %c0_1063] : memref<18x18x128xf32, #tpu.memory_space<vmem>>, vector<1x14x128xf32>
    %1687 = vector.shape_cast %1686 : vector<1x14x128xf32> to vector<14x128xf32>
    %1688 = vector.broadcast %108 : vector<1x128xf32> to vector<14x128xf32>
    %1689 = arith.mulf %1687, %1688 : vector<14x128xf32>
    %1690 = arith.addf %1685, %1689 : vector<14x128xf32>
    %c13_1064 = arith.constant 13 : index
    %c1_1065 = arith.constant 1 : index
    %c0_1066 = arith.constant 0 : index
    %1691 = vector.load %arg9[%c13_1064, %c1_1065, %c0_1066] : memref<18x18x128xf32, #tpu.memory_space<vmem>>, vector<1x14x128xf32>
    %1692 = vector.shape_cast %1691 : vector<1x14x128xf32> to vector<14x128xf32>
    %1693 = vector.broadcast %110 : vector<1x128xf32> to vector<14x128xf32>
    %1694 = arith.mulf %1692, %1693 : vector<14x128xf32>
    %1695 = arith.addf %1690, %1694 : vector<14x128xf32>
    %c13_1067 = arith.constant 13 : index
    %c2_1068 = arith.constant 2 : index
    %c0_1069 = arith.constant 0 : index
    %1696 = vector.load %arg9[%c13_1067, %c2_1068, %c0_1069] : memref<18x18x128xf32, #tpu.memory_space<vmem>>, vector<1x14x128xf32>
    %1697 = vector.shape_cast %1696 : vector<1x14x128xf32> to vector<14x128xf32>
    %1698 = vector.broadcast %112 : vector<1x128xf32> to vector<14x128xf32>
    %1699 = arith.mulf %1697, %1698 : vector<14x128xf32>
    %1700 = arith.addf %1695, %1699 : vector<14x128xf32>
    %c13_1070 = arith.constant 13 : index
    %c3_1071 = arith.constant 3 : index
    %c0_1072 = arith.constant 0 : index
    %1701 = vector.load %arg9[%c13_1070, %c3_1071, %c0_1072] : memref<18x18x128xf32, #tpu.memory_space<vmem>>, vector<1x14x128xf32>
    %1702 = vector.shape_cast %1701 : vector<1x14x128xf32> to vector<14x128xf32>
    %1703 = vector.broadcast %114 : vector<1x128xf32> to vector<14x128xf32>
    %1704 = arith.mulf %1702, %1703 : vector<14x128xf32>
    %1705 = arith.addf %1700, %1704 : vector<14x128xf32>
    %c13_1073 = arith.constant 13 : index
    %c4_1074 = arith.constant 4 : index
    %c0_1075 = arith.constant 0 : index
    %1706 = vector.load %arg9[%c13_1073, %c4_1074, %c0_1075] : memref<18x18x128xf32, #tpu.memory_space<vmem>>, vector<1x14x128xf32>
    %1707 = vector.shape_cast %1706 : vector<1x14x128xf32> to vector<14x128xf32>
    %1708 = vector.broadcast %116 : vector<1x128xf32> to vector<14x128xf32>
    %1709 = arith.mulf %1707, %1708 : vector<14x128xf32>
    %1710 = arith.addf %1705, %1709 : vector<14x128xf32>
    %c14_1076 = arith.constant 14 : index
    %c0_1077 = arith.constant 0 : index
    %c0_1078 = arith.constant 0 : index
    %1711 = vector.load %arg9[%c14_1076, %c0_1077, %c0_1078] : memref<18x18x128xf32, #tpu.memory_space<vmem>>, vector<1x14x128xf32>
    %1712 = vector.shape_cast %1711 : vector<1x14x128xf32> to vector<14x128xf32>
    %1713 = vector.broadcast %118 : vector<1x128xf32> to vector<14x128xf32>
    %1714 = arith.mulf %1712, %1713 : vector<14x128xf32>
    %1715 = arith.addf %1710, %1714 : vector<14x128xf32>
    %c14_1079 = arith.constant 14 : index
    %c1_1080 = arith.constant 1 : index
    %c0_1081 = arith.constant 0 : index
    %1716 = vector.load %arg9[%c14_1079, %c1_1080, %c0_1081] : memref<18x18x128xf32, #tpu.memory_space<vmem>>, vector<1x14x128xf32>
    %1717 = vector.shape_cast %1716 : vector<1x14x128xf32> to vector<14x128xf32>
    %1718 = vector.broadcast %120 : vector<1x128xf32> to vector<14x128xf32>
    %1719 = arith.mulf %1717, %1718 : vector<14x128xf32>
    %1720 = arith.addf %1715, %1719 : vector<14x128xf32>
    %c14_1082 = arith.constant 14 : index
    %c2_1083 = arith.constant 2 : index
    %c0_1084 = arith.constant 0 : index
    %1721 = vector.load %arg9[%c14_1082, %c2_1083, %c0_1084] : memref<18x18x128xf32, #tpu.memory_space<vmem>>, vector<1x14x128xf32>
    %1722 = vector.shape_cast %1721 : vector<1x14x128xf32> to vector<14x128xf32>
    %1723 = vector.broadcast %122 : vector<1x128xf32> to vector<14x128xf32>
    %1724 = arith.mulf %1722, %1723 : vector<14x128xf32>
    %1725 = arith.addf %1720, %1724 : vector<14x128xf32>
    %c14_1085 = arith.constant 14 : index
    %c3_1086 = arith.constant 3 : index
    %c0_1087 = arith.constant 0 : index
    %1726 = vector.load %arg9[%c14_1085, %c3_1086, %c0_1087] : memref<18x18x128xf32, #tpu.memory_space<vmem>>, vector<1x14x128xf32>
    %1727 = vector.shape_cast %1726 : vector<1x14x128xf32> to vector<14x128xf32>
    %1728 = vector.broadcast %124 : vector<1x128xf32> to vector<14x128xf32>
    %1729 = arith.mulf %1727, %1728 : vector<14x128xf32>
    %1730 = arith.addf %1725, %1729 : vector<14x128xf32>
    %c14_1088 = arith.constant 14 : index
    %c4_1089 = arith.constant 4 : index
    %c0_1090 = arith.constant 0 : index
    %1731 = vector.load %arg9[%c14_1088, %c4_1089, %c0_1090] : memref<18x18x128xf32, #tpu.memory_space<vmem>>, vector<1x14x128xf32>
    %1732 = vector.shape_cast %1731 : vector<1x14x128xf32> to vector<14x128xf32>
    %1733 = vector.broadcast %126 : vector<1x128xf32> to vector<14x128xf32>
    %1734 = arith.mulf %1732, %1733 : vector<14x128xf32>
    %1735 = arith.addf %1730, %1734 : vector<14x128xf32>
    %c15_1091 = arith.constant 15 : index
    %c0_1092 = arith.constant 0 : index
    %c0_1093 = arith.constant 0 : index
    %1736 = vector.load %arg9[%c15_1091, %c0_1092, %c0_1093] : memref<18x18x128xf32, #tpu.memory_space<vmem>>, vector<1x14x128xf32>
    %1737 = vector.shape_cast %1736 : vector<1x14x128xf32> to vector<14x128xf32>
    %1738 = vector.broadcast %128 : vector<1x128xf32> to vector<14x128xf32>
    %1739 = arith.mulf %1737, %1738 : vector<14x128xf32>
    %1740 = arith.addf %1735, %1739 : vector<14x128xf32>
    %c15_1094 = arith.constant 15 : index
    %c1_1095 = arith.constant 1 : index
    %c0_1096 = arith.constant 0 : index
    %1741 = vector.load %arg9[%c15_1094, %c1_1095, %c0_1096] : memref<18x18x128xf32, #tpu.memory_space<vmem>>, vector<1x14x128xf32>
    %1742 = vector.shape_cast %1741 : vector<1x14x128xf32> to vector<14x128xf32>
    %1743 = vector.broadcast %130 : vector<1x128xf32> to vector<14x128xf32>
    %1744 = arith.mulf %1742, %1743 : vector<14x128xf32>
    %1745 = arith.addf %1740, %1744 : vector<14x128xf32>
    %c15_1097 = arith.constant 15 : index
    %c2_1098 = arith.constant 2 : index
    %c0_1099 = arith.constant 0 : index
    %1746 = vector.load %arg9[%c15_1097, %c2_1098, %c0_1099] : memref<18x18x128xf32, #tpu.memory_space<vmem>>, vector<1x14x128xf32>
    %1747 = vector.shape_cast %1746 : vector<1x14x128xf32> to vector<14x128xf32>
    %1748 = vector.broadcast %132 : vector<1x128xf32> to vector<14x128xf32>
    %1749 = arith.mulf %1747, %1748 : vector<14x128xf32>
    %1750 = arith.addf %1745, %1749 : vector<14x128xf32>
    %c15_1100 = arith.constant 15 : index
    %c3_1101 = arith.constant 3 : index
    %c0_1102 = arith.constant 0 : index
    %1751 = vector.load %arg9[%c15_1100, %c3_1101, %c0_1102] : memref<18x18x128xf32, #tpu.memory_space<vmem>>, vector<1x14x128xf32>
    %1752 = vector.shape_cast %1751 : vector<1x14x128xf32> to vector<14x128xf32>
    %1753 = vector.broadcast %134 : vector<1x128xf32> to vector<14x128xf32>
    %1754 = arith.mulf %1752, %1753 : vector<14x128xf32>
    %1755 = arith.addf %1750, %1754 : vector<14x128xf32>
    %c15_1103 = arith.constant 15 : index
    %c4_1104 = arith.constant 4 : index
    %c0_1105 = arith.constant 0 : index
    %1756 = vector.load %arg9[%c15_1103, %c4_1104, %c0_1105] : memref<18x18x128xf32, #tpu.memory_space<vmem>>, vector<1x14x128xf32>
    %1757 = vector.shape_cast %1756 : vector<1x14x128xf32> to vector<14x128xf32>
    %1758 = vector.broadcast %136 : vector<1x128xf32> to vector<14x128xf32>
    %1759 = arith.mulf %1757, %1758 : vector<14x128xf32>
    %1760 = arith.addf %1755, %1759 : vector<14x128xf32>
    %c11_1106 = arith.constant 11 : index
    %c0_1107 = arith.constant 0 : index
    %c0_1108 = arith.constant 0 : index
    %1761 = vector.load %arg8[%c11_1106, %c0_1107, %c0_1108] : memref<14x14x128xf32, #tpu.memory_space<vmem>>, vector<1x14x128xf32>
    %1762 = vector.shape_cast %1761 : vector<1x14x128xf32> to vector<14x128xf32>
    %1763 = vector.shape_cast %1760 : vector<14x128xf32> to vector<1x14x128xf32>
    tpu.vector_store %arg8[%c11_1106, %c0_1107, %c0_1108], %1763 {strides = array<i32>} : memref<14x14x128xf32, #tpu.memory_space<vmem>>, vector<1x14x128xf32>,
    %cst_1109 = arith.constant dense<0.000000e+00> : vector<128xf32>
    %1764 = vector.multi_reduction <add>, %1760, %cst_1109 [0] : vector<14x128xf32> to vector<128xf32>
    %1765 = vector.shape_cast %1764 : vector<128xf32> to vector<1x128xf32>
    %1766 = arith.addf %1630, %1765 : vector<1x128xf32>
    %1767 = arith.mulf %1760, %1760 : vector<14x128xf32>
    %cst_1110 = arith.constant dense<0.000000e+00> : vector<128xf32>
    %1768 = vector.multi_reduction <add>, %1767, %cst_1110 [0] : vector<14x128xf32> to vector<128xf32>
    %1769 = vector.shape_cast %1768 : vector<128xf32> to vector<1x128xf32>
    %1770 = arith.addf %1634, %1769 : vector<1x128xf32>
    %cst_1111 = arith.constant 0.000000e+00 : f32
    %1771 = vector.broadcast %cst_1111 : f32 to vector<14x128xf32>
    %c12_1112 = arith.constant 12 : index
    %c0_1113 = arith.constant 0 : index
    %c0_1114 = arith.constant 0 : index
    %1772 = vector.load %arg9[%c12_1112, %c0_1113, %c0_1114] : memref<18x18x128xf32, #tpu.memory_space<vmem>>, vector<1x14x128xf32>
    %1773 = vector.shape_cast %1772 : vector<1x14x128xf32> to vector<14x128xf32>
    %1774 = vector.broadcast %88 : vector<1x128xf32> to vector<14x128xf32>
    %1775 = arith.mulf %1773, %1774 : vector<14x128xf32>
    %1776 = arith.addf %1771, %1775 : vector<14x128xf32>
    %c12_1115 = arith.constant 12 : index
    %c1_1116 = arith.constant 1 : index
    %c0_1117 = arith.constant 0 : index
    %1777 = vector.load %arg9[%c12_1115, %c1_1116, %c0_1117] : memref<18x18x128xf32, #tpu.memory_space<vmem>>, vector<1x14x128xf32>
    %1778 = vector.shape_cast %1777 : vector<1x14x128xf32> to vector<14x128xf32>
    %1779 = vector.broadcast %90 : vector<1x128xf32> to vector<14x128xf32>
    %1780 = arith.mulf %1778, %1779 : vector<14x128xf32>
    %1781 = arith.addf %1776, %1780 : vector<14x128xf32>
    %c12_1118 = arith.constant 12 : index
    %c2_1119 = arith.constant 2 : index
    %c0_1120 = arith.constant 0 : index
    %1782 = vector.load %arg9[%c12_1118, %c2_1119, %c0_1120] : memref<18x18x128xf32, #tpu.memory_space<vmem>>, vector<1x14x128xf32>
    %1783 = vector.shape_cast %1782 : vector<1x14x128xf32> to vector<14x128xf32>
    %1784 = vector.broadcast %92 : vector<1x128xf32> to vector<14x128xf32>
    %1785 = arith.mulf %1783, %1784 : vector<14x128xf32>
    %1786 = arith.addf %1781, %1785 : vector<14x128xf32>
    %c12_1121 = arith.constant 12 : index
    %c3_1122 = arith.constant 3 : index
    %c0_1123 = arith.constant 0 : index
    %1787 = vector.load %arg9[%c12_1121, %c3_1122, %c0_1123] : memref<18x18x128xf32, #tpu.memory_space<vmem>>, vector<1x14x128xf32>
    %1788 = vector.shape_cast %1787 : vector<1x14x128xf32> to vector<14x128xf32>
    %1789 = vector.broadcast %94 : vector<1x128xf32> to vector<14x128xf32>
    %1790 = arith.mulf %1788, %1789 : vector<14x128xf32>
    %1791 = arith.addf %1786, %1790 : vector<14x128xf32>
    %c12_1124 = arith.constant 12 : index
    %c4_1125 = arith.constant 4 : index
    %c0_1126 = arith.constant 0 : index
    %1792 = vector.load %arg9[%c12_1124, %c4_1125, %c0_1126] : memref<18x18x128xf32, #tpu.memory_space<vmem>>, vector<1x14x128xf32>
    %1793 = vector.shape_cast %1792 : vector<1x14x128xf32> to vector<14x128xf32>
    %1794 = vector.broadcast %96 : vector<1x128xf32> to vector<14x128xf32>
    %1795 = arith.mulf %1793, %1794 : vector<14x128xf32>
    %1796 = arith.addf %1791, %1795 : vector<14x128xf32>
    %c13_1127 = arith.constant 13 : index
    %c0_1128 = arith.constant 0 : index
    %c0_1129 = arith.constant 0 : index
    %1797 = vector.load %arg9[%c13_1127, %c0_1128, %c0_1129] : memref<18x18x128xf32, #tpu.memory_space<vmem>>, vector<1x14x128xf32>
    %1798 = vector.shape_cast %1797 : vector<1x14x128xf32> to vector<14x128xf32>
    %1799 = vector.broadcast %98 : vector<1x128xf32> to vector<14x128xf32>
    %1800 = arith.mulf %1798, %1799 : vector<14x128xf32>
    %1801 = arith.addf %1796, %1800 : vector<14x128xf32>
    %c13_1130 = arith.constant 13 : index
    %c1_1131 = arith.constant 1 : index
    %c0_1132 = arith.constant 0 : index
    %1802 = vector.load %arg9[%c13_1130, %c1_1131, %c0_1132] : memref<18x18x128xf32, #tpu.memory_space<vmem>>, vector<1x14x128xf32>
    %1803 = vector.shape_cast %1802 : vector<1x14x128xf32> to vector<14x128xf32>
    %1804 = vector.broadcast %100 : vector<1x128xf32> to vector<14x128xf32>
    %1805 = arith.mulf %1803, %1804 : vector<14x128xf32>
    %1806 = arith.addf %1801, %1805 : vector<14x128xf32>
    %c13_1133 = arith.constant 13 : index
    %c2_1134 = arith.constant 2 : index
    %c0_1135 = arith.constant 0 : index
    %1807 = vector.load %arg9[%c13_1133, %c2_1134, %c0_1135] : memref<18x18x128xf32, #tpu.memory_space<vmem>>, vector<1x14x128xf32>
    %1808 = vector.shape_cast %1807 : vector<1x14x128xf32> to vector<14x128xf32>
    %1809 = vector.broadcast %102 : vector<1x128xf32> to vector<14x128xf32>
    %1810 = arith.mulf %1808, %1809 : vector<14x128xf32>
    %1811 = arith.addf %1806, %1810 : vector<14x128xf32>
    %c13_1136 = arith.constant 13 : index
    %c3_1137 = arith.constant 3 : index
    %c0_1138 = arith.constant 0 : index
    %1812 = vector.load %arg9[%c13_1136, %c3_1137, %c0_1138] : memref<18x18x128xf32, #tpu.memory_space<vmem>>, vector<1x14x128xf32>
    %1813 = vector.shape_cast %1812 : vector<1x14x128xf32> to vector<14x128xf32>
    %1814 = vector.broadcast %104 : vector<1x128xf32> to vector<14x128xf32>
    %1815 = arith.mulf %1813, %1814 : vector<14x128xf32>
    %1816 = arith.addf %1811, %1815 : vector<14x128xf32>
    %c13_1139 = arith.constant 13 : index
    %c4_1140 = arith.constant 4 : index
    %c0_1141 = arith.constant 0 : index
    %1817 = vector.load %arg9[%c13_1139, %c4_1140, %c0_1141] : memref<18x18x128xf32, #tpu.memory_space<vmem>>, vector<1x14x128xf32>
    %1818 = vector.shape_cast %1817 : vector<1x14x128xf32> to vector<14x128xf32>
    %1819 = vector.broadcast %106 : vector<1x128xf32> to vector<14x128xf32>
    %1820 = arith.mulf %1818, %1819 : vector<14x128xf32>
    %1821 = arith.addf %1816, %1820 : vector<14x128xf32>
    %c14_1142 = arith.constant 14 : index
    %c0_1143 = arith.constant 0 : index
    %c0_1144 = arith.constant 0 : index
    %1822 = vector.load %arg9[%c14_1142, %c0_1143, %c0_1144] : memref<18x18x128xf32, #tpu.memory_space<vmem>>, vector<1x14x128xf32>
    %1823 = vector.shape_cast %1822 : vector<1x14x128xf32> to vector<14x128xf32>
    %1824 = vector.broadcast %108 : vector<1x128xf32> to vector<14x128xf32>
    %1825 = arith.mulf %1823, %1824 : vector<14x128xf32>
    %1826 = arith.addf %1821, %1825 : vector<14x128xf32>
    %c14_1145 = arith.constant 14 : index
    %c1_1146 = arith.constant 1 : index
    %c0_1147 = arith.constant 0 : index
    %1827 = vector.load %arg9[%c14_1145, %c1_1146, %c0_1147] : memref<18x18x128xf32, #tpu.memory_space<vmem>>, vector<1x14x128xf32>
    %1828 = vector.shape_cast %1827 : vector<1x14x128xf32> to vector<14x128xf32>
    %1829 = vector.broadcast %110 : vector<1x128xf32> to vector<14x128xf32>
    %1830 = arith.mulf %1828, %1829 : vector<14x128xf32>
    %1831 = arith.addf %1826, %1830 : vector<14x128xf32>
    %c14_1148 = arith.constant 14 : index
    %c2_1149 = arith.constant 2 : index
    %c0_1150 = arith.constant 0 : index
    %1832 = vector.load %arg9[%c14_1148, %c2_1149, %c0_1150] : memref<18x18x128xf32, #tpu.memory_space<vmem>>, vector<1x14x128xf32>
    %1833 = vector.shape_cast %1832 : vector<1x14x128xf32> to vector<14x128xf32>
    %1834 = vector.broadcast %112 : vector<1x128xf32> to vector<14x128xf32>
    %1835 = arith.mulf %1833, %1834 : vector<14x128xf32>
    %1836 = arith.addf %1831, %1835 : vector<14x128xf32>
    %c14_1151 = arith.constant 14 : index
    %c3_1152 = arith.constant 3 : index
    %c0_1153 = arith.constant 0 : index
    %1837 = vector.load %arg9[%c14_1151, %c3_1152, %c0_1153] : memref<18x18x128xf32, #tpu.memory_space<vmem>>, vector<1x14x128xf32>
    %1838 = vector.shape_cast %1837 : vector<1x14x128xf32> to vector<14x128xf32>
    %1839 = vector.broadcast %114 : vector<1x128xf32> to vector<14x128xf32>
    %1840 = arith.mulf %1838, %1839 : vector<14x128xf32>
    %1841 = arith.addf %1836, %1840 : vector<14x128xf32>
    %c14_1154 = arith.constant 14 : index
    %c4_1155 = arith.constant 4 : index
    %c0_1156 = arith.constant 0 : index
    %1842 = vector.load %arg9[%c14_1154, %c4_1155, %c0_1156] : memref<18x18x128xf32, #tpu.memory_space<vmem>>, vector<1x14x128xf32>
    %1843 = vector.shape_cast %1842 : vector<1x14x128xf32> to vector<14x128xf32>
    %1844 = vector.broadcast %116 : vector<1x128xf32> to vector<14x128xf32>
    %1845 = arith.mulf %1843, %1844 : vector<14x128xf32>
    %1846 = arith.addf %1841, %1845 : vector<14x128xf32>
    %c15_1157 = arith.constant 15 : index
    %c0_1158 = arith.constant 0 : index
    %c0_1159 = arith.constant 0 : index
    %1847 = vector.load %arg9[%c15_1157, %c0_1158, %c0_1159] : memref<18x18x128xf32, #tpu.memory_space<vmem>>, vector<1x14x128xf32>
    %1848 = vector.shape_cast %1847 : vector<1x14x128xf32> to vector<14x128xf32>
    %1849 = vector.broadcast %118 : vector<1x128xf32> to vector<14x128xf32>
    %1850 = arith.mulf %1848, %1849 : vector<14x128xf32>
    %1851 = arith.addf %1846, %1850 : vector<14x128xf32>
    %c15_1160 = arith.constant 15 : index
    %c1_1161 = arith.constant 1 : index
    %c0_1162 = arith.constant 0 : index
    %1852 = vector.load %arg9[%c15_1160, %c1_1161, %c0_1162] : memref<18x18x128xf32, #tpu.memory_space<vmem>>, vector<1x14x128xf32>
    %1853 = vector.shape_cast %1852 : vector<1x14x128xf32> to vector<14x128xf32>
    %1854 = vector.broadcast %120 : vector<1x128xf32> to vector<14x128xf32>
    %1855 = arith.mulf %1853, %1854 : vector<14x128xf32>
    %1856 = arith.addf %1851, %1855 : vector<14x128xf32>
    %c15_1163 = arith.constant 15 : index
    %c2_1164 = arith.constant 2 : index
    %c0_1165 = arith.constant 0 : index
    %1857 = vector.load %arg9[%c15_1163, %c2_1164, %c0_1165] : memref<18x18x128xf32, #tpu.memory_space<vmem>>, vector<1x14x128xf32>
    %1858 = vector.shape_cast %1857 : vector<1x14x128xf32> to vector<14x128xf32>
    %1859 = vector.broadcast %122 : vector<1x128xf32> to vector<14x128xf32>
    %1860 = arith.mulf %1858, %1859 : vector<14x128xf32>
    %1861 = arith.addf %1856, %1860 : vector<14x128xf32>
    %c15_1166 = arith.constant 15 : index
    %c3_1167 = arith.constant 3 : index
    %c0_1168 = arith.constant 0 : index
    %1862 = vector.load %arg9[%c15_1166, %c3_1167, %c0_1168] : memref<18x18x128xf32, #tpu.memory_space<vmem>>, vector<1x14x128xf32>
    %1863 = vector.shape_cast %1862 : vector<1x14x128xf32> to vector<14x128xf32>
    %1864 = vector.broadcast %124 : vector<1x128xf32> to vector<14x128xf32>
    %1865 = arith.mulf %1863, %1864 : vector<14x128xf32>
    %1866 = arith.addf %1861, %1865 : vector<14x128xf32>
    %c15_1169 = arith.constant 15 : index
    %c4_1170 = arith.constant 4 : index
    %c0_1171 = arith.constant 0 : index
    %1867 = vector.load %arg9[%c15_1169, %c4_1170, %c0_1171] : memref<18x18x128xf32, #tpu.memory_space<vmem>>, vector<1x14x128xf32>
    %1868 = vector.shape_cast %1867 : vector<1x14x128xf32> to vector<14x128xf32>
    %1869 = vector.broadcast %126 : vector<1x128xf32> to vector<14x128xf32>
    %1870 = arith.mulf %1868, %1869 : vector<14x128xf32>
    %1871 = arith.addf %1866, %1870 : vector<14x128xf32>
    %c16 = arith.constant 16 : index
    %c0_1172 = arith.constant 0 : index
    %c0_1173 = arith.constant 0 : index
    %1872 = vector.load %arg9[%c16, %c0_1172, %c0_1173] : memref<18x18x128xf32, #tpu.memory_space<vmem>>, vector<1x14x128xf32>
    %1873 = vector.shape_cast %1872 : vector<1x14x128xf32> to vector<14x128xf32>
    %1874 = vector.broadcast %128 : vector<1x128xf32> to vector<14x128xf32>
    %1875 = arith.mulf %1873, %1874 : vector<14x128xf32>
    %1876 = arith.addf %1871, %1875 : vector<14x128xf32>
    %c16_1174 = arith.constant 16 : index
    %c1_1175 = arith.constant 1 : index
    %c0_1176 = arith.constant 0 : index
    %1877 = vector.load %arg9[%c16_1174, %c1_1175, %c0_1176] : memref<18x18x128xf32, #tpu.memory_space<vmem>>, vector<1x14x128xf32>
    %1878 = vector.shape_cast %1877 : vector<1x14x128xf32> to vector<14x128xf32>
    %1879 = vector.broadcast %130 : vector<1x128xf32> to vector<14x128xf32>
    %1880 = arith.mulf %1878, %1879 : vector<14x128xf32>
    %1881 = arith.addf %1876, %1880 : vector<14x128xf32>
    %c16_1177 = arith.constant 16 : index
    %c2_1178 = arith.constant 2 : index
    %c0_1179 = arith.constant 0 : index
    %1882 = vector.load %arg9[%c16_1177, %c2_1178, %c0_1179] : memref<18x18x128xf32, #tpu.memory_space<vmem>>, vector<1x14x128xf32>
    %1883 = vector.shape_cast %1882 : vector<1x14x128xf32> to vector<14x128xf32>
    %1884 = vector.broadcast %132 : vector<1x128xf32> to vector<14x128xf32>
    %1885 = arith.mulf %1883, %1884 : vector<14x128xf32>
    %1886 = arith.addf %1881, %1885 : vector<14x128xf32>
    %c16_1180 = arith.constant 16 : index
    %c3_1181 = arith.constant 3 : index
    %c0_1182 = arith.constant 0 : index
    %1887 = vector.load %arg9[%c16_1180, %c3_1181, %c0_1182] : memref<18x18x128xf32, #tpu.memory_space<vmem>>, vector<1x14x128xf32>
    %1888 = vector.shape_cast %1887 : vector<1x14x128xf32> to vector<14x128xf32>
    %1889 = vector.broadcast %134 : vector<1x128xf32> to vector<14x128xf32>
    %1890 = arith.mulf %1888, %1889 : vector<14x128xf32>
    %1891 = arith.addf %1886, %1890 : vector<14x128xf32>
    %c16_1183 = arith.constant 16 : index
    %c4_1184 = arith.constant 4 : index
    %c0_1185 = arith.constant 0 : index
    %1892 = vector.load %arg9[%c16_1183, %c4_1184, %c0_1185] : memref<18x18x128xf32, #tpu.memory_space<vmem>>, vector<1x14x128xf32>
    %1893 = vector.shape_cast %1892 : vector<1x14x128xf32> to vector<14x128xf32>
    %1894 = vector.broadcast %136 : vector<1x128xf32> to vector<14x128xf32>
    %1895 = arith.mulf %1893, %1894 : vector<14x128xf32>
    %1896 = arith.addf %1891, %1895 : vector<14x128xf32>
    %c12_1186 = arith.constant 12 : index
    %c0_1187 = arith.constant 0 : index
    %c0_1188 = arith.constant 0 : index
    %1897 = vector.load %arg8[%c12_1186, %c0_1187, %c0_1188] : memref<14x14x128xf32, #tpu.memory_space<vmem>>, vector<1x14x128xf32>
    %1898 = vector.shape_cast %1897 : vector<1x14x128xf32> to vector<14x128xf32>
    %1899 = vector.shape_cast %1896 : vector<14x128xf32> to vector<1x14x128xf32>
    tpu.vector_store %arg8[%c12_1186, %c0_1187, %c0_1188], %1899 {strides = array<i32>} : memref<14x14x128xf32, #tpu.memory_space<vmem>>, vector<1x14x128xf32>,
    %cst_1189 = arith.constant dense<0.000000e+00> : vector<128xf32>
    %1900 = vector.multi_reduction <add>, %1896, %cst_1189 [0] : vector<14x128xf32> to vector<128xf32>
    %1901 = vector.shape_cast %1900 : vector<128xf32> to vector<1x128xf32>
    %1902 = arith.addf %1766, %1901 : vector<1x128xf32>
    %1903 = arith.mulf %1896, %1896 : vector<14x128xf32>
    %cst_1190 = arith.constant dense<0.000000e+00> : vector<128xf32>
    %1904 = vector.multi_reduction <add>, %1903, %cst_1190 [0] : vector<14x128xf32> to vector<128xf32>
    %1905 = vector.shape_cast %1904 : vector<128xf32> to vector<1x128xf32>
    %1906 = arith.addf %1770, %1905 : vector<1x128xf32>
    %cst_1191 = arith.constant 0.000000e+00 : f32
    %1907 = vector.broadcast %cst_1191 : f32 to vector<14x128xf32>
    %c13_1192 = arith.constant 13 : index
    %c0_1193 = arith.constant 0 : index
    %c0_1194 = arith.constant 0 : index
    %1908 = vector.load %arg9[%c13_1192, %c0_1193, %c0_1194] : memref<18x18x128xf32, #tpu.memory_space<vmem>>, vector<1x14x128xf32>
    %1909 = vector.shape_cast %1908 : vector<1x14x128xf32> to vector<14x128xf32>
    %1910 = vector.broadcast %88 : vector<1x128xf32> to vector<14x128xf32>
    %1911 = arith.mulf %1909, %1910 : vector<14x128xf32>
    %1912 = arith.addf %1907, %1911 : vector<14x128xf32>
    %c13_1195 = arith.constant 13 : index
    %c1_1196 = arith.constant 1 : index
    %c0_1197 = arith.constant 0 : index
    %1913 = vector.load %arg9[%c13_1195, %c1_1196, %c0_1197] : memref<18x18x128xf32, #tpu.memory_space<vmem>>, vector<1x14x128xf32>
    %1914 = vector.shape_cast %1913 : vector<1x14x128xf32> to vector<14x128xf32>
    %1915 = vector.broadcast %90 : vector<1x128xf32> to vector<14x128xf32>
    %1916 = arith.mulf %1914, %1915 : vector<14x128xf32>
    %1917 = arith.addf %1912, %1916 : vector<14x128xf32>
    %c13_1198 = arith.constant 13 : index
    %c2_1199 = arith.constant 2 : index
    %c0_1200 = arith.constant 0 : index
    %1918 = vector.load %arg9[%c13_1198, %c2_1199, %c0_1200] : memref<18x18x128xf32, #tpu.memory_space<vmem>>, vector<1x14x128xf32>
    %1919 = vector.shape_cast %1918 : vector<1x14x128xf32> to vector<14x128xf32>
    %1920 = vector.broadcast %92 : vector<1x128xf32> to vector<14x128xf32>
    %1921 = arith.mulf %1919, %1920 : vector<14x128xf32>
    %1922 = arith.addf %1917, %1921 : vector<14x128xf32>
    %c13_1201 = arith.constant 13 : index
    %c3_1202 = arith.constant 3 : index
    %c0_1203 = arith.constant 0 : index
    %1923 = vector.load %arg9[%c13_1201, %c3_1202, %c0_1203] : memref<18x18x128xf32, #tpu.memory_space<vmem>>, vector<1x14x128xf32>
    %1924 = vector.shape_cast %1923 : vector<1x14x128xf32> to vector<14x128xf32>
    %1925 = vector.broadcast %94 : vector<1x128xf32> to vector<14x128xf32>
    %1926 = arith.mulf %1924, %1925 : vector<14x128xf32>
    %1927 = arith.addf %1922, %1926 : vector<14x128xf32>
    %c13_1204 = arith.constant 13 : index
    %c4_1205 = arith.constant 4 : index
    %c0_1206 = arith.constant 0 : index
    %1928 = vector.load %arg9[%c13_1204, %c4_1205, %c0_1206] : memref<18x18x128xf32, #tpu.memory_space<vmem>>, vector<1x14x128xf32>
    %1929 = vector.shape_cast %1928 : vector<1x14x128xf32> to vector<14x128xf32>
    %1930 = vector.broadcast %96 : vector<1x128xf32> to vector<14x128xf32>
    %1931 = arith.mulf %1929, %1930 : vector<14x128xf32>
    %1932 = arith.addf %1927, %1931 : vector<14x128xf32>
    %c14_1207 = arith.constant 14 : index
    %c0_1208 = arith.constant 0 : index
    %c0_1209 = arith.constant 0 : index
    %1933 = vector.load %arg9[%c14_1207, %c0_1208, %c0_1209] : memref<18x18x128xf32, #tpu.memory_space<vmem>>, vector<1x14x128xf32>
    %1934 = vector.shape_cast %1933 : vector<1x14x128xf32> to vector<14x128xf32>
    %1935 = vector.broadcast %98 : vector<1x128xf32> to vector<14x128xf32>
    %1936 = arith.mulf %1934, %1935 : vector<14x128xf32>
    %1937 = arith.addf %1932, %1936 : vector<14x128xf32>
    %c14_1210 = arith.constant 14 : index
    %c1_1211 = arith.constant 1 : index
    %c0_1212 = arith.constant 0 : index
    %1938 = vector.load %arg9[%c14_1210, %c1_1211, %c0_1212] : memref<18x18x128xf32, #tpu.memory_space<vmem>>, vector<1x14x128xf32>
    %1939 = vector.shape_cast %1938 : vector<1x14x128xf32> to vector<14x128xf32>
    %1940 = vector.broadcast %100 : vector<1x128xf32> to vector<14x128xf32>
    %1941 = arith.mulf %1939, %1940 : vector<14x128xf32>
    %1942 = arith.addf %1937, %1941 : vector<14x128xf32>
    %c14_1213 = arith.constant 14 : index
    %c2_1214 = arith.constant 2 : index
    %c0_1215 = arith.constant 0 : index
    %1943 = vector.load %arg9[%c14_1213, %c2_1214, %c0_1215] : memref<18x18x128xf32, #tpu.memory_space<vmem>>, vector<1x14x128xf32>
    %1944 = vector.shape_cast %1943 : vector<1x14x128xf32> to vector<14x128xf32>
    %1945 = vector.broadcast %102 : vector<1x128xf32> to vector<14x128xf32>
    %1946 = arith.mulf %1944, %1945 : vector<14x128xf32>
    %1947 = arith.addf %1942, %1946 : vector<14x128xf32>
    %c14_1216 = arith.constant 14 : index
    %c3_1217 = arith.constant 3 : index
    %c0_1218 = arith.constant 0 : index
    %1948 = vector.load %arg9[%c14_1216, %c3_1217, %c0_1218] : memref<18x18x128xf32, #tpu.memory_space<vmem>>, vector<1x14x128xf32>
    %1949 = vector.shape_cast %1948 : vector<1x14x128xf32> to vector<14x128xf32>
    %1950 = vector.broadcast %104 : vector<1x128xf32> to vector<14x128xf32>
    %1951 = arith.mulf %1949, %1950 : vector<14x128xf32>
    %1952 = arith.addf %1947, %1951 : vector<14x128xf32>
    %c14_1219 = arith.constant 14 : index
    %c4_1220 = arith.constant 4 : index
    %c0_1221 = arith.constant 0 : index
    %1953 = vector.load %arg9[%c14_1219, %c4_1220, %c0_1221] : memref<18x18x128xf32, #tpu.memory_space<vmem>>, vector<1x14x128xf32>
    %1954 = vector.shape_cast %1953 : vector<1x14x128xf32> to vector<14x128xf32>
    %1955 = vector.broadcast %106 : vector<1x128xf32> to vector<14x128xf32>
    %1956 = arith.mulf %1954, %1955 : vector<14x128xf32>
    %1957 = arith.addf %1952, %1956 : vector<14x128xf32>
    %c15_1222 = arith.constant 15 : index
    %c0_1223 = arith.constant 0 : index
    %c0_1224 = arith.constant 0 : index
    %1958 = vector.load %arg9[%c15_1222, %c0_1223, %c0_1224] : memref<18x18x128xf32, #tpu.memory_space<vmem>>, vector<1x14x128xf32>
    %1959 = vector.shape_cast %1958 : vector<1x14x128xf32> to vector<14x128xf32>
    %1960 = vector.broadcast %108 : vector<1x128xf32> to vector<14x128xf32>
    %1961 = arith.mulf %1959, %1960 : vector<14x128xf32>
    %1962 = arith.addf %1957, %1961 : vector<14x128xf32>
    %c15_1225 = arith.constant 15 : index
    %c1_1226 = arith.constant 1 : index
    %c0_1227 = arith.constant 0 : index
    %1963 = vector.load %arg9[%c15_1225, %c1_1226, %c0_1227] : memref<18x18x128xf32, #tpu.memory_space<vmem>>, vector<1x14x128xf32>
    %1964 = vector.shape_cast %1963 : vector<1x14x128xf32> to vector<14x128xf32>
    %1965 = vector.broadcast %110 : vector<1x128xf32> to vector<14x128xf32>
    %1966 = arith.mulf %1964, %1965 : vector<14x128xf32>
    %1967 = arith.addf %1962, %1966 : vector<14x128xf32>
    %c15_1228 = arith.constant 15 : index
    %c2_1229 = arith.constant 2 : index
    %c0_1230 = arith.constant 0 : index
    %1968 = vector.load %arg9[%c15_1228, %c2_1229, %c0_1230] : memref<18x18x128xf32, #tpu.memory_space<vmem>>, vector<1x14x128xf32>
    %1969 = vector.shape_cast %1968 : vector<1x14x128xf32> to vector<14x128xf32>
    %1970 = vector.broadcast %112 : vector<1x128xf32> to vector<14x128xf32>
    %1971 = arith.mulf %1969, %1970 : vector<14x128xf32>
    %1972 = arith.addf %1967, %1971 : vector<14x128xf32>
    %c15_1231 = arith.constant 15 : index
    %c3_1232 = arith.constant 3 : index
    %c0_1233 = arith.constant 0 : index
    %1973 = vector.load %arg9[%c15_1231, %c3_1232, %c0_1233] : memref<18x18x128xf32, #tpu.memory_space<vmem>>, vector<1x14x128xf32>
    %1974 = vector.shape_cast %1973 : vector<1x14x128xf32> to vector<14x128xf32>
    %1975 = vector.broadcast %114 : vector<1x128xf32> to vector<14x128xf32>
    %1976 = arith.mulf %1974, %1975 : vector<14x128xf32>
    %1977 = arith.addf %1972, %1976 : vector<14x128xf32>
    %c15_1234 = arith.constant 15 : index
    %c4_1235 = arith.constant 4 : index
    %c0_1236 = arith.constant 0 : index
    %1978 = vector.load %arg9[%c15_1234, %c4_1235, %c0_1236] : memref<18x18x128xf32, #tpu.memory_space<vmem>>, vector<1x14x128xf32>
    %1979 = vector.shape_cast %1978 : vector<1x14x128xf32> to vector<14x128xf32>
    %1980 = vector.broadcast %116 : vector<1x128xf32> to vector<14x128xf32>
    %1981 = arith.mulf %1979, %1980 : vector<14x128xf32>
    %1982 = arith.addf %1977, %1981 : vector<14x128xf32>
    %c16_1237 = arith.constant 16 : index
    %c0_1238 = arith.constant 0 : index
    %c0_1239 = arith.constant 0 : index
    %1983 = vector.load %arg9[%c16_1237, %c0_1238, %c0_1239] : memref<18x18x128xf32, #tpu.memory_space<vmem>>, vector<1x14x128xf32>
    %1984 = vector.shape_cast %1983 : vector<1x14x128xf32> to vector<14x128xf32>
    %1985 = vector.broadcast %118 : vector<1x128xf32> to vector<14x128xf32>
    %1986 = arith.mulf %1984, %1985 : vector<14x128xf32>
    %1987 = arith.addf %1982, %1986 : vector<14x128xf32>
    %c16_1240 = arith.constant 16 : index
    %c1_1241 = arith.constant 1 : index
    %c0_1242 = arith.constant 0 : index
    %1988 = vector.load %arg9[%c16_1240, %c1_1241, %c0_1242] : memref<18x18x128xf32, #tpu.memory_space<vmem>>, vector<1x14x128xf32>
    %1989 = vector.shape_cast %1988 : vector<1x14x128xf32> to vector<14x128xf32>
    %1990 = vector.broadcast %120 : vector<1x128xf32> to vector<14x128xf32>
    %1991 = arith.mulf %1989, %1990 : vector<14x128xf32>
    %1992 = arith.addf %1987, %1991 : vector<14x128xf32>
    %c16_1243 = arith.constant 16 : index
    %c2_1244 = arith.constant 2 : index
    %c0_1245 = arith.constant 0 : index
    %1993 = vector.load %arg9[%c16_1243, %c2_1244, %c0_1245] : memref<18x18x128xf32, #tpu.memory_space<vmem>>, vector<1x14x128xf32>
    %1994 = vector.shape_cast %1993 : vector<1x14x128xf32> to vector<14x128xf32>
    %1995 = vector.broadcast %122 : vector<1x128xf32> to vector<14x128xf32>
    %1996 = arith.mulf %1994, %1995 : vector<14x128xf32>
    %1997 = arith.addf %1992, %1996 : vector<14x128xf32>
    %c16_1246 = arith.constant 16 : index
    %c3_1247 = arith.constant 3 : index
    %c0_1248 = arith.constant 0 : index
    %1998 = vector.load %arg9[%c16_1246, %c3_1247, %c0_1248] : memref<18x18x128xf32, #tpu.memory_space<vmem>>, vector<1x14x128xf32>
    %1999 = vector.shape_cast %1998 : vector<1x14x128xf32> to vector<14x128xf32>
    %2000 = vector.broadcast %124 : vector<1x128xf32> to vector<14x128xf32>
    %2001 = arith.mulf %1999, %2000 : vector<14x128xf32>
    %2002 = arith.addf %1997, %2001 : vector<14x128xf32>
    %c16_1249 = arith.constant 16 : index
    %c4_1250 = arith.constant 4 : index
    %c0_1251 = arith.constant 0 : index
    %2003 = vector.load %arg9[%c16_1249, %c4_1250, %c0_1251] : memref<18x18x128xf32, #tpu.memory_space<vmem>>, vector<1x14x128xf32>
    %2004 = vector.shape_cast %2003 : vector<1x14x128xf32> to vector<14x128xf32>
    %2005 = vector.broadcast %126 : vector<1x128xf32> to vector<14x128xf32>
    %2006 = arith.mulf %2004, %2005 : vector<14x128xf32>
    %2007 = arith.addf %2002, %2006 : vector<14x128xf32>
    %c17 = arith.constant 17 : index
    %c0_1252 = arith.constant 0 : index
    %c0_1253 = arith.constant 0 : index
    %2008 = vector.load %arg9[%c17, %c0_1252, %c0_1253] : memref<18x18x128xf32, #tpu.memory_space<vmem>>, vector<1x14x128xf32>
    %2009 = vector.shape_cast %2008 : vector<1x14x128xf32> to vector<14x128xf32>
    %2010 = vector.broadcast %128 : vector<1x128xf32> to vector<14x128xf32>
    %2011 = arith.mulf %2009, %2010 : vector<14x128xf32>
    %2012 = arith.addf %2007, %2011 : vector<14x128xf32>
    %c17_1254 = arith.constant 17 : index
    %c1_1255 = arith.constant 1 : index
    %c0_1256 = arith.constant 0 : index
    %2013 = vector.load %arg9[%c17_1254, %c1_1255, %c0_1256] : memref<18x18x128xf32, #tpu.memory_space<vmem>>, vector<1x14x128xf32>
    %2014 = vector.shape_cast %2013 : vector<1x14x128xf32> to vector<14x128xf32>
    %2015 = vector.broadcast %130 : vector<1x128xf32> to vector<14x128xf32>
    %2016 = arith.mulf %2014, %2015 : vector<14x128xf32>
    %2017 = arith.addf %2012, %2016 : vector<14x128xf32>
    %c17_1257 = arith.constant 17 : index
    %c2_1258 = arith.constant 2 : index
    %c0_1259 = arith.constant 0 : index
    %2018 = vector.load %arg9[%c17_1257, %c2_1258, %c0_1259] : memref<18x18x128xf32, #tpu.memory_space<vmem>>, vector<1x14x128xf32>
    %2019 = vector.shape_cast %2018 : vector<1x14x128xf32> to vector<14x128xf32>
    %2020 = vector.broadcast %132 : vector<1x128xf32> to vector<14x128xf32>
    %2021 = arith.mulf %2019, %2020 : vector<14x128xf32>
    %2022 = arith.addf %2017, %2021 : vector<14x128xf32>
    %c17_1260 = arith.constant 17 : index
    %c3_1261 = arith.constant 3 : index
    %c0_1262 = arith.constant 0 : index
    %2023 = vector.load %arg9[%c17_1260, %c3_1261, %c0_1262] : memref<18x18x128xf32, #tpu.memory_space<vmem>>, vector<1x14x128xf32>
    %2024 = vector.shape_cast %2023 : vector<1x14x128xf32> to vector<14x128xf32>
    %2025 = vector.broadcast %134 : vector<1x128xf32> to vector<14x128xf32>
    %2026 = arith.mulf %2024, %2025 : vector<14x128xf32>
    %2027 = arith.addf %2022, %2026 : vector<14x128xf32>
    %c17_1263 = arith.constant 17 : index
    %c4_1264 = arith.constant 4 : index
    %c0_1265 = arith.constant 0 : index
    %2028 = vector.load %arg9[%c17_1263, %c4_1264, %c0_1265] : memref<18x18x128xf32, #tpu.memory_space<vmem>>, vector<1x14x128xf32>
    %2029 = vector.shape_cast %2028 : vector<1x14x128xf32> to vector<14x128xf32>
    %2030 = vector.broadcast %136 : vector<1x128xf32> to vector<14x128xf32>
    %2031 = arith.mulf %2029, %2030 : vector<14x128xf32>
    %2032 = arith.addf %2027, %2031 : vector<14x128xf32>
    %c13_1266 = arith.constant 13 : index
    %c0_1267 = arith.constant 0 : index
    %c0_1268 = arith.constant 0 : index
    %2033 = vector.load %arg8[%c13_1266, %c0_1267, %c0_1268] : memref<14x14x128xf32, #tpu.memory_space<vmem>>, vector<1x14x128xf32>
    %2034 = vector.shape_cast %2033 : vector<1x14x128xf32> to vector<14x128xf32>
    %2035 = vector.shape_cast %2032 : vector<14x128xf32> to vector<1x14x128xf32>
    tpu.vector_store %arg8[%c13_1266, %c0_1267, %c0_1268], %2035 {strides = array<i32>} : memref<14x14x128xf32, #tpu.memory_space<vmem>>, vector<1x14x128xf32>,
    %cst_1269 = arith.constant dense<0.000000e+00> : vector<128xf32>
    %2036 = vector.multi_reduction <add>, %2032, %cst_1269 [0] : vector<14x128xf32> to vector<128xf32>
    %2037 = vector.shape_cast %2036 : vector<128xf32> to vector<1x128xf32>
    %2038 = arith.addf %1902, %2037 : vector<1x128xf32>
    %2039 = arith.mulf %2032, %2032 : vector<14x128xf32>
    %cst_1270 = arith.constant dense<0.000000e+00> : vector<128xf32>
    %2040 = vector.multi_reduction <add>, %2039, %cst_1270 [0] : vector<14x128xf32> to vector<128xf32>
    %2041 = vector.shape_cast %2040 : vector<128xf32> to vector<1x128xf32>
    %2042 = arith.addf %1906, %2041 : vector<1x128xf32>
    %cst_1271 = arith.constant 0.00510204071 : f32
    %2043 = vector.broadcast %cst_1271 : f32 to vector<1x128xf32>
    %2044 = arith.mulf %2038, %2043 : vector<1x128xf32>
    %cst_1272 = arith.constant 0.00510204071 : f32
    %2045 = vector.broadcast %cst_1272 : f32 to vector<1x128xf32>
    %2046 = arith.mulf %2042, %2045 : vector<1x128xf32>
    %2047 = arith.mulf %2044, %2044 : vector<1x128xf32>
    %2048 = arith.subf %2046, %2047 : vector<1x128xf32>
    %c0_1273 = arith.constant 0 : index
    %c0_1274 = arith.constant 0 : index
    %2049 = vector.load %arg6[%c0_1273, %c0_1274] : memref<1x128xf32, #tpu.memory_space<vmem>>, vector<1x128xf32>
    %cst_1275 = arith.constant 1.000000e-03 : f32
    %2050 = vector.broadcast %cst_1275 : f32 to vector<1x128xf32>
    %2051 = arith.addf %2048, %2050 : vector<1x128xf32>
    %2052 = math.rsqrt %2051 : vector<1x128xf32>
    %2053 = arith.mulf %2049, %2052 : vector<1x128xf32>
    %c0_1276 = arith.constant 0 : index
    %c0_1277 = arith.constant 0 : index
    %2054 = vector.load %arg7[%c0_1276, %c0_1277] : memref<1x128xf32, #tpu.memory_space<vmem>>, vector<1x128xf32>
    %2055 = arith.mulf %2044, %2053 : vector<1x128xf32>
    %2056 = arith.subf %2054, %2055 : vector<1x128xf32>
    %c0_1278 = arith.constant 0 : index
    %c0_1279 = arith.constant 0 : index
    %c0_1280 = arith.constant 0 : index
    %2057 = vector.load %arg8[%c0_1278, %c0_1279, %c0_1280] : memref<14x14x128xf32, #tpu.memory_space<vmem>>, vector<14x14x128xf32>
    %2058 = vector.shape_cast %2053 : vector<1x128xf32> to vector<1x1x128xf32>
    %2059 = vector.broadcast %2058 : vector<1x1x128xf32> to vector<14x14x128xf32>
    %2060 = arith.mulf %2057, %2059 : vector<14x14x128xf32>
    %2061 = vector.shape_cast %2056 : vector<1x128xf32> to vector<1x1x128xf32>
    %2062 = vector.broadcast %2061 : vector<1x1x128xf32> to vector<14x14x128xf32>
    %2063 = arith.addf %2060, %2062 : vector<14x14x128xf32>
    %cst_1281 = arith.constant 0.000000e+00 : f32
    %2064 = vector.broadcast %cst_1281 : f32 to vector<14x14x128xf32>
    %2065 = arith.maximumf %2063, %2064 : vector<14x14x128xf32>
    %c0_1282 = arith.constant 0 : index
    %c0_1283 = arith.constant 0 : index
    %c0_1284 = arith.constant 0 : index
    %2066 = vector.load %arg8[%c0_1282, %c0_1283, %c0_1284] : memref<14x14x128xf32, #tpu.memory_space<vmem>>, vector<14x14x128xf32>
    tpu.vector_store %arg8[%c0_1282, %c0_1283, %c0_1284], %2065 {strides = array<i32>} : memref<14x14x128xf32, #tpu.memory_space<vmem>>, vector<14x14x128xf32>,
    return
  }
  func.func @transform_0(%arg0: i32) -> (i32, i32) {
    %c0_i32 = arith.constant 0 : i32
    %c0_i32_0 = arith.constant 0 : i32
    %c0_i32_1 = arith.constant 0 : i32
    return %c0_i32, %c0_i32_0 : i32, i32
  }
  func.func @transform_1(%arg0: i32) -> (i32, i32) {
    %c0_i32 = arith.constant 0 : i32
    %c0_i32_0 = arith.constant 0 : i32
    return %c0_i32, %arg0 : i32, i32
  }
  func.func @transform_2(%arg0: i32) -> (i32, i32) {
    %c0_i32 = arith.constant 0 : i32
    %c0_i32_0 = arith.constant 0 : i32
    return %c0_i32, %arg0 : i32, i32
  }
  func.func @transform_3(%arg0: i32) -> (i32, i32) {
    %c0_i32 = arith.constant 0 : i32
    %c0_i32_0 = arith.constant 0 : i32
    return %c0_i32, %arg0 : i32, i32
  }
  func.func @transform_4(%arg0: i32) -> (i32, i32, i32) {
    %c0_i32 = arith.constant 0 : i32
    %c0_i32_0 = arith.constant 0 : i32
    %c0_i32_1 = arith.constant 0 : i32
    return %c0_i32, %c0_i32_0, %arg0 : i32, i32, i32
  }
  func.func @transform_5(%arg0: i32) -> (i32, i32) {
    %c0_i32 = arith.constant 0 : i32
    %c0_i32_0 = arith.constant 0 : i32
    return %c0_i32, %arg0 : i32, i32
  }
  func.func @transform_6(%arg0: i32) -> (i32, i32) {
    %c0_i32 = arith.constant 0 : i32
    %c0_i32_0 = arith.constant 0 : i32
    return %c0_i32, %arg0 : i32, i32
  }
  func.func @transform_7(%arg0: i32) -> (i32, i32, i32) {
    %c0_i32 = arith.constant 0 : i32
    %c0_i32_0 = arith.constant 0 : i32
    %c0_i32_1 = arith.constant 0 : i32
    return %c0_i32, %c0_i32_0, %arg0 : i32, i32, i32
  }
}

</mosaic_0001>

<llo_original>
// kernel: module_forward.1
$region0: #{module_forward.1}
  #allocation0 [shape = 'u32[]', space=smem, size = 0x4, offset = 0x4, fixed_abs, tag = 'smem constant byte address 0x4 - core index']
  #allocation1 [shape = 'u32[144,128]{1,0:T(1,128)}', space=vmem, size = 0x12000, scoped, tag = 'internal scratch']
  #allocation2 [shape = 'f32[18,18,128]{2,1,0:T(8,128)}', space=vmem, size = 0x36000, scoped, tag = 'scratch operand']
  #allocation3 [shape = 'f32[196,128]{1,0:T(8,128)}', space=vmem, size = 0x19000, scoped, tag = 'scratch operand']
  %s0 = inlined_call_operand.vmem [shape: f32[196,64], index: 0, kind: input, shape index: {}]
  %s1 = inlined_call_operand.vmem [shape: f32[64,384], index: 1, kind: input, shape index: {}]
  %s2 = inlined_call_operand.vmem [shape: f32[1,384], index: 2, kind: input, shape index: {}]
  %s3 = inlined_call_operand.vmem [shape: f32[1,384], index: 3, kind: input, shape index: {}]
  %s4 = inlined_call_operand.vmem [shape: f32[5,5,384], index: 4, kind: input, shape index: {}]
  %s5 = inlined_call_operand.vmem [shape: f32[1,384], index: 5, kind: input, shape index: {}]
  %s6 = inlined_call_operand.vmem [shape: f32[1,384], index: 6, kind: input, shape index: {}]
  %s7 = inlined_call_operand.vmem [shape: f32[14,14,384], index: 7, kind: output, shape index: {}]
  %s8 = sld [smem:[#allocation0]]
  $region171: #{module_forward.1} parent=0
    _
  %s10 = ssub.s32 1, %s8
  %s11 = scalar_select 0, %s10, %s8
  $region1: #{module_forward.1} parent=0
    #allocation4 [shape = 'u8[65536]{0}', space=vmem, size = 0x10000, scoped, tag = 'input window, operand 1']
    #allocation5 [shape = 'u8[40960]{0}', space=vmem, size = 0xa000, scoped, tag = 'input window, operand 4']
    #allocation6 [shape = 'u8[229376]{0}', space=vmem, size = 0x38000, scoped, tag = 'output window, operand 0']
    loop: start=0, step=1, limit=5
    $region2: #{module_forward.1} parent=1 // loop_pre_header
      _
    $region3: #{module_forward.1} parent=1 // loop_header
      %s13 = sphi 0, %s17
      %p14 = scmp.ge.s32.totalorder %s13, 5
      %s21 = sphi 0, %s21
      %s23 = sphi 0, %s21
      %s24 = sphi 0, %s23
      %s38 = sphi 0, %s24
      %s44 = sphi 0, %s46
      %s47 = sphi 0, %s44
      %s48 = sphi 0, %s47
      %s64 = sphi 0, %s48
      %s70 = sphi 0, %s72
      %s73 = sphi 0, %s70
      %s74 = sphi 0, %s73
      %s90 = sphi 0, %s74
      %s96 = sphi 0, %s98
      %s99 = sphi 0, %s96
      %s100 = sphi 0, %s99
      %s116 = sphi 0, %s100
      %s122 = sphi 0, %s124
      %s125 = sphi 0, %s122
      %s126 = sphi 0, %s125
      %s142 = sphi 0, %s126
      %s148 = sphi 0, %s150
      %s151 = sphi 0, %s148
      %s152 = sphi 0, %s151
      %s168 = sphi 0, %s152
      %s174 = sphi 0, %s176
      %s177 = sphi 0, %s174
      %s178 = sphi 0, %s177
      %s194 = sphi 0, %s178
      %s200 = sphi 0, %s202
      %s203 = sphi 0, %s200
      %s204 = sphi 0, %s203
      %s220 = sphi 0, %s204
    $region4: #{module_forward.1} parent=1 // loop_header_branch
      %16 = sbr.rel (%p14) target = $region8
    $region5: #{module_forward.1} parent=1 // loop_body
      %s18 = ssub.s32 %s13, 1
      %s19 = ssub.s32 %s13, 2
      %s20 = sadd.s32 %s13, 1
      %s22 = sadd.s32 %s21, 1
      %p25 = scmp.eq.s32.totalorder %s13, 2
      %p26 = scmp.ne.s32.totalorder %s21, %s23
      %p27 = scmp.eq.s32.totalorder %s13, 0
      %p28 = por %p26, %p27
      %p29 = scmp.ne.s32.totalorder %s21, %s23
      %p30 = scmp.eq.s32.totalorder %s18, 2
      %p31 = por %p29, %p30
      %p32 = scmp.ne.s32.totalorder %s23, %s24
      %p33 = scmp.eq.s32.totalorder %s18, 0
      %p34 = por %p32, %p33
      %p35 = scmp.ne.s32.totalorder %s23, %s24
      %p36 = scmp.eq.s32.totalorder %s19, 2
      %p37 = por %p35, %p36
      %p39 = scmp.ne.s32.totalorder %s24, %s38
      %p40 = scmp.eq.s32.totalorder %s19, 0
      %p41 = por %p39, %p40
      %s42 = ssub.s32 %s13, %s20
      %p43 = scmp.eq.s32.totalorder %s42, 0
      %s45 = sadd.s32 %s44, 1
      %s46 = scalar_select %p43, %s44, %s45
      %p49 = pneg %p43
      %p50 = scmp.eq.s32.totalorder %s13, 2
      %p51 = por %p49, %p50
      %p52 = scmp.ne.s32.totalorder %s44, %s47
      %p53 = scmp.eq.s32.totalorder %s13, 0
      %p54 = por %p52, %p53
      %p55 = scmp.ne.s32.totalorder %s44, %s47
      %p56 = scmp.eq.s32.totalorder %s18, 2
      %p57 = por %p55, %p56
      %p58 = scmp.ne.s32.totalorder %s47, %s48
      %p59 = scmp.eq.s32.totalorder %s18, 0
      %p60 = por %p58, %p59
      %p61 = scmp.ne.s32.totalorder %s47, %s48
      %p62 = scmp.eq.s32.totalorder %s19, 2
      %p63 = por %p61, %p62
      %p65 = scmp.ne.s32.totalorder %s48, %s64
      %p66 = scmp.eq.s32.totalorder %s19, 0
      %p67 = por %p65, %p66
      %s68 = ssub.s32 %s13, %s20
      %p69 = scmp.eq.s32.totalorder %s68, 0
      %s71 = sadd.s32 %s70, 1
      %s72 = scalar_select %p69, %s70, %s71
      %p75 = pneg %p69
      %p76 = scmp.eq.s32.totalorder %s13, 2
      %p77 = por %p75, %p76
      %p78 = scmp.ne.s32.totalorder %s70, %s73
      %p79 = scmp.eq.s32.totalorder %s13, 0
      %p80 = por %p78, %p79
      %p81 = scmp.ne.s32.totalorder %s70, %s73
      %p82 = scmp.eq.s32.totalorder %s18, 2
      %p83 = por %p81, %p82
      %p84 = scmp.ne.s32.totalorder %s73, %s74
      %p85 = scmp.eq.s32.totalorder %s18, 0
      %p86 = por %p84, %p85
      %p87 = scmp.ne.s32.totalorder %s73, %s74
      %p88 = scmp.eq.s32.totalorder %s19, 2
      %p89 = por %p87, %p88
      %p91 = scmp.ne.s32.totalorder %s74, %s90
      %p92 = scmp.eq.s32.totalorder %s19, 0
      %p93 = por %p91, %p92
      %s94 = ssub.s32 %s13, %s20
      %p95 = scmp.eq.s32.totalorder %s94, 0
      %s97 = sadd.s32 %s96, 1
      %s98 = scalar_select %p95, %s96, %s97
      %p101 = pneg %p95
      %p102 = scmp.eq.s32.totalorder %s13, 2
      %p103 = por %p101, %p102
      %p104 = scmp.ne.s32.totalorder %s96, %s99
      %p105 = scmp.eq.s32.totalorder %s13, 0
      %p106 = por %p104, %p105
      %p107 = scmp.ne.s32.totalorder %s96, %s99
      %p108 = scmp.eq.s32.totalorder %s18, 2
      %p109 = por %p107, %p108
      %p110 = scmp.ne.s32.totalorder %s99, %s100
      %p111 = scmp.eq.s32.totalorder %s18, 0
      %p112 = por %p110, %p111
      %p113 = scmp.ne.s32.totalorder %s99, %s100
      %p114 = scmp.eq.s32.totalorder %s19, 2
      %p115 = por %p113, %p114
      %p117 = scmp.ne.s32.totalorder %s100, %s116
      %p118 = scmp.eq.s32.totalorder %s19, 0
      %p119 = por %p117, %p118
      %s120 = ssub.s32 %s13, %s20
      %p121 = scmp.eq.s32.totalorder %s120, 0
      %s123 = sadd.s32 %s122, 1
      %s124 = scalar_select %p121, %s122, %s123
      %p127 = pneg %p121
      %p128 = scmp.eq.s32.totalorder %s13, 2
      %p129 = por %p127, %p128
      %p130 = scmp.ne.s32.totalorder %s122, %s125
      %p131 = scmp.eq.s32.totalorder %s13, 0
      %p132 = por %p130, %p131
      %p133 = scmp.ne.s32.totalorder %s122, %s125
      %p134 = scmp.eq.s32.totalorder %s18, 2
      %p135 = por %p133, %p134
      %p136 = scmp.ne.s32.totalorder %s125, %s126
      %p137 = scmp.eq.s32.totalorder %s18, 0
      %p138 = por %p136, %p137
      %p139 = scmp.ne.s32.totalorder %s125, %s126
      %p140 = scmp.eq.s32.totalorder %s19, 2
      %p141 = por %p139, %p140
      %p143 = scmp.ne.s32.totalorder %s126, %s142
      %p144 = scmp.eq.s32.totalorder %s19, 0
      %p145 = por %p143, %p144
      %s146 = ssub.s32 %s13, %s20
      %p147 = scmp.eq.s32.totalorder %s146, 0
      %s149 = sadd.s32 %s148, 1
      %s150 = scalar_select %p147, %s148, %s149
      %p153 = pneg %p147
      %p154 = scmp.eq.s32.totalorder %s13, 2
      %p155 = por %p153, %p154
      %p156 = scmp.ne.s32.totalorder %s148, %s151
      %p157 = scmp.eq.s32.totalorder %s13, 0
      %p158 = por %p156, %p157
      %p159 = scmp.ne.s32.totalorder %s148, %s151
      %p160 = scmp.eq.s32.totalorder %s18, 2
      %p161 = por %p159, %p160
      %p162 = scmp.ne.s32.totalorder %s151, %s152
      %p163 = scmp.eq.s32.totalorder %s18, 0
      %p164 = por %p162, %p163
      %p165 = scmp.ne.s32.totalorder %s151, %s152
      %p166 = scmp.eq.s32.totalorder %s19, 2
      %p167 = por %p165, %p166
      %p169 = scmp.ne.s32.totalorder %s152, %s168
      %p170 = scmp.eq.s32.totalorder %s19, 0
      %p171 = por %p169, %p170
      %s172 = ssub.s32 %s13, %s20
      %p173 = scmp.eq.s32.totalorder %s172, 0
      %s175 = sadd.s32 %s174, 1
      %s176 = scalar_select %p173, %s174, %s175
      %p179 = pneg %p173
      %p180 = scmp.eq.s32.totalorder %s13, 2
      %p181 = por %p179, %p180
      %p182 = scmp.ne.s32.totalorder %s174, %s177
      %p183 = scmp.eq.s32.totalorder %s13, 0
      %p184 = por %p182, %p183
      %p185 = scmp.ne.s32.totalorder %s174, %s177
      %p186 = scmp.eq.s32.totalorder %s18, 2
      %p187 = por %p185, %p186
      %p188 = scmp.ne.s32.totalorder %s177, %s178
      %p189 = scmp.eq.s32.totalorder %s18, 0
      %p190 = por %p188, %p189
      %p191 = scmp.ne.s32.totalorder %s177, %s178
      %p192 = scmp.eq.s32.totalorder %s19, 2
      %p193 = por %p191, %p192
      %p195 = scmp.ne.s32.totalorder %s178, %s194
      %p196 = scmp.eq.s32.totalorder %s19, 0
      %p197 = por %p195, %p196
      %s198 = ssub.s32 %s13, %s20
      %p199 = scmp.eq.s32.totalorder %s198, 0
      %s201 = sadd.s32 %s200, 1
      %s202 = scalar_select %p199, %s200, %s201
      %p205 = pneg %p199
      %p206 = scmp.eq.s32.totalorder %s13, 2
      %p207 = por %p205, %p206
      %p208 = scmp.ne.s32.totalorder %s200, %s203
      %p209 = scmp.eq.s32.totalorder %s13, 0
      %p210 = por %p208, %p209
      %p211 = scmp.ne.s32.totalorder %s200, %s203
      %p212 = scmp.eq.s32.totalorder %s18, 2
      %p213 = por %p211, %p212
      %p214 = scmp.ne.s32.totalorder %s203, %s204
      %p215 = scmp.eq.s32.totalorder %s18, 0
      %p216 = por %p214, %p215
      %p217 = scmp.ne.s32.totalorder %s203, %s204
      %p218 = scmp.eq.s32.totalorder %s19, 2
      %p219 = por %p217, %p218
      %p221 = scmp.ne.s32.totalorder %s204, %s220
      %p222 = scmp.eq.s32.totalorder %s19, 0
      %p223 = por %p221, %p222
      %p224 = scmp.le.s32.totalorder 1, %s13
      %p225 = scmp.lt.s32.totalorder %s13, 4
      %p226 = pnand %p224, %p225
      %p227 = pneg %p226
      // Predicated region
      $region9: #{module_forward.1} parent=5 // pred_check
        _
      $region10: #{module_forward.1} parent=5 // pred_check_branch
        %229 = sbr.rel (%p226) target = $region12
      $region11: #{module_forward.1} parent=5 // pred_region
        %s230 = ssub.s32 %s13, 1
        // Predicated region
        $region13: #{module_forward.1} parent=11 // pred_check
          %p231 = pneg %p34
        $region14: #{module_forward.1} parent=11 // pred_check_branch
          %233 = sbr.rel (%p231) target = $region16
        $region15: #{module_forward.1} parent=11 // pred_region
          _
        $region16: #{module_forward.1} parent=11 // pred_fallthru
          _
      $region12: #{module_forward.1} parent=5 // pred_fallthru
        _
      %p234 = scmp.lt.s32.totalorder %s13, 3
      // Predicated region
      $region17: #{module_forward.1} parent=5 // pred_check
        %p235 = pneg %p234
      $region18: #{module_forward.1} parent=5 // pred_check_branch
        %237 = sbr.rel (%p235) target = $region20
      $region19: #{module_forward.1} parent=5 // pred_region
        // Predicated region
        $region21: #{module_forward.1} parent=19 // pred_check
          %p238 = pneg %p54
        $region22: #{module_forward.1} parent=19 // pred_check_branch
          %240 = sbr.rel (%p238) target = $region24
        $region23: #{module_forward.1} parent=19 // pred_region
          %s241 = sand.u32 %s44, 1
          %s242 = sand.u32 %s44, 1
          %s243 = smul.addr %s242, 64
          %s244 = scalar_lea.vmem [#allocation4], %s243
          %s245 = smul.addr %s13, 8
          %s246 = scalar_lea.vmem %s1, %s245
          // Predicated region
          $region25: #{module_forward.1} parent=23 // pred_check
            _
          $region26: #{module_forward.1} parent=23 // pred_check_branch
            %248 = sbr.rel (0) target = $region28
          $region27: #{module_forward.1} parent=23 // pred_region
            // Predicated region
            $region29: #{module_forward.1} parent=27 // pred_check
              _
            $region30: #{module_forward.1} parent=27 // pred_check_branch
              %250 = sbr.rel (0) target = $region32
            $region31: #{module_forward.1} parent=27 // pred_region
              // Predicated region
              $region44: #{module_forward.1} parent=31 // pred_check
                _
              $region45: #{module_forward.1} parent=31 // pred_check_branch
                %279 = sbr.rel (0) target = $region47
              $region46: #{module_forward.1} parent=31 // pred_region
                loop: start=0, step=1, limit=1
                $region48: #{module_forward.1} parent=46 // loop_pre_header
                  _
                $region49: #{module_forward.1} parent=46 // loop_header
                  %s281 = sphi 0, %s285
                  %p282 = scmp.ge.s32.totalorder %s281, 1
                  %s286 = sphi %s246, %s246
                  %s287 = sphi %s244, %s244
                $region50: #{module_forward.1} parent=46 // loop_header_branch
                  %284 = sbr.rel (%p282) target = $region54
                $region51: #{module_forward.1} parent=46 // loop_body
                  %v288 = vld [vmem:[%s286] sm:$0xff]
                  %289 = vst [vmem:[%s287] sm:$0xff] %v288
                  %v290 = vld [vmem:[%s286 + $0x18] sm:$0xff]
                  %291 = vst [vmem:[%s287 + $0x8] sm:$0xff] %v290
                  %v292 = vld [vmem:[%s286 + $0x30] sm:$0xff]
                  %293 = vst [vmem:[%s287 + $0x10] sm:$0xff] %v292
                  %v294 = vld [vmem:[%s286 + $0x48] sm:$0xff]
                  %295 = vst [vmem:[%s287 + $0x18] sm:$0xff] %v294
                  %v296 = vld [vmem:[%s286 + $0x60] sm:$0xff]
                  %297 = vst [vmem:[%s287 + $0x20] sm:$0xff] %v296
                  %v298 = vld [vmem:[%s286 + $0x78] sm:$0xff]
                  %299 = vst [vmem:[%s287 + $0x28] sm:$0xff] %v298
                  %v300 = vld [vmem:[%s286 + $0x90] sm:$0xff]
                  %301 = vst [vmem:[%s287 + $0x30] sm:$0xff] %v300
                  %v302 = vld [vmem:[%s286 + $0xa8] sm:$0xff]
                  %303 = vst [vmem:[%s287 + $0x38] sm:$0xff] %v302
                $region52: #{module_forward.1} parent=46 // loop_footer
                  %s285 = sadd.s32 1, %s281
                $region53: #{module_forward.1} parent=46 // loop_footer_branch
                  %280 = sbr.rel target = $region49
                $region54: #{module_forward.1} parent=46 // loop_exit
                  _
              $region47: #{module_forward.1} parent=31 // pred_fallthru
                _
              // Predicated region
              $region55: #{module_forward.1} parent=31 // pred_check
                _
              $region56: #{module_forward.1} parent=31 // pred_check_branch
                %305 = sbr.rel target = $region58
              $region57: #{module_forward.1} parent=31 // pred_region
                _
              $region58: #{module_forward.1} parent=31 // pred_fallthru
                _
            $region32: #{module_forward.1} parent=27 // pred_fallthru
              _
            // Predicated region
            $region33: #{module_forward.1} parent=27 // pred_check
              _
            $region34: #{module_forward.1} parent=27 // pred_check_branch
              %252 = sbr.rel target = $region36
            $region35: #{module_forward.1} parent=27 // pred_region
              loop: start=0, step=1, limit=1
              $region37: #{module_forward.1} parent=35 // loop_pre_header
                _
              $region38: #{module_forward.1} parent=35 // loop_header
                %s255 = sphi 0, %s259
                %p256 = scmp.ge.s32.totalorder %s255, 1
                %s260 = sphi %s246, %s246
                %s261 = sphi %s244, %s244
              $region39: #{module_forward.1} parent=35 // loop_header_branch
                %258 = sbr.rel (%p256) target = $region43
              $region40: #{module_forward.1} parent=35 // loop_body
                %v262 = vld [vmem:[%s260] sm:$0xff]
                %263 = vst [vmem:[%s261] sm:$0xff] %v262
                %v264 = vld [vmem:[%s260 + $0x18] sm:$0xff]
                %265 = vst [vmem:[%s261 + $0x8] sm:$0xff] %v264
                %v266 = vld [vmem:[%s260 + $0x30] sm:$0xff]
                %267 = vst [vmem:[%s261 + $0x10] sm:$0xff] %v266
                %v268 = vld [vmem:[%s260 + $0x48] sm:$0xff]
                %269 = vst [vmem:[%s261 + $0x18] sm:$0xff] %v268
                %v270 = vld [vmem:[%s260 + $0x60] sm:$0xff]
                %271 = vst [vmem:[%s261 + $0x20] sm:$0xff] %v270
                %v272 = vld [vmem:[%s260 + $0x78] sm:$0xff]
                %273 = vst [vmem:[%s261 + $0x28] sm:$0xff] %v272
                %v274 = vld [vmem:[%s260 + $0x90] sm:$0xff]
                %275 = vst [vmem:[%s261 + $0x30] sm:$0xff] %v274
                %v276 = vld [vmem:[%s260 + $0xa8] sm:$0xff]
                %277 = vst [vmem:[%s261 + $0x38] sm:$0xff] %v276
              $region41: #{module_forward.1} parent=35 // loop_footer
                %s259 = sadd.s32 1, %s255
              $region42: #{module_forward.1} parent=35 // loop_footer_branch
                %254 = sbr.rel target = $region38
              $region43: #{module_forward.1} parent=35 // loop_exit
                _
            $region36: #{module_forward.1} parent=27 // pred_fallthru
              _
          $region28: #{module_forward.1} parent=23 // pred_fallthru
            _
          %306 = vnop
        $region24: #{module_forward.1} parent=19 // pred_fallthru
          _
        // Predicated region
        $region59: #{module_forward.1} parent=19 // pred_check
          %p307 = pneg %p80
        $region60: #{module_forward.1} parent=19 // pred_check_branch
          %309 = sbr.rel (%p307) target = $region62
        $region61: #{module_forward.1} parent=19 // pred_region
          %p310 = scmp.lt.s32.totalorder %s13, 2
          %s311 = scalar_select %p310, %s13, 2
          %s312 = scalar_lea.vmem %s2, %s311
        $region62: #{module_forward.1} parent=19 // pred_fallthru
          _
        // Predicated region
        $region63: #{module_forward.1} parent=19 // pred_check
          %p313 = pneg %p106
        $region64: #{module_forward.1} parent=19 // pred_check_branch
          %315 = sbr.rel (%p313) target = $region66
        $region65: #{module_forward.1} parent=19 // pred_region
          %p316 = scmp.lt.s32.totalorder %s13, 2
          %s317 = scalar_select %p316, %s13, 2
          %s318 = scalar_lea.vmem %s3, %s317
        $region66: #{module_forward.1} parent=19 // pred_fallthru
          _
        // Predicated region
        $region67: #{module_forward.1} parent=19 // pred_check
          %p319 = pneg %p132
        $region68: #{module_forward.1} parent=19 // pred_check_branch
          %321 = sbr.rel (%p319) target = $region70
        $region69: #{module_forward.1} parent=19 // pred_region
          %s322 = sand.u32 %s122, 1
          %s323 = sand.u32 %s122, 1
          %s324 = smul.addr %s323, 40
          %s325 = scalar_lea.vmem [#allocation5], %s324
          %s326 = smul.addr %s13, 8
          %s327 = scalar_lea.vmem %s4, %s326
          // Predicated region
          $region71: #{module_forward.1} parent=69 // pred_check
            _
          $region72: #{module_forward.1} parent=69 // pred_check_branch
            %329 = sbr.rel (0) target = $region74
          $region73: #{module_forward.1} parent=69 // pred_region
            // Predicated region
            $region75: #{module_forward.1} parent=73 // pred_check
              _
            $region76: #{module_forward.1} parent=73 // pred_check_branch
              %331 = sbr.rel (0) target = $region78
            $region77: #{module_forward.1} parent=73 // pred_region
              // Predicated region
              $region90: #{module_forward.1} parent=77 // pred_check
                _
              $region91: #{module_forward.1} parent=77 // pred_check_branch
                %354 = sbr.rel (0) target = $region93
              $region92: #{module_forward.1} parent=77 // pred_region
                loop: start=0, step=1, limit=1
                $region94: #{module_forward.1} parent=92 // loop_pre_header
                  _
                $region95: #{module_forward.1} parent=92 // loop_header
                  %s356 = sphi 0, %s360
                  %p357 = scmp.ge.s32.totalorder %s356, 1
                  %s361 = sphi %s327, %s327
                  %s362 = sphi %s325, %s325
                $region96: #{module_forward.1} parent=92 // loop_header_branch
                  %359 = sbr.rel (%p357) target = $region100
                $region97: #{module_forward.1} parent=92 // loop_body
                  %v363 = vld [vmem:[%s361] sm:$0xff]
                  %364 = vst [vmem:[%s362] sm:$0xff] %v363
                  %v365 = vld [vmem:[%s361 + $0x18] sm:$0xff]
                  %366 = vst [vmem:[%s362 + $0x8] sm:$0xff] %v365
                  %v367 = vld [vmem:[%s361 + $0x30] sm:$0xff]
                  %368 = vst [vmem:[%s362 + $0x10] sm:$0xff] %v367
                  %v369 = vld [vmem:[%s361 + $0x48] sm:$0xff]
                  %370 = vst [vmem:[%s362 + $0x18] sm:$0xff] %v369
                  %v371 = vld [vmem:[%s361 + $0x60] sm:$0xff]
                  %372 = vst [vmem:[%s362 + $0x20] sm:$0xff] %v371
                $region98: #{module_forward.1} parent=92 // loop_footer
                  %s360 = sadd.s32 1, %s356
                $region99: #{module_forward.1} parent=92 // loop_footer_branch
                  %355 = sbr.rel target = $region95
                $region100: #{module_forward.1} parent=92 // loop_exit
                  _
              $region93: #{module_forward.1} parent=77 // pred_fallthru
                _
              // Predicated region
              $region101: #{module_forward.1} parent=77 // pred_check
                _
              $region102: #{module_forward.1} parent=77 // pred_check_branch
                %374 = sbr.rel target = $region104
              $region103: #{module_forward.1} parent=77 // pred_region
                _
              $region104: #{module_forward.1} parent=77 // pred_fallthru
                _
            $region78: #{module_forward.1} parent=73 // pred_fallthru
              _
            // Predicated region
            $region79: #{module_forward.1} parent=73 // pred_check
              _
            $region80: #{module_forward.1} parent=73 // pred_check_branch
              %333 = sbr.rel target = $region82
            $region81: #{module_forward.1} parent=73 // pred_region
              loop: start=0, step=1, limit=1
              $region83: #{module_forward.1} parent=81 // loop_pre_header
                _
              $region84: #{module_forward.1} parent=81 // loop_header
                %s336 = sphi 0, %s340
                %p337 = scmp.ge.s32.totalorder %s336, 1
                %s341 = sphi %s327, %s327
                %s342 = sphi %s325, %s325
              $region85: #{module_forward.1} parent=81 // loop_header_branch
                %339 = sbr.rel (%p337) target = $region89
              $region86: #{module_forward.1} parent=81 // loop_body
                %v343 = vld [vmem:[%s341] sm:$0xff]
                %344 = vst [vmem:[%s342] sm:$0xff] %v343
                %v345 = vld [vmem:[%s341 + $0x18] sm:$0xff]
                %346 = vst [vmem:[%s342 + $0x8] sm:$0xff] %v345
                %v347 = vld [vmem:[%s341 + $0x30] sm:$0xff]
                %348 = vst [vmem:[%s342 + $0x10] sm:$0xff] %v347
                %v349 = vld [vmem:[%s341 + $0x48] sm:$0xff]
                %350 = vst [vmem:[%s342 + $0x18] sm:$0xff] %v349
                %v351 = vld [vmem:[%s341 + $0x60] sm:$0xff]
                %352 = vst [vmem:[%s342 + $0x20] sm:$0xff] %v351
              $region87: #{module_forward.1} parent=81 // loop_footer
                %s340 = sadd.s32 1, %s336
              $region88: #{module_forward.1} parent=81 // loop_footer_branch
                %335 = sbr.rel target = $region84
              $region89: #{module_forward.1} parent=81 // loop_exit
                _
            $region82: #{module_forward.1} parent=73 // pred_fallthru
              _
          $region74: #{module_forward.1} parent=69 // pred_fallthru
            _
          %375 = vnop
        $region70: #{module_forward.1} parent=19 // pred_fallthru
          _
        // Predicated region
        $region105: #{module_forward.1} parent=19 // pred_check
          %p376 = pneg %p158
        $region106: #{module_forward.1} parent=19 // pred_check_branch
          %378 = sbr.rel (%p376) target = $region108
        $region107: #{module_forward.1} parent=19 // pred_region
          %p379 = scmp.lt.s32.totalorder %s13, 2
          %s380 = scalar_select %p379, %s13, 2
          %s381 = scalar_lea.vmem %s5, %s380
        $region108: #{module_forward.1} parent=19 // pred_fallthru
          _
        // Predicated region
        $region109: #{module_forward.1} parent=19 // pred_check
          %p382 = pneg %p184
        $region110: #{module_forward.1} parent=19 // pred_check_branch
          %384 = sbr.rel (%p382) target = $region112
        $region111: #{module_forward.1} parent=19 // pred_region
          %p385 = scmp.lt.s32.totalorder %s13, 2
          %s386 = scalar_select %p385, %s13, 2
          %s387 = scalar_lea.vmem %s6, %s386
        $region112: #{module_forward.1} parent=19 // pred_fallthru
          _
      $region20: #{module_forward.1} parent=5 // pred_fallthru
        _
      %p388 = scmp.le.s32.totalorder 1, %s13
      %p389 = scmp.lt.s32.totalorder %s13, 4
      %p390 = pnand %p388, %p389
      %p391 = pneg %p390
      // Predicated region
      $region113: #{module_forward.1} parent=5 // pred_check
        _
      $region114: #{module_forward.1} parent=5 // pred_check_branch
        %393 = sbr.rel (%p390) target = $region116
      $region115: #{module_forward.1} parent=5 // pred_region
        %s394 = ssub.s32 %s13, 1
        %s395 = sand.u32 %s47, 1
        %s396 = sand.u32 %s47, 1
        %s397 = smul.addr %s396, 64
        %s398 = scalar_lea.vmem [#allocation4], %s397
        // Predicated region
        $region117: #{module_forward.1} parent=115 // pred_check
          %p399 = pneg %p60
        $region118: #{module_forward.1} parent=115 // pred_check_branch
          %401 = sbr.rel (%p399) target = $region120
        $region119: #{module_forward.1} parent=115 // pred_region
          _
        $region120: #{module_forward.1} parent=115 // pred_fallthru
          _
        %s402 = sand.u32 %s125, 1
        %s403 = sand.u32 %s125, 1
        %s404 = smul.addr %s403, 40
        %s405 = scalar_lea.vmem [#allocation5], %s404
        // Predicated region
        $region121: #{module_forward.1} parent=115 // pred_check
          %p406 = pneg %p138
        $region122: #{module_forward.1} parent=115 // pred_check_branch
          %408 = sbr.rel (%p406) target = $region124
        $region123: #{module_forward.1} parent=115 // pred_region
          _
        $region124: #{module_forward.1} parent=115 // pred_fallthru
          _
        %p409 = pneg %p34
        %p410 = pneg %p31
        %s411 = sand.u32 %s47, 1
        %s412 = sand.u32 %s47, 1
        %s413 = smul.addr %s412, 64
        %s414 = scalar_lea.vmem [#allocation4], %s413
        %p415 = pneg %p60
        %p416 = pneg %p57
        %p417 = scmp.lt.s32.totalorder %s18, 2
        %s418 = scalar_select %p417, %s18, 2
        %s419 = scalar_lea.vmem %s2, %s418
        %p420 = pneg %p86
        %p421 = pneg %p83
        %p422 = scmp.lt.s32.totalorder %s18, 2
        %s423 = scalar_select %p422, %s18, 2
        %s424 = scalar_lea.vmem %s3, %s423
        %p425 = pneg %p112
        %p426 = pneg %p109
        %s427 = sand.u32 %s125, 1
        %s428 = sand.u32 %s125, 1
        %s429 = smul.addr %s428, 40
        %s430 = scalar_lea.vmem [#allocation5], %s429
        %p431 = pneg %p138
        %p432 = pneg %p135
        %p433 = scmp.lt.s32.totalorder %s18, 2
        %s434 = scalar_select %p433, %s18, 2
        %s435 = scalar_lea.vmem %s5, %s434
        %p436 = pneg %p164
        %p437 = pneg %p161
        %p438 = scmp.lt.s32.totalorder %s18, 2
        %s439 = scalar_select %p438, %s18, 2
        %s440 = scalar_lea.vmem %s6, %s439
        %p441 = pneg %p190
        %p442 = pneg %p187
        %p443 = pneg %p216
        %p444 = pneg %p213
        %s445 = sand.u32 %s203, 1
        %s446 = sand.u32 %s203, 1
        %s447 = smul.addr %s446, 224
        %s448 = scalar_lea.vmem [#allocation6], %s447
        %p449 = scmp.lt.s32.totalorder %s18, 2
        %s450 = scalar_select %p449, %s18, 2
        %s451 = scalar_lea.vmem %s2, %s450
        %p452 = scmp.lt.s32.totalorder %s18, 2
        %s453 = scalar_select %p452, %s18, 2
        %s454 = scalar_lea.vmem %s3, %s453
        %p455 = scmp.lt.s32.totalorder %s18, 2
        %s456 = scalar_select %p455, %s18, 2
        %s457 = scalar_lea.vmem %s5, %s456
        %p458 = scmp.lt.s32.totalorder %s18, 2
        %s459 = scalar_select %p458, %s18, 2
        %s460 = scalar_lea.vmem %s6, %s459
        %v461 = vld [vmem:[%s0] sm:$0xff]
        %v462 = vld [vmem:[%s0 + $0x8] sm:$0xff]
        %v463 = vld [vmem:[%s0 + $0x10] sm:$0xff]
        %v464 = vld [vmem:[%s0 + $0x18] sm:$0xff]
        %v465 = vld [vmem:[%s0 + $0x20] sm:$0xff]
        %v466 = vld [vmem:[%s0 + $0x28] sm:$0xff]
        %v467 = vld [vmem:[%s0 + $0x30] sm:$0xff]
        %v468 = vld [vmem:[%s0 + $0x38] sm:$0xff]
        %v469 = vld [vmem:[%s0 + $0x40] sm:$0xff]
        %v470 = vld [vmem:[%s0 + $0x48] sm:$0xff]
        %v471 = vld [vmem:[%s0 + $0x50] sm:$0xff]
        %v472 = vld [vmem:[%s0 + $0x58] sm:$0xff]
        %v473 = vld [vmem:[%s0 + $0x60] sm:$0xff]
        %v474 = vld [vmem:[%s0 + $0x68] sm:$0xff]
        %v475 = vld [vmem:[%s0 + $0x70] sm:$0xff]
        %v476 = vld [vmem:[%s0 + $0x78] sm:$0xff]
        %v477 = vld [vmem:[%s0 + $0x80] sm:$0xff]
        %v478 = vld [vmem:[%s0 + $0x88] sm:$0xff]
        %v479 = vld [vmem:[%s0 + $0x90] sm:$0xff]
        %v480 = vld [vmem:[%s0 + $0x98] sm:$0xff]
        %v481 = vld [vmem:[%s0 + $0xa0] sm:$0xff]
        %v482 = vld [vmem:[%s0 + $0xa8] sm:$0xff]
        %v483 = vld [vmem:[%s0 + $0xb0] sm:$0xff]
        %v484 = vld [vmem:[%s0 + $0xb8] sm:$0xff]
        %v485 = vld [vmem:[%s0 + $0xc0] sm:$0xf]
        %v486 = vld [vmem:[%s398] sm:$0xff]
        %v487 = vld [vmem:[%s398 + $0x8] sm:$0xff]
        %v488 = vld [vmem:[%s398 + $0x10] sm:$0xff]
        %v489 = vld [vmem:[%s398 + $0x18] sm:$0xff]
        %v490 = vld [vmem:[%s398 + $0x20] sm:$0xff]
        %v491 = vld [vmem:[%s398 + $0x28] sm:$0xff]
        %v492 = vld [vmem:[%s398 + $0x30] sm:$0xff]
        %v493 = vld [vmem:[%s398 + $0x38] sm:$0xff]
        %vm494 = vcmask 523264
        %v496 = vsel %vm494, %v461, 0
        %v499 = vsel %vm494, %v462, 0
        %v502 = vsel %vm494, %v463, 0
        %v505 = vsel %vm494, %v464, 0
        %v508 = vsel %vm494, %v465, 0
        %v511 = vsel %vm494, %v466, 0
        %v514 = vsel %vm494, %v467, 0
        %v517 = vsel %vm494, %v468, 0
        %v520 = vsel %vm494, %v469, 0
        %v523 = vsel %vm494, %v470, 0
        %v526 = vsel %vm494, %v471, 0
        %v529 = vsel %vm494, %v472, 0
        %v532 = vsel %vm494, %v473, 0
        %v535 = vsel %vm494, %v474, 0
        %v538 = vsel %vm494, %v475, 0
        %v541 = vsel %vm494, %v476, 0
        %v544 = vsel %vm494, %v477, 0
        %v547 = vsel %vm494, %v478, 0
        %v550 = vsel %vm494, %v479, 0
        %v553 = vsel %vm494, %v480, 0
        %v556 = vsel %vm494, %v481, 0
        %v559 = vsel %vm494, %v482, 0
        %v562 = vsel %vm494, %v483, 0
        %v565 = vsel %vm494, %v484, 0
        %v568 = vsel %vm494, %v485, 0
        %570 = vmatprep.subr.mxu0 0.0
        %571 = vmatpush1.msra.mxu0 %v486
        %572 = vmatprep.subr.mxu0 0.0
        %573 = vmatpush1.msra.mxu0 %v487
        %574 = vmatprep.subr.mxu0 0.0
        %575 = vmatpush1.msra.mxu0 %v488
        %576 = vmatprep.subr.mxu0 0.0
        %577 = vmatpush1.msra.mxu0 %v489
        %578 = vmatprep.subr.mxu0 0.0
        %579 = vmatpush1.msra.mxu0 %v490
        %580 = vmatprep.subr.mxu0 0.0
        %581 = vmatpush1.msra.mxu0 %v491
        %582 = vmatprep.subr.mxu0 0.0
        %583 = vmatpush1.msra.mxu0 %v492
        %584 = vmatprep.subr.mxu0 0.0
        %585 = vmatpush1.msra.mxu0 %v493
        %586 = vmatprep.subr.mxu0 0.0
        %587 = vmatpush1.msra.mxu0 0.0
        %588 = vmatprep.subr.mxu0 0.0
        %589 = vmatpush1.msra.mxu0 0.0
        %590 = vmatprep.subr.mxu0 0.0
        %591 = vmatpush1.msra.mxu0 0.0
        %592 = vmatprep.subr.mxu0 0.0
        %593 = vmatpush1.msra.mxu0 0.0
        %594 = vmatprep.subr.mxu0 0.0
        %595 = vmatpush1.msra.mxu0 0.0
        %596 = vmatprep.subr.mxu0 0.0
        %597 = vmatpush1.msra.mxu0 0.0
        %598 = vmatprep.subr.mxu0 0.0
        %599 = vmatpush1.msra.mxu0 0.0
        %600 = vmatprep.subr.mxu0 0.0
        %601 = vmatpush1.msra.mxu0 0.0
        %602 = vmatprep.subr.mxu0 0.0
        %603 = vmatpush1.msra.mxu0 0.0
        %604 = vmatprep.subr.mxu0 0.0
        %605 = vmatpush1.msra.mxu0 0.0
        %606 = vmatprep.subr.mxu0 0.0
        %607 = vmatpush1.msra.mxu0 0.0
        %608 = vmatprep.subr.mxu0 0.0
        %609 = vmatpush1.msra.mxu0 0.0
        %610 = vmatprep.subr.mxu0 0.0
        %611 = vmatpush1.msra.mxu0 0.0
        %612 = vmatprep.subr.mxu0 0.0
        %613 = vmatpush1.msra.mxu0 0.0
        %614 = vmatprep.subr.mxu0 0.0
        %615 = vmatpush1.msra.mxu0 0.0
        %616 = vmatprep.subr.mxu0 0.0
        %617 = vmatpush1.msra.mxu0 0.0
        %618 = vmatprep.subr.mxu0 0.0
        %619 = vmatpush1.msra.mxu0 0.0
        %620 = vmatprep.subr.mxu0 0.0
        %621 = vmatpush1.msra.mxu0 0.0
        %622 = vmatprep.subr.mxu0 0.0
        %623 = vmatpush1.msra.mxu0 0.0
        %624 = vmatprep.subr.mxu0 0.0
        %625 = vmatpush1.msra.mxu0 0.0
        %626 = vmatprep.subr.mxu0 0.0
        %627 = vmatpush1.msra.mxu0 0.0
        %628 = vmatprep.subr.mxu0 0.0
        %629 = vmatpush1.msra.mxu0 0.0
        %630 = vmatprep.subr.mxu0 0.0
        %631 = vmatpush1.msra.mxu0 0.0
        %632 = vmatprep.subr.mxu0 0.0
        %633 = vmatpush1.msra.mxu0 0.0
        %634 = vmatprep.mubr.f32.mxu0 0.0
        %635 = vmatmul.mubr.f32.gmra.mrb[0].mxu0 %v496
        %v636 = vpop.f32.mrb[0].mxu0
        %v637 = vadd.f32 0.0, %v636
        %v638 = vpop.f32.mrb[0].mxu0
        %639 = vmatprep.mubr.f32.mxu0 0.0
        %640 = vmatmul.mubr.f32.gmra.mrb[0].mxu0 %v499
        %v641 = vpop.f32.mrb[0].mxu0
        %v642 = vadd.f32 0.0, %v641
        %v643 = vpop.f32.mrb[0].mxu0
        %644 = vmatprep.mubr.f32.mxu0 0.0
        %645 = vmatmul.mubr.f32.gmra.mrb[0].mxu0 %v502
        %v646 = vpop.f32.mrb[0].mxu0
        %v647 = vadd.f32 0.0, %v646
        %v648 = vpop.f32.mrb[0].mxu0
        %649 = vmatprep.mubr.f32.mxu0 0.0
        %650 = vmatmul.mubr.f32.gmra.mrb[0].mxu0 %v505
        %v651 = vpop.f32.mrb[0].mxu0
        %v652 = vadd.f32 0.0, %v651
        %v653 = vpop.f32.mrb[0].mxu0
        %654 = vmatprep.mubr.f32.mxu0 0.0
        %655 = vmatmul.mubr.f32.gmra.mrb[0].mxu0 %v508
        %v656 = vpop.f32.mrb[0].mxu0
        %v657 = vadd.f32 0.0, %v656
        %v658 = vpop.f32.mrb[0].mxu0
        %659 = vmatprep.mubr.f32.mxu0 0.0
        %660 = vmatmul.mubr.f32.gmra.mrb[0].mxu0 %v511
        %v661 = vpop.f32.mrb[0].mxu0
        %v662 = vadd.f32 0.0, %v661
        %v663 = vpop.f32.mrb[0].mxu0
        %664 = vmatprep.mubr.f32.mxu0 0.0
        %665 = vmatmul.mubr.f32.gmra.mrb[0].mxu0 %v514
        %v666 = vpop.f32.mrb[0].mxu0
        %v667 = vadd.f32 0.0, %v666
        %v668 = vpop.f32.mrb[0].mxu0
        %669 = vmatprep.mubr.f32.mxu0 0.0
        %670 = vmatmul.mubr.f32.gmra.mrb[0].mxu0 %v517
        %v671 = vpop.f32.mrb[0].mxu0
        %v672 = vadd.f32 0.0, %v671
        %v673 = vpop.f32.mrb[0].mxu0
        %674 = vmatprep.mubr.f32.mxu0 0.0
        %675 = vmatmul.mubr.f32.gmra.mrb[0].mxu0 %v520
        %v676 = vpop.f32.mrb[0].mxu0
        %v677 = vadd.f32 0.0, %v676
        %v678 = vpop.f32.mrb[0].mxu0
        %679 = vmatprep.mubr.f32.mxu0 0.0
        %680 = vmatmul.mubr.f32.gmra.mrb[0].mxu0 %v523
        %v681 = vpop.f32.mrb[0].mxu0
        %v682 = vadd.f32 0.0, %v681
        %v683 = vpop.f32.mrb[0].mxu0
        %684 = vmatprep.mubr.f32.mxu0 0.0
        %685 = vmatmul.mubr.f32.gmra.mrb[0].mxu0 %v526
        %v686 = vpop.f32.mrb[0].mxu0
        %v687 = vadd.f32 0.0, %v686
        %v688 = vpop.f32.mrb[0].mxu0
        %689 = vmatprep.mubr.f32.mxu0 0.0
        %690 = vmatmul.mubr.f32.gmra.mrb[0].mxu0 %v529
        %v691 = vpop.f32.mrb[0].mxu0
        %v692 = vadd.f32 0.0, %v691
        %v693 = vpop.f32.mrb[0].mxu0
        %694 = vmatprep.mubr.f32.mxu0 0.0
        %695 = vmatmul.mubr.f32.gmra.mrb[0].mxu0 %v532
        %v696 = vpop.f32.mrb[0].mxu0
        %v697 = vadd.f32 0.0, %v696
        %v698 = vpop.f32.mrb[0].mxu0
        %699 = vmatprep.mubr.f32.mxu0 0.0
        %700 = vmatmul.mubr.f32.gmra.mrb[0].mxu0 %v535
        %v701 = vpop.f32.mrb[0].mxu0
        %v702 = vadd.f32 0.0, %v701
        %v703 = vpop.f32.mrb[0].mxu0
        %704 = vmatprep.mubr.f32.mxu0 0.0
        %705 = vmatmul.mubr.f32.gmra.mrb[0].mxu0 %v538
        %v706 = vpop.f32.mrb[0].mxu0
        %v707 = vadd.f32 0.0, %v706
        %v708 = vpop.f32.mrb[0].mxu0
        %709 = vmatprep.mubr.f32.mxu0 0.0
        %710 = vmatmul.mubr.f32.gmra.mrb[0].mxu0 %v541
        %v711 = vpop.f32.mrb[0].mxu0
        %v712 = vadd.f32 0.0, %v711
        %v713 = vpop.f32.mrb[0].mxu0
        %714 = vmatprep.mubr.f32.mxu0 0.0
        %715 = vmatmul.mubr.f32.gmra.mrb[0].mxu0 %v544
        %v716 = vpop.f32.mrb[0].mxu0
        %v717 = vadd.f32 0.0, %v716
        %v718 = vpop.f32.mrb[0].mxu0
        %719 = vmatprep.mubr.f32.mxu0 0.0
        %720 = vmatmul.mubr.f32.gmra.mrb[0].mxu0 %v547
        %v721 = vpop.f32.mrb[0].mxu0
        %v722 = vadd.f32 0.0, %v721
        %v723 = vpop.f32.mrb[0].mxu0
        %724 = vmatprep.mubr.f32.mxu0 0.0
        %725 = vmatmul.mubr.f32.gmra.mrb[0].mxu0 %v550
        %v726 = vpop.f32.mrb[0].mxu0
        %v727 = vadd.f32 0.0, %v726
        %v728 = vpop.f32.mrb[0].mxu0
        %729 = vmatprep.mubr.f32.mxu0 0.0
        %730 = vmatmul.mubr.f32.gmra.mrb[0].mxu0 %v553
        %v731 = vpop.f32.mrb[0].mxu0
        %v732 = vadd.f32 0.0, %v731
        %v733 = vpop.f32.mrb[0].mxu0
        %734 = vmatprep.mubr.f32.mxu0 0.0
        %735 = vmatmul.mubr.f32.gmra.mrb[0].mxu0 %v556
        %v736 = vpop.f32.mrb[0].mxu0
        %v737 = vadd.f32 0.0, %v736
        %v738 = vpop.f32.mrb[0].mxu0
        %739 = vmatprep.mubr.f32.mxu0 0.0
        %740 = vmatmul.mubr.f32.gmra.mrb[0].mxu0 %v559
        %v741 = vpop.f32.mrb[0].mxu0
        %v742 = vadd.f32 0.0, %v741
        %v743 = vpop.f32.mrb[0].mxu0
        %744 = vmatprep.mubr.f32.mxu0 0.0
        %745 = vmatmul.mubr.f32.gmra.mrb[0].mxu0 %v562
        %v746 = vpop.f32.mrb[0].mxu0
        %v747 = vadd.f32 0.0, %v746
        %v748 = vpop.f32.mrb[0].mxu0
        %749 = vmatprep.mubr.f32.mxu0 0.0
        %750 = vmatmul.mubr.f32.gmra.mrb[0].mxu0 %v565
        %v751 = vpop.f32.mrb[0].mxu0
        %v752 = vadd.f32 0.0, %v751
        %v753 = vpop.f32.mrb[0].mxu0
        %754 = vmatprep.mubr.f32.mxu0 0.0
        %755 = vmatmul.mubr.f32.gmra.mrb[0].mxu0 %v568
        %v756 = vpop.f32.mrb[0].mxu0
        %v757 = vadd.f32 0.0, %v756
        %v758 = vpop.f32.mrb[0].mxu0
        %759 = vdwg.mxu0
        %v760 = vadd.f32 %v637, %v642
        %v761 = vadd.f32 %v760, %v647
        %v762 = vadd.f32 %v761, %v652
        %v763 = vadd.f32 %v762, %v657
        %v764 = vadd.f32 %v763, %v662
        %v765 = vadd.f32 %v764, %v667
        %v766 = vadd.f32 %v765, %v672
        %v767 = vadd.f32 %v766, %v677
        %v768 = vadd.f32 %v767, %v682
        %v769 = vadd.f32 %v768, %v687
        %v770 = vadd.f32 %v769, %v692
        %v771 = vadd.f32 %v770, %v697
        %v772 = vadd.f32 %v771, %v702
        %v773 = vadd.f32 %v772, %v707
        %v774 = vadd.f32 %v773, %v712
        %v775 = vadd.f32 %v774, %v717
        %v776 = vadd.f32 %v775, %v722
        %v777 = vadd.f32 %v776, %v727
        %v778 = vadd.f32 %v777, %v732
        %v779 = vadd.f32 %v778, %v737
        %v780 = vadd.f32 %v779, %v742
        %v781 = vadd.f32 %v780, %v747
        %v782 = vadd.f32 %v781, %v752
        %vm783 = vcmask 1043456
        %v784 = vsel %vm783, %v757, 0.0
        %v785 = vadd.f32 %v782, %v784
        %v786 = vrot.slane %v785, 4
        %v787 = vadd.f32 %v785, %v786
        %v788 = vrot.slane %v787, 2
        %v789 = vadd.f32 %v787, %v788
        %v790 = vrot.slane %v789, 1
        %v791 = vadd.f32 %v789, %v790
        %v792 = vmul.f32 %v637, %v637
        %v793 = vmul.f32 %v642, %v642
        %v794 = vmul.f32 %v647, %v647
        %v795 = vmul.f32 %v652, %v652
        %v796 = vmul.f32 %v657, %v657
        %v797 = vmul.f32 %v662, %v662
        %v798 = vmul.f32 %v667, %v667
        %v799 = vmul.f32 %v672, %v672
        %v800 = vmul.f32 %v677, %v677
        %v801 = vmul.f32 %v682, %v682
        %v802 = vmul.f32 %v687, %v687
        %v803 = vmul.f32 %v692, %v692
        %v804 = vmul.f32 %v697, %v697
        %v805 = vmul.f32 %v702, %v702
        %v806 = vmul.f32 %v707, %v707
        %v807 = vmul.f32 %v712, %v712
        %v808 = vmul.f32 %v717, %v717
        %v809 = vmul.f32 %v722, %v722
        %v810 = vmul.f32 %v727, %v727
        %v811 = vmul.f32 %v732, %v732
        %v812 = vmul.f32 %v737, %v737
        %v813 = vmul.f32 %v742, %v742
        %v814 = vmul.f32 %v747, %v747
        %v815 = vmul.f32 %v752, %v752
        %v816 = vmul.f32 %v757, %v757
        %v817 = vadd.f32 %v792, %v793
        %v818 = vadd.f32 %v817, %v794
        %v819 = vadd.f32 %v818, %v795
        %v820 = vadd.f32 %v819, %v796
        %v821 = vadd.f32 %v820, %v797
        %v822 = vadd.f32 %v821, %v798
        %v823 = vadd.f32 %v822, %v799
        %v824 = vadd.f32 %v823, %v800
        %v825 = vadd.f32 %v824, %v801
        %v826 = vadd.f32 %v825, %v802
        %v827 = vadd.f32 %v826, %v803
        %v828 = vadd.f32 %v827, %v804
        %v829 = vadd.f32 %v828, %v805
        %v830 = vadd.f32 %v829, %v806
        %v831 = vadd.f32 %v830, %v807
        %v832 = vadd.f32 %v831, %v808
        %v833 = vadd.f32 %v832, %v809
        %v834 = vadd.f32 %v833, %v810
        %v835 = vadd.f32 %v834, %v811
        %v836 = vadd.f32 %v835, %v812
        %v837 = vadd.f32 %v836, %v813
        %v838 = vadd.f32 %v837, %v814
        %v839 = vadd.f32 %v838, %v815
        %v840 = vsel %vm783, %v816, 0.0
        %v841 = vadd.f32 %v839, %v840
        %v842 = vrot.slane %v841, 4
        %v843 = vadd.f32 %v841, %v842
        %v844 = vrot.slane %v843, 2
        %v845 = vadd.f32 %v843, %v844
        %v846 = vrot.slane %v845, 1
        %v847 = vadd.f32 %v845, %v846
        %v848 = vmul.f32 %v791, 0.0051020407
        %v849 = vmul.f32 %v847, 0.0051020407
        %v850 = vmul.f32 %v848, %v848
        %v851 = vsub.f32 %v849, %v850
        %v852 = vld [vmem:[%s451] sm:$0x1]
        %v853 = vadd.f32 %v851, 0.001
        %v854 = vrsqrt.pop %v853
        %v855 = vmul.f32 %v852, %v854
        %v856 = vld [vmem:[%s454] sm:$0x1]
        %v857 = vmul.f32 %v848, %v855
        %v858 = vsub.f32 %v856, %v857
        %v860 = vlaneseq
        %v861 = vshrl.u32 %v860, 7
        %v862 = vsub.s32 0, %v861
        %v863 = vrot.slane %v855, %v862
        %v865 = vmul.f32 %v637, %v863
        %v866 = vmul.f32 %v642, %v863
        %v867 = vmul.f32 %v647, %v863
        %v868 = vmul.f32 %v652, %v863
        %v869 = vmul.f32 %v657, %v863
        %v870 = vmul.f32 %v662, %v863
        %v871 = vmul.f32 %v667, %v863
        %v872 = vmul.f32 %v672, %v863
        %v873 = vmul.f32 %v677, %v863
        %v874 = vmul.f32 %v682, %v863
        %v875 = vmul.f32 %v687, %v863
        %v876 = vmul.f32 %v692, %v863
        %v877 = vmul.f32 %v697, %v863
        %v878 = vmul.f32 %v702, %v863
        %v879 = vmul.f32 %v707, %v863
        %v880 = vmul.f32 %v712, %v863
        %v881 = vmul.f32 %v717, %v863
        %v882 = vmul.f32 %v722, %v863
        %v883 = vmul.f32 %v727, %v863
        %v884 = vmul.f32 %v732, %v863
        %v885 = vmul.f32 %v737, %v863
        %v886 = vmul.f32 %v742, %v863
        %v887 = vmul.f32 %v747, %v863
        %v888 = vmul.f32 %v752, %v863
        %v889 = vmul.f32 %v757, %v863
        %v891 = vlaneseq
        %v892 = vshrl.u32 %v891, 7
        %v893 = vsub.s32 0, %v892
        %v894 = vrot.slane %v858, %v893
        %v896 = vadd.f32 %v865, %v894
        %v897 = vadd.f32 %v866, %v894
        %v898 = vadd.f32 %v867, %v894
        %v899 = vadd.f32 %v868, %v894
        %v900 = vadd.f32 %v869, %v894
        %v901 = vadd.f32 %v870, %v894
        %v902 = vadd.f32 %v871, %v894
        %v903 = vadd.f32 %v872, %v894
        %v904 = vadd.f32 %v873, %v894
        %v905 = vadd.f32 %v874, %v894
        %v906 = vadd.f32 %v875, %v894
        %v907 = vadd.f32 %v876, %v894
        %v908 = vadd.f32 %v877, %v894
        %v909 = vadd.f32 %v878, %v894
        %v910 = vadd.f32 %v879, %v894
        %v911 = vadd.f32 %v880, %v894
        %v912 = vadd.f32 %v881, %v894
        %v913 = vadd.f32 %v882, %v894
        %v914 = vadd.f32 %v883, %v894
        %v915 = vadd.f32 %v884, %v894
        %v916 = vadd.f32 %v885, %v894
        %v917 = vadd.f32 %v886, %v894
        %v918 = vadd.f32 %v887, %v894
        %v919 = vadd.f32 %v888, %v894
        %v920 = vadd.f32 %v889, %v894
        %v921 = vmax.f32 %v896, 0.0
        %v922 = vmax.f32 %v897, 0.0
        %v923 = vmax.f32 %v898, 0.0
        %v924 = vmax.f32 %v899, 0.0
        %v925 = vmax.f32 %v900, 0.0
        %v926 = vmax.f32 %v901, 0.0
        %v927 = vmax.f32 %v902, 0.0
        %v928 = vmax.f32 %v903, 0.0
        %v929 = vmax.f32 %v904, 0.0
        %v930 = vmax.f32 %v905, 0.0
        %v931 = vmax.f32 %v906, 0.0
        %v932 = vmax.f32 %v907, 0.0
        %v933 = vmax.f32 %v908, 0.0
        %v934 = vmax.f32 %v909, 0.0
        %v935 = vmax.f32 %v910, 0.0
        %v936 = vmax.f32 %v911, 0.0
        %v937 = vmax.f32 %v912, 0.0
        %v938 = vmax.f32 %v913, 0.0
        %v939 = vmax.f32 %v914, 0.0
        %v940 = vmax.f32 %v915, 0.0
        %v941 = vmax.f32 %v916, 0.0
        %v942 = vmax.f32 %v917, 0.0
        %v943 = vmax.f32 %v918, 0.0
        %v944 = vmax.f32 %v919, 0.0
        %v945 = vmax.f32 %v920, 0.0
        %946 = vst [vmem:[#allocation3] sm:$0xff] %v921
        %947 = vst [vmem:[#allocation3 + $0x8] sm:$0xff] %v922
        %948 = vst [vmem:[#allocation3 + $0x10] sm:$0xff] %v923
        %949 = vst [vmem:[#allocation3 + $0x18] sm:$0xff] %v924
        %950 = vst [vmem:[#allocation3 + $0x20] sm:$0xff] %v925
        %951 = vst [vmem:[#allocation3 + $0x28] sm:$0xff] %v926
        %952 = vst [vmem:[#allocation3 + $0x30] sm:$0xff] %v927
        %953 = vst [vmem:[#allocation3 + $0x38] sm:$0xff] %v928
        %954 = vst [vmem:[#allocation3 + $0x40] sm:$0xff] %v929
        %955 = vst [vmem:[#allocation3 + $0x48] sm:$0xff] %v930
        %956 = vst [vmem:[#allocation3 + $0x50] sm:$0xff] %v931
        %957 = vst [vmem:[#allocation3 + $0x58] sm:$0xff] %v932
        %958 = vst [vmem:[#allocation3 + $0x60] sm:$0xff] %v933
        %959 = vst [vmem:[#allocation3 + $0x68] sm:$0xff] %v934
        %960 = vst [vmem:[#allocation3 + $0x70] sm:$0xff] %v935
        %961 = vst [vmem:[#allocation3 + $0x78] sm:$0xff] %v936
        %962 = vst [vmem:[#allocation3 + $0x80] sm:$0xff] %v937
        %963 = vst [vmem:[#allocation3 + $0x88] sm:$0xff] %v938
        %964 = vst [vmem:[#allocation3 + $0x90] sm:$0xff] %v939
        %965 = vst [vmem:[#allocation3 + $0x98] sm:$0xff] %v940
        %966 = vst [vmem:[#allocation3 + $0xa0] sm:$0xff] %v941
        %967 = vst [vmem:[#allocation3 + $0xa8] sm:$0xff] %v942
        %968 = vst [vmem:[#allocation3 + $0xb0] sm:$0xff] %v943
        %969 = vst [vmem:[#allocation3 + $0xb8] sm:$0xff] %v944
        %970 = vst [vmem:[#allocation3 + $0xc0] sm:$0xf] %v945
        %971 = vst [vmem:[#allocation2] sm:$0xff] 0.0
        %972 = vst [vmem:[#allocation2 + $0x8] sm:$0xff] 0.0
        %973 = vst [vmem:[#allocation2 + $0x10] sm:$0x3] 0.0
        %974 = vst [vmem:[#allocation2 + $0x18] sm:$0xff] 0.0
        %975 = vst [vmem:[#allocation2 + $0x20] sm:$0xff] 0.0
        %976 = vst [vmem:[#allocation2 + $0x28] sm:$0x3] 0.0
        %977 = vst [vmem:[#allocation2 + $0x30] sm:$0xff] 0.0
        %978 = vst [vmem:[#allocation2 + $0x38] sm:$0xff] 0.0
        %979 = vst [vmem:[#allocation2 + $0x40] sm:$0x3] 0.0
        %980 = vst [vmem:[#allocation2 + $0x48] sm:$0xff] 0.0
        %981 = vst [vmem:[#allocation2 + $0x50] sm:$0xff] 0.0
        %982 = vst [vmem:[#allocation2 + $0x58] sm:$0x3] 0.0
        %983 = vst [vmem:[#allocation2 + $0x60] sm:$0xff] 0.0
        %984 = vst [vmem:[#allocation2 + $0x68] sm:$0xff] 0.0
        %985 = vst [vmem:[#allocation2 + $0x70] sm:$0x3] 0.0
        %986 = vst [vmem:[#allocation2 + $0x78] sm:$0xff] 0.0
        %987 = vst [vmem:[#allocation2 + $0x80] sm:$0xff] 0.0
        %988 = vst [vmem:[#allocation2 + $0x88] sm:$0x3] 0.0
        %989 = vst [vmem:[#allocation2 + $0x90] sm:$0xff] 0.0
        %990 = vst [vmem:[#allocation2 + $0x98] sm:$0xff] 0.0
        %991 = vst [vmem:[#allocation2 + $0xa0] sm:$0x3] 0.0
        %992 = vst [vmem:[#allocation2 + $0xa8] sm:$0xff] 0.0
        %993 = vst [vmem:[#allocation2 + $0xb0] sm:$0xff] 0.0
        %994 = vst [vmem:[#allocation2 + $0xb8] sm:$0x3] 0.0
        %995 = vst [vmem:[#allocation2 + $0xc0] sm:$0xff] 0.0
        %996 = vst [vmem:[#allocation2 + $0xc8] sm:$0xff] 0.0
        %997 = vst [vmem:[#allocation2 + $0xd0] sm:$0x3] 0.0
        %998 = vst [vmem:[#allocation2 + $0xd8] sm:$0xff] 0.0
        %999 = vst [vmem:[#allocation2 + $0xe0] sm:$0xff] 0.0
        %1000 = vst [vmem:[#allocation2 + $0xe8] sm:$0x3] 0.0
        %1001 = vst [vmem:[#allocation2 + $0xf0] sm:$0xff] 0.0
        %1002 = vst [vmem:[#allocation2 + $0xf8] sm:$0xff] 0.0
        %1003 = vst [vmem:[#allocation2 + $0x100] sm:$0x3] 0.0
        %1004 = vst [vmem:[#allocation2 + $0x108] sm:$0xff] 0.0
        %1005 = vst [vmem:[#allocation2 + $0x110] sm:$0xff] 0.0
        %1006 = vst [vmem:[#allocation2 + $0x118] sm:$0x3] 0.0
        %1007 = vst [vmem:[#allocation2 + $0x120] sm:$0xff] 0.0
        %1008 = vst [vmem:[#allocation2 + $0x128] sm:$0xff] 0.0
        %1009 = vst [vmem:[#allocation2 + $0x130] sm:$0x3] 0.0
        %1010 = vst [vmem:[#allocation2 + $0x138] sm:$0xff] 0.0
        %1011 = vst [vmem:[#allocation2 + $0x140] sm:$0xff] 0.0
        %1012 = vst [vmem:[#allocation2 + $0x148] sm:$0x3] 0.0
        %1013 = vst [vmem:[#allocation2 + $0x150] sm:$0xff] 0.0
        %1014 = vst [vmem:[#allocation2 + $0x158] sm:$0xff] 0.0
        %1015 = vst [vmem:[#allocation2 + $0x160] sm:$0x3] 0.0
        %1016 = vst [vmem:[#allocation2 + $0x168] sm:$0xff] 0.0
        %1017 = vst [vmem:[#allocation2 + $0x170] sm:$0xff] 0.0
        %1018 = vst [vmem:[#allocation2 + $0x178] sm:$0x3] 0.0
        %1019 = vst [vmem:[#allocation2 + $0x180] sm:$0xff] 0.0
        %1020 = vst [vmem:[#allocation2 + $0x188] sm:$0xff] 0.0
        %1021 = vst [vmem:[#allocation2 + $0x190] sm:$0x3] 0.0
        %1022 = vst [vmem:[#allocation2 + $0x198] sm:$0xff] 0.0
        %1023 = vst [vmem:[#allocation2 + $0x1a0] sm:$0xff] 0.0
        %1024 = vst [vmem:[#allocation2 + $0x1a8] sm:$0x3] 0.0
        %v1025 = vld [vmem:[#allocation3] sm:$0xff]
        %v1026 = vld [vmem:[#allocation3 + $0x8] sm:$0x3f]
        %s1027 = scalar_lea.vmem [#allocation2], 48
        %1028 = vst [vmem:[%s1027 + $0x2] sm:$0xff] %v1025
        %1029 = vst [vmem:[%s1027 + $0xa] sm:$0x3f] %v1026
        %v1030 = vld [vmem:[#allocation3 + $0xe] sm:$0xff]
        %v1031 = vld [vmem:[#allocation3 + $0x16] sm:$0x3f]
        %s1032 = scalar_lea.vmem [#allocation2], 72
        %1033 = vst [vmem:[%s1032 + $0x2] sm:$0xff] %v1030
        %1034 = vst [vmem:[%s1032 + $0xa] sm:$0x3f] %v1031
        %v1035 = vld [vmem:[#allocation3 + $0x1c] sm:$0xff]
        %v1036 = vld [vmem:[#allocation3 + $0x24] sm:$0x3f]
        %s1037 = scalar_lea.vmem [#allocation2], 96
        %1038 = vst [vmem:[%s1037 + $0x2] sm:$0xff] %v1035
        %1039 = vst [vmem:[%s1037 + $0xa] sm:$0x3f] %v1036
        %v1040 = vld [vmem:[#allocation3 + $0x2a] sm:$0xff]
        %v1041 = vld [vmem:[#allocation3 + $0x32] sm:$0x3f]
        %s1042 = scalar_lea.vmem [#allocation2], 120
        %1043 = vst [vmem:[%s1042 + $0x2] sm:$0xff] %v1040
        %1044 = vst [vmem:[%s1042 + $0xa] sm:$0x3f] %v1041
        %v1045 = vld [vmem:[#allocation3 + $0x38] sm:$0xff]
        %v1046 = vld [vmem:[#allocation3 + $0x40] sm:$0x3f]
        %s1047 = scalar_lea.vmem [#allocation2], 144
        %1048 = vst [vmem:[%s1047 + $0x2] sm:$0xff] %v1045
        %1049 = vst [vmem:[%s1047 + $0xa] sm:$0x3f] %v1046
        %v1050 = vld [vmem:[#allocation3 + $0x46] sm:$0xff]
        %v1051 = vld [vmem:[#allocation3 + $0x4e] sm:$0x3f]
        %s1052 = scalar_lea.vmem [#allocation2], 168
        %1053 = vst [vmem:[%s1052 + $0x2] sm:$0xff] %v1050
        %1054 = vst [vmem:[%s1052 + $0xa] sm:$0x3f] %v1051
        %v1055 = vld [vmem:[#allocation3 + $0x54] sm:$0xff]
        %v1056 = vld [vmem:[#allocation3 + $0x5c] sm:$0x3f]
        %s1057 = scalar_lea.vmem [#allocation2], 192
        %1058 = vst [vmem:[%s1057 + $0x2] sm:$0xff] %v1055
        %1059 = vst [vmem:[%s1057 + $0xa] sm:$0x3f] %v1056
        %v1060 = vld [vmem:[#allocation3 + $0x62] sm:$0xff]
        %v1061 = vld [vmem:[#allocation3 + $0x6a] sm:$0x3f]
        %s1062 = scalar_lea.vmem [#allocation2], 216
        %1063 = vst [vmem:[%s1062 + $0x2] sm:$0xff] %v1060
        %1064 = vst [vmem:[%s1062 + $0xa] sm:$0x3f] %v1061
        %v1065 = vld [vmem:[#allocation3 + $0x70] sm:$0xff]
        %v1066 = vld [vmem:[#allocation3 + $0x78] sm:$0x3f]
        %s1067 = scalar_lea.vmem [#allocation2], 240
        %1068 = vst [vmem:[%s1067 + $0x2] sm:$0xff] %v1065
        %1069 = vst [vmem:[%s1067 + $0xa] sm:$0x3f] %v1066
        %v1070 = vld [vmem:[#allocation3 + $0x7e] sm:$0xff]
        %v1071 = vld [vmem:[#allocation3 + $0x86] sm:$0x3f]
        %s1072 = scalar_lea.vmem [#allocation2], 264
        %1073 = vst [vmem:[%s1072 + $0x2] sm:$0xff] %v1070
        %1074 = vst [vmem:[%s1072 + $0xa] sm:$0x3f] %v1071
        %v1075 = vld [vmem:[#allocation3 + $0x8c] sm:$0xff]
        %v1076 = vld [vmem:[#allocation3 + $0x94] sm:$0x3f]
        %s1077 = scalar_lea.vmem [#allocation2], 288
        %1078 = vst [vmem:[%s1077 + $0x2] sm:$0xff] %v1075
        %1079 = vst [vmem:[%s1077 + $0xa] sm:$0x3f] %v1076
        %v1080 = vld [vmem:[#allocation3 + $0x9a] sm:$0xff]
        %v1081 = vld [vmem:[#allocation3 + $0xa2] sm:$0x3f]
        %s1082 = scalar_lea.vmem [#allocation2], 312
        %1083 = vst [vmem:[%s1082 + $0x2] sm:$0xff] %v1080
        %1084 = vst [vmem:[%s1082 + $0xa] sm:$0x3f] %v1081
        %v1085 = vld [vmem:[#allocation3 + $0xa8] sm:$0xff]
        %v1086 = vld [vmem:[#allocation3 + $0xb0] sm:$0x3f]
        %s1087 = scalar_lea.vmem [#allocation2], 336
        %1088 = vst [vmem:[%s1087 + $0x2] sm:$0xff] %v1085
        %1089 = vst [vmem:[%s1087 + $0xa] sm:$0x3f] %v1086
        %v1090 = vld [vmem:[#allocation3 + $0xb6] sm:$0xff]
        %v1091 = vld [vmem:[#allocation3 + $0xbe] sm:$0x3f]
        %s1092 = scalar_lea.vmem [#allocation2], 360
        %1093 = vst [vmem:[%s1092 + $0x2] sm:$0xff] %v1090
        %1094 = vst [vmem:[%s1092 + $0xa] sm:$0x3f] %v1091
        %v1095 = vld [vmem:[%s405] sm:$0x1]
        %v1096 = vld [vmem:[%s405 + $0x1] sm:$0x1]
        %v1097 = vld [vmem:[%s405 + $0x2] sm:$0x1]
        %v1098 = vld [vmem:[%s405 + $0x3] sm:$0x1]
        %v1099 = vld [vmem:[%s405 + $0x4] sm:$0x1]
        %s1100 = scalar_lea.vmem %s405, 8 [#allocation5]
        %v1101 = vld [vmem:[%s1100] sm:$0x1]
        %v1102 = vld [vmem:[%s1100 + $0x1] sm:$0x1]
        %v1103 = vld [vmem:[%s1100 + $0x2] sm:$0x1]
        %v1104 = vld [vmem:[%s1100 + $0x3] sm:$0x1]
        %v1105 = vld [vmem:[%s1100 + $0x4] sm:$0x1]
        %s1106 = scalar_lea.vmem %s405, 16 [#allocation5]
        %v1107 = vld [vmem:[%s1106] sm:$0x1]
        %v1108 = vld [vmem:[%s1106 + $0x1] sm:$0x1]
        %v1109 = vld [vmem:[%s1106 + $0x2] sm:$0x1]
        %v1110 = vld [vmem:[%s1106 + $0x3] sm:$0x1]
        %v1111 = vld [vmem:[%s1106 + $0x4] sm:$0x1]
        %s1112 = scalar_lea.vmem %s405, 24 [#allocation5]
        %v1113 = vld [vmem:[%s1112] sm:$0x1]
        %v1114 = vld [vmem:[%s1112 + $0x1] sm:$0x1]
        %v1115 = vld [vmem:[%s1112 + $0x2] sm:$0x1]
        %v1116 = vld [vmem:[%s1112 + $0x3] sm:$0x1]
        %v1117 = vld [vmem:[%s1112 + $0x4] sm:$0x1]
        %s1118 = scalar_lea.vmem %s405, 32 [#allocation5]
        %v1119 = vld [vmem:[%s1118] sm:$0x1]
        %v1120 = vld [vmem:[%s1118 + $0x1] sm:$0x1]
        %v1121 = vld [vmem:[%s1118 + $0x2] sm:$0x1]
        %v1122 = vld [vmem:[%s1118 + $0x3] sm:$0x1]
        %v1123 = vld [vmem:[%s1118 + $0x4] sm:$0x1]
        %v1124 = vld [vmem:[#allocation2] sm:$0xff]
        %v1125 = vld [vmem:[#allocation2 + $0x8] sm:$0x3f]
        %v1126 = vlaneseq
        %v1127 = vshrl.u32 %v1126, 7
        %v1128 = vsub.s32 0, %v1127
        %v1129 = vrot.slane %v1095, %v1128
        %v1130 = vmul.f32 %v1124, %v1129
        %v1131 = vmul.f32 %v1125, %v1129
        %v1132 = vadd.f32 %v1130, 0.0
        %v1133 = vadd.f32 %v1131, 0.0
        %v1134 = vld [vmem:[#allocation2 + $0x1] sm:$0xff]
        %v1135 = vld [vmem:[#allocation2 + $0x9] sm:$0x3f]
        %v1136 = vlaneseq
        %v1137 = vshrl.u32 %v1136, 7
        %v1138 = vsub.s32 0, %v1137
        %v1139 = vrot.slane %v1096, %v1138
        %v1140 = vmul.f32 %v1134, %v1139
        %v1141 = vmul.f32 %v1135, %v1139
        %v1142 = vadd.f32 %v1132, %v1140
        %v1143 = vadd.f32 %v1133, %v1141
        %v1144 = vld [vmem:[#allocation2 + $0x2] sm:$0xff]
        %v1145 = vld [vmem:[#allocation2 + $0xa] sm:$0x3f]
        %v1146 = vlaneseq
        %v1147 = vshrl.u32 %v1146, 7
        %v1148 = vsub.s32 0, %v1147
        %v1149 = vrot.slane %v1097, %v1148
        %v1150 = vmul.f32 %v1144, %v1149
        %v1151 = vmul.f32 %v1145, %v1149
        %v1152 = vadd.f32 %v1142, %v1150
        %v1153 = vadd.f32 %v1143, %v1151
        %v1154 = vld [vmem:[#allocation2 + $0x3] sm:$0xff]
        %v1155 = vld [vmem:[#allocation2 + $0xb] sm:$0x3f]
        %v1156 = vlaneseq
        %v1157 = vshrl.u32 %v1156, 7
        %v1158 = vsub.s32 0, %v1157
        %v1159 = vrot.slane %v1098, %v1158
        %v1160 = vmul.f32 %v1154, %v1159
        %v1161 = vmul.f32 %v1155, %v1159
        %v1162 = vadd.f32 %v1152, %v1160
        %v1163 = vadd.f32 %v1153, %v1161
        %v1164 = vld [vmem:[#allocation2 + $0x4] sm:$0xff]
        %v1165 = vld [vmem:[#allocation2 + $0xc] sm:$0x3f]
        %v1166 = vlaneseq
        %v1167 = vshrl.u32 %v1166, 7
        %v1168 = vsub.s32 0, %v1167
        %v1169 = vrot.slane %v1099, %v1168
        %v1170 = vmul.f32 %v1164, %v1169
        %v1171 = vmul.f32 %v1165, %v1169
        %v1172 = vadd.f32 %v1162, %v1170
        %v1173 = vadd.f32 %v1163, %v1171
        %s1174 = scalar_lea.vmem [#allocation2], 24
        %v1175 = vld [vmem:[%s1174] sm:$0xff]
        %v1176 = vld [vmem:[%s1174 + $0x8] sm:$0x3f]
        %v1177 = vlaneseq
        %v1178 = vshrl.u32 %v1177, 7
        %v1179 = vsub.s32 0, %v1178
        %v1180 = vrot.slane %v1101, %v1179
        %v1181 = vmul.f32 %v1175, %v1180
        %v1182 = vmul.f32 %v1176, %v1180
        %v1183 = vadd.f32 %v1172, %v1181
        %v1184 = vadd.f32 %v1173, %v1182
        %v1185 = vld [vmem:[%s1174 + $0x1] sm:$0xff]
        %v1186 = vld [vmem:[%s1174 + $0x9] sm:$0x3f]
        %v1187 = vlaneseq
        %v1188 = vshrl.u32 %v1187, 7
        %v1189 = vsub.s32 0, %v1188
        %v1190 = vrot.slane %v1102, %v1189
        %v1191 = vmul.f32 %v1185, %v1190
        %v1192 = vmul.f32 %v1186, %v1190
        %v1193 = vadd.f32 %v1183, %v1191
        %v1194 = vadd.f32 %v1184, %v1192
        %v1195 = vld [vmem:[%s1174 + $0x2] sm:$0xff]
        %v1196 = vld [vmem:[%s1174 + $0xa] sm:$0x3f]
        %v1197 = vlaneseq
        %v1198 = vshrl.u32 %v1197, 7
        %v1199 = vsub.s32 0, %v1198
        %v1200 = vrot.slane %v1103, %v1199
        %v1201 = vmul.f32 %v1195, %v1200
        %v1202 = vmul.f32 %v1196, %v1200
        %v1203 = vadd.f32 %v1193, %v1201
        %v1204 = vadd.f32 %v1194, %v1202
        %v1205 = vld [vmem:[%s1174 + $0x3] sm:$0xff]
        %v1206 = vld [vmem:[%s1174 + $0xb] sm:$0x3f]
        %v1207 = vlaneseq
        %v1208 = vshrl.u32 %v1207, 7
        %v1209 = vsub.s32 0, %v1208
        %v1210 = vrot.slane %v1104, %v1209
        %v1211 = vmul.f32 %v1205, %v1210
        %v1212 = vmul.f32 %v1206, %v1210
        %v1213 = vadd.f32 %v1203, %v1211
        %v1214 = vadd.f32 %v1204, %v1212
        %v1215 = vld [vmem:[%s1174 + $0x4] sm:$0xff]
        %v1216 = vld [vmem:[%s1174 + $0xc] sm:$0x3f]
        %v1217 = vlaneseq
        %v1218 = vshrl.u32 %v1217, 7
        %v1219 = vsub.s32 0, %v1218
        %v1220 = vrot.slane %v1105, %v1219
        %v1221 = vmul.f32 %v1215, %v1220
        %v1222 = vmul.f32 %v1216, %v1220
        %v1223 = vadd.f32 %v1213, %v1221
        %v1224 = vadd.f32 %v1214, %v1222
        %v1225 = vld [vmem:[%s1027] sm:$0xff]
        %v1226 = vld [vmem:[%s1027 + $0x8] sm:$0x3f]
        %v1227 = vlaneseq
        %v1228 = vshrl.u32 %v1227, 7
        %v1229 = vsub.s32 0, %v1228
        %v1230 = vrot.slane %v1107, %v1229
        %v1231 = vmul.f32 %v1225, %v1230
        %v1232 = vmul.f32 %v1226, %v1230
        %v1233 = vadd.f32 %v1223, %v1231
        %v1234 = vadd.f32 %v1224, %v1232
        %v1235 = vld [vmem:[%s1027 + $0x1] sm:$0xff]
        %v1236 = vld [vmem:[%s1027 + $0x9] sm:$0x3f]
        %v1237 = vlaneseq
        %v1238 = vshrl.u32 %v1237, 7
        %v1239 = vsub.s32 0, %v1238
        %v1240 = vrot.slane %v1108, %v1239
        %v1241 = vmul.f32 %v1235, %v1240
        %v1242 = vmul.f32 %v1236, %v1240
        %v1243 = vadd.f32 %v1233, %v1241
        %v1244 = vadd.f32 %v1234, %v1242
        %v1245 = vld [vmem:[%s1027 + $0x2] sm:$0xff]
        %v1246 = vld [vmem:[%s1027 + $0xa] sm:$0x3f]
        %v1247 = vlaneseq
        %v1248 = vshrl.u32 %v1247, 7
        %v1249 = vsub.s32 0, %v1248
        %v1250 = vrot.slane %v1109, %v1249
        %v1251 = vmul.f32 %v1245, %v1250
        %v1252 = vmul.f32 %v1246, %v1250
        %v1253 = vadd.f32 %v1243, %v1251
        %v1254 = vadd.f32 %v1244, %v1252
        %v1255 = vld [vmem:[%s1027 + $0x3] sm:$0xff]
        %v1256 = vld [vmem:[%s1027 + $0xb] sm:$0x3f]
        %v1257 = vlaneseq
        %v1258 = vshrl.u32 %v1257, 7
        %v1259 = vsub.s32 0, %v1258
        %v1260 = vrot.slane %v1110, %v1259
        %v1261 = vmul.f32 %v1255, %v1260
        %v1262 = vmul.f32 %v1256, %v1260
        %v1263 = vadd.f32 %v1253, %v1261
        %v1264 = vadd.f32 %v1254, %v1262
        %v1265 = vld [vmem:[%s1027 + $0x4] sm:$0xff]
        %v1266 = vld [vmem:[%s1027 + $0xc] sm:$0x3f]
        %v1267 = vlaneseq
        %v1268 = vshrl.u32 %v1267, 7
        %v1269 = vsub.s32 0, %v1268
        %v1270 = vrot.slane %v1111, %v1269
        %v1271 = vmul.f32 %v1265, %v1270
        %v1272 = vmul.f32 %v1266, %v1270
        %v1273 = vadd.f32 %v1263, %v1271
        %v1274 = vadd.f32 %v1264, %v1272
        %v1275 = vld [vmem:[%s1032] sm:$0xff]
        %v1276 = vld [vmem:[%s1032 + $0x8] sm:$0x3f]
        %v1277 = vlaneseq
        %v1278 = vshrl.u32 %v1277, 7
        %v1279 = vsub.s32 0, %v1278
        %v1280 = vrot.slane %v1113, %v1279
        %v1281 = vmul.f32 %v1275, %v1280
        %v1282 = vmul.f32 %v1276, %v1280
        %v1283 = vadd.f32 %v1273, %v1281
        %v1284 = vadd.f32 %v1274, %v1282
        %v1285 = vld [vmem:[%s1032 + $0x1] sm:$0xff]
        %v1286 = vld [vmem:[%s1032 + $0x9] sm:$0x3f]
        %v1287 = vlaneseq
        %v1288 = vshrl.u32 %v1287, 7
        %v1289 = vsub.s32 0, %v1288
        %v1290 = vrot.slane %v1114, %v1289
        %v1291 = vmul.f32 %v1285, %v1290
        %v1292 = vmul.f32 %v1286, %v1290
        %v1293 = vadd.f32 %v1283, %v1291
        %v1294 = vadd.f32 %v1284, %v1292
        %v1295 = vld [vmem:[%s1032 + $0x2] sm:$0xff]
        %v1296 = vld [vmem:[%s1032 + $0xa] sm:$0x3f]
        %v1297 = vlaneseq
        %v1298 = vshrl.u32 %v1297, 7
        %v1299 = vsub.s32 0, %v1298
        %v1300 = vrot.slane %v1115, %v1299
        %v1301 = vmul.f32 %v1295, %v1300
        %v1302 = vmul.f32 %v1296, %v1300
        %v1303 = vadd.f32 %v1293, %v1301
        %v1304 = vadd.f32 %v1294, %v1302
        %v1305 = vld [vmem:[%s1032 + $0x3] sm:$0xff]
        %v1306 = vld [vmem:[%s1032 + $0xb] sm:$0x3f]
        %v1307 = vlaneseq
        %v1308 = vshrl.u32 %v1307, 7
        %v1309 = vsub.s32 0, %v1308
        %v1310 = vrot.slane %v1116, %v1309
        %v1311 = vmul.f32 %v1305, %v1310
        %v1312 = vmul.f32 %v1306, %v1310
        %v1313 = vadd.f32 %v1303, %v1311
        %v1314 = vadd.f32 %v1304, %v1312
        %v1315 = vld [vmem:[%s1032 + $0x4] sm:$0xff]
        %v1316 = vld [vmem:[%s1032 + $0xc] sm:$0x3f]
        %v1317 = vlaneseq
        %v1318 = vshrl.u32 %v1317, 7
        %v1319 = vsub.s32 0, %v1318
        %v1320 = vrot.slane %v1117, %v1319
        %v1321 = vmul.f32 %v1315, %v1320
        %v1322 = vmul.f32 %v1316, %v1320
        %v1323 = vadd.f32 %v1313, %v1321
        %v1324 = vadd.f32 %v1314, %v1322
        %v1325 = vld [vmem:[%s1037] sm:$0xff]
        %v1326 = vld [vmem:[%s1037 + $0x8] sm:$0x3f]
        %v1327 = vlaneseq
        %v1328 = vshrl.u32 %v1327, 7
        %v1329 = vsub.s32 0, %v1328
        %v1330 = vrot.slane %v1119, %v1329
        %v1331 = vmul.f32 %v1325, %v1330
        %v1332 = vmul.f32 %v1326, %v1330
        %v1333 = vadd.f32 %v1323, %v1331
        %v1334 = vadd.f32 %v1324, %v1332
        %v1335 = vld [vmem:[%s1037 + $0x1] sm:$0xff]
        %v1336 = vld [vmem:[%s1037 + $0x9] sm:$0x3f]
        %v1337 = vlaneseq
        %v1338 = vshrl.u32 %v1337, 7
        %v1339 = vsub.s32 0, %v1338
        %v1340 = vrot.slane %v1120, %v1339
        %v1341 = vmul.f32 %v1335, %v1340
        %v1342 = vmul.f32 %v1336, %v1340
        %v1343 = vadd.f32 %v1333, %v1341
        %v1344 = vadd.f32 %v1334, %v1342
        %v1345 = vld [vmem:[%s1037 + $0x2] sm:$0xff]
        %v1346 = vld [vmem:[%s1037 + $0xa] sm:$0x3f]
        %v1347 = vlaneseq
        %v1348 = vshrl.u32 %v1347, 7
        %v1349 = vsub.s32 0, %v1348
        %v1350 = vrot.slane %v1121, %v1349
        %v1351 = vmul.f32 %v1345, %v1350
        %v1352 = vmul.f32 %v1346, %v1350
        %v1353 = vadd.f32 %v1343, %v1351
        %v1354 = vadd.f32 %v1344, %v1352
        %v1355 = vld [vmem:[%s1037 + $0x3] sm:$0xff]
        %v1356 = vld [vmem:[%s1037 + $0xb] sm:$0x3f]
        %v1357 = vlaneseq
        %v1358 = vshrl.u32 %v1357, 7
        %v1359 = vsub.s32 0, %v1358
        %v1360 = vrot.slane %v1122, %v1359
        %v1361 = vmul.f32 %v1355, %v1360
        %v1362 = vmul.f32 %v1356, %v1360
        %v1363 = vadd.f32 %v1353, %v1361
        %v1364 = vadd.f32 %v1354, %v1362
        %v1365 = vld [vmem:[%s1037 + $0x4] sm:$0xff]
        %v1366 = vld [vmem:[%s1037 + $0xc] sm:$0x3f]
        %v1367 = vlaneseq
        %v1368 = vshrl.u32 %v1367, 7
        %v1369 = vsub.s32 0, %v1368
        %v1370 = vrot.slane %v1123, %v1369
        %v1371 = vmul.f32 %v1365, %v1370
        %v1372 = vmul.f32 %v1366, %v1370
        %v1373 = vadd.f32 %v1363, %v1371
        %v1374 = vadd.f32 %v1364, %v1372
        %1375 = vst [vmem:[%s448] sm:$0xff] %v1373
        %1376 = vst [vmem:[%s448 + $0x8] sm:$0x3f] %v1374
        %vm1377 = vcmask 1045504
        %v1378 = vsel %vm1377, %v1374, 0.0
        %v1379 = vadd.f32 %v1373, %v1378
        %v1380 = vrot.slane %v1379, 4
        %v1381 = vadd.f32 %v1379, %v1380
        %v1382 = vrot.slane %v1381, 2
        %v1383 = vadd.f32 %v1381, %v1382
        %v1384 = vrot.slane %v1383, 1
        %v1385 = vadd.f32 %v1383, %v1384
        %v1386 = vadd.f32 %v1385, 0.0
        %v1387 = vmul.f32 %v1373, %v1373
        %v1388 = vmul.f32 %v1374, %v1374
        %v1389 = vsel %vm1377, %v1388, 0.0
        %v1390 = vadd.f32 %v1387, %v1389
        %v1391 = vrot.slane %v1390, 4
        %v1392 = vadd.f32 %v1390, %v1391
        %v1393 = vrot.slane %v1392, 2
        %v1394 = vadd.f32 %v1392, %v1393
        %v1395 = vrot.slane %v1394, 1
        %v1396 = vadd.f32 %v1394, %v1395
        %v1397 = vadd.f32 %v1396, 0.0
        %v1398 = vld [vmem:[%s1174] sm:$0xff]
        %v1399 = vld [vmem:[%s1174 + $0x8] sm:$0x3f]
        %v1400 = vmul.f32 %v1398, %v1129
        %v1401 = vmul.f32 %v1399, %v1129
        %v1402 = vadd.f32 %v1400, 0.0
        %v1403 = vadd.f32 %v1401, 0.0
        %v1404 = vld [vmem:[%s1174 + $0x1] sm:$0xff]
        %v1405 = vld [vmem:[%s1174 + $0x9] sm:$0x3f]
        %v1406 = vmul.f32 %v1404, %v1139
        %v1407 = vmul.f32 %v1405, %v1139
        %v1408 = vadd.f32 %v1402, %v1406
        %v1409 = vadd.f32 %v1403, %v1407
        %v1410 = vld [vmem:[%s1174 + $0x2] sm:$0xff]
        %v1411 = vld [vmem:[%s1174 + $0xa] sm:$0x3f]
        %v1412 = vmul.f32 %v1410, %v1149
        %v1413 = vmul.f32 %v1411, %v1149
        %v1414 = vadd.f32 %v1408, %v1412
        %v1415 = vadd.f32 %v1409, %v1413
        %v1416 = vld [vmem:[%s1174 + $0x3] sm:$0xff]
        %v1417 = vld [vmem:[%s1174 + $0xb] sm:$0x3f]
        %v1418 = vmul.f32 %v1416, %v1159
        %v1419 = vmul.f32 %v1417, %v1159
        %v1420 = vadd.f32 %v1414, %v1418
        %v1421 = vadd.f32 %v1415, %v1419
        %v1422 = vld [vmem:[%s1174 + $0x4] sm:$0xff]
        %v1423 = vld [vmem:[%s1174 + $0xc] sm:$0x3f]
        %v1424 = vmul.f32 %v1422, %v1169
        %v1425 = vmul.f32 %v1423, %v1169
        %v1426 = vadd.f32 %v1420, %v1424
        %v1427 = vadd.f32 %v1421, %v1425
        %v1428 = vld [vmem:[%s1027] sm:$0xff]
        %v1429 = vld [vmem:[%s1027 + $0x8] sm:$0x3f]
        %v1430 = vmul.f32 %v1428, %v1180
        %v1431 = vmul.f32 %v1429, %v1180
        %v1432 = vadd.f32 %v1426, %v1430
        %v1433 = vadd.f32 %v1427, %v1431
        %v1434 = vld [vmem:[%s1027 + $0x1] sm:$0xff]
        %v1435 = vld [vmem:[%s1027 + $0x9] sm:$0x3f]
        %v1436 = vmul.f32 %v1434, %v1190
        %v1437 = vmul.f32 %v1435, %v1190
        %v1438 = vadd.f32 %v1432, %v1436
        %v1439 = vadd.f32 %v1433, %v1437
        %v1440 = vld [vmem:[%s1027 + $0x2] sm:$0xff]
        %v1441 = vld [vmem:[%s1027 + $0xa] sm:$0x3f]
        %v1442 = vmul.f32 %v1440, %v1200
        %v1443 = vmul.f32 %v1441, %v1200
        %v1444 = vadd.f32 %v1438, %v1442
        %v1445 = vadd.f32 %v1439, %v1443
        %v1446 = vld [vmem:[%s1027 + $0x3] sm:$0xff]
        %v1447 = vld [vmem:[%s1027 + $0xb] sm:$0x3f]
        %v1448 = vmul.f32 %v1446, %v1210
        %v1449 = vmul.f32 %v1447, %v1210
        %v1450 = vadd.f32 %v1444, %v1448
        %v1451 = vadd.f32 %v1445, %v1449
        %v1452 = vld [vmem:[%s1027 + $0x4] sm:$0xff]
        %v1453 = vld [vmem:[%s1027 + $0xc] sm:$0x3f]
        %v1454 = vmul.f32 %v1452, %v1220
        %v1455 = vmul.f32 %v1453, %v1220
        %v1456 = vadd.f32 %v1450, %v1454
        %v1457 = vadd.f32 %v1451, %v1455
        %v1458 = vld [vmem:[%s1032] sm:$0xff]
        %v1459 = vld [vmem:[%s1032 + $0x8] sm:$0x3f]
        %v1460 = vmul.f32 %v1458, %v1230
        %v1461 = vmul.f32 %v1459, %v1230
        %v1462 = vadd.f32 %v1456, %v1460
        %v1463 = vadd.f32 %v1457, %v1461
        %v1464 = vld [vmem:[%s1032 + $0x1] sm:$0xff]
        %v1465 = vld [vmem:[%s1032 + $0x9] sm:$0x3f]
        %v1466 = vmul.f32 %v1464, %v1240
        %v1467 = vmul.f32 %v1465, %v1240
        %v1468 = vadd.f32 %v1462, %v1466
        %v1469 = vadd.f32 %v1463, %v1467
        %v1470 = vld [vmem:[%s1032 + $0x2] sm:$0xff]
        %v1471 = vld [vmem:[%s1032 + $0xa] sm:$0x3f]
        %v1472 = vmul.f32 %v1470, %v1250
        %v1473 = vmul.f32 %v1471, %v1250
        %v1474 = vadd.f32 %v1468, %v1472
        %v1475 = vadd.f32 %v1469, %v1473
        %v1476 = vld [vmem:[%s1032 + $0x3] sm:$0xff]
        %v1477 = vld [vmem:[%s1032 + $0xb] sm:$0x3f]
        %v1478 = vmul.f32 %v1476, %v1260
        %v1479 = vmul.f32 %v1477, %v1260
        %v1480 = vadd.f32 %v1474, %v1478
        %v1481 = vadd.f32 %v1475, %v1479
        %v1482 = vld [vmem:[%s1032 + $0x4] sm:$0xff]
        %v1483 = vld [vmem:[%s1032 + $0xc] sm:$0x3f]
        %v1484 = vmul.f32 %v1482, %v1270
        %v1485 = vmul.f32 %v1483, %v1270
        %v1486 = vadd.f32 %v1480, %v1484
        %v1487 = vadd.f32 %v1481, %v1485
        %v1488 = vld [vmem:[%s1037] sm:$0xff]
        %v1489 = vld [vmem:[%s1037 + $0x8] sm:$0x3f]
        %v1490 = vmul.f32 %v1488, %v1280
        %v1491 = vmul.f32 %v1489, %v1280
        %v1492 = vadd.f32 %v1486, %v1490
        %v1493 = vadd.f32 %v1487, %v1491
        %v1494 = vld [vmem:[%s1037 + $0x1] sm:$0xff]
        %v1495 = vld [vmem:[%s1037 + $0x9] sm:$0x3f]
        %v1496 = vmul.f32 %v1494, %v1290
        %v1497 = vmul.f32 %v1495, %v1290
        %v1498 = vadd.f32 %v1492, %v1496
        %v1499 = vadd.f32 %v1493, %v1497
        %v1500 = vld [vmem:[%s1037 + $0x2] sm:$0xff]
        %v1501 = vld [vmem:[%s1037 + $0xa] sm:$0x3f]
        %v1502 = vmul.f32 %v1500, %v1300
        %v1503 = vmul.f32 %v1501, %v1300
        %v1504 = vadd.f32 %v1498, %v1502
        %v1505 = vadd.f32 %v1499, %v1503
        %v1506 = vld [vmem:[%s1037 + $0x3] sm:$0xff]
        %v1507 = vld [vmem:[%s1037 + $0xb] sm:$0x3f]
        %v1508 = vmul.f32 %v1506, %v1310
        %v1509 = vmul.f32 %v1507, %v1310
        %v1510 = vadd.f32 %v1504, %v1508
        %v1511 = vadd.f32 %v1505, %v1509
        %v1512 = vld [vmem:[%s1037 + $0x4] sm:$0xff]
        %v1513 = vld [vmem:[%s1037 + $0xc] sm:$0x3f]
        %v1514 = vmul.f32 %v1512, %v1320
        %v1515 = vmul.f32 %v1513, %v1320
        %v1516 = vadd.f32 %v1510, %v1514
        %v1517 = vadd.f32 %v1511, %v1515
        %v1518 = vld [vmem:[%s1042] sm:$0xff]
        %v1519 = vld [vmem:[%s1042 + $0x8] sm:$0x3f]
        %v1520 = vmul.f32 %v1518, %v1330
        %v1521 = vmul.f32 %v1519, %v1330
        %v1522 = vadd.f32 %v1516, %v1520
        %v1523 = vadd.f32 %v1517, %v1521
        %v1524 = vld [vmem:[%s1042 + $0x1] sm:$0xff]
        %v1525 = vld [vmem:[%s1042 + $0x9] sm:$0x3f]
        %v1526 = vmul.f32 %v1524, %v1340
        %v1527 = vmul.f32 %v1525, %v1340
        %v1528 = vadd.f32 %v1522, %v1526
        %v1529 = vadd.f32 %v1523, %v1527
        %v1530 = vld [vmem:[%s1042 + $0x2] sm:$0xff]
        %v1531 = vld [vmem:[%s1042 + $0xa] sm:$0x3f]
        %v1532 = vmul.f32 %v1530, %v1350
        %v1533 = vmul.f32 %v1531, %v1350
        %v1534 = vadd.f32 %v1528, %v1532
        %v1535 = vadd.f32 %v1529, %v1533
        %v1536 = vld [vmem:[%s1042 + $0x3] sm:$0xff]
        %v1537 = vld [vmem:[%s1042 + $0xb] sm:$0x3f]
        %v1538 = vmul.f32 %v1536, %v1360
        %v1539 = vmul.f32 %v1537, %v1360
        %v1540 = vadd.f32 %v1534, %v1538
        %v1541 = vadd.f32 %v1535, %v1539
        %v1542 = vld [vmem:[%s1042 + $0x4] sm:$0xff]
        %v1543 = vld [vmem:[%s1042 + $0xc] sm:$0x3f]
        %v1544 = vmul.f32 %v1542, %v1370
        %v1545 = vmul.f32 %v1543, %v1370
        %v1546 = vadd.f32 %v1540, %v1544
        %v1547 = vadd.f32 %v1541, %v1545
        %s1548 = scalar_lea.vmem %s448, 16 [#allocation6]
        %1549 = vst [vmem:[%s1548] sm:$0xff] %v1546
        %1550 = vst [vmem:[%s1548 + $0x8] sm:$0x3f] %v1547
        %v1551 = vsel %vm1377, %v1547, 0.0
        %v1552 = vadd.f32 %v1546, %v1551
        %v1553 = vrot.slane %v1552, 4
        %v1554 = vadd.f32 %v1552, %v1553
        %v1555 = vrot.slane %v1554, 2
        %v1556 = vadd.f32 %v1554, %v1555
        %v1557 = vrot.slane %v1556, 1
        %v1558 = vadd.f32 %v1556, %v1557
        %v1559 = vadd.f32 %v1386, %v1558
        %v1560 = vmul.f32 %v1546, %v1546
        %v1561 = vmul.f32 %v1547, %v1547
        %v1562 = vsel %vm1377, %v1561, 0.0
        %v1563 = vadd.f32 %v1560, %v1562
        %v1564 = vrot.slane %v1563, 4
        %v1565 = vadd.f32 %v1563, %v1564
        %v1566 = vrot.slane %v1565, 2
        %v1567 = vadd.f32 %v1565, %v1566
        %v1568 = vrot.slane %v1567, 1
        %v1569 = vadd.f32 %v1567, %v1568
        %v1570 = vadd.f32 %v1397, %v1569
        %v1571 = vld [vmem:[%s1027] sm:$0xff]
        %v1572 = vld [vmem:[%s1027 + $0x8] sm:$0x3f]
        %v1573 = vmul.f32 %v1571, %v1129
        %v1574 = vmul.f32 %v1572, %v1129
        %v1575 = vadd.f32 %v1573, 0.0
        %v1576 = vadd.f32 %v1574, 0.0
        %v1577 = vld [vmem:[%s1027 + $0x1] sm:$0xff]
        %v1578 = vld [vmem:[%s1027 + $0x9] sm:$0x3f]
        %v1579 = vmul.f32 %v1577, %v1139
        %v1580 = vmul.f32 %v1578, %v1139
        %v1581 = vadd.f32 %v1575, %v1579
        %v1582 = vadd.f32 %v1576, %v1580
        %v1583 = vld [vmem:[%s1027 + $0x2] sm:$0xff]
        %v1584 = vld [vmem:[%s1027 + $0xa] sm:$0x3f]
        %v1585 = vmul.f32 %v1583, %v1149
        %v1586 = vmul.f32 %v1584, %v1149
        %v1587 = vadd.f32 %v1581, %v1585
        %v1588 = vadd.f32 %v1582, %v1586
        %v1589 = vld [vmem:[%s1027 + $0x3] sm:$0xff]
        %v1590 = vld [vmem:[%s1027 + $0xb] sm:$0x3f]
        %v1591 = vmul.f32 %v1589, %v1159
        %v1592 = vmul.f32 %v1590, %v1159
        %v1593 = vadd.f32 %v1587, %v1591
        %v1594 = vadd.f32 %v1588, %v1592
        %v1595 = vld [vmem:[%s1027 + $0x4] sm:$0xff]
        %v1596 = vld [vmem:[%s1027 + $0xc] sm:$0x3f]
        %v1597 = vmul.f32 %v1595, %v1169
        %v1598 = vmul.f32 %v1596, %v1169
        %v1599 = vadd.f32 %v1593, %v1597
        %v1600 = vadd.f32 %v1594, %v1598
        %v1601 = vld [vmem:[%s1032] sm:$0xff]
        %v1602 = vld [vmem:[%s1032 + $0x8] sm:$0x3f]
        %v1603 = vmul.f32 %v1601, %v1180
        %v1604 = vmul.f32 %v1602, %v1180
        %v1605 = vadd.f32 %v1599, %v1603
        %v1606 = vadd.f32 %v1600, %v1604
        %v1607 = vld [vmem:[%s1032 + $0x1] sm:$0xff]
        %v1608 = vld [vmem:[%s1032 + $0x9] sm:$0x3f]
        %v1609 = vmul.f32 %v1607, %v1190
        %v1610 = vmul.f32 %v1608, %v1190
        %v1611 = vadd.f32 %v1605, %v1609
        %v1612 = vadd.f32 %v1606, %v1610
        %v1613 = vld [vmem:[%s1032 + $0x2] sm:$0xff]
        %v1614 = vld [vmem:[%s1032 + $0xa] sm:$0x3f]
        %v1615 = vmul.f32 %v1613, %v1200
        %v1616 = vmul.f32 %v1614, %v1200
        %v1617 = vadd.f32 %v1611, %v1615
        %v1618 = vadd.f32 %v1612, %v1616
        %v1619 = vld [vmem:[%s1032 + $0x3] sm:$0xff]
        %v1620 = vld [vmem:[%s1032 + $0xb] sm:$0x3f]
        %v1621 = vmul.f32 %v1619, %v1210
        %v1622 = vmul.f32 %v1620, %v1210
        %v1623 = vadd.f32 %v1617, %v1621
        %v1624 = vadd.f32 %v1618, %v1622
        %v1625 = vld [vmem:[%s1032 + $0x4] sm:$0xff]
        %v1626 = vld [vmem:[%s1032 + $0xc] sm:$0x3f]
        %v1627 = vmul.f32 %v1625, %v1220
        %v1628 = vmul.f32 %v1626, %v1220
        %v1629 = vadd.f32 %v1623, %v1627
        %v1630 = vadd.f32 %v1624, %v1628
        %v1631 = vld [vmem:[%s1037] sm:$0xff]
        %v1632 = vld [vmem:[%s1037 + $0x8] sm:$0x3f]
        %v1633 = vmul.f32 %v1631, %v1230
        %v1634 = vmul.f32 %v1632, %v1230
        %v1635 = vadd.f32 %v1629, %v1633
        %v1636 = vadd.f32 %v1630, %v1634
        %v1637 = vld [vmem:[%s1037 + $0x1] sm:$0xff]
        %v1638 = vld [vmem:[%s1037 + $0x9] sm:$0x3f]
        %v1639 = vmul.f32 %v1637, %v1240
        %v1640 = vmul.f32 %v1638, %v1240
        %v1641 = vadd.f32 %v1635, %v1639
        %v1642 = vadd.f32 %v1636, %v1640
        %v1643 = vld [vmem:[%s1037 + $0x2] sm:$0xff]
        %v1644 = vld [vmem:[%s1037 + $0xa] sm:$0x3f]
        %v1645 = vmul.f32 %v1643, %v1250
        %v1646 = vmul.f32 %v1644, %v1250
        %v1647 = vadd.f32 %v1641, %v1645
        %v1648 = vadd.f32 %v1642, %v1646
        %v1649 = vld [vmem:[%s1037 + $0x3] sm:$0xff]
        %v1650 = vld [vmem:[%s1037 + $0xb] sm:$0x3f]
        %v1651 = vmul.f32 %v1649, %v1260
        %v1652 = vmul.f32 %v1650, %v1260
        %v1653 = vadd.f32 %v1647, %v1651
        %v1654 = vadd.f32 %v1648, %v1652
        %v1655 = vld [vmem:[%s1037 + $0x4] sm:$0xff]
        %v1656 = vld [vmem:[%s1037 + $0xc] sm:$0x3f]
        %v1657 = vmul.f32 %v1655, %v1270
        %v1658 = vmul.f32 %v1656, %v1270
        %v1659 = vadd.f32 %v1653, %v1657
        %v1660 = vadd.f32 %v1654, %v1658
        %v1661 = vld [vmem:[%s1042] sm:$0xff]
        %v1662 = vld [vmem:[%s1042 + $0x8] sm:$0x3f]
        %v1663 = vmul.f32 %v1661, %v1280
        %v1664 = vmul.f32 %v1662, %v1280
        %v1665 = vadd.f32 %v1659, %v1663
        %v1666 = vadd.f32 %v1660, %v1664
        %v1667 = vld [vmem:[%s1042 + $0x1] sm:$0xff]
        %v1668 = vld [vmem:[%s1042 + $0x9] sm:$0x3f]
        %v1669 = vmul.f32 %v1667, %v1290
        %v1670 = vmul.f32 %v1668, %v1290
        %v1671 = vadd.f32 %v1665, %v1669
        %v1672 = vadd.f32 %v1666, %v1670
        %v1673 = vld [vmem:[%s1042 + $0x2] sm:$0xff]
        %v1674 = vld [vmem:[%s1042 + $0xa] sm:$0x3f]
        %v1675 = vmul.f32 %v1673, %v1300
        %v1676 = vmul.f32 %v1674, %v1300
        %v1677 = vadd.f32 %v1671, %v1675
        %v1678 = vadd.f32 %v1672, %v1676
        %v1679 = vld [vmem:[%s1042 + $0x3] sm:$0xff]
        %v1680 = vld [vmem:[%s1042 + $0xb] sm:$0x3f]
        %v1681 = vmul.f32 %v1679, %v1310
        %v1682 = vmul.f32 %v1680, %v1310
        %v1683 = vadd.f32 %v1677, %v1681
        %v1684 = vadd.f32 %v1678, %v1682
        %v1685 = vld [vmem:[%s1042 + $0x4] sm:$0xff]
        %v1686 = vld [vmem:[%s1042 + $0xc] sm:$0x3f]
        %v1687 = vmul.f32 %v1685, %v1320
        %v1688 = vmul.f32 %v1686, %v1320
        %v1689 = vadd.f32 %v1683, %v1687
        %v1690 = vadd.f32 %v1684, %v1688
        %v1691 = vld [vmem:[%s1047] sm:$0xff]
        %v1692 = vld [vmem:[%s1047 + $0x8] sm:$0x3f]
        %v1693 = vmul.f32 %v1691, %v1330
        %v1694 = vmul.f32 %v1692, %v1330
        %v1695 = vadd.f32 %v1689, %v1693
        %v1696 = vadd.f32 %v1690, %v1694
        %v1697 = vld [vmem:[%s1047 + $0x1] sm:$0xff]
        %v1698 = vld [vmem:[%s1047 + $0x9] sm:$0x3f]
        %v1699 = vmul.f32 %v1697, %v1340
        %v1700 = vmul.f32 %v1698, %v1340
        %v1701 = vadd.f32 %v1695, %v1699
        %v1702 = vadd.f32 %v1696, %v1700
        %v1703 = vld [vmem:[%s1047 + $0x2] sm:$0xff]
        %v1704 = vld [vmem:[%s1047 + $0xa] sm:$0x3f]
        %v1705 = vmul.f32 %v1703, %v1350
        %v1706 = vmul.f32 %v1704, %v1350
        %v1707 = vadd.f32 %v1701, %v1705
        %v1708 = vadd.f32 %v1702, %v1706
        %v1709 = vld [vmem:[%s1047 + $0x3] sm:$0xff]
        %v1710 = vld [vmem:[%s1047 + $0xb] sm:$0x3f]
        %v1711 = vmul.f32 %v1709, %v1360
        %v1712 = vmul.f32 %v1710, %v1360
        %v1713 = vadd.f32 %v1707, %v1711
        %v1714 = vadd.f32 %v1708, %v1712
        %v1715 = vld [vmem:[%s1047 + $0x4] sm:$0xff]
        %v1716 = vld [vmem:[%s1047 + $0xc] sm:$0x3f]
        %v1717 = vmul.f32 %v1715, %v1370
        %v1718 = vmul.f32 %v1716, %v1370
        %v1719 = vadd.f32 %v1713, %v1717
        %v1720 = vadd.f32 %v1714, %v1718
        %s1721 = scalar_lea.vmem %s448, 32 [#allocation6]
        %1722 = vst [vmem:[%s1721] sm:$0xff] %v1719
        %1723 = vst [vmem:[%s1721 + $0x8] sm:$0x3f] %v1720
        %v1724 = vsel %vm1377, %v1720, 0.0
        %v1725 = vadd.f32 %v1719, %v1724
        %v1726 = vrot.slane %v1725, 4
        %v1727 = vadd.f32 %v1725, %v1726
        %v1728 = vrot.slane %v1727, 2
        %v1729 = vadd.f32 %v1727, %v1728
        %v1730 = vrot.slane %v1729, 1
        %v1731 = vadd.f32 %v1729, %v1730
        %v1732 = vadd.f32 %v1559, %v1731
        %v1733 = vmul.f32 %v1719, %v1719
        %v1734 = vmul.f32 %v1720, %v1720
        %v1735 = vsel %vm1377, %v1734, 0.0
        %v1736 = vadd.f32 %v1733, %v1735
        %v1737 = vrot.slane %v1736, 4
        %v1738 = vadd.f32 %v1736, %v1737
        %v1739 = vrot.slane %v1738, 2
        %v1740 = vadd.f32 %v1738, %v1739
        %v1741 = vrot.slane %v1740, 1
        %v1742 = vadd.f32 %v1740, %v1741
        %v1743 = vadd.f32 %v1570, %v1742
        %v1744 = vld [vmem:[%s1032] sm:$0xff]
        %v1745 = vld [vmem:[%s1032 + $0x8] sm:$0x3f]
        %v1746 = vmul.f32 %v1744, %v1129
        %v1747 = vmul.f32 %v1745, %v1129
        %v1748 = vadd.f32 %v1746, 0.0
        %v1749 = vadd.f32 %v1747, 0.0
        %v1750 = vld [vmem:[%s1032 + $0x1] sm:$0xff]
        %v1751 = vld [vmem:[%s1032 + $0x9] sm:$0x3f]
        %v1752 = vmul.f32 %v1750, %v1139
        %v1753 = vmul.f32 %v1751, %v1139
        %v1754 = vadd.f32 %v1748, %v1752
        %v1755 = vadd.f32 %v1749, %v1753
        %v1756 = vld [vmem:[%s1032 + $0x2] sm:$0xff]
        %v1757 = vld [vmem:[%s1032 + $0xa] sm:$0x3f]
        %v1758 = vmul.f32 %v1756, %v1149
        %v1759 = vmul.f32 %v1757, %v1149
        %v1760 = vadd.f32 %v1754, %v1758
        %v1761 = vadd.f32 %v1755, %v1759
        %v1762 = vld [vmem:[%s1032 + $0x3] sm:$0xff]
        %v1763 = vld [vmem:[%s1032 + $0xb] sm:$0x3f]
        %v1764 = vmul.f32 %v1762, %v1159
        %v1765 = vmul.f32 %v1763, %v1159
        %v1766 = vadd.f32 %v1760, %v1764
        %v1767 = vadd.f32 %v1761, %v1765
        %v1768 = vld [vmem:[%s1032 + $0x4] sm:$0xff]
        %v1769 = vld [vmem:[%s1032 + $0xc] sm:$0x3f]
        %v1770 = vmul.f32 %v1768, %v1169
        %v1771 = vmul.f32 %v1769, %v1169
        %v1772 = vadd.f32 %v1766, %v1770
        %v1773 = vadd.f32 %v1767, %v1771
        %v1774 = vld [vmem:[%s1037] sm:$0xff]
        %v1775 = vld [vmem:[%s1037 + $0x8] sm:$0x3f]
        %v1776 = vmul.f32 %v1774, %v1180
        %v1777 = vmul.f32 %v1775, %v1180
        %v1778 = vadd.f32 %v1772, %v1776
        %v1779 = vadd.f32 %v1773, %v1777
        %v1780 = vld [vmem:[%s1037 + $0x1] sm:$0xff]
        %v1781 = vld [vmem:[%s1037 + $0x9] sm:$0x3f]
        %v1782 = vmul.f32 %v1780, %v1190
        %v1783 = vmul.f32 %v1781, %v1190
        %v1784 = vadd.f32 %v1778, %v1782
        %v1785 = vadd.f32 %v1779, %v1783
        %v1786 = vld [vmem:[%s1037 + $0x2] sm:$0xff]
        %v1787 = vld [vmem:[%s1037 + $0xa] sm:$0x3f]
        %v1788 = vmul.f32 %v1786, %v1200
        %v1789 = vmul.f32 %v1787, %v1200
        %v1790 = vadd.f32 %v1784, %v1788
        %v1791 = vadd.f32 %v1785, %v1789
        %v1792 = vld [vmem:[%s1037 + $0x3] sm:$0xff]
        %v1793 = vld [vmem:[%s1037 + $0xb] sm:$0x3f]
        %v1794 = vmul.f32 %v1792, %v1210
        %v1795 = vmul.f32 %v1793, %v1210
        %v1796 = vadd.f32 %v1790, %v1794
        %v1797 = vadd.f32 %v1791, %v1795
        %v1798 = vld [vmem:[%s1037 + $0x4] sm:$0xff]
        %v1799 = vld [vmem:[%s1037 + $0xc] sm:$0x3f]
        %v1800 = vmul.f32 %v1798, %v1220
        %v1801 = vmul.f32 %v1799, %v1220
        %v1802 = vadd.f32 %v1796, %v1800
        %v1803 = vadd.f32 %v1797, %v1801
        %v1804 = vld [vmem:[%s1042] sm:$0xff]
        %v1805 = vld [vmem:[%s1042 + $0x8] sm:$0x3f]
        %v1806 = vmul.f32 %v1804, %v1230
        %v1807 = vmul.f32 %v1805, %v1230
        %v1808 = vadd.f32 %v1802, %v1806
        %v1809 = vadd.f32 %v1803, %v1807
        %v1810 = vld [vmem:[%s1042 + $0x1] sm:$0xff]
        %v1811 = vld [vmem:[%s1042 + $0x9] sm:$0x3f]
        %v1812 = vmul.f32 %v1810, %v1240
        %v1813 = vmul.f32 %v1811, %v1240
        %v1814 = vadd.f32 %v1808, %v1812
        %v1815 = vadd.f32 %v1809, %v1813
        %v1816 = vld [vmem:[%s1042 + $0x2] sm:$0xff]
        %v1817 = vld [vmem:[%s1042 + $0xa] sm:$0x3f]
        %v1818 = vmul.f32 %v1816, %v1250
        %v1819 = vmul.f32 %v1817, %v1250
        %v1820 = vadd.f32 %v1814, %v1818
        %v1821 = vadd.f32 %v1815, %v1819
        %v1822 = vld [vmem:[%s1042 + $0x3] sm:$0xff]
        %v1823 = vld [vmem:[%s1042 + $0xb] sm:$0x3f]
        %v1824 = vmul.f32 %v1822, %v1260
        %v1825 = vmul.f32 %v1823, %v1260
        %v1826 = vadd.f32 %v1820, %v1824
        %v1827 = vadd.f32 %v1821, %v1825
        %v1828 = vld [vmem:[%s1042 + $0x4] sm:$0xff]
        %v1829 = vld [vmem:[%s1042 + $0xc] sm:$0x3f]
        %v1830 = vmul.f32 %v1828, %v1270
        %v1831 = vmul.f32 %v1829, %v1270
        %v1832 = vadd.f32 %v1826, %v1830
        %v1833 = vadd.f32 %v1827, %v1831
        %v1834 = vld [vmem:[%s1047] sm:$0xff]
        %v1835 = vld [vmem:[%s1047 + $0x8] sm:$0x3f]
        %v1836 = vmul.f32 %v1834, %v1280
        %v1837 = vmul.f32 %v1835, %v1280
        %v1838 = vadd.f32 %v1832, %v1836
        %v1839 = vadd.f32 %v1833, %v1837
        %v1840 = vld [vmem:[%s1047 + $0x1] sm:$0xff]
        %v1841 = vld [vmem:[%s1047 + $0x9] sm:$0x3f]
        %v1842 = vmul.f32 %v1840, %v1290
        %v1843 = vmul.f32 %v1841, %v1290
        %v1844 = vadd.f32 %v1838, %v1842
        %v1845 = vadd.f32 %v1839, %v1843
        %v1846 = vld [vmem:[%s1047 + $0x2] sm:$0xff]
        %v1847 = vld [vmem:[%s1047 + $0xa] sm:$0x3f]
        %v1848 = vmul.f32 %v1846, %v1300
        %v1849 = vmul.f32 %v1847, %v1300
        %v1850 = vadd.f32 %v1844, %v1848
        %v1851 = vadd.f32 %v1845, %v1849
        %v1852 = vld [vmem:[%s1047 + $0x3] sm:$0xff]
        %v1853 = vld [vmem:[%s1047 + $0xb] sm:$0x3f]
        %v1854 = vmul.f32 %v1852, %v1310
        %v1855 = vmul.f32 %v1853, %v1310
        %v1856 = vadd.f32 %v1850, %v1854
        %v1857 = vadd.f32 %v1851, %v1855
        %v1858 = vld [vmem:[%s1047 + $0x4] sm:$0xff]
        %v1859 = vld [vmem:[%s1047 + $0xc] sm:$0x3f]
        %v1860 = vmul.f32 %v1858, %v1320
        %v1861 = vmul.f32 %v1859, %v1320
        %v1862 = vadd.f32 %v1856, %v1860
        %v1863 = vadd.f32 %v1857, %v1861
        %v1864 = vld [vmem:[%s1052] sm:$0xff]
        %v1865 = vld [vmem:[%s1052 + $0x8] sm:$0x3f]
        %v1866 = vmul.f32 %v1864, %v1330
        %v1867 = vmul.f32 %v1865, %v1330
        %v1868 = vadd.f32 %v1862, %v1866
        %v1869 = vadd.f32 %v1863, %v1867
        %v1870 = vld [vmem:[%s1052 + $0x1] sm:$0xff]
        %v1871 = vld [vmem:[%s1052 + $0x9] sm:$0x3f]
        %v1872 = vmul.f32 %v1870, %v1340
        %v1873 = vmul.f32 %v1871, %v1340
        %v1874 = vadd.f32 %v1868, %v1872
        %v1875 = vadd.f32 %v1869, %v1873
        %v1876 = vld [vmem:[%s1052 + $0x2] sm:$0xff]
        %v1877 = vld [vmem:[%s1052 + $0xa] sm:$0x3f]
        %v1878 = vmul.f32 %v1876, %v1350
        %v1879 = vmul.f32 %v1877, %v1350
        %v1880 = vadd.f32 %v1874, %v1878
        %v1881 = vadd.f32 %v1875, %v1879
        %v1882 = vld [vmem:[%s1052 + $0x3] sm:$0xff]
        %v1883 = vld [vmem:[%s1052 + $0xb] sm:$0x3f]
        %v1884 = vmul.f32 %v1882, %v1360
        %v1885 = vmul.f32 %v1883, %v1360
        %v1886 = vadd.f32 %v1880, %v1884
        %v1887 = vadd.f32 %v1881, %v1885
        %v1888 = vld [vmem:[%s1052 + $0x4] sm:$0xff]
        %v1889 = vld [vmem:[%s1052 + $0xc] sm:$0x3f]
        %v1890 = vmul.f32 %v1888, %v1370
        %v1891 = vmul.f32 %v1889, %v1370
        %v1892 = vadd.f32 %v1886, %v1890
        %v1893 = vadd.f32 %v1887, %v1891
        %s1894 = scalar_lea.vmem %s448, 48 [#allocation6]
        %1895 = vst [vmem:[%s1894] sm:$0xff] %v1892
        %1896 = vst [vmem:[%s1894 + $0x8] sm:$0x3f] %v1893
        %v1897 = vsel %vm1377, %v1893, 0.0
        %v1898 = vadd.f32 %v1892, %v1897
        %v1899 = vrot.slane %v1898, 4
        %v1900 = vadd.f32 %v1898, %v1899
        %v1901 = vrot.slane %v1900, 2
        %v1902 = vadd.f32 %v1900, %v1901
        %v1903 = vrot.slane %v1902, 1
        %v1904 = vadd.f32 %v1902, %v1903
        %v1905 = vadd.f32 %v1732, %v1904
        %v1906 = vmul.f32 %v1892, %v1892
        %v1907 = vmul.f32 %v1893, %v1893
        %v1908 = vsel %vm1377, %v1907, 0.0
        %v1909 = vadd.f32 %v1906, %v1908
        %v1910 = vrot.slane %v1909, 4
        %v1911 = vadd.f32 %v1909, %v1910
        %v1912 = vrot.slane %v1911, 2
        %v1913 = vadd.f32 %v1911, %v1912
        %v1914 = vrot.slane %v1913, 1
        %v1915 = vadd.f32 %v1913, %v1914
        %v1916 = vadd.f32 %v1743, %v1915
        %v1917 = vld [vmem:[%s1037] sm:$0xff]
        %v1918 = vld [vmem:[%s1037 + $0x8] sm:$0x3f]
        %v1919 = vmul.f32 %v1917, %v1129
        %v1920 = vmul.f32 %v1918, %v1129
        %v1921 = vadd.f32 %v1919, 0.0
        %v1922 = vadd.f32 %v1920, 0.0
        %v1923 = vld [vmem:[%s1037 + $0x1] sm:$0xff]
        %v1924 = vld [vmem:[%s1037 + $0x9] sm:$0x3f]
        %v1925 = vmul.f32 %v1923, %v1139
        %v1926 = vmul.f32 %v1924, %v1139
        %v1927 = vadd.f32 %v1921, %v1925
        %v1928 = vadd.f32 %v1922, %v1926
        %v1929 = vld [vmem:[%s1037 + $0x2] sm:$0xff]
        %v1930 = vld [vmem:[%s1037 + $0xa] sm:$0x3f]
        %v1931 = vmul.f32 %v1929, %v1149
        %v1932 = vmul.f32 %v1930, %v1149
        %v1933 = vadd.f32 %v1927, %v1931
        %v1934 = vadd.f32 %v1928, %v1932
        %v1935 = vld [vmem:[%s1037 + $0x3] sm:$0xff]
        %v1936 = vld [vmem:[%s1037 + $0xb] sm:$0x3f]
        %v1937 = vmul.f32 %v1935, %v1159
        %v1938 = vmul.f32 %v1936, %v1159
        %v1939 = vadd.f32 %v1933, %v1937
        %v1940 = vadd.f32 %v1934, %v1938
        %v1941 = vld [vmem:[%s1037 + $0x4] sm:$0xff]
        %v1942 = vld [vmem:[%s1037 + $0xc] sm:$0x3f]
        %v1943 = vmul.f32 %v1941, %v1169
        %v1944 = vmul.f32 %v1942, %v1169
        %v1945 = vadd.f32 %v1939, %v1943
        %v1946 = vadd.f32 %v1940, %v1944
        %v1947 = vld [vmem:[%s1042] sm:$0xff]
        %v1948 = vld [vmem:[%s1042 + $0x8] sm:$0x3f]
        %v1949 = vmul.f32 %v1947, %v1180
        %v1950 = vmul.f32 %v1948, %v1180
        %v1951 = vadd.f32 %v1945, %v1949
        %v1952 = vadd.f32 %v1946, %v1950
        %v1953 = vld [vmem:[%s1042 + $0x1] sm:$0xff]
        %v1954 = vld [vmem:[%s1042 + $0x9] sm:$0x3f]
        %v1955 = vmul.f32 %v1953, %v1190
        %v1956 = vmul.f32 %v1954, %v1190
        %v1957 = vadd.f32 %v1951, %v1955
        %v1958 = vadd.f32 %v1952, %v1956
        %v1959 = vld [vmem:[%s1042 + $0x2] sm:$0xff]
        %v1960 = vld [vmem:[%s1042 + $0xa] sm:$0x3f]
        %v1961 = vmul.f32 %v1959, %v1200
        %v1962 = vmul.f32 %v1960, %v1200
        %v1963 = vadd.f32 %v1957, %v1961
        %v1964 = vadd.f32 %v1958, %v1962
        %v1965 = vld [vmem:[%s1042 + $0x3] sm:$0xff]
        %v1966 = vld [vmem:[%s1042 + $0xb] sm:$0x3f]
        %v1967 = vmul.f32 %v1965, %v1210
        %v1968 = vmul.f32 %v1966, %v1210
        %v1969 = vadd.f32 %v1963, %v1967
        %v1970 = vadd.f32 %v1964, %v1968
        %v1971 = vld [vmem:[%s1042 + $0x4] sm:$0xff]
        %v1972 = vld [vmem:[%s1042 + $0xc] sm:$0x3f]
        %v1973 = vmul.f32 %v1971, %v1220
        %v1974 = vmul.f32 %v1972, %v1220
        %v1975 = vadd.f32 %v1969, %v1973
        %v1976 = vadd.f32 %v1970, %v1974
        %v1977 = vld [vmem:[%s1047] sm:$0xff]
        %v1978 = vld [vmem:[%s1047 + $0x8] sm:$0x3f]
        %v1979 = vmul.f32 %v1977, %v1230
        %v1980 = vmul.f32 %v1978, %v1230
        %v1981 = vadd.f32 %v1975, %v1979
        %v1982 = vadd.f32 %v1976, %v1980
        %v1983 = vld [vmem:[%s1047 + $0x1] sm:$0xff]
        %v1984 = vld [vmem:[%s1047 + $0x9] sm:$0x3f]
        %v1985 = vmul.f32 %v1983, %v1240
        %v1986 = vmul.f32 %v1984, %v1240
        %v1987 = vadd.f32 %v1981, %v1985
        %v1988 = vadd.f32 %v1982, %v1986
        %v1989 = vld [vmem:[%s1047 + $0x2] sm:$0xff]
        %v1990 = vld [vmem:[%s1047 + $0xa] sm:$0x3f]
        %v1991 = vmul.f32 %v1989, %v1250
        %v1992 = vmul.f32 %v1990, %v1250
        %v1993 = vadd.f32 %v1987, %v1991
        %v1994 = vadd.f32 %v1988, %v1992
        %v1995 = vld [vmem:[%s1047 + $0x3] sm:$0xff]
        %v1996 = vld [vmem:[%s1047 + $0xb] sm:$0x3f]
        %v1997 = vmul.f32 %v1995, %v1260
        %v1998 = vmul.f32 %v1996, %v1260
        %v1999 = vadd.f32 %v1993, %v1997
        %v2000 = vadd.f32 %v1994, %v1998
        %v2001 = vld [vmem:[%s1047 + $0x4] sm:$0xff]
        %v2002 = vld [vmem:[%s1047 + $0xc] sm:$0x3f]
        %v2003 = vmul.f32 %v2001, %v1270
        %v2004 = vmul.f32 %v2002, %v1270
        %v2005 = vadd.f32 %v1999, %v2003
        %v2006 = vadd.f32 %v2000, %v2004
        %v2007 = vld [vmem:[%s1052] sm:$0xff]
        %v2008 = vld [vmem:[%s1052 + $0x8] sm:$0x3f]
        %v2009 = vmul.f32 %v2007, %v1280
        %v2010 = vmul.f32 %v2008, %v1280
        %v2011 = vadd.f32 %v2005, %v2009
        %v2012 = vadd.f32 %v2006, %v2010
        %v2013 = vld [vmem:[%s1052 + $0x1] sm:$0xff]
        %v2014 = vld [vmem:[%s1052 + $0x9] sm:$0x3f]
        %v2015 = vmul.f32 %v2013, %v1290
        %v2016 = vmul.f32 %v2014, %v1290
        %v2017 = vadd.f32 %v2011, %v2015
        %v2018 = vadd.f32 %v2012, %v2016
        %v2019 = vld [vmem:[%s1052 + $0x2] sm:$0xff]
        %v2020 = vld [vmem:[%s1052 + $0xa] sm:$0x3f]
        %v2021 = vmul.f32 %v2019, %v1300
        %v2022 = vmul.f32 %v2020, %v1300
        %v2023 = vadd.f32 %v2017, %v2021
        %v2024 = vadd.f32 %v2018, %v2022
        %v2025 = vld [vmem:[%s1052 + $0x3] sm:$0xff]
        %v2026 = vld [vmem:[%s1052 + $0xb] sm:$0x3f]
        %v2027 = vmul.f32 %v2025, %v1310
        %v2028 = vmul.f32 %v2026, %v1310
        %v2029 = vadd.f32 %v2023, %v2027
        %v2030 = vadd.f32 %v2024, %v2028
        %v2031 = vld [vmem:[%s1052 + $0x4] sm:$0xff]
        %v2032 = vld [vmem:[%s1052 + $0xc] sm:$0x3f]
        %v2033 = vmul.f32 %v2031, %v1320
        %v2034 = vmul.f32 %v2032, %v1320
        %v2035 = vadd.f32 %v2029, %v2033
        %v2036 = vadd.f32 %v2030, %v2034
        %v2037 = vld [vmem:[%s1057] sm:$0xff]
        %v2038 = vld [vmem:[%s1057 + $0x8] sm:$0x3f]
        %v2039 = vmul.f32 %v2037, %v1330
        %v2040 = vmul.f32 %v2038, %v1330
        %v2041 = vadd.f32 %v2035, %v2039
        %v2042 = vadd.f32 %v2036, %v2040
        %v2043 = vld [vmem:[%s1057 + $0x1] sm:$0xff]
        %v2044 = vld [vmem:[%s1057 + $0x9] sm:$0x3f]
        %v2045 = vmul.f32 %v2043, %v1340
        %v2046 = vmul.f32 %v2044, %v1340
        %v2047 = vadd.f32 %v2041, %v2045
        %v2048 = vadd.f32 %v2042, %v2046
        %v2049 = vld [vmem:[%s1057 + $0x2] sm:$0xff]
        %v2050 = vld [vmem:[%s1057 + $0xa] sm:$0x3f]
        %v2051 = vmul.f32 %v2049, %v1350
        %v2052 = vmul.f32 %v2050, %v1350
        %v2053 = vadd.f32 %v2047, %v2051
        %v2054 = vadd.f32 %v2048, %v2052
        %v2055 = vld [vmem:[%s1057 + $0x3] sm:$0xff]
        %v2056 = vld [vmem:[%s1057 + $0xb] sm:$0x3f]
        %v2057 = vmul.f32 %v2055, %v1360
        %v2058 = vmul.f32 %v2056, %v1360
        %v2059 = vadd.f32 %v2053, %v2057
        %v2060 = vadd.f32 %v2054, %v2058
        %v2061 = vld [vmem:[%s1057 + $0x4] sm:$0xff]
        %v2062 = vld [vmem:[%s1057 + $0xc] sm:$0x3f]
        %v2063 = vmul.f32 %v2061, %v1370
        %v2064 = vmul.f32 %v2062, %v1370
        %v2065 = vadd.f32 %v2059, %v2063
        %v2066 = vadd.f32 %v2060, %v2064
        %s2067 = scalar_lea.vmem %s448, 64 [#allocation6]
        %2068 = vst [vmem:[%s2067] sm:$0xff] %v2065
        %2069 = vst [vmem:[%s2067 + $0x8] sm:$0x3f] %v2066
        %v2070 = vsel %vm1377, %v2066, 0.0
        %v2071 = vadd.f32 %v2065, %v2070
        %v2072 = vrot.slane %v2071, 4
        %v2073 = vadd.f32 %v2071, %v2072
        %v2074 = vrot.slane %v2073, 2
        %v2075 = vadd.f32 %v2073, %v2074
        %v2076 = vrot.slane %v2075, 1
        %v2077 = vadd.f32 %v2075, %v2076
        %v2078 = vadd.f32 %v1905, %v2077
        %v2079 = vmul.f32 %v2065, %v2065
        %v2080 = vmul.f32 %v2066, %v2066
        %v2081 = vsel %vm1377, %v2080, 0.0
        %v2082 = vadd.f32 %v2079, %v2081
        %v2083 = vrot.slane %v2082, 4
        %v2084 = vadd.f32 %v2082, %v2083
        %v2085 = vrot.slane %v2084, 2
        %v2086 = vadd.f32 %v2084, %v2085
        %v2087 = vrot.slane %v2086, 1
        %v2088 = vadd.f32 %v2086, %v2087
        %v2089 = vadd.f32 %v1916, %v2088
        %v2090 = vld [vmem:[%s1042] sm:$0xff]
        %v2091 = vld [vmem:[%s1042 + $0x8] sm:$0x3f]
        %v2092 = vmul.f32 %v2090, %v1129
        %v2093 = vmul.f32 %v2091, %v1129
        %v2094 = vadd.f32 %v2092, 0.0
        %v2095 = vadd.f32 %v2093, 0.0
        %v2096 = vld [vmem:[%s1042 + $0x1] sm:$0xff]
        %v2097 = vld [vmem:[%s1042 + $0x9] sm:$0x3f]
        %v2098 = vmul.f32 %v2096, %v1139
        %v2099 = vmul.f32 %v2097, %v1139
        %v2100 = vadd.f32 %v2094, %v2098
        %v2101 = vadd.f32 %v2095, %v2099
        %v2102 = vld [vmem:[%s1042 + $0x2] sm:$0xff]
        %v2103 = vld [vmem:[%s1042 + $0xa] sm:$0x3f]
        %v2104 = vmul.f32 %v2102, %v1149
        %v2105 = vmul.f32 %v2103, %v1149
        %v2106 = vadd.f32 %v2100, %v2104
        %v2107 = vadd.f32 %v2101, %v2105
        %v2108 = vld [vmem:[%s1042 + $0x3] sm:$0xff]
        %v2109 = vld [vmem:[%s1042 + $0xb] sm:$0x3f]
        %v2110 = vmul.f32 %v2108, %v1159
        %v2111 = vmul.f32 %v2109, %v1159
        %v2112 = vadd.f32 %v2106, %v2110
        %v2113 = vadd.f32 %v2107, %v2111
        %v2114 = vld [vmem:[%s1042 + $0x4] sm:$0xff]
        %v2115 = vld [vmem:[%s1042 + $0xc] sm:$0x3f]
        %v2116 = vmul.f32 %v2114, %v1169
        %v2117 = vmul.f32 %v2115, %v1169
        %v2118 = vadd.f32 %v2112, %v2116
        %v2119 = vadd.f32 %v2113, %v2117
        %v2120 = vld [vmem:[%s1047] sm:$0xff]
        %v2121 = vld [vmem:[%s1047 + $0x8] sm:$0x3f]
        %v2122 = vmul.f32 %v2120, %v1180
        %v2123 = vmul.f32 %v2121, %v1180
        %v2124 = vadd.f32 %v2118, %v2122
        %v2125 = vadd.f32 %v2119, %v2123
        %v2126 = vld [vmem:[%s1047 + $0x1] sm:$0xff]
        %v2127 = vld [vmem:[%s1047 + $0x9] sm:$0x3f]
        %v2128 = vmul.f32 %v2126, %v1190
        %v2129 = vmul.f32 %v2127, %v1190
        %v2130 = vadd.f32 %v2124, %v2128
        %v2131 = vadd.f32 %v2125, %v2129
        %v2132 = vld [vmem:[%s1047 + $0x2] sm:$0xff]
        %v2133 = vld [vmem:[%s1047 + $0xa] sm:$0x3f]
        %v2134 = vmul.f32 %v2132, %v1200
        %v2135 = vmul.f32 %v2133, %v1200
        %v2136 = vadd.f32 %v2130, %v2134
        %v2137 = vadd.f32 %v2131, %v2135
        %v2138 = vld [vmem:[%s1047 + $0x3] sm:$0xff]
        %v2139 = vld [vmem:[%s1047 + $0xb] sm:$0x3f]
        %v2140 = vmul.f32 %v2138, %v1210
        %v2141 = vmul.f32 %v2139, %v1210
        %v2142 = vadd.f32 %v2136, %v2140
        %v2143 = vadd.f32 %v2137, %v2141
        %v2144 = vld [vmem:[%s1047 + $0x4] sm:$0xff]
        %v2145 = vld [vmem:[%s1047 + $0xc] sm:$0x3f]
        %v2146 = vmul.f32 %v2144, %v1220
        %v2147 = vmul.f32 %v2145, %v1220
        %v2148 = vadd.f32 %v2142, %v2146
        %v2149 = vadd.f32 %v2143, %v2147
        %v2150 = vld [vmem:[%s1052] sm:$0xff]
        %v2151 = vld [vmem:[%s1052 + $0x8] sm:$0x3f]
        %v2152 = vmul.f32 %v2150, %v1230
        %v2153 = vmul.f32 %v2151, %v1230
        %v2154 = vadd.f32 %v2148, %v2152
        %v2155 = vadd.f32 %v2149, %v2153
        %v2156 = vld [vmem:[%s1052 + $0x1] sm:$0xff]
        %v2157 = vld [vmem:[%s1052 + $0x9] sm:$0x3f]
        %v2158 = vmul.f32 %v2156, %v1240
        %v2159 = vmul.f32 %v2157, %v1240
        %v2160 = vadd.f32 %v2154, %v2158
        %v2161 = vadd.f32 %v2155, %v2159
        %v2162 = vld [vmem:[%s1052 + $0x2] sm:$0xff]
        %v2163 = vld [vmem:[%s1052 + $0xa] sm:$0x3f]
        %v2164 = vmul.f32 %v2162, %v1250
        %v2165 = vmul.f32 %v2163, %v1250
        %v2166 = vadd.f32 %v2160, %v2164
        %v2167 = vadd.f32 %v2161, %v2165
        %v2168 = vld [vmem:[%s1052 + $0x3] sm:$0xff]
        %v2169 = vld [vmem:[%s1052 + $0xb] sm:$0x3f]
        %v2170 = vmul.f32 %v2168, %v1260
        %v2171 = vmul.f32 %v2169, %v1260
        %v2172 = vadd.f32 %v2166, %v2170
        %v2173 = vadd.f32 %v2167, %v2171
        %v2174 = vld [vmem:[%s1052 + $0x4] sm:$0xff]
        %v2175 = vld [vmem:[%s1052 + $0xc] sm:$0x3f]
        %v2176 = vmul.f32 %v2174, %v1270
        %v2177 = vmul.f32 %v2175, %v1270
        %v2178 = vadd.f32 %v2172, %v2176
        %v2179 = vadd.f32 %v2173, %v2177
        %v2180 = vld [vmem:[%s1057] sm:$0xff]
        %v2181 = vld [vmem:[%s1057 + $0x8] sm:$0x3f]
        %v2182 = vmul.f32 %v2180, %v1280
        %v2183 = vmul.f32 %v2181, %v1280
        %v2184 = vadd.f32 %v2178, %v2182
        %v2185 = vadd.f32 %v2179, %v2183
        %v2186 = vld [vmem:[%s1057 + $0x1] sm:$0xff]
        %v2187 = vld [vmem:[%s1057 + $0x9] sm:$0x3f]
        %v2188 = vmul.f32 %v2186, %v1290
        %v2189 = vmul.f32 %v2187, %v1290
        %v2190 = vadd.f32 %v2184, %v2188
        %v2191 = vadd.f32 %v2185, %v2189
        %v2192 = vld [vmem:[%s1057 + $0x2] sm:$0xff]
        %v2193 = vld [vmem:[%s1057 + $0xa] sm:$0x3f]
        %v2194 = vmul.f32 %v2192, %v1300
        %v2195 = vmul.f32 %v2193, %v1300
        %v2196 = vadd.f32 %v2190, %v2194
        %v2197 = vadd.f32 %v2191, %v2195
        %v2198 = vld [vmem:[%s1057 + $0x3] sm:$0xff]
        %v2199 = vld [vmem:[%s1057 + $0xb] sm:$0x3f]
        %v2200 = vmul.f32 %v2198, %v1310
        %v2201 = vmul.f32 %v2199, %v1310
        %v2202 = vadd.f32 %v2196, %v2200
        %v2203 = vadd.f32 %v2197, %v2201
        %v2204 = vld [vmem:[%s1057 + $0x4] sm:$0xff]
        %v2205 = vld [vmem:[%s1057 + $0xc] sm:$0x3f]
        %v2206 = vmul.f32 %v2204, %v1320
        %v2207 = vmul.f32 %v2205, %v1320
        %v2208 = vadd.f32 %v2202, %v2206
        %v2209 = vadd.f32 %v2203, %v2207
        %v2210 = vld [vmem:[%s1062] sm:$0xff]
        %v2211 = vld [vmem:[%s1062 + $0x8] sm:$0x3f]
        %v2212 = vmul.f32 %v2210, %v1330
        %v2213 = vmul.f32 %v2211, %v1330
        %v2214 = vadd.f32 %v2208, %v2212
        %v2215 = vadd.f32 %v2209, %v2213
        %v2216 = vld [vmem:[%s1062 + $0x1] sm:$0xff]
        %v2217 = vld [vmem:[%s1062 + $0x9] sm:$0x3f]
        %v2218 = vmul.f32 %v2216, %v1340
        %v2219 = vmul.f32 %v2217, %v1340
        %v2220 = vadd.f32 %v2214, %v2218
        %v2221 = vadd.f32 %v2215, %v2219
        %v2222 = vld [vmem:[%s1062 + $0x2] sm:$0xff]
        %v2223 = vld [vmem:[%s1062 + $0xa] sm:$0x3f]
        %v2224 = vmul.f32 %v2222, %v1350
        %v2225 = vmul.f32 %v2223, %v1350
        %v2226 = vadd.f32 %v2220, %v2224
        %v2227 = vadd.f32 %v2221, %v2225
        %v2228 = vld [vmem:[%s1062 + $0x3] sm:$0xff]
        %v2229 = vld [vmem:[%s1062 + $0xb] sm:$0x3f]
        %v2230 = vmul.f32 %v2228, %v1360
        %v2231 = vmul.f32 %v2229, %v1360
        %v2232 = vadd.f32 %v2226, %v2230
        %v2233 = vadd.f32 %v2227, %v2231
        %v2234 = vld [vmem:[%s1062 + $0x4] sm:$0xff]
        %v2235 = vld [vmem:[%s1062 + $0xc] sm:$0x3f]
        %v2236 = vmul.f32 %v2234, %v1370
        %v2237 = vmul.f32 %v2235, %v1370
        %v2238 = vadd.f32 %v2232, %v2236
        %v2239 = vadd.f32 %v2233, %v2237
        %s2240 = scalar_lea.vmem %s448, 80 [#allocation6]
        %2241 = vst [vmem:[%s2240] sm:$0xff] %v2238
        %2242 = vst [vmem:[%s2240 + $0x8] sm:$0x3f] %v2239
        %v2243 = vsel %vm1377, %v2239, 0.0
        %v2244 = vadd.f32 %v2238, %v2243
        %v2245 = vrot.slane %v2244, 4
        %v2246 = vadd.f32 %v2244, %v2245
        %v2247 = vrot.slane %v2246, 2
        %v2248 = vadd.f32 %v2246, %v2247
        %v2249 = vrot.slane %v2248, 1
        %v2250 = vadd.f32 %v2248, %v2249
        %v2251 = vadd.f32 %v2078, %v2250
        %v2252 = vmul.f32 %v2238, %v2238
        %v2253 = vmul.f32 %v2239, %v2239
        %v2254 = vsel %vm1377, %v2253, 0.0
        %v2255 = vadd.f32 %v2252, %v2254
        %v2256 = vrot.slane %v2255, 4
        %v2257 = vadd.f32 %v2255, %v2256
        %v2258 = vrot.slane %v2257, 2
        %v2259 = vadd.f32 %v2257, %v2258
        %v2260 = vrot.slane %v2259, 1
        %v2261 = vadd.f32 %v2259, %v2260
        %v2262 = vadd.f32 %v2089, %v2261
        %v2263 = vld [vmem:[%s1047] sm:$0xff]
        %v2264 = vld [vmem:[%s1047 + $0x8] sm:$0x3f]
        %v2265 = vmul.f32 %v2263, %v1129
        %v2266 = vmul.f32 %v2264, %v1129
        %v2267 = vadd.f32 %v2265, 0.0
        %v2268 = vadd.f32 %v2266, 0.0
        %v2269 = vld [vmem:[%s1047 + $0x1] sm:$0xff]
        %v2270 = vld [vmem:[%s1047 + $0x9] sm:$0x3f]
        %v2271 = vmul.f32 %v2269, %v1139
        %v2272 = vmul.f32 %v2270, %v1139
        %v2273 = vadd.f32 %v2267, %v2271
        %v2274 = vadd.f32 %v2268, %v2272
        %v2275 = vld [vmem:[%s1047 + $0x2] sm:$0xff]
        %v2276 = vld [vmem:[%s1047 + $0xa] sm:$0x3f]
        %v2277 = vmul.f32 %v2275, %v1149
        %v2278 = vmul.f32 %v2276, %v1149
        %v2279 = vadd.f32 %v2273, %v2277
        %v2280 = vadd.f32 %v2274, %v2278
        %v2281 = vld [vmem:[%s1047 + $0x3] sm:$0xff]
        %v2282 = vld [vmem:[%s1047 + $0xb] sm:$0x3f]
        %v2283 = vmul.f32 %v2281, %v1159
        %v2284 = vmul.f32 %v2282, %v1159
        %v2285 = vadd.f32 %v2279, %v2283
        %v2286 = vadd.f32 %v2280, %v2284
        %v2287 = vld [vmem:[%s1047 + $0x4] sm:$0xff]
        %v2288 = vld [vmem:[%s1047 + $0xc] sm:$0x3f]
        %v2289 = vmul.f32 %v2287, %v1169
        %v2290 = vmul.f32 %v2288, %v1169
        %v2291 = vadd.f32 %v2285, %v2289
        %v2292 = vadd.f32 %v2286, %v2290
        %v2293 = vld [vmem:[%s1052] sm:$0xff]
        %v2294 = vld [vmem:[%s1052 + $0x8] sm:$0x3f]
        %v2295 = vmul.f32 %v2293, %v1180
        %v2296 = vmul.f32 %v2294, %v1180
        %v2297 = vadd.f32 %v2291, %v2295
        %v2298 = vadd.f32 %v2292, %v2296
        %v2299 = vld [vmem:[%s1052 + $0x1] sm:$0xff]
        %v2300 = vld [vmem:[%s1052 + $0x9] sm:$0x3f]
        %v2301 = vmul.f32 %v2299, %v1190
        %v2302 = vmul.f32 %v2300, %v1190
        %v2303 = vadd.f32 %v2297, %v2301
        %v2304 = vadd.f32 %v2298, %v2302
        %v2305 = vld [vmem:[%s1052 + $0x2] sm:$0xff]
        %v2306 = vld [vmem:[%s1052 + $0xa] sm:$0x3f]
        %v2307 = vmul.f32 %v2305, %v1200
        %v2308 = vmul.f32 %v2306, %v1200
        %v2309 = vadd.f32 %v2303, %v2307
        %v2310 = vadd.f32 %v2304, %v2308
        %v2311 = vld [vmem:[%s1052 + $0x3] sm:$0xff]
        %v2312 = vld [vmem:[%s1052 + $0xb] sm:$0x3f]
        %v2313 = vmul.f32 %v2311, %v1210
        %v2314 = vmul.f32 %v2312, %v1210
        %v2315 = vadd.f32 %v2309, %v2313
        %v2316 = vadd.f32 %v2310, %v2314
        %v2317 = vld [vmem:[%s1052 + $0x4] sm:$0xff]
        %v2318 = vld [vmem:[%s1052 + $0xc] sm:$0x3f]
        %v2319 = vmul.f32 %v2317, %v1220
        %v2320 = vmul.f32 %v2318, %v1220
        %v2321 = vadd.f32 %v2315, %v2319
        %v2322 = vadd.f32 %v2316, %v2320
        %v2323 = vld [vmem:[%s1057] sm:$0xff]
        %v2324 = vld [vmem:[%s1057 + $0x8] sm:$0x3f]
        %v2325 = vmul.f32 %v2323, %v1230
        %v2326 = vmul.f32 %v2324, %v1230
        %v2327 = vadd.f32 %v2321, %v2325
        %v2328 = vadd.f32 %v2322, %v2326
        %v2329 = vld [vmem:[%s1057 + $0x1] sm:$0xff]
        %v2330 = vld [vmem:[%s1057 + $0x9] sm:$0x3f]
        %v2331 = vmul.f32 %v2329, %v1240
        %v2332 = vmul.f32 %v2330, %v1240
        %v2333 = vadd.f32 %v2327, %v2331
        %v2334 = vadd.f32 %v2328, %v2332
        %v2335 = vld [vmem:[%s1057 + $0x2] sm:$0xff]
        %v2336 = vld [vmem:[%s1057 + $0xa] sm:$0x3f]
        %v2337 = vmul.f32 %v2335, %v1250
        %v2338 = vmul.f32 %v2336, %v1250
        %v2339 = vadd.f32 %v2333, %v2337
        %v2340 = vadd.f32 %v2334, %v2338
        %v2341 = vld [vmem:[%s1057 + $0x3] sm:$0xff]
        %v2342 = vld [vmem:[%s1057 + $0xb] sm:$0x3f]
        %v2343 = vmul.f32 %v2341, %v1260
        %v2344 = vmul.f32 %v2342, %v1260
        %v2345 = vadd.f32 %v2339, %v2343
        %v2346 = vadd.f32 %v2340, %v2344
        %v2347 = vld [vmem:[%s1057 + $0x4] sm:$0xff]
        %v2348 = vld [vmem:[%s1057 + $0xc] sm:$0x3f]
        %v2349 = vmul.f32 %v2347, %v1270
        %v2350 = vmul.f32 %v2348, %v1270
        %v2351 = vadd.f32 %v2345, %v2349
        %v2352 = vadd.f32 %v2346, %v2350
        %v2353 = vld [vmem:[%s1062] sm:$0xff]
        %v2354 = vld [vmem:[%s1062 + $0x8] sm:$0x3f]
        %v2355 = vmul.f32 %v2353, %v1280
        %v2356 = vmul.f32 %v2354, %v1280
        %v2357 = vadd.f32 %v2351, %v2355
        %v2358 = vadd.f32 %v2352, %v2356
        %v2359 = vld [vmem:[%s1062 + $0x1] sm:$0xff]
        %v2360 = vld [vmem:[%s1062 + $0x9] sm:$0x3f]
        %v2361 = vmul.f32 %v2359, %v1290
        %v2362 = vmul.f32 %v2360, %v1290
        %v2363 = vadd.f32 %v2357, %v2361
        %v2364 = vadd.f32 %v2358, %v2362
        %v2365 = vld [vmem:[%s1062 + $0x2] sm:$0xff]
        %v2366 = vld [vmem:[%s1062 + $0xa] sm:$0x3f]
        %v2367 = vmul.f32 %v2365, %v1300
        %v2368 = vmul.f32 %v2366, %v1300
        %v2369 = vadd.f32 %v2363, %v2367
        %v2370 = vadd.f32 %v2364, %v2368
        %v2371 = vld [vmem:[%s1062 + $0x3] sm:$0xff]
        %v2372 = vld [vmem:[%s1062 + $0xb] sm:$0x3f]
        %v2373 = vmul.f32 %v2371, %v1310
        %v2374 = vmul.f32 %v2372, %v1310
        %v2375 = vadd.f32 %v2369, %v2373
        %v2376 = vadd.f32 %v2370, %v2374
        %v2377 = vld [vmem:[%s1062 + $0x4] sm:$0xff]
        %v2378 = vld [vmem:[%s1062 + $0xc] sm:$0x3f]
        %v2379 = vmul.f32 %v2377, %v1320
        %v2380 = vmul.f32 %v2378, %v1320
        %v2381 = vadd.f32 %v2375, %v2379
        %v2382 = vadd.f32 %v2376, %v2380
        %v2383 = vld [vmem:[%s1067] sm:$0xff]
        %v2384 = vld [vmem:[%s1067 + $0x8] sm:$0x3f]
        %v2385 = vmul.f32 %v2383, %v1330
        %v2386 = vmul.f32 %v2384, %v1330
        %v2387 = vadd.f32 %v2381, %v2385
        %v2388 = vadd.f32 %v2382, %v2386
        %v2389 = vld [vmem:[%s1067 + $0x1] sm:$0xff]
        %v2390 = vld [vmem:[%s1067 + $0x9] sm:$0x3f]
        %v2391 = vmul.f32 %v2389, %v1340
        %v2392 = vmul.f32 %v2390, %v1340
        %v2393 = vadd.f32 %v2387, %v2391
        %v2394 = vadd.f32 %v2388, %v2392
        %v2395 = vld [vmem:[%s1067 + $0x2] sm:$0xff]
        %v2396 = vld [vmem:[%s1067 + $0xa] sm:$0x3f]
        %v2397 = vmul.f32 %v2395, %v1350
        %v2398 = vmul.f32 %v2396, %v1350
        %v2399 = vadd.f32 %v2393, %v2397
        %v2400 = vadd.f32 %v2394, %v2398
        %v2401 = vld [vmem:[%s1067 + $0x3] sm:$0xff]
        %v2402 = vld [vmem:[%s1067 + $0xb] sm:$0x3f]
        %v2403 = vmul.f32 %v2401, %v1360
        %v2404 = vmul.f32 %v2402, %v1360
        %v2405 = vadd.f32 %v2399, %v2403
        %v2406 = vadd.f32 %v2400, %v2404
        %v2407 = vld [vmem:[%s1067 + $0x4] sm:$0xff]
        %v2408 = vld [vmem:[%s1067 + $0xc] sm:$0x3f]
        %v2409 = vmul.f32 %v2407, %v1370
        %v2410 = vmul.f32 %v2408, %v1370
        %v2411 = vadd.f32 %v2405, %v2409
        %v2412 = vadd.f32 %v2406, %v2410
        %s2413 = scalar_lea.vmem %s448, 96 [#allocation6]
        %2414 = vst [vmem:[%s2413] sm:$0xff] %v2411
        %2415 = vst [vmem:[%s2413 + $0x8] sm:$0x3f] %v2412
        %v2416 = vsel %vm1377, %v2412, 0.0
        %v2417 = vadd.f32 %v2411, %v2416
        %v2418 = vrot.slane %v2417, 4
        %v2419 = vadd.f32 %v2417, %v2418
        %v2420 = vrot.slane %v2419, 2
        %v2421 = vadd.f32 %v2419, %v2420
        %v2422 = vrot.slane %v2421, 1
        %v2423 = vadd.f32 %v2421, %v2422
        %v2424 = vadd.f32 %v2251, %v2423
        %v2425 = vmul.f32 %v2411, %v2411
        %v2426 = vmul.f32 %v2412, %v2412
        %v2427 = vsel %vm1377, %v2426, 0.0
        %v2428 = vadd.f32 %v2425, %v2427
        %v2429 = vrot.slane %v2428, 4
        %v2430 = vadd.f32 %v2428, %v2429
        %v2431 = vrot.slane %v2430, 2
        %v2432 = vadd.f32 %v2430, %v2431
        %v2433 = vrot.slane %v2432, 1
        %v2434 = vadd.f32 %v2432, %v2433
        %v2435 = vadd.f32 %v2262, %v2434
        %v2436 = vld [vmem:[%s1052] sm:$0xff]
        %v2437 = vld [vmem:[%s1052 + $0x8] sm:$0x3f]
        %v2438 = vmul.f32 %v2436, %v1129
        %v2439 = vmul.f32 %v2437, %v1129
        %v2440 = vadd.f32 %v2438, 0.0
        %v2441 = vadd.f32 %v2439, 0.0
        %v2442 = vld [vmem:[%s1052 + $0x1] sm:$0xff]
        %v2443 = vld [vmem:[%s1052 + $0x9] sm:$0x3f]
        %v2444 = vmul.f32 %v2442, %v1139
        %v2445 = vmul.f32 %v2443, %v1139
        %v2446 = vadd.f32 %v2440, %v2444
        %v2447 = vadd.f32 %v2441, %v2445
        %v2448 = vld [vmem:[%s1052 + $0x2] sm:$0xff]
        %v2449 = vld [vmem:[%s1052 + $0xa] sm:$0x3f]
        %v2450 = vmul.f32 %v2448, %v1149
        %v2451 = vmul.f32 %v2449, %v1149
        %v2452 = vadd.f32 %v2446, %v2450
        %v2453 = vadd.f32 %v2447, %v2451
        %v2454 = vld [vmem:[%s1052 + $0x3] sm:$0xff]
        %v2455 = vld [vmem:[%s1052 + $0xb] sm:$0x3f]
        %v2456 = vmul.f32 %v2454, %v1159
        %v2457 = vmul.f32 %v2455, %v1159
        %v2458 = vadd.f32 %v2452, %v2456
        %v2459 = vadd.f32 %v2453, %v2457
        %v2460 = vld [vmem:[%s1052 + $0x4] sm:$0xff]
        %v2461 = vld [vmem:[%s1052 + $0xc] sm:$0x3f]
        %v2462 = vmul.f32 %v2460, %v1169
        %v2463 = vmul.f32 %v2461, %v1169
        %v2464 = vadd.f32 %v2458, %v2462
        %v2465 = vadd.f32 %v2459, %v2463
        %v2466 = vld [vmem:[%s1057] sm:$0xff]
        %v2467 = vld [vmem:[%s1057 + $0x8] sm:$0x3f]
        %v2468 = vmul.f32 %v2466, %v1180
        %v2469 = vmul.f32 %v2467, %v1180
        %v2470 = vadd.f32 %v2464, %v2468
        %v2471 = vadd.f32 %v2465, %v2469
        %v2472 = vld [vmem:[%s1057 + $0x1] sm:$0xff]
        %v2473 = vld [vmem:[%s1057 + $0x9] sm:$0x3f]
        %v2474 = vmul.f32 %v2472, %v1190
        %v2475 = vmul.f32 %v2473, %v1190
        %v2476 = vadd.f32 %v2470, %v2474
        %v2477 = vadd.f32 %v2471, %v2475
        %v2478 = vld [vmem:[%s1057 + $0x2] sm:$0xff]
        %v2479 = vld [vmem:[%s1057 + $0xa] sm:$0x3f]
        %v2480 = vmul.f32 %v2478, %v1200
        %v2481 = vmul.f32 %v2479, %v1200
        %v2482 = vadd.f32 %v2476, %v2480
        %v2483 = vadd.f32 %v2477, %v2481
        %v2484 = vld [vmem:[%s1057 + $0x3] sm:$0xff]
        %v2485 = vld [vmem:[%s1057 + $0xb] sm:$0x3f]
        %v2486 = vmul.f32 %v2484, %v1210
        %v2487 = vmul.f32 %v2485, %v1210
        %v2488 = vadd.f32 %v2482, %v2486
        %v2489 = vadd.f32 %v2483, %v2487
        %v2490 = vld [vmem:[%s1057 + $0x4] sm:$0xff]
        %v2491 = vld [vmem:[%s1057 + $0xc] sm:$0x3f]
        %v2492 = vmul.f32 %v2490, %v1220
        %v2493 = vmul.f32 %v2491, %v1220
        %v2494 = vadd.f32 %v2488, %v2492
        %v2495 = vadd.f32 %v2489, %v2493
        %v2496 = vld [vmem:[%s1062] sm:$0xff]
        %v2497 = vld [vmem:[%s1062 + $0x8] sm:$0x3f]
        %v2498 = vmul.f32 %v2496, %v1230
        %v2499 = vmul.f32 %v2497, %v1230
        %v2500 = vadd.f32 %v2494, %v2498
        %v2501 = vadd.f32 %v2495, %v2499
        %v2502 = vld [vmem:[%s1062 + $0x1] sm:$0xff]
        %v2503 = vld [vmem:[%s1062 + $0x9] sm:$0x3f]
        %v2504 = vmul.f32 %v2502, %v1240
        %v2505 = vmul.f32 %v2503, %v1240
        %v2506 = vadd.f32 %v2500, %v2504
        %v2507 = vadd.f32 %v2501, %v2505
        %v2508 = vld [vmem:[%s1062 + $0x2] sm:$0xff]
        %v2509 = vld [vmem:[%s1062 + $0xa] sm:$0x3f]
        %v2510 = vmul.f32 %v2508, %v1250
        %v2511 = vmul.f32 %v2509, %v1250
        %v2512 = vadd.f32 %v2506, %v2510
        %v2513 = vadd.f32 %v2507, %v2511
        %v2514 = vld [vmem:[%s1062 + $0x3] sm:$0xff]
        %v2515 = vld [vmem:[%s1062 + $0xb] sm:$0x3f]
        %v2516 = vmul.f32 %v2514, %v1260
        %v2517 = vmul.f32 %v2515, %v1260
        %v2518 = vadd.f32 %v2512, %v2516
        %v2519 = vadd.f32 %v2513, %v2517
        %v2520 = vld [vmem:[%s1062 + $0x4] sm:$0xff]
        %v2521 = vld [vmem:[%s1062 + $0xc] sm:$0x3f]
        %v2522 = vmul.f32 %v2520, %v1270
        %v2523 = vmul.f32 %v2521, %v1270
        %v2524 = vadd.f32 %v2518, %v2522
        %v2525 = vadd.f32 %v2519, %v2523
        %v2526 = vld [vmem:[%s1067] sm:$0xff]
        %v2527 = vld [vmem:[%s1067 + $0x8] sm:$0x3f]
        %v2528 = vmul.f32 %v2526, %v1280
        %v2529 = vmul.f32 %v2527, %v1280
        %v2530 = vadd.f32 %v2524, %v2528
        %v2531 = vadd.f32 %v2525, %v2529
        %v2532 = vld [vmem:[%s1067 + $0x1] sm:$0xff]
        %v2533 = vld [vmem:[%s1067 + $0x9] sm:$0x3f]
        %v2534 = vmul.f32 %v2532, %v1290
        %v2535 = vmul.f32 %v2533, %v1290
        %v2536 = vadd.f32 %v2530, %v2534
        %v2537 = vadd.f32 %v2531, %v2535
        %v2538 = vld [vmem:[%s1067 + $0x2] sm:$0xff]
        %v2539 = vld [vmem:[%s1067 + $0xa] sm:$0x3f]
        %v2540 = vmul.f32 %v2538, %v1300
        %v2541 = vmul.f32 %v2539, %v1300
        %v2542 = vadd.f32 %v2536, %v2540
        %v2543 = vadd.f32 %v2537, %v2541
        %v2544 = vld [vmem:[%s1067 + $0x3] sm:$0xff]
        %v2545 = vld [vmem:[%s1067 + $0xb] sm:$0x3f]
        %v2546 = vmul.f32 %v2544, %v1310
        %v2547 = vmul.f32 %v2545, %v1310
        %v2548 = vadd.f32 %v2542, %v2546
        %v2549 = vadd.f32 %v2543, %v2547
        %v2550 = vld [vmem:[%s1067 + $0x4] sm:$0xff]
        %v2551 = vld [vmem:[%s1067 + $0xc] sm:$0x3f]
        %v2552 = vmul.f32 %v2550, %v1320
        %v2553 = vmul.f32 %v2551, %v1320
        %v2554 = vadd.f32 %v2548, %v2552
        %v2555 = vadd.f32 %v2549, %v2553
        %v2556 = vld [vmem:[%s1072] sm:$0xff]
        %v2557 = vld [vmem:[%s1072 + $0x8] sm:$0x3f]
        %v2558 = vmul.f32 %v2556, %v1330
        %v2559 = vmul.f32 %v2557, %v1330
        %v2560 = vadd.f32 %v2554, %v2558
        %v2561 = vadd.f32 %v2555, %v2559
        %v2562 = vld [vmem:[%s1072 + $0x1] sm:$0xff]
        %v2563 = vld [vmem:[%s1072 + $0x9] sm:$0x3f]
        %v2564 = vmul.f32 %v2562, %v1340
        %v2565 = vmul.f32 %v2563, %v1340
        %v2566 = vadd.f32 %v2560, %v2564
        %v2567 = vadd.f32 %v2561, %v2565
        %v2568 = vld [vmem:[%s1072 + $0x2] sm:$0xff]
        %v2569 = vld [vmem:[%s1072 + $0xa] sm:$0x3f]
        %v2570 = vmul.f32 %v2568, %v1350
        %v2571 = vmul.f32 %v2569, %v1350
        %v2572 = vadd.f32 %v2566, %v2570
        %v2573 = vadd.f32 %v2567, %v2571
        %v2574 = vld [vmem:[%s1072 + $0x3] sm:$0xff]
        %v2575 = vld [vmem:[%s1072 + $0xb] sm:$0x3f]
        %v2576 = vmul.f32 %v2574, %v1360
        %v2577 = vmul.f32 %v2575, %v1360
        %v2578 = vadd.f32 %v2572, %v2576
        %v2579 = vadd.f32 %v2573, %v2577
        %v2580 = vld [vmem:[%s1072 + $0x4] sm:$0xff]
        %v2581 = vld [vmem:[%s1072 + $0xc] sm:$0x3f]
        %v2582 = vmul.f32 %v2580, %v1370
        %v2583 = vmul.f32 %v2581, %v1370
        %v2584 = vadd.f32 %v2578, %v2582
        %v2585 = vadd.f32 %v2579, %v2583
        %s2586 = scalar_lea.vmem %s448, 112 [#allocation6]
        %2587 = vst [vmem:[%s2586] sm:$0xff] %v2584
        %2588 = vst [vmem:[%s2586 + $0x8] sm:$0x3f] %v2585
        %v2589 = vsel %vm1377, %v2585, 0.0
        %v2590 = vadd.f32 %v2584, %v2589
        %v2591 = vrot.slane %v2590, 4
        %v2592 = vadd.f32 %v2590, %v2591
        %v2593 = vrot.slane %v2592, 2
        %v2594 = vadd.f32 %v2592, %v2593
        %v2595 = vrot.slane %v2594, 1
        %v2596 = vadd.f32 %v2594, %v2595
        %v2597 = vadd.f32 %v2424, %v2596
        %v2598 = vmul.f32 %v2584, %v2584
        %v2599 = vmul.f32 %v2585, %v2585
        %v2600 = vsel %vm1377, %v2599, 0.0
        %v2601 = vadd.f32 %v2598, %v2600
        %v2602 = vrot.slane %v2601, 4
        %v2603 = vadd.f32 %v2601, %v2602
        %v2604 = vrot.slane %v2603, 2
        %v2605 = vadd.f32 %v2603, %v2604
        %v2606 = vrot.slane %v2605, 1
        %v2607 = vadd.f32 %v2605, %v2606
        %v2608 = vadd.f32 %v2435, %v2607
        %v2609 = vld [vmem:[%s1057] sm:$0xff]
        %v2610 = vld [vmem:[%s1057 + $0x8] sm:$0x3f]
        %v2611 = vmul.f32 %v2609, %v1129
        %v2612 = vmul.f32 %v2610, %v1129
        %v2613 = vadd.f32 %v2611, 0.0
        %v2614 = vadd.f32 %v2612, 0.0
        %v2615 = vld [vmem:[%s1057 + $0x1] sm:$0xff]
        %v2616 = vld [vmem:[%s1057 + $0x9] sm:$0x3f]
        %v2617 = vmul.f32 %v2615, %v1139
        %v2618 = vmul.f32 %v2616, %v1139
        %v2619 = vadd.f32 %v2613, %v2617
        %v2620 = vadd.f32 %v2614, %v2618
        %v2621 = vld [vmem:[%s1057 + $0x2] sm:$0xff]
        %v2622 = vld [vmem:[%s1057 + $0xa] sm:$0x3f]
        %v2623 = vmul.f32 %v2621, %v1149
        %v2624 = vmul.f32 %v2622, %v1149
        %v2625 = vadd.f32 %v2619, %v2623
        %v2626 = vadd.f32 %v2620, %v2624
        %v2627 = vld [vmem:[%s1057 + $0x3] sm:$0xff]
        %v2628 = vld [vmem:[%s1057 + $0xb] sm:$0x3f]
        %v2629 = vmul.f32 %v2627, %v1159
        %v2630 = vmul.f32 %v2628, %v1159
        %v2631 = vadd.f32 %v2625, %v2629
        %v2632 = vadd.f32 %v2626, %v2630
        %v2633 = vld [vmem:[%s1057 + $0x4] sm:$0xff]
        %v2634 = vld [vmem:[%s1057 + $0xc] sm:$0x3f]
        %v2635 = vmul.f32 %v2633, %v1169
        %v2636 = vmul.f32 %v2634, %v1169
        %v2637 = vadd.f32 %v2631, %v2635
        %v2638 = vadd.f32 %v2632, %v2636
        %v2639 = vld [vmem:[%s1062] sm:$0xff]
        %v2640 = vld [vmem:[%s1062 + $0x8] sm:$0x3f]
        %v2641 = vmul.f32 %v2639, %v1180
        %v2642 = vmul.f32 %v2640, %v1180
        %v2643 = vadd.f32 %v2637, %v2641
        %v2644 = vadd.f32 %v2638, %v2642
        %v2645 = vld [vmem:[%s1062 + $0x1] sm:$0xff]
        %v2646 = vld [vmem:[%s1062 + $0x9] sm:$0x3f]
        %v2647 = vmul.f32 %v2645, %v1190
        %v2648 = vmul.f32 %v2646, %v1190
        %v2649 = vadd.f32 %v2643, %v2647
        %v2650 = vadd.f32 %v2644, %v2648
        %v2651 = vld [vmem:[%s1062 + $0x2] sm:$0xff]
        %v2652 = vld [vmem:[%s1062 + $0xa] sm:$0x3f]
        %v2653 = vmul.f32 %v2651, %v1200
        %v2654 = vmul.f32 %v2652, %v1200
        %v2655 = vadd.f32 %v2649, %v2653
        %v2656 = vadd.f32 %v2650, %v2654
        %v2657 = vld [vmem:[%s1062 + $0x3] sm:$0xff]
        %v2658 = vld [vmem:[%s1062 + $0xb] sm:$0x3f]
        %v2659 = vmul.f32 %v2657, %v1210
        %v2660 = vmul.f32 %v2658, %v1210
        %v2661 = vadd.f32 %v2655, %v2659
        %v2662 = vadd.f32 %v2656, %v2660
        %v2663 = vld [vmem:[%s1062 + $0x4] sm:$0xff]
        %v2664 = vld [vmem:[%s1062 + $0xc] sm:$0x3f]
        %v2665 = vmul.f32 %v2663, %v1220
        %v2666 = vmul.f32 %v2664, %v1220
        %v2667 = vadd.f32 %v2661, %v2665
        %v2668 = vadd.f32 %v2662, %v2666
        %v2669 = vld [vmem:[%s1067] sm:$0xff]
        %v2670 = vld [vmem:[%s1067 + $0x8] sm:$0x3f]
        %v2671 = vmul.f32 %v2669, %v1230
        %v2672 = vmul.f32 %v2670, %v1230
        %v2673 = vadd.f32 %v2667, %v2671
        %v2674 = vadd.f32 %v2668, %v2672
        %v2675 = vld [vmem:[%s1067 + $0x1] sm:$0xff]
        %v2676 = vld [vmem:[%s1067 + $0x9] sm:$0x3f]
        %v2677 = vmul.f32 %v2675, %v1240
        %v2678 = vmul.f32 %v2676, %v1240
        %v2679 = vadd.f32 %v2673, %v2677
        %v2680 = vadd.f32 %v2674, %v2678
        %v2681 = vld [vmem:[%s1067 + $0x2] sm:$0xff]
        %v2682 = vld [vmem:[%s1067 + $0xa] sm:$0x3f]
        %v2683 = vmul.f32 %v2681, %v1250
        %v2684 = vmul.f32 %v2682, %v1250
        %v2685 = vadd.f32 %v2679, %v2683
        %v2686 = vadd.f32 %v2680, %v2684
        %v2687 = vld [vmem:[%s1067 + $0x3] sm:$0xff]
        %v2688 = vld [vmem:[%s1067 + $0xb] sm:$0x3f]
        %v2689 = vmul.f32 %v2687, %v1260
        %v2690 = vmul.f32 %v2688, %v1260
        %v2691 = vadd.f32 %v2685, %v2689
        %v2692 = vadd.f32 %v2686, %v2690
        %v2693 = vld [vmem:[%s1067 + $0x4] sm:$0xff]
        %v2694 = vld [vmem:[%s1067 + $0xc] sm:$0x3f]
        %v2695 = vmul.f32 %v2693, %v1270
        %v2696 = vmul.f32 %v2694, %v1270
        %v2697 = vadd.f32 %v2691, %v2695
        %v2698 = vadd.f32 %v2692, %v2696
        %v2699 = vld [vmem:[%s1072] sm:$0xff]
        %v2700 = vld [vmem:[%s1072 + $0x8] sm:$0x3f]
        %v2701 = vmul.f32 %v2699, %v1280
        %v2702 = vmul.f32 %v2700, %v1280
        %v2703 = vadd.f32 %v2697, %v2701
        %v2704 = vadd.f32 %v2698, %v2702
        %v2705 = vld [vmem:[%s1072 + $0x1] sm:$0xff]
        %v2706 = vld [vmem:[%s1072 + $0x9] sm:$0x3f]
        %v2707 = vmul.f32 %v2705, %v1290
        %v2708 = vmul.f32 %v2706, %v1290
        %v2709 = vadd.f32 %v2703, %v2707
        %v2710 = vadd.f32 %v2704, %v2708
        %v2711 = vld [vmem:[%s1072 + $0x2] sm:$0xff]
        %v2712 = vld [vmem:[%s1072 + $0xa] sm:$0x3f]
        %v2713 = vmul.f32 %v2711, %v1300
        %v2714 = vmul.f32 %v2712, %v1300
        %v2715 = vadd.f32 %v2709, %v2713
        %v2716 = vadd.f32 %v2710, %v2714
        %v2717 = vld [vmem:[%s1072 + $0x3] sm:$0xff]
        %v2718 = vld [vmem:[%s1072 + $0xb] sm:$0x3f]
        %v2719 = vmul.f32 %v2717, %v1310
        %v2720 = vmul.f32 %v2718, %v1310
        %v2721 = vadd.f32 %v2715, %v2719
        %v2722 = vadd.f32 %v2716, %v2720
        %v2723 = vld [vmem:[%s1072 + $0x4] sm:$0xff]
        %v2724 = vld [vmem:[%s1072 + $0xc] sm:$0x3f]
        %v2725 = vmul.f32 %v2723, %v1320
        %v2726 = vmul.f32 %v2724, %v1320
        %v2727 = vadd.f32 %v2721, %v2725
        %v2728 = vadd.f32 %v2722, %v2726
        %v2729 = vld [vmem:[%s1077] sm:$0xff]
        %v2730 = vld [vmem:[%s1077 + $0x8] sm:$0x3f]
        %v2731 = vmul.f32 %v2729, %v1330
        %v2732 = vmul.f32 %v2730, %v1330
        %v2733 = vadd.f32 %v2727, %v2731
        %v2734 = vadd.f32 %v2728, %v2732
        %v2735 = vld [vmem:[%s1077 + $0x1] sm:$0xff]
        %v2736 = vld [vmem:[%s1077 + $0x9] sm:$0x3f]
        %v2737 = vmul.f32 %v2735, %v1340
        %v2738 = vmul.f32 %v2736, %v1340
        %v2739 = vadd.f32 %v2733, %v2737
        %v2740 = vadd.f32 %v2734, %v2738
        %v2741 = vld [vmem:[%s1077 + $0x2] sm:$0xff]
        %v2742 = vld [vmem:[%s1077 + $0xa] sm:$0x3f]
        %v2743 = vmul.f32 %v2741, %v1350
        %v2744 = vmul.f32 %v2742, %v1350
        %v2745 = vadd.f32 %v2739, %v2743
        %v2746 = vadd.f32 %v2740, %v2744
        %v2747 = vld [vmem:[%s1077 + $0x3] sm:$0xff]
        %v2748 = vld [vmem:[%s1077 + $0xb] sm:$0x3f]
        %v2749 = vmul.f32 %v2747, %v1360
        %v2750 = vmul.f32 %v2748, %v1360
        %v2751 = vadd.f32 %v2745, %v2749
        %v2752 = vadd.f32 %v2746, %v2750
        %v2753 = vld [vmem:[%s1077 + $0x4] sm:$0xff]
        %v2754 = vld [vmem:[%s1077 + $0xc] sm:$0x3f]
        %v2755 = vmul.f32 %v2753, %v1370
        %v2756 = vmul.f32 %v2754, %v1370
        %v2757 = vadd.f32 %v2751, %v2755
        %v2758 = vadd.f32 %v2752, %v2756
        %s2759 = scalar_lea.vmem %s448, 128 [#allocation6]
        %2760 = vst [vmem:[%s2759] sm:$0xff] %v2757
        %2761 = vst [vmem:[%s2759 + $0x8] sm:$0x3f] %v2758
        %v2762 = vsel %vm1377, %v2758, 0.0
        %v2763 = vadd.f32 %v2757, %v2762
        %v2764 = vrot.slane %v2763, 4
        %v2765 = vadd.f32 %v2763, %v2764
        %v2766 = vrot.slane %v2765, 2
        %v2767 = vadd.f32 %v2765, %v2766
        %v2768 = vrot.slane %v2767, 1
        %v2769 = vadd.f32 %v2767, %v2768
        %v2770 = vadd.f32 %v2597, %v2769
        %v2771 = vmul.f32 %v2757, %v2757
        %v2772 = vmul.f32 %v2758, %v2758
        %v2773 = vsel %vm1377, %v2772, 0.0
        %v2774 = vadd.f32 %v2771, %v2773
        %v2775 = vrot.slane %v2774, 4
        %v2776 = vadd.f32 %v2774, %v2775
        %v2777 = vrot.slane %v2776, 2
        %v2778 = vadd.f32 %v2776, %v2777
        %v2779 = vrot.slane %v2778, 1
        %v2780 = vadd.f32 %v2778, %v2779
        %v2781 = vadd.f32 %v2608, %v2780
        %v2782 = vld [vmem:[%s1062] sm:$0xff]
        %v2783 = vld [vmem:[%s1062 + $0x8] sm:$0x3f]
        %v2784 = vmul.f32 %v2782, %v1129
        %v2785 = vmul.f32 %v2783, %v1129
        %v2786 = vadd.f32 %v2784, 0.0
        %v2787 = vadd.f32 %v2785, 0.0
        %v2788 = vld [vmem:[%s1062 + $0x1] sm:$0xff]
        %v2789 = vld [vmem:[%s1062 + $0x9] sm:$0x3f]
        %v2790 = vmul.f32 %v2788, %v1139
        %v2791 = vmul.f32 %v2789, %v1139
        %v2792 = vadd.f32 %v2786, %v2790
        %v2793 = vadd.f32 %v2787, %v2791
        %v2794 = vld [vmem:[%s1062 + $0x2] sm:$0xff]
        %v2795 = vld [vmem:[%s1062 + $0xa] sm:$0x3f]
        %v2796 = vmul.f32 %v2794, %v1149
        %v2797 = vmul.f32 %v2795, %v1149
        %v2798 = vadd.f32 %v2792, %v2796
        %v2799 = vadd.f32 %v2793, %v2797
        %v2800 = vld [vmem:[%s1062 + $0x3] sm:$0xff]
        %v2801 = vld [vmem:[%s1062 + $0xb] sm:$0x3f]
        %v2802 = vmul.f32 %v2800, %v1159
        %v2803 = vmul.f32 %v2801, %v1159
        %v2804 = vadd.f32 %v2798, %v2802
        %v2805 = vadd.f32 %v2799, %v2803
        %v2806 = vld [vmem:[%s1062 + $0x4] sm:$0xff]
        %v2807 = vld [vmem:[%s1062 + $0xc] sm:$0x3f]
        %v2808 = vmul.f32 %v2806, %v1169
        %v2809 = vmul.f32 %v2807, %v1169
        %v2810 = vadd.f32 %v2804, %v2808
        %v2811 = vadd.f32 %v2805, %v2809
        %v2812 = vld [vmem:[%s1067] sm:$0xff]
        %v2813 = vld [vmem:[%s1067 + $0x8] sm:$0x3f]
        %v2814 = vmul.f32 %v2812, %v1180
        %v2815 = vmul.f32 %v2813, %v1180
        %v2816 = vadd.f32 %v2810, %v2814
        %v2817 = vadd.f32 %v2811, %v2815
        %v2818 = vld [vmem:[%s1067 + $0x1] sm:$0xff]
        %v2819 = vld [vmem:[%s1067 + $0x9] sm:$0x3f]
        %v2820 = vmul.f32 %v2818, %v1190
        %v2821 = vmul.f32 %v2819, %v1190
        %v2822 = vadd.f32 %v2816, %v2820
        %v2823 = vadd.f32 %v2817, %v2821
        %v2824 = vld [vmem:[%s1067 + $0x2] sm:$0xff]
        %v2825 = vld [vmem:[%s1067 + $0xa] sm:$0x3f]
        %v2826 = vmul.f32 %v2824, %v1200
        %v2827 = vmul.f32 %v2825, %v1200
        %v2828 = vadd.f32 %v2822, %v2826
        %v2829 = vadd.f32 %v2823, %v2827
        %v2830 = vld [vmem:[%s1067 + $0x3] sm:$0xff]
        %v2831 = vld [vmem:[%s1067 + $0xb] sm:$0x3f]
        %v2832 = vmul.f32 %v2830, %v1210
        %v2833 = vmul.f32 %v2831, %v1210
        %v2834 = vadd.f32 %v2828, %v2832
        %v2835 = vadd.f32 %v2829, %v2833
        %v2836 = vld [vmem:[%s1067 + $0x4] sm:$0xff]
        %v2837 = vld [vmem:[%s1067 + $0xc] sm:$0x3f]
        %v2838 = vmul.f32 %v2836, %v1220
        %v2839 = vmul.f32 %v2837, %v1220
        %v2840 = vadd.f32 %v2834, %v2838
        %v2841 = vadd.f32 %v2835, %v2839
        %v2842 = vld [vmem:[%s1072] sm:$0xff]
        %v2843 = vld [vmem:[%s1072 + $0x8] sm:$0x3f]
        %v2844 = vmul.f32 %v2842, %v1230
        %v2845 = vmul.f32 %v2843, %v1230
        %v2846 = vadd.f32 %v2840, %v2844
        %v2847 = vadd.f32 %v2841, %v2845
        %v2848 = vld [vmem:[%s1072 + $0x1] sm:$0xff]
        %v2849 = vld [vmem:[%s1072 + $0x9] sm:$0x3f]
        %v2850 = vmul.f32 %v2848, %v1240
        %v2851 = vmul.f32 %v2849, %v1240
        %v2852 = vadd.f32 %v2846, %v2850
        %v2853 = vadd.f32 %v2847, %v2851
        %v2854 = vld [vmem:[%s1072 + $0x2] sm:$0xff]
        %v2855 = vld [vmem:[%s1072 + $0xa] sm:$0x3f]
        %v2856 = vmul.f32 %v2854, %v1250
        %v2857 = vmul.f32 %v2855, %v1250
        %v2858 = vadd.f32 %v2852, %v2856
        %v2859 = vadd.f32 %v2853, %v2857
        %v2860 = vld [vmem:[%s1072 + $0x3] sm:$0xff]
        %v2861 = vld [vmem:[%s1072 + $0xb] sm:$0x3f]
        %v2862 = vmul.f32 %v2860, %v1260
        %v2863 = vmul.f32 %v2861, %v1260
        %v2864 = vadd.f32 %v2858, %v2862
        %v2865 = vadd.f32 %v2859, %v2863
        %v2866 = vld [vmem:[%s1072 + $0x4] sm:$0xff]
        %v2867 = vld [vmem:[%s1072 + $0xc] sm:$0x3f]
        %v2868 = vmul.f32 %v2866, %v1270
        %v2869 = vmul.f32 %v2867, %v1270
        %v2870 = vadd.f32 %v2864, %v2868
        %v2871 = vadd.f32 %v2865, %v2869
        %v2872 = vld [vmem:[%s1077] sm:$0xff]
        %v2873 = vld [vmem:[%s1077 + $0x8] sm:$0x3f]
        %v2874 = vmul.f32 %v2872, %v1280
        %v2875 = vmul.f32 %v2873, %v1280
        %v2876 = vadd.f32 %v2870, %v2874
        %v2877 = vadd.f32 %v2871, %v2875
        %v2878 = vld [vmem:[%s1077 + $0x1] sm:$0xff]
        %v2879 = vld [vmem:[%s1077 + $0x9] sm:$0x3f]
        %v2880 = vmul.f32 %v2878, %v1290
        %v2881 = vmul.f32 %v2879, %v1290
        %v2882 = vadd.f32 %v2876, %v2880
        %v2883 = vadd.f32 %v2877, %v2881
        %v2884 = vld [vmem:[%s1077 + $0x2] sm:$0xff]
        %v2885 = vld [vmem:[%s1077 + $0xa] sm:$0x3f]
        %v2886 = vmul.f32 %v2884, %v1300
        %v2887 = vmul.f32 %v2885, %v1300
        %v2888 = vadd.f32 %v2882, %v2886
        %v2889 = vadd.f32 %v2883, %v2887
        %v2890 = vld [vmem:[%s1077 + $0x3] sm:$0xff]
        %v2891 = vld [vmem:[%s1077 + $0xb] sm:$0x3f]
        %v2892 = vmul.f32 %v2890, %v1310
        %v2893 = vmul.f32 %v2891, %v1310
        %v2894 = vadd.f32 %v2888, %v2892
        %v2895 = vadd.f32 %v2889, %v2893
        %v2896 = vld [vmem:[%s1077 + $0x4] sm:$0xff]
        %v2897 = vld [vmem:[%s1077 + $0xc] sm:$0x3f]
        %v2898 = vmul.f32 %v2896, %v1320
        %v2899 = vmul.f32 %v2897, %v1320
        %v2900 = vadd.f32 %v2894, %v2898
        %v2901 = vadd.f32 %v2895, %v2899
        %v2902 = vld [vmem:[%s1082] sm:$0xff]
        %v2903 = vld [vmem:[%s1082 + $0x8] sm:$0x3f]
        %v2904 = vmul.f32 %v2902, %v1330
        %v2905 = vmul.f32 %v2903, %v1330
        %v2906 = vadd.f32 %v2900, %v2904
        %v2907 = vadd.f32 %v2901, %v2905
        %v2908 = vld [vmem:[%s1082 + $0x1] sm:$0xff]
        %v2909 = vld [vmem:[%s1082 + $0x9] sm:$0x3f]
        %v2910 = vmul.f32 %v2908, %v1340
        %v2911 = vmul.f32 %v2909, %v1340
        %v2912 = vadd.f32 %v2906, %v2910
        %v2913 = vadd.f32 %v2907, %v2911
        %v2914 = vld [vmem:[%s1082 + $0x2] sm:$0xff]
        %v2915 = vld [vmem:[%s1082 + $0xa] sm:$0x3f]
        %v2916 = vmul.f32 %v2914, %v1350
        %v2917 = vmul.f32 %v2915, %v1350
        %v2918 = vadd.f32 %v2912, %v2916
        %v2919 = vadd.f32 %v2913, %v2917
        %v2920 = vld [vmem:[%s1082 + $0x3] sm:$0xff]
        %v2921 = vld [vmem:[%s1082 + $0xb] sm:$0x3f]
        %v2922 = vmul.f32 %v2920, %v1360
        %v2923 = vmul.f32 %v2921, %v1360
        %v2924 = vadd.f32 %v2918, %v2922
        %v2925 = vadd.f32 %v2919, %v2923
        %v2926 = vld [vmem:[%s1082 + $0x4] sm:$0xff]
        %v2927 = vld [vmem:[%s1082 + $0xc] sm:$0x3f]
        %v2928 = vmul.f32 %v2926, %v1370
        %v2929 = vmul.f32 %v2927, %v1370
        %v2930 = vadd.f32 %v2924, %v2928
        %v2931 = vadd.f32 %v2925, %v2929
        %s2932 = scalar_lea.vmem %s448, 144 [#allocation6]
        %2933 = vst [vmem:[%s2932] sm:$0xff] %v2930
        %2934 = vst [vmem:[%s2932 + $0x8] sm:$0x3f] %v2931
        %v2935 = vsel %vm1377, %v2931, 0.0
        %v2936 = vadd.f32 %v2930, %v2935
        %v2937 = vrot.slane %v2936, 4
        %v2938 = vadd.f32 %v2936, %v2937
        %v2939 = vrot.slane %v2938, 2
        %v2940 = vadd.f32 %v2938, %v2939
        %v2941 = vrot.slane %v2940, 1
        %v2942 = vadd.f32 %v2940, %v2941
        %v2943 = vadd.f32 %v2770, %v2942
        %v2944 = vmul.f32 %v2930, %v2930
        %v2945 = vmul.f32 %v2931, %v2931
        %v2946 = vsel %vm1377, %v2945, 0.0
        %v2947 = vadd.f32 %v2944, %v2946
        %v2948 = vrot.slane %v2947, 4
        %v2949 = vadd.f32 %v2947, %v2948
        %v2950 = vrot.slane %v2949, 2
        %v2951 = vadd.f32 %v2949, %v2950
        %v2952 = vrot.slane %v2951, 1
        %v2953 = vadd.f32 %v2951, %v2952
        %v2954 = vadd.f32 %v2781, %v2953
        %v2955 = vld [vmem:[%s1067] sm:$0xff]
        %v2956 = vld [vmem:[%s1067 + $0x8] sm:$0x3f]
        %v2957 = vmul.f32 %v2955, %v1129
        %v2958 = vmul.f32 %v2956, %v1129
        %v2959 = vadd.f32 %v2957, 0.0
        %v2960 = vadd.f32 %v2958, 0.0
        %v2961 = vld [vmem:[%s1067 + $0x1] sm:$0xff]
        %v2962 = vld [vmem:[%s1067 + $0x9] sm:$0x3f]
        %v2963 = vmul.f32 %v2961, %v1139
        %v2964 = vmul.f32 %v2962, %v1139
        %v2965 = vadd.f32 %v2959, %v2963
        %v2966 = vadd.f32 %v2960, %v2964
        %v2967 = vld [vmem:[%s1067 + $0x2] sm:$0xff]
        %v2968 = vld [vmem:[%s1067 + $0xa] sm:$0x3f]
        %v2969 = vmul.f32 %v2967, %v1149
        %v2970 = vmul.f32 %v2968, %v1149
        %v2971 = vadd.f32 %v2965, %v2969
        %v2972 = vadd.f32 %v2966, %v2970
        %v2973 = vld [vmem:[%s1067 + $0x3] sm:$0xff]
        %v2974 = vld [vmem:[%s1067 + $0xb] sm:$0x3f]
        %v2975 = vmul.f32 %v2973, %v1159
        %v2976 = vmul.f32 %v2974, %v1159
        %v2977 = vadd.f32 %v2971, %v2975
        %v2978 = vadd.f32 %v2972, %v2976
        %v2979 = vld [vmem:[%s1067 + $0x4] sm:$0xff]
        %v2980 = vld [vmem:[%s1067 + $0xc] sm:$0x3f]
        %v2981 = vmul.f32 %v2979, %v1169
        %v2982 = vmul.f32 %v2980, %v1169
        %v2983 = vadd.f32 %v2977, %v2981
        %v2984 = vadd.f32 %v2978, %v2982
        %v2985 = vld [vmem:[%s1072] sm:$0xff]
        %v2986 = vld [vmem:[%s1072 + $0x8] sm:$0x3f]
        %v2987 = vmul.f32 %v2985, %v1180
        %v2988 = vmul.f32 %v2986, %v1180
        %v2989 = vadd.f32 %v2983, %v2987
        %v2990 = vadd.f32 %v2984, %v2988
        %v2991 = vld [vmem:[%s1072 + $0x1] sm:$0xff]
        %v2992 = vld [vmem:[%s1072 + $0x9] sm:$0x3f]
        %v2993 = vmul.f32 %v2991, %v1190
        %v2994 = vmul.f32 %v2992, %v1190
        %v2995 = vadd.f32 %v2989, %v2993
        %v2996 = vadd.f32 %v2990, %v2994
        %v2997 = vld [vmem:[%s1072 + $0x2] sm:$0xff]
        %v2998 = vld [vmem:[%s1072 + $0xa] sm:$0x3f]
        %v2999 = vmul.f32 %v2997, %v1200
        %v3000 = vmul.f32 %v2998, %v1200
        %v3001 = vadd.f32 %v2995, %v2999
        %v3002 = vadd.f32 %v2996, %v3000
        %v3003 = vld [vmem:[%s1072 + $0x3] sm:$0xff]
        %v3004 = vld [vmem:[%s1072 + $0xb] sm:$0x3f]
        %v3005 = vmul.f32 %v3003, %v1210
        %v3006 = vmul.f32 %v3004, %v1210
        %v3007 = vadd.f32 %v3001, %v3005
        %v3008 = vadd.f32 %v3002, %v3006
        %v3009 = vld [vmem:[%s1072 + $0x4] sm:$0xff]
        %v3010 = vld [vmem:[%s1072 + $0xc] sm:$0x3f]
        %v3011 = vmul.f32 %v3009, %v1220
        %v3012 = vmul.f32 %v3010, %v1220
        %v3013 = vadd.f32 %v3007, %v3011
        %v3014 = vadd.f32 %v3008, %v3012
        %v3015 = vld [vmem:[%s1077] sm:$0xff]
        %v3016 = vld [vmem:[%s1077 + $0x8] sm:$0x3f]
        %v3017 = vmul.f32 %v3015, %v1230
        %v3018 = vmul.f32 %v3016, %v1230
        %v3019 = vadd.f32 %v3013, %v3017
        %v3020 = vadd.f32 %v3014, %v3018
        %v3021 = vld [vmem:[%s1077 + $0x1] sm:$0xff]
        %v3022 = vld [vmem:[%s1077 + $0x9] sm:$0x3f]
        %v3023 = vmul.f32 %v3021, %v1240
        %v3024 = vmul.f32 %v3022, %v1240
        %v3025 = vadd.f32 %v3019, %v3023
        %v3026 = vadd.f32 %v3020, %v3024
        %v3027 = vld [vmem:[%s1077 + $0x2] sm:$0xff]
        %v3028 = vld [vmem:[%s1077 + $0xa] sm:$0x3f]
        %v3029 = vmul.f32 %v3027, %v1250
        %v3030 = vmul.f32 %v3028, %v1250
        %v3031 = vadd.f32 %v3025, %v3029
        %v3032 = vadd.f32 %v3026, %v3030
        %v3033 = vld [vmem:[%s1077 + $0x3] sm:$0xff]
        %v3034 = vld [vmem:[%s1077 + $0xb] sm:$0x3f]
        %v3035 = vmul.f32 %v3033, %v1260
        %v3036 = vmul.f32 %v3034, %v1260
        %v3037 = vadd.f32 %v3031, %v3035
        %v3038 = vadd.f32 %v3032, %v3036
        %v3039 = vld [vmem:[%s1077 + $0x4] sm:$0xff]
        %v3040 = vld [vmem:[%s1077 + $0xc] sm:$0x3f]
        %v3041 = vmul.f32 %v3039, %v1270
        %v3042 = vmul.f32 %v3040, %v1270
        %v3043 = vadd.f32 %v3037, %v3041
        %v3044 = vadd.f32 %v3038, %v3042
        %v3045 = vld [vmem:[%s1082] sm:$0xff]
        %v3046 = vld [vmem:[%s1082 + $0x8] sm:$0x3f]
        %v3047 = vmul.f32 %v3045, %v1280
        %v3048 = vmul.f32 %v3046, %v1280
        %v3049 = vadd.f32 %v3043, %v3047
        %v3050 = vadd.f32 %v3044, %v3048
        %v3051 = vld [vmem:[%s1082 + $0x1] sm:$0xff]
        %v3052 = vld [vmem:[%s1082 + $0x9] sm:$0x3f]
        %v3053 = vmul.f32 %v3051, %v1290
        %v3054 = vmul.f32 %v3052, %v1290
        %v3055 = vadd.f32 %v3049, %v3053
        %v3056 = vadd.f32 %v3050, %v3054
        %v3057 = vld [vmem:[%s1082 + $0x2] sm:$0xff]
        %v3058 = vld [vmem:[%s1082 + $0xa] sm:$0x3f]
        %v3059 = vmul.f32 %v3057, %v1300
        %v3060 = vmul.f32 %v3058, %v1300
        %v3061 = vadd.f32 %v3055, %v3059
        %v3062 = vadd.f32 %v3056, %v3060
        %v3063 = vld [vmem:[%s1082 + $0x3] sm:$0xff]
        %v3064 = vld [vmem:[%s1082 + $0xb] sm:$0x3f]
        %v3065 = vmul.f32 %v3063, %v1310
        %v3066 = vmul.f32 %v3064, %v1310
        %v3067 = vadd.f32 %v3061, %v3065
        %v3068 = vadd.f32 %v3062, %v3066
        %v3069 = vld [vmem:[%s1082 + $0x4] sm:$0xff]
        %v3070 = vld [vmem:[%s1082 + $0xc] sm:$0x3f]
        %v3071 = vmul.f32 %v3069, %v1320
        %v3072 = vmul.f32 %v3070, %v1320
        %v3073 = vadd.f32 %v3067, %v3071
        %v3074 = vadd.f32 %v3068, %v3072
        %v3075 = vld [vmem:[%s1087] sm:$0xff]
        %v3076 = vld [vmem:[%s1087 + $0x8] sm:$0x3f]
        %v3077 = vmul.f32 %v3075, %v1330
        %v3078 = vmul.f32 %v3076, %v1330
        %v3079 = vadd.f32 %v3073, %v3077
        %v3080 = vadd.f32 %v3074, %v3078
        %v3081 = vld [vmem:[%s1087 + $0x1] sm:$0xff]
        %v3082 = vld [vmem:[%s1087 + $0x9] sm:$0x3f]
        %v3083 = vmul.f32 %v3081, %v1340
        %v3084 = vmul.f32 %v3082, %v1340
        %v3085 = vadd.f32 %v3079, %v3083
        %v3086 = vadd.f32 %v3080, %v3084
        %v3087 = vld [vmem:[%s1087 + $0x2] sm:$0xff]
        %v3088 = vld [vmem:[%s1087 + $0xa] sm:$0x3f]
        %v3089 = vmul.f32 %v3087, %v1350
        %v3090 = vmul.f32 %v3088, %v1350
        %v3091 = vadd.f32 %v3085, %v3089
        %v3092 = vadd.f32 %v3086, %v3090
        %v3093 = vld [vmem:[%s1087 + $0x3] sm:$0xff]
        %v3094 = vld [vmem:[%s1087 + $0xb] sm:$0x3f]
        %v3095 = vmul.f32 %v3093, %v1360
        %v3096 = vmul.f32 %v3094, %v1360
        %v3097 = vadd.f32 %v3091, %v3095
        %v3098 = vadd.f32 %v3092, %v3096
        %v3099 = vld [vmem:[%s1087 + $0x4] sm:$0xff]
        %v3100 = vld [vmem:[%s1087 + $0xc] sm:$0x3f]
        %v3101 = vmul.f32 %v3099, %v1370
        %v3102 = vmul.f32 %v3100, %v1370
        %v3103 = vadd.f32 %v3097, %v3101
        %v3104 = vadd.f32 %v3098, %v3102
        %s3105 = scalar_lea.vmem %s448, 160 [#allocation6]
        %3106 = vst [vmem:[%s3105] sm:$0xff] %v3103
        %3107 = vst [vmem:[%s3105 + $0x8] sm:$0x3f] %v3104
        %v3108 = vsel %vm1377, %v3104, 0.0
        %v3109 = vadd.f32 %v3103, %v3108
        %v3110 = vrot.slane %v3109, 4
        %v3111 = vadd.f32 %v3109, %v3110
        %v3112 = vrot.slane %v3111, 2
        %v3113 = vadd.f32 %v3111, %v3112
        %v3114 = vrot.slane %v3113, 1
        %v3115 = vadd.f32 %v3113, %v3114
        %v3116 = vadd.f32 %v2943, %v3115
        %v3117 = vmul.f32 %v3103, %v3103
        %v3118 = vmul.f32 %v3104, %v3104
        %v3119 = vsel %vm1377, %v3118, 0.0
        %v3120 = vadd.f32 %v3117, %v3119
        %v3121 = vrot.slane %v3120, 4
        %v3122 = vadd.f32 %v3120, %v3121
        %v3123 = vrot.slane %v3122, 2
        %v3124 = vadd.f32 %v3122, %v3123
        %v3125 = vrot.slane %v3124, 1
        %v3126 = vadd.f32 %v3124, %v3125
        %v3127 = vadd.f32 %v2954, %v3126
        %v3128 = vld [vmem:[%s1072] sm:$0xff]
        %v3129 = vld [vmem:[%s1072 + $0x8] sm:$0x3f]
        %v3130 = vmul.f32 %v3128, %v1129
        %v3131 = vmul.f32 %v3129, %v1129
        %v3132 = vadd.f32 %v3130, 0.0
        %v3133 = vadd.f32 %v3131, 0.0
        %v3134 = vld [vmem:[%s1072 + $0x1] sm:$0xff]
        %v3135 = vld [vmem:[%s1072 + $0x9] sm:$0x3f]
        %v3136 = vmul.f32 %v3134, %v1139
        %v3137 = vmul.f32 %v3135, %v1139
        %v3138 = vadd.f32 %v3132, %v3136
        %v3139 = vadd.f32 %v3133, %v3137
        %v3140 = vld [vmem:[%s1072 + $0x2] sm:$0xff]
        %v3141 = vld [vmem:[%s1072 + $0xa] sm:$0x3f]
        %v3142 = vmul.f32 %v3140, %v1149
        %v3143 = vmul.f32 %v3141, %v1149
        %v3144 = vadd.f32 %v3138, %v3142
        %v3145 = vadd.f32 %v3139, %v3143
        %v3146 = vld [vmem:[%s1072 + $0x3] sm:$0xff]
        %v3147 = vld [vmem:[%s1072 + $0xb] sm:$0x3f]
        %v3148 = vmul.f32 %v3146, %v1159
        %v3149 = vmul.f32 %v3147, %v1159
        %v3150 = vadd.f32 %v3144, %v3148
        %v3151 = vadd.f32 %v3145, %v3149
        %v3152 = vld [vmem:[%s1072 + $0x4] sm:$0xff]
        %v3153 = vld [vmem:[%s1072 + $0xc] sm:$0x3f]
        %v3154 = vmul.f32 %v3152, %v1169
        %v3155 = vmul.f32 %v3153, %v1169
        %v3156 = vadd.f32 %v3150, %v3154
        %v3157 = vadd.f32 %v3151, %v3155
        %v3158 = vld [vmem:[%s1077] sm:$0xff]
        %v3159 = vld [vmem:[%s1077 + $0x8] sm:$0x3f]
        %v3160 = vmul.f32 %v3158, %v1180
        %v3161 = vmul.f32 %v3159, %v1180
        %v3162 = vadd.f32 %v3156, %v3160
        %v3163 = vadd.f32 %v3157, %v3161
        %v3164 = vld [vmem:[%s1077 + $0x1] sm:$0xff]
        %v3165 = vld [vmem:[%s1077 + $0x9] sm:$0x3f]
        %v3166 = vmul.f32 %v3164, %v1190
        %v3167 = vmul.f32 %v3165, %v1190
        %v3168 = vadd.f32 %v3162, %v3166
        %v3169 = vadd.f32 %v3163, %v3167
        %v3170 = vld [vmem:[%s1077 + $0x2] sm:$0xff]
        %v3171 = vld [vmem:[%s1077 + $0xa] sm:$0x3f]
        %v3172 = vmul.f32 %v3170, %v1200
        %v3173 = vmul.f32 %v3171, %v1200
        %v3174 = vadd.f32 %v3168, %v3172
        %v3175 = vadd.f32 %v3169, %v3173
        %v3176 = vld [vmem:[%s1077 + $0x3] sm:$0xff]
        %v3177 = vld [vmem:[%s1077 + $0xb] sm:$0x3f]
        %v3178 = vmul.f32 %v3176, %v1210
        %v3179 = vmul.f32 %v3177, %v1210
        %v3180 = vadd.f32 %v3174, %v3178
        %v3181 = vadd.f32 %v3175, %v3179
        %v3182 = vld [vmem:[%s1077 + $0x4] sm:$0xff]
        %v3183 = vld [vmem:[%s1077 + $0xc] sm:$0x3f]
        %v3184 = vmul.f32 %v3182, %v1220
        %v3185 = vmul.f32 %v3183, %v1220
        %v3186 = vadd.f32 %v3180, %v3184
        %v3187 = vadd.f32 %v3181, %v3185
        %v3188 = vld [vmem:[%s1082] sm:$0xff]
        %v3189 = vld [vmem:[%s1082 + $0x8] sm:$0x3f]
        %v3190 = vmul.f32 %v3188, %v1230
        %v3191 = vmul.f32 %v3189, %v1230
        %v3192 = vadd.f32 %v3186, %v3190
        %v3193 = vadd.f32 %v3187, %v3191
        %v3194 = vld [vmem:[%s1082 + $0x1] sm:$0xff]
        %v3195 = vld [vmem:[%s1082 + $0x9] sm:$0x3f]
        %v3196 = vmul.f32 %v3194, %v1240
        %v3197 = vmul.f32 %v3195, %v1240
        %v3198 = vadd.f32 %v3192, %v3196
        %v3199 = vadd.f32 %v3193, %v3197
        %v3200 = vld [vmem:[%s1082 + $0x2] sm:$0xff]
        %v3201 = vld [vmem:[%s1082 + $0xa] sm:$0x3f]
        %v3202 = vmul.f32 %v3200, %v1250
        %v3203 = vmul.f32 %v3201, %v1250
        %v3204 = vadd.f32 %v3198, %v3202
        %v3205 = vadd.f32 %v3199, %v3203
        %v3206 = vld [vmem:[%s1082 + $0x3] sm:$0xff]
        %v3207 = vld [vmem:[%s1082 + $0xb] sm:$0x3f]
        %v3208 = vmul.f32 %v3206, %v1260
        %v3209 = vmul.f32 %v3207, %v1260
        %v3210 = vadd.f32 %v3204, %v3208
        %v3211 = vadd.f32 %v3205, %v3209
        %v3212 = vld [vmem:[%s1082 + $0x4] sm:$0xff]
        %v3213 = vld [vmem:[%s1082 + $0xc] sm:$0x3f]
        %v3214 = vmul.f32 %v3212, %v1270
        %v3215 = vmul.f32 %v3213, %v1270
        %v3216 = vadd.f32 %v3210, %v3214
        %v3217 = vadd.f32 %v3211, %v3215
        %v3218 = vld [vmem:[%s1087] sm:$0xff]
        %v3219 = vld [vmem:[%s1087 + $0x8] sm:$0x3f]
        %v3220 = vmul.f32 %v3218, %v1280
        %v3221 = vmul.f32 %v3219, %v1280
        %v3222 = vadd.f32 %v3216, %v3220
        %v3223 = vadd.f32 %v3217, %v3221
        %v3224 = vld [vmem:[%s1087 + $0x1] sm:$0xff]
        %v3225 = vld [vmem:[%s1087 + $0x9] sm:$0x3f]
        %v3226 = vmul.f32 %v3224, %v1290
        %v3227 = vmul.f32 %v3225, %v1290
        %v3228 = vadd.f32 %v3222, %v3226
        %v3229 = vadd.f32 %v3223, %v3227
        %v3230 = vld [vmem:[%s1087 + $0x2] sm:$0xff]
        %v3231 = vld [vmem:[%s1087 + $0xa] sm:$0x3f]
        %v3232 = vmul.f32 %v3230, %v1300
        %v3233 = vmul.f32 %v3231, %v1300
        %v3234 = vadd.f32 %v3228, %v3232
        %v3235 = vadd.f32 %v3229, %v3233
        %v3236 = vld [vmem:[%s1087 + $0x3] sm:$0xff]
        %v3237 = vld [vmem:[%s1087 + $0xb] sm:$0x3f]
        %v3238 = vmul.f32 %v3236, %v1310
        %v3239 = vmul.f32 %v3237, %v1310
        %v3240 = vadd.f32 %v3234, %v3238
        %v3241 = vadd.f32 %v3235, %v3239
        %v3242 = vld [vmem:[%s1087 + $0x4] sm:$0xff]
        %v3243 = vld [vmem:[%s1087 + $0xc] sm:$0x3f]
        %v3244 = vmul.f32 %v3242, %v1320
        %v3245 = vmul.f32 %v3243, %v1320
        %v3246 = vadd.f32 %v3240, %v3244
        %v3247 = vadd.f32 %v3241, %v3245
        %v3248 = vld [vmem:[%s1092] sm:$0xff]
        %v3249 = vld [vmem:[%s1092 + $0x8] sm:$0x3f]
        %v3250 = vmul.f32 %v3248, %v1330
        %v3251 = vmul.f32 %v3249, %v1330
        %v3252 = vadd.f32 %v3246, %v3250
        %v3253 = vadd.f32 %v3247, %v3251
        %v3254 = vld [vmem:[%s1092 + $0x1] sm:$0xff]
        %v3255 = vld [vmem:[%s1092 + $0x9] sm:$0x3f]
        %v3256 = vmul.f32 %v3254, %v1340
        %v3257 = vmul.f32 %v3255, %v1340
        %v3258 = vadd.f32 %v3252, %v3256
        %v3259 = vadd.f32 %v3253, %v3257
        %v3260 = vld [vmem:[%s1092 + $0x2] sm:$0xff]
        %v3261 = vld [vmem:[%s1092 + $0xa] sm:$0x3f]
        %v3262 = vmul.f32 %v3260, %v1350
        %v3263 = vmul.f32 %v3261, %v1350
        %v3264 = vadd.f32 %v3258, %v3262
        %v3265 = vadd.f32 %v3259, %v3263
        %v3266 = vld [vmem:[%s1092 + $0x3] sm:$0xff]
        %v3267 = vld [vmem:[%s1092 + $0xb] sm:$0x3f]
        %v3268 = vmul.f32 %v3266, %v1360
        %v3269 = vmul.f32 %v3267, %v1360
        %v3270 = vadd.f32 %v3264, %v3268
        %v3271 = vadd.f32 %v3265, %v3269
        %v3272 = vld [vmem:[%s1092 + $0x4] sm:$0xff]
        %v3273 = vld [vmem:[%s1092 + $0xc] sm:$0x3f]
        %v3274 = vmul.f32 %v3272, %v1370
        %v3275 = vmul.f32 %v3273, %v1370
        %v3276 = vadd.f32 %v3270, %v3274
        %v3277 = vadd.f32 %v3271, %v3275
        %s3278 = scalar_lea.vmem %s448, 176 [#allocation6]
        %3279 = vst [vmem:[%s3278] sm:$0xff] %v3276
        %3280 = vst [vmem:[%s3278 + $0x8] sm:$0x3f] %v3277
        %v3281 = vsel %vm1377, %v3277, 0.0
        %v3282 = vadd.f32 %v3276, %v3281
        %v3283 = vrot.slane %v3282, 4
        %v3284 = vadd.f32 %v3282, %v3283
        %v3285 = vrot.slane %v3284, 2
        %v3286 = vadd.f32 %v3284, %v3285
        %v3287 = vrot.slane %v3286, 1
        %v3288 = vadd.f32 %v3286, %v3287
        %v3289 = vadd.f32 %v3116, %v3288
        %v3290 = vmul.f32 %v3276, %v3276
        %v3291 = vmul.f32 %v3277, %v3277
        %v3292 = vsel %vm1377, %v3291, 0.0
        %v3293 = vadd.f32 %v3290, %v3292
        %v3294 = vrot.slane %v3293, 4
        %v3295 = vadd.f32 %v3293, %v3294
        %v3296 = vrot.slane %v3295, 2
        %v3297 = vadd.f32 %v3295, %v3296
        %v3298 = vrot.slane %v3297, 1
        %v3299 = vadd.f32 %v3297, %v3298
        %v3300 = vadd.f32 %v3127, %v3299
        %v3301 = vld [vmem:[%s1077] sm:$0xff]
        %v3302 = vld [vmem:[%s1077 + $0x8] sm:$0x3f]
        %v3303 = vmul.f32 %v3301, %v1129
        %v3304 = vmul.f32 %v3302, %v1129
        %v3305 = vadd.f32 %v3303, 0.0
        %v3306 = vadd.f32 %v3304, 0.0
        %v3307 = vld [vmem:[%s1077 + $0x1] sm:$0xff]
        %v3308 = vld [vmem:[%s1077 + $0x9] sm:$0x3f]
        %v3309 = vmul.f32 %v3307, %v1139
        %v3310 = vmul.f32 %v3308, %v1139
        %v3311 = vadd.f32 %v3305, %v3309
        %v3312 = vadd.f32 %v3306, %v3310
        %v3313 = vld [vmem:[%s1077 + $0x2] sm:$0xff]
        %v3314 = vld [vmem:[%s1077 + $0xa] sm:$0x3f]
        %v3315 = vmul.f32 %v3313, %v1149
        %v3316 = vmul.f32 %v3314, %v1149
        %v3317 = vadd.f32 %v3311, %v3315
        %v3318 = vadd.f32 %v3312, %v3316
        %v3319 = vld [vmem:[%s1077 + $0x3] sm:$0xff]
        %v3320 = vld [vmem:[%s1077 + $0xb] sm:$0x3f]
        %v3321 = vmul.f32 %v3319, %v1159
        %v3322 = vmul.f32 %v3320, %v1159
        %v3323 = vadd.f32 %v3317, %v3321
        %v3324 = vadd.f32 %v3318, %v3322
        %v3325 = vld [vmem:[%s1077 + $0x4] sm:$0xff]
        %v3326 = vld [vmem:[%s1077 + $0xc] sm:$0x3f]
        %v3327 = vmul.f32 %v3325, %v1169
        %v3328 = vmul.f32 %v3326, %v1169
        %v3329 = vadd.f32 %v3323, %v3327
        %v3330 = vadd.f32 %v3324, %v3328
        %v3331 = vld [vmem:[%s1082] sm:$0xff]
        %v3332 = vld [vmem:[%s1082 + $0x8] sm:$0x3f]
        %v3333 = vmul.f32 %v3331, %v1180
        %v3334 = vmul.f32 %v3332, %v1180
        %v3335 = vadd.f32 %v3329, %v3333
        %v3336 = vadd.f32 %v3330, %v3334
        %v3337 = vld [vmem:[%s1082 + $0x1] sm:$0xff]
        %v3338 = vld [vmem:[%s1082 + $0x9] sm:$0x3f]
        %v3339 = vmul.f32 %v3337, %v1190
        %v3340 = vmul.f32 %v3338, %v1190
        %v3341 = vadd.f32 %v3335, %v3339
        %v3342 = vadd.f32 %v3336, %v3340
        %v3343 = vld [vmem:[%s1082 + $0x2] sm:$0xff]
        %v3344 = vld [vmem:[%s1082 + $0xa] sm:$0x3f]
        %v3345 = vmul.f32 %v3343, %v1200
        %v3346 = vmul.f32 %v3344, %v1200
        %v3347 = vadd.f32 %v3341, %v3345
        %v3348 = vadd.f32 %v3342, %v3346
        %v3349 = vld [vmem:[%s1082 + $0x3] sm:$0xff]
        %v3350 = vld [vmem:[%s1082 + $0xb] sm:$0x3f]
        %v3351 = vmul.f32 %v3349, %v1210
        %v3352 = vmul.f32 %v3350, %v1210
        %v3353 = vadd.f32 %v3347, %v3351
        %v3354 = vadd.f32 %v3348, %v3352
        %v3355 = vld [vmem:[%s1082 + $0x4] sm:$0xff]
        %v3356 = vld [vmem:[%s1082 + $0xc] sm:$0x3f]
        %v3357 = vmul.f32 %v3355, %v1220
        %v3358 = vmul.f32 %v3356, %v1220
        %v3359 = vadd.f32 %v3353, %v3357
        %v3360 = vadd.f32 %v3354, %v3358
        %v3361 = vld [vmem:[%s1087] sm:$0xff]
        %v3362 = vld [vmem:[%s1087 + $0x8] sm:$0x3f]
        %v3363 = vmul.f32 %v3361, %v1230
        %v3364 = vmul.f32 %v3362, %v1230
        %v3365 = vadd.f32 %v3359, %v3363
        %v3366 = vadd.f32 %v3360, %v3364
        %v3367 = vld [vmem:[%s1087 + $0x1] sm:$0xff]
        %v3368 = vld [vmem:[%s1087 + $0x9] sm:$0x3f]
        %v3369 = vmul.f32 %v3367, %v1240
        %v3370 = vmul.f32 %v3368, %v1240
        %v3371 = vadd.f32 %v3365, %v3369
        %v3372 = vadd.f32 %v3366, %v3370
        %v3373 = vld [vmem:[%s1087 + $0x2] sm:$0xff]
        %v3374 = vld [vmem:[%s1087 + $0xa] sm:$0x3f]
        %v3375 = vmul.f32 %v3373, %v1250
        %v3376 = vmul.f32 %v3374, %v1250
        %v3377 = vadd.f32 %v3371, %v3375
        %v3378 = vadd.f32 %v3372, %v3376
        %v3379 = vld [vmem:[%s1087 + $0x3] sm:$0xff]
        %v3380 = vld [vmem:[%s1087 + $0xb] sm:$0x3f]
        %v3381 = vmul.f32 %v3379, %v1260
        %v3382 = vmul.f32 %v3380, %v1260
        %v3383 = vadd.f32 %v3377, %v3381
        %v3384 = vadd.f32 %v3378, %v3382
        %v3385 = vld [vmem:[%s1087 + $0x4] sm:$0xff]
        %v3386 = vld [vmem:[%s1087 + $0xc] sm:$0x3f]
        %v3387 = vmul.f32 %v3385, %v1270
        %v3388 = vmul.f32 %v3386, %v1270
        %v3389 = vadd.f32 %v3383, %v3387
        %v3390 = vadd.f32 %v3384, %v3388
        %v3391 = vld [vmem:[%s1092] sm:$0xff]
        %v3392 = vld [vmem:[%s1092 + $0x8] sm:$0x3f]
        %v3393 = vmul.f32 %v3391, %v1280
        %v3394 = vmul.f32 %v3392, %v1280
        %v3395 = vadd.f32 %v3389, %v3393
        %v3396 = vadd.f32 %v3390, %v3394
        %v3397 = vld [vmem:[%s1092 + $0x1] sm:$0xff]
        %v3398 = vld [vmem:[%s1092 + $0x9] sm:$0x3f]
        %v3399 = vmul.f32 %v3397, %v1290
        %v3400 = vmul.f32 %v3398, %v1290
        %v3401 = vadd.f32 %v3395, %v3399
        %v3402 = vadd.f32 %v3396, %v3400
        %v3403 = vld [vmem:[%s1092 + $0x2] sm:$0xff]
        %v3404 = vld [vmem:[%s1092 + $0xa] sm:$0x3f]
        %v3405 = vmul.f32 %v3403, %v1300
        %v3406 = vmul.f32 %v3404, %v1300
        %v3407 = vadd.f32 %v3401, %v3405
        %v3408 = vadd.f32 %v3402, %v3406
        %v3409 = vld [vmem:[%s1092 + $0x3] sm:$0xff]
        %v3410 = vld [vmem:[%s1092 + $0xb] sm:$0x3f]
        %v3411 = vmul.f32 %v3409, %v1310
        %v3412 = vmul.f32 %v3410, %v1310
        %v3413 = vadd.f32 %v3407, %v3411
        %v3414 = vadd.f32 %v3408, %v3412
        %v3415 = vld [vmem:[%s1092 + $0x4] sm:$0xff]
        %v3416 = vld [vmem:[%s1092 + $0xc] sm:$0x3f]
        %v3417 = vmul.f32 %v3415, %v1320
        %v3418 = vmul.f32 %v3416, %v1320
        %v3419 = vadd.f32 %v3413, %v3417
        %v3420 = vadd.f32 %v3414, %v3418
        %s3421 = scalar_lea.vmem [#allocation2], 384
        %v3422 = vld [vmem:[%s3421] sm:$0xff]
        %v3423 = vld [vmem:[%s3421 + $0x8] sm:$0x3f]
        %v3424 = vmul.f32 %v3422, %v1330
        %v3425 = vmul.f32 %v3423, %v1330
        %v3426 = vadd.f32 %v3419, %v3424
        %v3427 = vadd.f32 %v3420, %v3425
        %v3428 = vld [vmem:[%s3421 + $0x1] sm:$0xff]
        %v3429 = vld [vmem:[%s3421 + $0x9] sm:$0x3f]
        %v3430 = vmul.f32 %v3428, %v1340
        %v3431 = vmul.f32 %v3429, %v1340
        %v3432 = vadd.f32 %v3426, %v3430
        %v3433 = vadd.f32 %v3427, %v3431
        %v3434 = vld [vmem:[%s3421 + $0x2] sm:$0xff]
        %v3435 = vld [vmem:[%s3421 + $0xa] sm:$0x3f]
        %v3436 = vmul.f32 %v3434, %v1350
        %v3437 = vmul.f32 %v3435, %v1350
        %v3438 = vadd.f32 %v3432, %v3436
        %v3439 = vadd.f32 %v3433, %v3437
        %v3440 = vld [vmem:[%s3421 + $0x3] sm:$0xff]
        %v3441 = vld [vmem:[%s3421 + $0xb] sm:$0x3f]
        %v3442 = vmul.f32 %v3440, %v1360
        %v3443 = vmul.f32 %v3441, %v1360
        %v3444 = vadd.f32 %v3438, %v3442
        %v3445 = vadd.f32 %v3439, %v3443
        %v3446 = vld [vmem:[%s3421 + $0x4] sm:$0xff]
        %v3447 = vld [vmem:[%s3421 + $0xc] sm:$0x3f]
        %v3448 = vmul.f32 %v3446, %v1370
        %v3449 = vmul.f32 %v3447, %v1370
        %v3450 = vadd.f32 %v3444, %v3448
        %v3451 = vadd.f32 %v3445, %v3449
        %s3452 = scalar_lea.vmem %s448, 192 [#allocation6]
        %3453 = vst [vmem:[%s3452] sm:$0xff] %v3450
        %3454 = vst [vmem:[%s3452 + $0x8] sm:$0x3f] %v3451
        %v3455 = vsel %vm1377, %v3451, 0.0
        %v3456 = vadd.f32 %v3450, %v3455
        %v3457 = vrot.slane %v3456, 4
        %v3458 = vadd.f32 %v3456, %v3457
        %v3459 = vrot.slane %v3458, 2
        %v3460 = vadd.f32 %v3458, %v3459
        %v3461 = vrot.slane %v3460, 1
        %v3462 = vadd.f32 %v3460, %v3461
        %v3463 = vadd.f32 %v3289, %v3462
        %v3464 = vmul.f32 %v3450, %v3450
        %v3465 = vmul.f32 %v3451, %v3451
        %v3466 = vsel %vm1377, %v3465, 0.0
        %v3467 = vadd.f32 %v3464, %v3466
        %v3468 = vrot.slane %v3467, 4
        %v3469 = vadd.f32 %v3467, %v3468
        %v3470 = vrot.slane %v3469, 2
        %v3471 = vadd.f32 %v3469, %v3470
        %v3472 = vrot.slane %v3471, 1
        %v3473 = vadd.f32 %v3471, %v3472
        %v3474 = vadd.f32 %v3300, %v3473
        %v3475 = vld [vmem:[%s1082] sm:$0xff]
        %v3476 = vld [vmem:[%s1082 + $0x8] sm:$0x3f]
        %v3477 = vmul.f32 %v3475, %v1129
        %v3478 = vmul.f32 %v3476, %v1129
        %v3479 = vadd.f32 %v3477, 0.0
        %v3480 = vadd.f32 %v3478, 0.0
        %v3481 = vld [vmem:[%s1082 + $0x1] sm:$0xff]
        %v3482 = vld [vmem:[%s1082 + $0x9] sm:$0x3f]
        %v3483 = vmul.f32 %v3481, %v1139
        %v3484 = vmul.f32 %v3482, %v1139
        %v3485 = vadd.f32 %v3479, %v3483
        %v3486 = vadd.f32 %v3480, %v3484
        %v3487 = vld [vmem:[%s1082 + $0x2] sm:$0xff]
        %v3488 = vld [vmem:[%s1082 + $0xa] sm:$0x3f]
        %v3489 = vmul.f32 %v3487, %v1149
        %v3490 = vmul.f32 %v3488, %v1149
        %v3491 = vadd.f32 %v3485, %v3489
        %v3492 = vadd.f32 %v3486, %v3490
        %v3493 = vld [vmem:[%s1082 + $0x3] sm:$0xff]
        %v3494 = vld [vmem:[%s1082 + $0xb] sm:$0x3f]
        %v3495 = vmul.f32 %v3493, %v1159
        %v3496 = vmul.f32 %v3494, %v1159
        %v3497 = vadd.f32 %v3491, %v3495
        %v3498 = vadd.f32 %v3492, %v3496
        %v3499 = vld [vmem:[%s1082 + $0x4] sm:$0xff]
        %v3500 = vld [vmem:[%s1082 + $0xc] sm:$0x3f]
        %v3501 = vmul.f32 %v3499, %v1169
        %v3502 = vmul.f32 %v3500, %v1169
        %v3503 = vadd.f32 %v3497, %v3501
        %v3504 = vadd.f32 %v3498, %v3502
        %v3505 = vld [vmem:[%s1087] sm:$0xff]
        %v3506 = vld [vmem:[%s1087 + $0x8] sm:$0x3f]
        %v3507 = vmul.f32 %v3505, %v1180
        %v3508 = vmul.f32 %v3506, %v1180
        %v3509 = vadd.f32 %v3503, %v3507
        %v3510 = vadd.f32 %v3504, %v3508
        %v3511 = vld [vmem:[%s1087 + $0x1] sm:$0xff]
        %v3512 = vld [vmem:[%s1087 + $0x9] sm:$0x3f]
        %v3513 = vmul.f32 %v3511, %v1190
        %v3514 = vmul.f32 %v3512, %v1190
        %v3515 = vadd.f32 %v3509, %v3513
        %v3516 = vadd.f32 %v3510, %v3514
        %v3517 = vld [vmem:[%s1087 + $0x2] sm:$0xff]
        %v3518 = vld [vmem:[%s1087 + $0xa] sm:$0x3f]
        %v3519 = vmul.f32 %v3517, %v1200
        %v3520 = vmul.f32 %v3518, %v1200
        %v3521 = vadd.f32 %v3515, %v3519
        %v3522 = vadd.f32 %v3516, %v3520
        %v3523 = vld [vmem:[%s1087 + $0x3] sm:$0xff]
        %v3524 = vld [vmem:[%s1087 + $0xb] sm:$0x3f]
        %v3525 = vmul.f32 %v3523, %v1210
        %v3526 = vmul.f32 %v3524, %v1210
        %v3527 = vadd.f32 %v3521, %v3525
        %v3528 = vadd.f32 %v3522, %v3526
        %v3529 = vld [vmem:[%s1087 + $0x4] sm:$0xff]
        %v3530 = vld [vmem:[%s1087 + $0xc] sm:$0x3f]
        %v3531 = vmul.f32 %v3529, %v1220
        %v3532 = vmul.f32 %v3530, %v1220
        %v3533 = vadd.f32 %v3527, %v3531
        %v3534 = vadd.f32 %v3528, %v3532
        %v3535 = vld [vmem:[%s1092] sm:$0xff]
        %v3536 = vld [vmem:[%s1092 + $0x8] sm:$0x3f]
        %v3537 = vmul.f32 %v3535, %v1230
        %v3538 = vmul.f32 %v3536, %v1230
        %v3539 = vadd.f32 %v3533, %v3537
        %v3540 = vadd.f32 %v3534, %v3538
        %v3541 = vld [vmem:[%s1092 + $0x1] sm:$0xff]
        %v3542 = vld [vmem:[%s1092 + $0x9] sm:$0x3f]
        %v3543 = vmul.f32 %v3541, %v1240
        %v3544 = vmul.f32 %v3542, %v1240
        %v3545 = vadd.f32 %v3539, %v3543
        %v3546 = vadd.f32 %v3540, %v3544
        %v3547 = vld [vmem:[%s1092 + $0x2] sm:$0xff]
        %v3548 = vld [vmem:[%s1092 + $0xa] sm:$0x3f]
        %v3549 = vmul.f32 %v3547, %v1250
        %v3550 = vmul.f32 %v3548, %v1250
        %v3551 = vadd.f32 %v3545, %v3549
        %v3552 = vadd.f32 %v3546, %v3550
        %v3553 = vld [vmem:[%s1092 + $0x3] sm:$0xff]
        %v3554 = vld [vmem:[%s1092 + $0xb] sm:$0x3f]
        %v3555 = vmul.f32 %v3553, %v1260
        %v3556 = vmul.f32 %v3554, %v1260
        %v3557 = vadd.f32 %v3551, %v3555
        %v3558 = vadd.f32 %v3552, %v3556
        %v3559 = vld [vmem:[%s1092 + $0x4] sm:$0xff]
        %v3560 = vld [vmem:[%s1092 + $0xc] sm:$0x3f]
        %v3561 = vmul.f32 %v3559, %v1270
        %v3562 = vmul.f32 %v3560, %v1270
        %v3563 = vadd.f32 %v3557, %v3561
        %v3564 = vadd.f32 %v3558, %v3562
        %v3565 = vld [vmem:[%s3421] sm:$0xff]
        %v3566 = vld [vmem:[%s3421 + $0x8] sm:$0x3f]
        %v3567 = vmul.f32 %v3565, %v1280
        %v3568 = vmul.f32 %v3566, %v1280
        %v3569 = vadd.f32 %v3563, %v3567
        %v3570 = vadd.f32 %v3564, %v3568
        %v3571 = vld [vmem:[%s3421 + $0x1] sm:$0xff]
        %v3572 = vld [vmem:[%s3421 + $0x9] sm:$0x3f]
        %v3573 = vmul.f32 %v3571, %v1290
        %v3574 = vmul.f32 %v3572, %v1290
        %v3575 = vadd.f32 %v3569, %v3573
        %v3576 = vadd.f32 %v3570, %v3574
        %v3577 = vld [vmem:[%s3421 + $0x2] sm:$0xff]
        %v3578 = vld [vmem:[%s3421 + $0xa] sm:$0x3f]
        %v3579 = vmul.f32 %v3577, %v1300
        %v3580 = vmul.f32 %v3578, %v1300
        %v3581 = vadd.f32 %v3575, %v3579
        %v3582 = vadd.f32 %v3576, %v3580
        %v3583 = vld [vmem:[%s3421 + $0x3] sm:$0xff]
        %v3584 = vld [vmem:[%s3421 + $0xb] sm:$0x3f]
        %v3585 = vmul.f32 %v3583, %v1310
        %v3586 = vmul.f32 %v3584, %v1310
        %v3587 = vadd.f32 %v3581, %v3585
        %v3588 = vadd.f32 %v3582, %v3586
        %v3589 = vld [vmem:[%s3421 + $0x4] sm:$0xff]
        %v3590 = vld [vmem:[%s3421 + $0xc] sm:$0x3f]
        %v3591 = vmul.f32 %v3589, %v1320
        %v3592 = vmul.f32 %v3590, %v1320
        %v3593 = vadd.f32 %v3587, %v3591
        %v3594 = vadd.f32 %v3588, %v3592
        %s3595 = scalar_lea.vmem [#allocation2], 408
        %v3596 = vld [vmem:[%s3595] sm:$0xff]
        %v3597 = vld [vmem:[%s3595 + $0x8] sm:$0x3f]
        %v3598 = vmul.f32 %v3596, %v1330
        %v3599 = vmul.f32 %v3597, %v1330
        %v3600 = vadd.f32 %v3593, %v3598
        %v3601 = vadd.f32 %v3594, %v3599
        %v3602 = vld [vmem:[%s3595 + $0x1] sm:$0xff]
        %v3603 = vld [vmem:[%s3595 + $0x9] sm:$0x3f]
        %v3604 = vmul.f32 %v3602, %v1340
        %v3605 = vmul.f32 %v3603, %v1340
        %v3606 = vadd.f32 %v3600, %v3604
        %v3607 = vadd.f32 %v3601, %v3605
        %v3608 = vld [vmem:[%s3595 + $0x2] sm:$0xff]
        %v3609 = vld [vmem:[%s3595 + $0xa] sm:$0x3f]
        %v3610 = vmul.f32 %v3608, %v1350
        %v3611 = vmul.f32 %v3609, %v1350
        %v3612 = vadd.f32 %v3606, %v3610
        %v3613 = vadd.f32 %v3607, %v3611
        %v3614 = vld [vmem:[%s3595 + $0x3] sm:$0xff]
        %v3615 = vld [vmem:[%s3595 + $0xb] sm:$0x3f]
        %v3616 = vmul.f32 %v3614, %v1360
        %v3617 = vmul.f32 %v3615, %v1360
        %v3618 = vadd.f32 %v3612, %v3616
        %v3619 = vadd.f32 %v3613, %v3617
        %v3620 = vld [vmem:[%s3595 + $0x4] sm:$0xff]
        %v3621 = vld [vmem:[%s3595 + $0xc] sm:$0x3f]
        %v3622 = vmul.f32 %v3620, %v1370
        %v3623 = vmul.f32 %v3621, %v1370
        %v3624 = vadd.f32 %v3618, %v3622
        %v3625 = vadd.f32 %v3619, %v3623
        %s3626 = scalar_lea.vmem %s448, 208 [#allocation6]
        %3627 = vst [vmem:[%s3626] sm:$0xff] %v3624
        %3628 = vst [vmem:[%s3626 + $0x8] sm:$0x3f] %v3625
        %v3629 = vsel %vm1377, %v3625, 0.0
        %v3630 = vadd.f32 %v3624, %v3629
        %v3631 = vrot.slane %v3630, 4
        %v3632 = vadd.f32 %v3630, %v3631
        %v3633 = vrot.slane %v3632, 2
        %v3634 = vadd.f32 %v3632, %v3633
        %v3635 = vrot.slane %v3634, 1
        %v3636 = vadd.f32 %v3634, %v3635
        %v3637 = vadd.f32 %v3463, %v3636
        %v3638 = vmul.f32 %v3624, %v3624
        %v3639 = vmul.f32 %v3625, %v3625
        %v3640 = vsel %vm1377, %v3639, 0.0
        %v3641 = vadd.f32 %v3638, %v3640
        %v3642 = vrot.slane %v3641, 4
        %v3643 = vadd.f32 %v3641, %v3642
        %v3644 = vrot.slane %v3643, 2
        %v3645 = vadd.f32 %v3643, %v3644
        %v3646 = vrot.slane %v3645, 1
        %v3647 = vadd.f32 %v3645, %v3646
        %v3648 = vadd.f32 %v3474, %v3647
        %v3649 = vmul.f32 %v3637, 0.0051020407
        %v3650 = vmul.f32 %v3648, 0.0051020407
        %v3651 = vmul.f32 %v3649, %v3649
        %v3652 = vsub.f32 %v3650, %v3651
        %v3653 = vld [vmem:[%s457] sm:$0x1]
        %v3654 = vadd.f32 %v3652, 0.001
        %v3655 = vrsqrt.pop %v3654
        %v3656 = vmul.f32 %v3653, %v3655
        %v3657 = vld [vmem:[%s460] sm:$0x1]
        %v3658 = vmul.f32 %v3649, %v3656
        %v3659 = vsub.f32 %v3657, %v3658
        %v3660 = vld [vmem:[%s448] sm:$0xff]
        %v3661 = vld [vmem:[%s448 + $0x8] sm:$0x3f]
        %v3662 = vld [vmem:[%s448 + $0x10] sm:$0xff]
        %v3663 = vld [vmem:[%s448 + $0x18] sm:$0x3f]
        %v3664 = vld [vmem:[%s448 + $0x20] sm:$0xff]
        %v3665 = vld [vmem:[%s448 + $0x28] sm:$0x3f]
        %v3666 = vld [vmem:[%s448 + $0x30] sm:$0xff]
        %v3667 = vld [vmem:[%s448 + $0x38] sm:$0x3f]
        %v3668 = vld [vmem:[%s448 + $0x40] sm:$0xff]
        %v3669 = vld [vmem:[%s448 + $0x48] sm:$0x3f]
        %v3670 = vld [vmem:[%s448 + $0x50] sm:$0xff]
        %v3671 = vld [vmem:[%s448 + $0x58] sm:$0x3f]
        %v3672 = vld [vmem:[%s448 + $0x60] sm:$0xff]
        %v3673 = vld [vmem:[%s448 + $0x68] sm:$0x3f]
        %v3674 = vld [vmem:[%s448 + $0x70] sm:$0xff]
        %v3675 = vld [vmem:[%s448 + $0x78] sm:$0x3f]
        %v3676 = vld [vmem:[%s448 + $0x80] sm:$0xff]
        %v3677 = vld [vmem:[%s448 + $0x88] sm:$0x3f]
        %v3678 = vld [vmem:[%s448 + $0x90] sm:$0xff]
        %v3679 = vld [vmem:[%s448 + $0x98] sm:$0x3f]
        %v3680 = vld [vmem:[%s448 + $0xa0] sm:$0xff]
        %v3681 = vld [vmem:[%s448 + $0xa8] sm:$0x3f]
        %v3682 = vld [vmem:[%s448 + $0xb0] sm:$0xff]
        %v3683 = vld [vmem:[%s448 + $0xb8] sm:$0x3f]
        %v3684 = vld [vmem:[%s448 + $0xc0] sm:$0xff]
        %v3685 = vld [vmem:[%s448 + $0xc8] sm:$0x3f]
        %v3686 = vld [vmem:[%s448 + $0xd0] sm:$0xff]
        %v3687 = vld [vmem:[%s448 + $0xd8] sm:$0x3f]
        %v3689 = vlaneseq
        %v3690 = vshrl.u32 %v3689, 7
        %v3691 = vsub.s32 0, %v3690
        %v3692 = vrot.slane %v3656, %v3691
        %v3694 = vmul.f32 %v3660, %v3692
        %v3695 = vmul.f32 %v3661, %v3692
        %v3696 = vmul.f32 %v3662, %v3692
        %v3697 = vmul.f32 %v3663, %v3692
        %v3698 = vmul.f32 %v3664, %v3692
        %v3699 = vmul.f32 %v3665, %v3692
        %v3700 = vmul.f32 %v3666, %v3692
        %v3701 = vmul.f32 %v3667, %v3692
        %v3702 = vmul.f32 %v3668, %v3692
        %v3703 = vmul.f32 %v3669, %v3692
        %v3704 = vmul.f32 %v3670, %v3692
        %v3705 = vmul.f32 %v3671, %v3692
        %v3706 = vmul.f32 %v3672, %v3692
        %v3707 = vmul.f32 %v3673, %v3692
        %v3708 = vmul.f32 %v3674, %v3692
        %v3709 = vmul.f32 %v3675, %v3692
        %v3710 = vmul.f32 %v3676, %v3692
        %v3711 = vmul.f32 %v3677, %v3692
        %v3712 = vmul.f32 %v3678, %v3692
        %v3713 = vmul.f32 %v3679, %v3692
        %v3714 = vmul.f32 %v3680, %v3692
        %v3715 = vmul.f32 %v3681, %v3692
        %v3716 = vmul.f32 %v3682, %v3692
        %v3717 = vmul.f32 %v3683, %v3692
        %v3718 = vmul.f32 %v3684, %v3692
        %v3719 = vmul.f32 %v3685, %v3692
        %v3720 = vmul.f32 %v3686, %v3692
        %v3721 = vmul.f32 %v3687, %v3692
        %v3723 = vlaneseq
        %v3724 = vshrl.u32 %v3723, 7
        %v3725 = vsub.s32 0, %v3724
        %v3726 = vrot.slane %v3659, %v3725
        %v3728 = vadd.f32 %v3694, %v3726
        %v3729 = vadd.f32 %v3695, %v3726
        %v3730 = vadd.f32 %v3696, %v3726
        %v3731 = vadd.f32 %v3697, %v3726
        %v3732 = vadd.f32 %v3698, %v3726
        %v3733 = vadd.f32 %v3699, %v3726
        %v3734 = vadd.f32 %v3700, %v3726
        %v3735 = vadd.f32 %v3701, %v3726
        %v3736 = vadd.f32 %v3702, %v3726
        %v3737 = vadd.f32 %v3703, %v3726
        %v3738 = vadd.f32 %v3704, %v3726
        %v3739 = vadd.f32 %v3705, %v3726
        %v3740 = vadd.f32 %v3706, %v3726
        %v3741 = vadd.f32 %v3707, %v3726
        %v3742 = vadd.f32 %v3708, %v3726
        %v3743 = vadd.f32 %v3709, %v3726
        %v3744 = vadd.f32 %v3710, %v3726
        %v3745 = vadd.f32 %v3711, %v3726
        %v3746 = vadd.f32 %v3712, %v3726
        %v3747 = vadd.f32 %v3713, %v3726
        %v3748 = vadd.f32 %v3714, %v3726
        %v3749 = vadd.f32 %v3715, %v3726
        %v3750 = vadd.f32 %v3716, %v3726
        %v3751 = vadd.f32 %v3717, %v3726
        %v3752 = vadd.f32 %v3718, %v3726
        %v3753 = vadd.f32 %v3719, %v3726
        %v3754 = vadd.f32 %v3720, %v3726
        %v3755 = vadd.f32 %v3721, %v3726
        %v3756 = vmax.f32 %v3728, 0.0
        %v3757 = vmax.f32 %v3729, 0.0
        %v3758 = vmax.f32 %v3730, 0.0
        %v3759 = vmax.f32 %v3731, 0.0
        %v3760 = vmax.f32 %v3732, 0.0
        %v3761 = vmax.f32 %v3733, 0.0
        %v3762 = vmax.f32 %v3734, 0.0
        %v3763 = vmax.f32 %v3735, 0.0
        %v3764 = vmax.f32 %v3736, 0.0
        %v3765 = vmax.f32 %v3737, 0.0
        %v3766 = vmax.f32 %v3738, 0.0
        %v3767 = vmax.f32 %v3739, 0.0
        %v3768 = vmax.f32 %v3740, 0.0
        %v3769 = vmax.f32 %v3741, 0.0
        %v3770 = vmax.f32 %v3742, 0.0
        %v3771 = vmax.f32 %v3743, 0.0
        %v3772 = vmax.f32 %v3744, 0.0
        %v3773 = vmax.f32 %v3745, 0.0
        %v3774 = vmax.f32 %v3746, 0.0
        %v3775 = vmax.f32 %v3747, 0.0
        %v3776 = vmax.f32 %v3748, 0.0
        %v3777 = vmax.f32 %v3749, 0.0
        %v3778 = vmax.f32 %v3750, 0.0
        %v3779 = vmax.f32 %v3751, 0.0
        %v3780 = vmax.f32 %v3752, 0.0
        %v3781 = vmax.f32 %v3753, 0.0
        %v3782 = vmax.f32 %v3754, 0.0
        %v3783 = vmax.f32 %v3755, 0.0
        %3784 = vst [vmem:[%s448] sm:$0xff] %v3756
        %3785 = vst [vmem:[%s448 + $0x8] sm:$0x3f] %v3757
        %3786 = vst [vmem:[%s448 + $0x10] sm:$0xff] %v3758
        %3787 = vst [vmem:[%s448 + $0x18] sm:$0x3f] %v3759
        %3788 = vst [vmem:[%s448 + $0x20] sm:$0xff] %v3760
        %3789 = vst [vmem:[%s448 + $0x28] sm:$0x3f] %v3761
        %3790 = vst [vmem:[%s448 + $0x30] sm:$0xff] %v3762
        %3791 = vst [vmem:[%s448 + $0x38] sm:$0x3f] %v3763
        %3792 = vst [vmem:[%s448 + $0x40] sm:$0xff] %v3764
        %3793 = vst [vmem:[%s448 + $0x48] sm:$0x3f] %v3765
        %3794 = vst [vmem:[%s448 + $0x50] sm:$0xff] %v3766
        %3795 = vst [vmem:[%s448 + $0x58] sm:$0x3f] %v3767
        %3796 = vst [vmem:[%s448 + $0x60] sm:$0xff] %v3768
        %3797 = vst [vmem:[%s448 + $0x68] sm:$0x3f] %v3769
        %3798 = vst [vmem:[%s448 + $0x70] sm:$0xff] %v3770
        %3799 = vst [vmem:[%s448 + $0x78] sm:$0x3f] %v3771
        %3800 = vst [vmem:[%s448 + $0x80] sm:$0xff] %v3772
        %3801 = vst [vmem:[%s448 + $0x88] sm:$0x3f] %v3773
        %3802 = vst [vmem:[%s448 + $0x90] sm:$0xff] %v3774
        %3803 = vst [vmem:[%s448 + $0x98] sm:$0x3f] %v3775
        %3804 = vst [vmem:[%s448 + $0xa0] sm:$0xff] %v3776
        %3805 = vst [vmem:[%s448 + $0xa8] sm:$0x3f] %v3777
        %3806 = vst [vmem:[%s448 + $0xb0] sm:$0xff] %v3778
        %3807 = vst [vmem:[%s448 + $0xb8] sm:$0x3f] %v3779
        %3808 = vst [vmem:[%s448 + $0xc0] sm:$0xff] %v3780
        %3809 = vst [vmem:[%s448 + $0xc8] sm:$0x3f] %v3781
        %3810 = vst [vmem:[%s448 + $0xd0] sm:$0xff] %v3782
        %3811 = vst [vmem:[%s448 + $0xd8] sm:$0x3f] %v3783
        %s3812 = sand.u32 %s203, 1
        %s3813 = sand.u32 %s203, 1
        %s3814 = smul.addr %s3813, 224
        %s3815 = scalar_lea.vmem [#allocation6], %s3814
        // Predicated region
        $region125: #{module_forward.1} parent=115 // pred_check
          %p3816 = pneg %p213
        $region126: #{module_forward.1} parent=115 // pred_check_branch
          %3818 = sbr.rel (%p3816) target = $region128
        $region127: #{module_forward.1} parent=115 // pred_region
          %s3819 = smul.addr %s18, 8
          %s3820 = scalar_lea.vmem %s7, %s3819
          // Predicated region
          $region129: #{module_forward.1} parent=127 // pred_check
            _
          $region130: #{module_forward.1} parent=127 // pred_check_branch
            %3822 = sbr.rel (0) target = $region132
          $region131: #{module_forward.1} parent=127 // pred_region
            // Predicated region
            $region133: #{module_forward.1} parent=131 // pred_check
              _
            $region134: #{module_forward.1} parent=131 // pred_check_branch
              %3824 = sbr.rel (0) target = $region136
            $region135: #{module_forward.1} parent=131 // pred_region
              // Predicated region
              $region148: #{module_forward.1} parent=135 // pred_check
                _
              $region149: #{module_forward.1} parent=135 // pred_check_branch
                %3893 = sbr.rel (0) target = $region151
              $region150: #{module_forward.1} parent=135 // pred_region
                loop: start=0, step=1, limit=1
                $region152: #{module_forward.1} parent=150 // loop_pre_header
                  _
                $region153: #{module_forward.1} parent=150 // loop_header
                  %s3895 = sphi 0, %s3899
                  %p3896 = scmp.ge.s32.totalorder %s3895, 1
                  %s3900 = sphi %s3815, %s3815
                  %s3901 = sphi %s3820, %s3820
                $region154: #{module_forward.1} parent=150 // loop_header_branch
                  %3898 = sbr.rel (%p3896) target = $region158
                $region155: #{module_forward.1} parent=150 // loop_body
                  %v3902 = vld [vmem:[%s3900] sm:$0xff]
                  %3903 = vst [vmem:[%s3901] sm:$0xff] %v3902
                  %v3904 = vld [vmem:[%s3900 + $0x8] sm:$0xff]
                  %3905 = vst [vmem:[%s3901 + $0x18] sm:$0xff] %v3904
                  %v3906 = vld [vmem:[%s3900 + $0x10] sm:$0xff]
                  %3907 = vst [vmem:[%s3901 + $0x30] sm:$0xff] %v3906
                  %v3908 = vld [vmem:[%s3900 + $0x18] sm:$0xff]
                  %3909 = vst [vmem:[%s3901 + $0x48] sm:$0xff] %v3908
                  %v3910 = vld [vmem:[%s3900 + $0x20] sm:$0xff]
                  %3911 = vst [vmem:[%s3901 + $0x60] sm:$0xff] %v3910
                  %v3912 = vld [vmem:[%s3900 + $0x28] sm:$0xff]
                  %3913 = vst [vmem:[%s3901 + $0x78] sm:$0xff] %v3912
                  %v3914 = vld [vmem:[%s3900 + $0x30] sm:$0xff]
                  %3915 = vst [vmem:[%s3901 + $0x90] sm:$0xff] %v3914
                  %v3916 = vld [vmem:[%s3900 + $0x38] sm:$0xff]
                  %3917 = vst [vmem:[%s3901 + $0xa8] sm:$0xff] %v3916
                  %v3918 = vld [vmem:[%s3900 + $0x40] sm:$0xff]
                  %3919 = vst [vmem:[%s3901 + $0xc0] sm:$0xff] %v3918
                  %v3920 = vld [vmem:[%s3900 + $0x48] sm:$0xff]
                  %3921 = vst [vmem:[%s3901 + $0xd8] sm:$0xff] %v3920
                  %v3922 = vld [vmem:[%s3900 + $0x50] sm:$0xff]
                  %3923 = vst [vmem:[%s3901 + $0xf0] sm:$0xff] %v3922
                  %v3924 = vld [vmem:[%s3900 + $0x58] sm:$0xff]
                  %3925 = vst [vmem:[%s3901 + $0x108] sm:$0xff] %v3924
                  %v3926 = vld [vmem:[%s3900 + $0x60] sm:$0xff]
                  %3927 = vst [vmem:[%s3901 + $0x120] sm:$0xff] %v3926
                  %v3928 = vld [vmem:[%s3900 + $0x68] sm:$0xff]
                  %3929 = vst [vmem:[%s3901 + $0x138] sm:$0xff] %v3928
                  %v3930 = vld [vmem:[%s3900 + $0x70] sm:$0xff]
                  %3931 = vst [vmem:[%s3901 + $0x150] sm:$0xff] %v3930
                  %v3932 = vld [vmem:[%s3900 + $0x78] sm:$0xff]
                  %3933 = vst [vmem:[%s3901 + $0x168] sm:$0xff] %v3932
                  %v3934 = vld [vmem:[%s3900 + $0x80] sm:$0xff]
                  %3935 = vst [vmem:[%s3901 + $0x180] sm:$0xff] %v3934
                  %v3936 = vld [vmem:[%s3900 + $0x88] sm:$0xff]
                  %3937 = vst [vmem:[%s3901 + $0x198] sm:$0xff] %v3936
                  %v3938 = vld [vmem:[%s3900 + $0x90] sm:$0xff]
                  %3939 = vst [vmem:[%s3901 + $0x1b0] sm:$0xff] %v3938
                  %v3940 = vld [vmem:[%s3900 + $0x98] sm:$0xff]
                  %3941 = vst [vmem:[%s3901 + $0x1c8] sm:$0xff] %v3940
                  %v3942 = vld [vmem:[%s3900 + $0xa0] sm:$0xff]
                  %3943 = vst [vmem:[%s3901 + $0x1e0] sm:$0xff] %v3942
                  %v3944 = vld [vmem:[%s3900 + $0xa8] sm:$0xff]
                  %3945 = vst [vmem:[%s3901 + $0x1f8] sm:$0xff] %v3944
                  %v3946 = vld [vmem:[%s3900 + $0xb0] sm:$0xff]
                  %3947 = vst [vmem:[%s3901 + $0x210] sm:$0xff] %v3946
                  %v3948 = vld [vmem:[%s3900 + $0xb8] sm:$0xff]
                  %3949 = vst [vmem:[%s3901 + $0x228] sm:$0xff] %v3948
                  %v3950 = vld [vmem:[%s3900 + $0xc0] sm:$0xff]
                  %3951 = vst [vmem:[%s3901 + $0x240] sm:$0xff] %v3950
                  %v3952 = vld [vmem:[%s3900 + $0xc8] sm:$0xff]
                  %3953 = vst [vmem:[%s3901 + $0x258] sm:$0xff] %v3952
                  %v3954 = vld [vmem:[%s3900 + $0xd0] sm:$0xff]
                  %3955 = vst [vmem:[%s3901 + $0x270] sm:$0xff] %v3954
                  %v3956 = vld [vmem:[%s3900 + $0xd8] sm:$0xff]
                  %3957 = vst [vmem:[%s3901 + $0x288] sm:$0xff] %v3956
                $region156: #{module_forward.1} parent=150 // loop_footer
                  %s3899 = sadd.s32 1, %s3895
                $region157: #{module_forward.1} parent=150 // loop_footer_branch
                  %3894 = sbr.rel target = $region153
                $region158: #{module_forward.1} parent=150 // loop_exit
                  _
              $region151: #{module_forward.1} parent=135 // pred_fallthru
                _
              // Predicated region
              $region159: #{module_forward.1} parent=135 // pred_check
                _
              $region160: #{module_forward.1} parent=135 // pred_check_branch
                %3959 = sbr.rel target = $region162
              $region161: #{module_forward.1} parent=135 // pred_region
                _
              $region162: #{module_forward.1} parent=135 // pred_fallthru
                _
            $region136: #{module_forward.1} parent=131 // pred_fallthru
              _
            // Predicated region
            $region137: #{module_forward.1} parent=131 // pred_check
              _
            $region138: #{module_forward.1} parent=131 // pred_check_branch
              %3826 = sbr.rel target = $region140
            $region139: #{module_forward.1} parent=131 // pred_region
              loop: start=0, step=1, limit=1
              $region141: #{module_forward.1} parent=139 // loop_pre_header
                _
              $region142: #{module_forward.1} parent=139 // loop_header
                %s3829 = sphi 0, %s3833
                %p3830 = scmp.ge.s32.totalorder %s3829, 1
                %s3834 = sphi %s3815, %s3815
                %s3835 = sphi %s3820, %s3820
              $region143: #{module_forward.1} parent=139 // loop_header_branch
                %3832 = sbr.rel (%p3830) target = $region147
              $region144: #{module_forward.1} parent=139 // loop_body
                %v3836 = vld [vmem:[%s3834] sm:$0xff]
                %3837 = vst [vmem:[%s3835] sm:$0xff] %v3836
                %v3838 = vld [vmem:[%s3834 + $0x8] sm:$0xff]
                %3839 = vst [vmem:[%s3835 + $0x18] sm:$0xff] %v3838
                %v3840 = vld [vmem:[%s3834 + $0x10] sm:$0xff]
                %3841 = vst [vmem:[%s3835 + $0x30] sm:$0xff] %v3840
                %v3842 = vld [vmem:[%s3834 + $0x18] sm:$0xff]
                %3843 = vst [vmem:[%s3835 + $0x48] sm:$0xff] %v3842
                %v3844 = vld [vmem:[%s3834 + $0x20] sm:$0xff]
                %3845 = vst [vmem:[%s3835 + $0x60] sm:$0xff] %v3844
                %v3846 = vld [vmem:[%s3834 + $0x28] sm:$0xff]
                %3847 = vst [vmem:[%s3835 + $0x78] sm:$0xff] %v3846
                %v3848 = vld [vmem:[%s3834 + $0x30] sm:$0xff]
                %3849 = vst [vmem:[%s3835 + $0x90] sm:$0xff] %v3848
                %v3850 = vld [vmem:[%s3834 + $0x38] sm:$0xff]
                %3851 = vst [vmem:[%s3835 + $0xa8] sm:$0xff] %v3850
                %v3852 = vld [vmem:[%s3834 + $0x40] sm:$0xff]
                %3853 = vst [vmem:[%s3835 + $0xc0] sm:$0xff] %v3852
                %v3854 = vld [vmem:[%s3834 + $0x48] sm:$0xff]
                %3855 = vst [vmem:[%s3835 + $0xd8] sm:$0xff] %v3854
                %v3856 = vld [vmem:[%s3834 + $0x50] sm:$0xff]
                %3857 = vst [vmem:[%s3835 + $0xf0] sm:$0xff] %v3856
                %v3858 = vld [vmem:[%s3834 + $0x58] sm:$0xff]
                %3859 = vst [vmem:[%s3835 + $0x108] sm:$0xff] %v3858
                %v3860 = vld [vmem:[%s3834 + $0x60] sm:$0xff]
                %3861 = vst [vmem:[%s3835 + $0x120] sm:$0xff] %v3860
                %v3862 = vld [vmem:[%s3834 + $0x68] sm:$0xff]
                %3863 = vst [vmem:[%s3835 + $0x138] sm:$0xff] %v3862
                %v3864 = vld [vmem:[%s3834 + $0x70] sm:$0xff]
                %3865 = vst [vmem:[%s3835 + $0x150] sm:$0xff] %v3864
                %v3866 = vld [vmem:[%s3834 + $0x78] sm:$0xff]
                %3867 = vst [vmem:[%s3835 + $0x168] sm:$0xff] %v3866
                %v3868 = vld [vmem:[%s3834 + $0x80] sm:$0xff]
                %3869 = vst [vmem:[%s3835 + $0x180] sm:$0xff] %v3868
                %v3870 = vld [vmem:[%s3834 + $0x88] sm:$0xff]
                %3871 = vst [vmem:[%s3835 + $0x198] sm:$0xff] %v3870
                %v3872 = vld [vmem:[%s3834 + $0x90] sm:$0xff]
                %3873 = vst [vmem:[%s3835 + $0x1b0] sm:$0xff] %v3872
                %v3874 = vld [vmem:[%s3834 + $0x98] sm:$0xff]
                %3875 = vst [vmem:[%s3835 + $0x1c8] sm:$0xff] %v3874
                %v3876 = vld [vmem:[%s3834 + $0xa0] sm:$0xff]
                %3877 = vst [vmem:[%s3835 + $0x1e0] sm:$0xff] %v3876
                %v3878 = vld [vmem:[%s3834 + $0xa8] sm:$0xff]
                %3879 = vst [vmem:[%s3835 + $0x1f8] sm:$0xff] %v3878
                %v3880 = vld [vmem:[%s3834 + $0xb0] sm:$0xff]
                %3881 = vst [vmem:[%s3835 + $0x210] sm:$0xff] %v3880
                %v3882 = vld [vmem:[%s3834 + $0xb8] sm:$0xff]
                %3883 = vst [vmem:[%s3835 + $0x228] sm:$0xff] %v3882
                %v3884 = vld [vmem:[%s3834 + $0xc0] sm:$0xff]
                %3885 = vst [vmem:[%s3835 + $0x240] sm:$0xff] %v3884
                %v3886 = vld [vmem:[%s3834 + $0xc8] sm:$0xff]
                %3887 = vst [vmem:[%s3835 + $0x258] sm:$0xff] %v3886
                %v3888 = vld [vmem:[%s3834 + $0xd0] sm:$0xff]
                %3889 = vst [vmem:[%s3835 + $0x270] sm:$0xff] %v3888
                %v3890 = vld [vmem:[%s3834 + $0xd8] sm:$0xff]
                %3891 = vst [vmem:[%s3835 + $0x288] sm:$0xff] %v3890
              $region145: #{module_forward.1} parent=139 // loop_footer
                %s3833 = sadd.s32 1, %s3829
              $region146: #{module_forward.1} parent=139 // loop_footer_branch
                %3828 = sbr.rel target = $region142
              $region147: #{module_forward.1} parent=139 // loop_exit
                _
            $region140: #{module_forward.1} parent=131 // pred_fallthru
              _
          $region132: #{module_forward.1} parent=127 // pred_fallthru
            _
          %3960 = vnop
        $region128: #{module_forward.1} parent=115 // pred_fallthru
          _
      $region116: #{module_forward.1} parent=5 // pred_fallthru
        _
      %p3961 = scmp.le.s32.totalorder 2, %s13
      // Predicated region
      $region163: #{module_forward.1} parent=5 // pred_check
        %p3962 = pneg %p3961
      $region164: #{module_forward.1} parent=5 // pred_check_branch
        %3964 = sbr.rel (%p3962) target = $region166
      $region165: #{module_forward.1} parent=5 // pred_region
        %s3965 = ssub.s32 %s13, 2
        // Predicated region
        $region167: #{module_forward.1} parent=165 // pred_check
          %p3966 = pneg %p219
        $region168: #{module_forward.1} parent=165 // pred_check_branch
          %3968 = sbr.rel (%p3966) target = $region170
        $region169: #{module_forward.1} parent=165 // pred_region
          %s3969 = sand.u32 %s204, 1
          %s3970 = sand.u32 %s204, 1
          %s3971 = smul.addr %s3970, 224
          %s3972 = scalar_lea.vmem [#allocation6], %s3971
        $region170: #{module_forward.1} parent=165 // pred_fallthru
          _
      $region166: #{module_forward.1} parent=5 // pred_fallthru
        _
    $region6: #{module_forward.1} parent=1 // loop_footer
      %s17 = sadd.s32 1, %s13
    $region7: #{module_forward.1} parent=1 // loop_footer_branch
      %12 = sbr.rel target = $region3
    $region8: #{module_forward.1} parent=1 // loop_exit
      _

</llo_original>
